<compile_context>
chip_gen: v5e
topology: v5e:2x2
jax: 0.10.0
libtpu: 0.0.40
codegen_flags: <defaults>
</compile_context>

<pallas_src>
import functools

import numpy as np
import jax
import jax.numpy as jnp
from jax import lax
from jax.experimental import pallas as pl
from jax.experimental.pallas import tpu as pltpu

EPS = 1e-5  # PyTorch BatchNorm2d default eps


# ----------------------------------------------------------------------------
# Static per-block layout geometry
# ----------------------------------------------------------------------------
def _block_dims(H, W, cin, cout):
    Ho, Wo = H // 2, W // 2
    S = Wo + 1                      # row stride of the flattened padded layouts
    Hr = Ho + 1                     # packed row-pairs of the padded input
    Mi = Hr * S                     # valid rows of the packed input
    return dict(H=H, W=W, cin=cin, cout=cout, Ho=Ho, Wo=Wo, S=S, Hr=Hr,
                Mi=Mi,
                Mi_pad=Mi + S,      # slack rows so tap slabs never read OOB
                M=Ho * S,           # rows of the per-tap accumulators
                Tn=(Ho + 3) * S)    # rows of the padded conv1-output scratch


# ----------------------------------------------------------------------------
# Fused kernel: one grid step = one batch element through all blocks
# ----------------------------------------------------------------------------
def _net_kernel(x_ref, *refs, dims):
    n = len(dims)
    idx = 0
    w_refs = refs[idx:idx + 8 * n]; idx += 8 * n
    sel_refs = refs[idx:idx + 2 * (n - 1)]; idx += 2 * (n - 1)
    o_ref = refs[idx]; idx += 1
    t_scr = refs[idx:idx + n]; idx += n
    f_scr = refs[idx:idx + n - 1]

    for bi in range(n):
        d = dims[bi]
        cin, cout = d["cin"], d["cout"]
        Ho, Wo, S, M, Tn = d["Ho"], d["Wo"], d["S"], d["M"], d["Tn"]
        (w1p_ref, w1k2_ref, b1_ref, w2_ref, wp_ref, bp_ref,
         fc1_ref, fc2_ref) = w_refs[8 * bi:8 * bi + 8]
        t_ref = t_scr[bi]

        def read_in(p, start, size, _bi=bi):
            """(size, 2*cin) slab of this block's packed/padded input."""
            if _bi == 0:
                return x_ref[0, p, pl.ds(start, size), :]
            return f_scr[_bi - 1][p, pl.ds(start, size), :]

        # ---- conv1: 3x3 stride-2 pad-1 (BN folded into weights) + ReLU ------
        # One dot per tap, M = Ho*S rows; rows with index % S == Wo are junk.
        acc1 = jnp.zeros((M, cout), jnp.float32)
        for kh in range(3):
            p, r0 = kh & 1, (kh >> 1) * S
            acc1 = acc1 + jnp.dot(read_in(p, r0, M), w1p_ref[kh],
                                  preferred_element_type=jnp.float32)
            acc1 = acc1 + jnp.dot(read_in(p, r0 + 1, M)[:, :cin], w1k2_ref[kh],
                                  preferred_element_type=jnp.float32)

        # Valid-row mask (junk rows must become zero: they double as padding).
        ridx = lax.broadcasted_iota(jnp.int32, (M, 1), 0)
        mask = jnp.ones((M, 1), jnp.float32)
        for oh in range(Ho):
            mask = jnp.where(ridx == oh * S + Wo, 0.0, mask)

        y1 = jnp.maximum(acc1 + b1_ref[...], 0.0) * mask

        # Zero only the halo of the padded conv1-output scratch, then place the
        # whole y1 with ONE shifted bulk store: y1[oh, ow] lands at padded
        # position (oh+1, ow+1) and the masked junk rows land exactly on the
        # left-padding slots (which must be zero anyway).
        t_ref[pl.ds(0, S + 1), :] = jnp.zeros((S + 1, cout), jnp.float32)
        tail = Tn - ((Ho + 1) * S + 1)
        t_ref[pl.ds((Ho + 1) * S + 1, tail), :] = jnp.zeros((tail, cout),
                                                            jnp.float32)
        t_ref[pl.ds(S + 1, M), :] = y1

        # ---- conv2: 3x3 stride-1 pad-1 (no BN / activation): 9 tap dots -----
        acc2 = jnp.zeros((M, cout), jnp.float32)
        for kh in range(3):
            for kw in range(3):
                acc2 = acc2 + jnp.dot(t_ref[pl.ds(kh * S + kw, M), :],
                                      w2_ref[kh, kw],
                                      preferred_element_type=jnp.float32)

        # ---- SE gate: masked global average pool -> fc1 -> ReLU -> fc2 ------
        pooled = jnp.sum(acc2 * mask, axis=0, keepdims=True) * (1.0 / (Ho * Wo))
        z = jnp.maximum(jnp.dot(pooled, fc1_ref[...],
                                preferred_element_type=jnp.float32), 0.0)
        gate = jax.nn.sigmoid(jnp.dot(z, fc2_ref[...],
                                      preferred_element_type=jnp.float32))

        # ---- branch2: 1x1 stride-2 projection (+ folded BN) -----------------
        br2 = jnp.dot(read_in(1, 0, M), wp_ref[...],
                      preferred_element_type=jnp.float32) + bp_ref[...]

        out_full = jnp.maximum(acc2 * gate + br2, 0.0)          # (M, cout)

        if bi == n - 1:
            for oh in range(Ho):
                o_ref[0, oh] = out_full[oh * S:oh * S + Wo, :]
        else:
            # Repack into the next block's zero-padded, column-parity-packed,
            # row-parity-split input with 0/1 selection matmuls (MXU is idle
            # here); this also (re)writes the zero halo every step.
            f_next = f_scr[bi]
            sel_lo, sel_hi = sel_refs[2 * bi], sel_refs[2 * bi + 1]
            for p in range(2):
                lo = jnp.dot(sel_lo[p], out_full,
                             preferred_element_type=jnp.float32)
                hi = jnp.dot(sel_hi[p], out_full,
                             preferred_element_type=jnp.float32)
                f_next[p] = jnp.concatenate([lo, hi], axis=-1)


# ----------------------------------------------------------------------------
# Host-side packing: BN folding, column-pair weight packing, repack selectors
# ----------------------------------------------------------------------------
def _pack_block_weights(p, d):
    cin, cout = d["cin"], d["cout"]
    s1 = p["bn1_gamma"] * jax.lax.rsqrt(p["bn1_var"] + EPS)
    b1 = (p["bn1_beta"] - p["bn1_mean"] * s1).reshape(1, cout)
    sp = p["pbn_gamma"] * jax.lax.rsqrt(p["pbn_var"] + EPS)
    bp = (p["pbn_beta"] - p["pbn_mean"] * sp).reshape(1, cout)
    w1s = p["conv1_w"] * s1[None, None, None, :]                  # (3,3,cin,cout)
    w1_pair = jnp.concatenate([w1s[:, 0], w1s[:, 1]], axis=1)     # (3,2cin,cout)
    w1_k2 = w1s[:, 2]                                             # (3,cin,cout)
    wp = p["proj_w"][0, 0] * sp[None, :]                          # (cin,cout)
    wp_pad = jnp.concatenate([jnp.zeros_like(wp), wp], axis=0)    # (2cin,cout)
    cr = p["fc1_w"].shape[1]
    crp = max(cr, 8)                                              # layout-only pad
    fc1 = jnp.zeros((cout, crp), jnp.float32).at[:, :cr].set(p["fc1_w"])
    fc2 = jnp.zeros((crp, cout), jnp.float32).at[:cr, :].set(p["fc2_w"])
    return [w1_pair, w1_k2, b1, p["conv2_w"], wp_pad, bp, fc1, fc2]


def _repack_selectors(d, d_next):
    """0/1 matmul operands that turn a block's flattened output (row stride S,
    junk column at index Wo) into the next block's padded, column-parity-packed
    input.  Shapes: (2, Mi_pad_next, M_cur)."""
    Ho, Wo, S, M = d["Ho"], d["Wo"], d["S"], d["M"]
    Sn, Mn = d_next["S"], d_next["Mi_pad"]
    lo = np.zeros((2, Mn, M), np.float32)   # -> lanes [0:cout]       (even col)
    hi = np.zeros((2, Mn, M), np.float32)   # -> lanes [cout:2*cout]  (odd col)
    for p in range(2):
        for r in range(d_next["Hr"]):
            a = 2 * r + p                   # padded row index of next input
            if not (1 <= a <= Ho):
                continue
            for c in range(Sn):
                for dst, b in ((lo, 2 * c), (hi, 2 * c + 1)):
                    if 1 <= b <= Wo:
                        dst[p, r * Sn + c, (a - 1) * S + (b - 1)] = 1.0
    return jnp.asarray(lo), jnp.asarray(hi)


# ----------------------------------------------------------------------------
# Wrapper: single pallas_call for the whole 4-block network
# ----------------------------------------------------------------------------
def noise_analysis_forward(x, params):
    """x: NHWC float32 (B, H, W, Cin) -> (B, H/2^n, W/2^n, Cout_last)."""
    B, H, W, cin = x.shape
    n = len(params)

    dims, h, w, c = [], H, W, cin
    for p in params:
        assert h % 2 == 0 and w % 2 == 0
        cout = p["conv1_w"].shape[-1]
        dims.append(_block_dims(h, w, c, cout))
        h, w, c = h // 2, w // 2, cout
    for d in dims[:-1]:                       # repack assumes even output size
        assert d["Ho"] % 2 == 0 and d["Wo"] % 2 == 0

    # Block-1 input: pad by 1, fold column parity into channels, split row
    # parity, flatten (row, col), append one packed row of zero slack.
    d0 = dims[0]
    xp = jnp.pad(x, ((0, 0), (1, 1), (1, 1), (0, 0)))
    xr = xp.reshape(B, H + 2, d0["S"], 2 * cin)
    xr = xr.reshape(B, d0["Hr"], 2, d0["S"], 2 * cin).transpose(0, 2, 1, 3, 4)
    xr = xr.reshape(B, 2, d0["Mi"], 2 * cin)
    xr = jnp.pad(xr, ((0, 0), (0, 0), (0, d0["Mi_pad"] - d0["Mi"]), (0, 0)))

    weights, sels = [], []
    for p, d in zip(params, dims):
        weights += _pack_block_weights(p, d)
    for bi in range(n - 1):
        sels += list(_repack_selectors(dims[bi], dims[bi + 1]))

    def _const_spec(a):
        return pl.BlockSpec(a.shape, lambda b, _nd=a.ndim: (0,) * _nd)

    dl = dims[-1]
    in_specs = ([pl.BlockSpec((1, 2, d0["Mi_pad"], 2 * cin),
                              lambda b: (b, 0, 0, 0))]
                + [_const_spec(a) for a in weights]
                + [_const_spec(a) for a in sels])
    scratch = ([pltpu.VMEM((d["Tn"], d["cout"]), jnp.float32) for d in dims]
               + [pltpu.VMEM((2, d["Mi_pad"], 2 * d["cin"]), jnp.float32)
                  for d in dims[1:]])

    kernel = functools.partial(_net_kernel, dims=dims)
    return pl.pallas_call(
        kernel,
        out_shape=jax.ShapeDtypeStruct((B, dl["Ho"], dl["Wo"], dl["cout"]),
                                       jnp.float32),
        grid=(B,),
        in_specs=in_specs,
        out_specs=pl.BlockSpec((1, dl["Ho"], dl["Wo"], dl["cout"]),
                               lambda b: (b, 0, 0, 0)),
        scratch_shapes=scratch,
        compiler_params=pltpu.CompilerParams(
            dimension_semantics=("parallel",),
            vmem_limit_bytes=32 * 1024 * 1024,
        ),
    )(xr, *weights, *sels)


# ----------------------------------------------------------------------------
# Deterministic synthetic parameters (HWIO conv weights, BN in eval mode)
# ----------------------------------------------------------------------------
def init_block_params(key, cin, cout, reduction=16):
    cr = max(cout // reduction, 1)
    ks = jax.random.split(key, 13)
    p = {
        "conv1_w": jax.random.normal(ks[0], (3, 3, cin, cout)) * 0.1,
        "conv2_w": jax.random.normal(ks[1], (3, 3, cout, cout)) * 0.1,
        "proj_w": jax.random.normal(ks[2], (1, 1, cin, cout)) * 0.1,
        "fc1_w": jax.random.normal(ks[3], (cout, cr)) * 0.1,
        "fc2_w": jax.random.normal(ks[4], (cr, cout)) * 0.1,
        "bn1_gamma": 1.0 + 0.1 * jax.random.normal(ks[5], (cout,)),
        "bn1_beta": 0.1 * jax.random.normal(ks[6], (cout,)),
        "bn1_mean": 0.05 * jax.random.normal(ks[7], (cout,)),
        "bn1_var": 1.0 + 0.1 * jnp.abs(jax.random.normal(ks[8], (cout,))),
        "pbn_gamma": 1.0 + 0.1 * jax.random.normal(ks[9], (cout,)),
        "pbn_beta": 0.1 * jax.random.normal(ks[10], (cout,)),
        "pbn_mean": 0.05 * jax.random.normal(ks[11], (cout,)),
        "pbn_var": 1.0 + 0.1 * jnp.abs(jax.random.normal(ks[12], (cout,))),
    }
    return {k: v.astype(jnp.float32) for k, v in p.items()}


# ----------------------------------------------------------------------------
# Pure-JAX reference of the same math (self-check)
# ----------------------------------------------------------------------------
def _conv2d_ref(x, w, stride, pad):
    kh, kw = w.shape[0], w.shape[1]
    if pad:
        x = jnp.pad(x, ((0, 0), (pad, pad), (pad, pad), (0, 0)))
    B, Hp, Wp, _ = x.shape
    Ho = (Hp - kh) // stride + 1
    Wo = (Wp - kw) // stride + 1
    out = jnp.zeros((B, Ho, Wo, w.shape[-1]), jnp.float32)
    for i in range(kh):
        for j in range(kw):
            patch = x[:, i:i + (Ho - 1) * stride + 1:stride,
                         j:j + (Wo - 1) * stride + 1:stride, :]
            out = out + jnp.einsum("bhwc,cd->bhwd", patch, w[i, j],
                                   precision="highest")
    return out


def block3_reference(x, p):
    s1 = p["bn1_gamma"] * jax.lax.rsqrt(p["bn1_var"] + EPS)
    b1 = p["bn1_beta"] - p["bn1_mean"] * s1
    y = jnp.maximum(_conv2d_ref(x, p["conv1_w"], 2, 1) * s1 + b1, 0.0)
    br1 = _conv2d_ref(y, p["conv2_w"], 1, 1)
    sp = p["pbn_gamma"] * jax.lax.rsqrt(p["pbn_var"] + EPS)
    bp = p["pbn_beta"] - p["pbn_mean"] * sp
    br2 = _conv2d_ref(x, p["proj_w"], 2, 0) * sp + bp
    pooled = jnp.mean(br1, axis=(1, 2))
    z = jnp.maximum(pooled @ p["fc1_w"], 0.0)
    g = jax.nn.sigmoid(z @ p["fc2_w"])
    return jnp.maximum(br1 * g[:, None, None, :] + br2, 0.0)


def noise_analysis_reference(x, params):
    for p in params:
        x = block3_reference(x, p)
    return x


if __name__ == "__main__":
    key = jax.random.PRNGKey(0)
    kx, k8, k9, k10, k11 = jax.random.split(key, 5)

    # NHWC input, equivalent to PyTorch NCHW [2, 16, 16, 16].
    x = jax.random.normal(kx, (2, 16, 16, 16), dtype=jnp.float32)

    params = [
        init_block_params(k8, 16, 16),     # L8
        init_block_params(k9, 16, 64),     # L9
        init_block_params(k10, 64, 128),   # L10
        init_block_params(k11, 128, 256),  # L11
    ]

    out = jax.block_until_ready(jax.jit(noise_analysis_forward)(x, params))
    assert out.shape == (2, 1, 1, 256), out.shape

    ref = jax.block_until_ready(noise_analysis_reference(x, params))
    max_err = float(jnp.max(jnp.abs(out - ref)))
    assert jnp.allclose(out, ref, atol=5e-3, rtol=5e-3), f"mismatch: {max_err}"

    print("KERNEL_OK")
</pallas_src>

<mosaic_0001>
module attributes {stable_mosaic.version = 11 : i64} {
  func.func @_net_kernel(%arg0: i32, %arg1: memref<1x2x90x32xf32, #tpu.memory_space<vmem>>, %arg2: memref<3x32x16xf32, #tpu.memory_space<vmem>>, %arg3: memref<3x16x16xf32, #tpu.memory_space<vmem>>, %arg4: memref<1x16xf32, #tpu.memory_space<vmem>>, %arg5: memref<3x3x16x16xf32, #tpu.memory_space<vmem>>, %arg6: memref<32x16xf32, #tpu.memory_space<vmem>>, %arg7: memref<1x16xf32, #tpu.memory_space<vmem>>, %arg8: memref<16x8xf32, #tpu.memory_space<vmem>>, %arg9: memref<8x16xf32, #tpu.memory_space<vmem>>, %arg10: memref<3x32x64xf32, #tpu.memory_space<vmem>>, %arg11: memref<3x16x64xf32, #tpu.memory_space<vmem>>, %arg12: memref<1x64xf32, #tpu.memory_space<vmem>>, %arg13: memref<3x3x64x64xf32, #tpu.memory_space<vmem>>, %arg14: memref<32x64xf32, #tpu.memory_space<vmem>>, %arg15: memref<1x64xf32, #tpu.memory_space<vmem>>, %arg16: memref<64x8xf32, #tpu.memory_space<vmem>>, %arg17: memref<8x64xf32, #tpu.memory_space<vmem>>, %arg18: memref<3x128x128xf32, #tpu.memory_space<vmem>>, %arg19: memref<3x64x128xf32, #tpu.memory_space<vmem>>, %arg20: memref<1x128xf32, #tpu.memory_space<vmem>>, %arg21: memref<3x3x128x128xf32, #tpu.memory_space<vmem>>, %arg22: memref<128x128xf32, #tpu.memory_space<vmem>>, %arg23: memref<1x128xf32, #tpu.memory_space<vmem>>, %arg24: memref<128x8xf32, #tpu.memory_space<vmem>>, %arg25: memref<8x128xf32, #tpu.memory_space<vmem>>, %arg26: memref<3x256x256xf32, #tpu.memory_space<vmem>>, %arg27: memref<3x128x256xf32, #tpu.memory_space<vmem>>, %arg28: memref<1x256xf32, #tpu.memory_space<vmem>>, %arg29: memref<3x3x256x256xf32, #tpu.memory_space<vmem>>, %arg30: memref<256x256xf32, #tpu.memory_space<vmem>>, %arg31: memref<1x256xf32, #tpu.memory_space<vmem>>, %arg32: memref<256x16xf32, #tpu.memory_space<vmem>>, %arg33: memref<16x256xf32, #tpu.memory_space<vmem>>, %arg34: memref<2x30x72xf32, #tpu.memory_space<vmem>>, %arg35: memref<2x30x72xf32, #tpu.memory_space<vmem>>, %arg36: memref<2x12x20xf32, #tpu.memory_space<vmem>>, %arg37: memref<2x12x20xf32, #tpu.memory_space<vmem>>, %arg38: memref<2x6x6xf32, #tpu.memory_space<vmem>>, %arg39: memref<2x6x6xf32, #tpu.memory_space<vmem>>, %arg40: memref<1x1x1x256xf32, #tpu.memory_space<vmem>>, %arg41: memref<99x16xf32, #tpu.memory_space<vmem>>, %arg42: memref<35x64xf32, #tpu.memory_space<vmem>>, %arg43: memref<15x128xf32, #tpu.memory_space<vmem>>, %arg44: memref<8x256xf32, #tpu.memory_space<vmem>>, %arg45: memref<2x30x32xf32, #tpu.memory_space<vmem>>, %arg46: memref<2x12x128xf32, #tpu.memory_space<vmem>>, %arg47: memref<2x6x256xf32, #tpu.memory_space<vmem>>) attributes {dimension_semantics = [#tpu.dimension_semantics<parallel>], iteration_bounds = array<i64: 2>, scalar_prefetch = 0 : i64, scratch_operands = 7 : i64, tpu.core_type = #tpu.core_type<tc>, window_params = [{transform_indices = @transform_0, window_bounds = array<i64: 1, 2, 90, 32>}, {pipeline_mode = #tpu.pipeline_mode<synchronous>, transform_indices = @transform_1, window_bounds = array<i64: 3, 32, 16>}, {pipeline_mode = #tpu.pipeline_mode<synchronous>, transform_indices = @transform_2, window_bounds = array<i64: 3, 16, 16>}, {pipeline_mode = #tpu.pipeline_mode<synchronous>, transform_indices = @transform_3, window_bounds = array<i64: 1, 16>}, {pipeline_mode = #tpu.pipeline_mode<synchronous>, transform_indices = @transform_4, window_bounds = array<i64: 3, 3, 16, 16>}, {pipeline_mode = #tpu.pipeline_mode<synchronous>, transform_indices = @transform_5, window_bounds = array<i64: 32, 16>}, {pipeline_mode = #tpu.pipeline_mode<synchronous>, transform_indices = @transform_6, window_bounds = array<i64: 1, 16>}, {pipeline_mode = #tpu.pipeline_mode<synchronous>, transform_indices = @transform_7, window_bounds = array<i64: 16, 8>}, {pipeline_mode = #tpu.pipeline_mode<synchronous>, transform_indices = @transform_8, window_bounds = array<i64: 8, 16>}, {pipeline_mode = #tpu.pipeline_mode<synchronous>, transform_indices = @transform_9, window_bounds = array<i64: 3, 32, 64>}, {pipeline_mode = #tpu.pipeline_mode<synchronous>, transform_indices = @transform_10, window_bounds = array<i64: 3, 16, 64>}, {pipeline_mode = #tpu.pipeline_mode<synchronous>, transform_indices = @transform_11, window_bounds = array<i64: 1, 64>}, {pipeline_mode = #tpu.pipeline_mode<synchronous>, transform_indices = @transform_12, window_bounds = array<i64: 3, 3, 64, 64>}, {pipeline_mode = #tpu.pipeline_mode<synchronous>, transform_indices = @transform_13, window_bounds = array<i64: 32, 64>}, {pipeline_mode = #tpu.pipeline_mode<synchronous>, transform_indices = @transform_14, window_bounds = array<i64: 1, 64>}, {pipeline_mode = #tpu.pipeline_mode<synchronous>, transform_indices = @transform_15, window_bounds = array<i64: 64, 8>}, {pipeline_mode = #tpu.pipeline_mode<synchronous>, transform_indices = @transform_16, window_bounds = array<i64: 8, 64>}, {pipeline_mode = #tpu.pipeline_mode<synchronous>, transform_indices = @transform_17, window_bounds = array<i64: 3, 128, 128>}, {pipeline_mode = #tpu.pipeline_mode<synchronous>, transform_indices = @transform_18, window_bounds = array<i64: 3, 64, 128>}, {pipeline_mode = #tpu.pipeline_mode<synchronous>, transform_indices = @transform_19, window_bounds = array<i64: 1, 128>}, {pipeline_mode = #tpu.pipeline_mode<synchronous>, transform_indices = @transform_20, window_bounds = array<i64: 3, 3, 128, 128>}, {pipeline_mode = #tpu.pipeline_mode<synchronous>, transform_indices = @transform_21, window_bounds = array<i64: 128, 128>}, {pipeline_mode = #tpu.pipeline_mode<synchronous>, transform_indices = @transform_22, window_bounds = array<i64: 1, 128>}, {pipeline_mode = #tpu.pipeline_mode<synchronous>, transform_indices = @transform_23, window_bounds = array<i64: 128, 8>}, {pipeline_mode = #tpu.pipeline_mode<synchronous>, transform_indices = @transform_24, window_bounds = array<i64: 8, 128>}, {pipeline_mode = #tpu.pipeline_mode<synchronous>, transform_indices = @transform_25, window_bounds = array<i64: 3, 256, 256>}, {pipeline_mode = #tpu.pipeline_mode<synchronous>, transform_indices = @transform_26, window_bounds = array<i64: 3, 128, 256>}, {pipeline_mode = #tpu.pipeline_mode<synchronous>, transform_indices = @transform_27, window_bounds = array<i64: 1, 256>}, {pipeline_mode = #tpu.pipeline_mode<synchronous>, transform_indices = @transform_28, window_bounds = array<i64: 3, 3, 256, 256>}, {pipeline_mode = #tpu.pipeline_mode<synchronous>, transform_indices = @transform_29, window_bounds = array<i64: 256, 256>}, {pipeline_mode = #tpu.pipeline_mode<synchronous>, transform_indices = @transform_30, window_bounds = array<i64: 1, 256>}, {pipeline_mode = #tpu.pipeline_mode<synchronous>, transform_indices = @transform_31, window_bounds = array<i64: 256, 16>}, {pipeline_mode = #tpu.pipeline_mode<synchronous>, transform_indices = @transform_32, window_bounds = array<i64: 16, 256>}, {pipeline_mode = #tpu.pipeline_mode<synchronous>, transform_indices = @transform_33, window_bounds = array<i64: 2, 30, 72>}, {pipeline_mode = #tpu.pipeline_mode<synchronous>, transform_indices = @transform_34, window_bounds = array<i64: 2, 30, 72>}, {pipeline_mode = #tpu.pipeline_mode<synchronous>, transform_indices = @transform_35, window_bounds = array<i64: 2, 12, 20>}, {pipeline_mode = #tpu.pipeline_mode<synchronous>, transform_indices = @transform_36, window_bounds = array<i64: 2, 12, 20>}, {pipeline_mode = #tpu.pipeline_mode<synchronous>, transform_indices = @transform_37, window_bounds = array<i64: 2, 6, 6>}, {pipeline_mode = #tpu.pipeline_mode<synchronous>, transform_indices = @transform_38, window_bounds = array<i64: 2, 6, 6>}, {transform_indices = @transform_39, window_bounds = array<i64: 1, 1, 1, 256>}]} {
    %cst = arith.constant 0.000000e+00 : f32
    %0 = vector.broadcast %cst : f32 to vector<72x16xf32>
    %c0 = arith.constant 0 : index
    %c0_0 = arith.constant 0 : index
    %c0_1 = arith.constant 0 : index
    %c0_2 = arith.constant 0 : index
    %1 = vector.load %arg1[%c0, %c0_0, %c0_1, %c0_2] : memref<1x2x90x32xf32, #tpu.memory_space<vmem>>, vector<1x1x72x32xf32>
    %2 = vector.shape_cast %1 : vector<1x1x72x32xf32> to vector<72x32xf32>
    %c0_3 = arith.constant 0 : index
    %c0_4 = arith.constant 0 : index
    %c0_5 = arith.constant 0 : index
    %3 = vector.load %arg2[%c0_3, %c0_4, %c0_5] : memref<3x32x16xf32, #tpu.memory_space<vmem>>, vector<1x32x16xf32>
    %4 = vector.shape_cast %3 : vector<1x32x16xf32> to vector<32x16xf32>
    %cst_6 = arith.constant dense<0.000000e+00> : vector<72x16xf32>
    %5 = tpu.matmul %2, %4, %cst_6 {dimension_numbers = #tpu.dot_dimension_numbers<[1], [0], [0], [1], [0, 0, 1, 1], [], []>} : vector<72x32xf32>, vector<32x16xf32>, vector<72x16xf32> -> vector<72x16xf32>
    %6 = arith.addf %0, %5 : vector<72x16xf32>
    %c0_7 = arith.constant 0 : index
    %c0_8 = arith.constant 0 : index
    %c1 = arith.constant 1 : index
    %c0_9 = arith.constant 0 : index
    %7 = vector.load %arg1[%c0_7, %c0_8, %c1, %c0_9] : memref<1x2x90x32xf32, #tpu.memory_space<vmem>>, vector<1x1x72x32xf32>
    %8 = vector.shape_cast %7 : vector<1x1x72x32xf32> to vector<72x32xf32>
    %9 = vector.extract_strided_slice %8 {offsets = [0, 0], sizes = [72, 16], strides = [1, 1]} : vector<72x32xf32> to vector<72x16xf32>
    %c0_10 = arith.constant 0 : index
    %c0_11 = arith.constant 0 : index
    %c0_12 = arith.constant 0 : index
    %10 = vector.load %arg3[%c0_10, %c0_11, %c0_12] : memref<3x16x16xf32, #tpu.memory_space<vmem>>, vector<1x16x16xf32>
    %11 = vector.shape_cast %10 : vector<1x16x16xf32> to vector<16x16xf32>
    %cst_13 = arith.constant dense<0.000000e+00> : vector<72x16xf32>
    %12 = tpu.matmul %9, %11, %cst_13 {dimension_numbers = #tpu.dot_dimension_numbers<[1], [0], [0], [1], [0, 0, 1, 1], [], []>} : vector<72x16xf32>, vector<16x16xf32>, vector<72x16xf32> -> vector<72x16xf32>
    %13 = arith.addf %6, %12 : vector<72x16xf32>
    %c0_14 = arith.constant 0 : index
    %c1_15 = arith.constant 1 : index
    %c0_16 = arith.constant 0 : index
    %c0_17 = arith.constant 0 : index
    %14 = vector.load %arg1[%c0_14, %c1_15, %c0_16, %c0_17] : memref<1x2x90x32xf32, #tpu.memory_space<vmem>>, vector<1x1x72x32xf32>
    %15 = vector.shape_cast %14 : vector<1x1x72x32xf32> to vector<72x32xf32>
    %c1_18 = arith.constant 1 : index
    %c0_19 = arith.constant 0 : index
    %c0_20 = arith.constant 0 : index
    %16 = vector.load %arg2[%c1_18, %c0_19, %c0_20] : memref<3x32x16xf32, #tpu.memory_space<vmem>>, vector<1x32x16xf32>
    %17 = vector.shape_cast %16 : vector<1x32x16xf32> to vector<32x16xf32>
    %cst_21 = arith.constant dense<0.000000e+00> : vector<72x16xf32>
    %18 = tpu.matmul %15, %17, %cst_21 {dimension_numbers = #tpu.dot_dimension_numbers<[1], [0], [0], [1], [0, 0, 1, 1], [], []>} : vector<72x32xf32>, vector<32x16xf32>, vector<72x16xf32> -> vector<72x16xf32>
    %19 = arith.addf %13, %18 : vector<72x16xf32>
    %c0_22 = arith.constant 0 : index
    %c1_23 = arith.constant 1 : index
    %c1_24 = arith.constant 1 : index
    %c0_25 = arith.constant 0 : index
    %20 = vector.load %arg1[%c0_22, %c1_23, %c1_24, %c0_25] : memref<1x2x90x32xf32, #tpu.memory_space<vmem>>, vector<1x1x72x32xf32>
    %21 = vector.shape_cast %20 : vector<1x1x72x32xf32> to vector<72x32xf32>
    %22 = vector.extract_strided_slice %21 {offsets = [0, 0], sizes = [72, 16], strides = [1, 1]} : vector<72x32xf32> to vector<72x16xf32>
    %c1_26 = arith.constant 1 : index
    %c0_27 = arith.constant 0 : index
    %c0_28 = arith.constant 0 : index
    %23 = vector.load %arg3[%c1_26, %c0_27, %c0_28] : memref<3x16x16xf32, #tpu.memory_space<vmem>>, vector<1x16x16xf32>
    %24 = vector.shape_cast %23 : vector<1x16x16xf32> to vector<16x16xf32>
    %cst_29 = arith.constant dense<0.000000e+00> : vector<72x16xf32>
    %25 = tpu.matmul %22, %24, %cst_29 {dimension_numbers = #tpu.dot_dimension_numbers<[1], [0], [0], [1], [0, 0, 1, 1], [], []>} : vector<72x16xf32>, vector<16x16xf32>, vector<72x16xf32> -> vector<72x16xf32>
    %26 = arith.addf %19, %25 : vector<72x16xf32>
    %c0_30 = arith.constant 0 : index
    %c0_31 = arith.constant 0 : index
    %c9 = arith.constant 9 : index
    %c0_32 = arith.constant 0 : index
    %27 = vector.load %arg1[%c0_30, %c0_31, %c9, %c0_32] : memref<1x2x90x32xf32, #tpu.memory_space<vmem>>, vector<1x1x72x32xf32>
    %28 = vector.shape_cast %27 : vector<1x1x72x32xf32> to vector<72x32xf32>
    %c2 = arith.constant 2 : index
    %c0_33 = arith.constant 0 : index
    %c0_34 = arith.constant 0 : index
    %29 = vector.load %arg2[%c2, %c0_33, %c0_34] : memref<3x32x16xf32, #tpu.memory_space<vmem>>, vector<1x32x16xf32>
    %30 = vector.shape_cast %29 : vector<1x32x16xf32> to vector<32x16xf32>
    %cst_35 = arith.constant dense<0.000000e+00> : vector<72x16xf32>
    %31 = tpu.matmul %28, %30, %cst_35 {dimension_numbers = #tpu.dot_dimension_numbers<[1], [0], [0], [1], [0, 0, 1, 1], [], []>} : vector<72x32xf32>, vector<32x16xf32>, vector<72x16xf32> -> vector<72x16xf32>
    %32 = arith.addf %26, %31 : vector<72x16xf32>
    %c0_36 = arith.constant 0 : index
    %c0_37 = arith.constant 0 : index
    %c10 = arith.constant 10 : index
    %c0_38 = arith.constant 0 : index
    %33 = vector.load %arg1[%c0_36, %c0_37, %c10, %c0_38] : memref<1x2x90x32xf32, #tpu.memory_space<vmem>>, vector<1x1x72x32xf32>
    %34 = vector.shape_cast %33 : vector<1x1x72x32xf32> to vector<72x32xf32>
    %35 = vector.extract_strided_slice %34 {offsets = [0, 0], sizes = [72, 16], strides = [1, 1]} : vector<72x32xf32> to vector<72x16xf32>
    %c2_39 = arith.constant 2 : index
    %c0_40 = arith.constant 0 : index
    %c0_41 = arith.constant 0 : index
    %36 = vector.load %arg3[%c2_39, %c0_40, %c0_41] : memref<3x16x16xf32, #tpu.memory_space<vmem>>, vector<1x16x16xf32>
    %37 = vector.shape_cast %36 : vector<1x16x16xf32> to vector<16x16xf32>
    %cst_42 = arith.constant dense<0.000000e+00> : vector<72x16xf32>
    %38 = tpu.matmul %35, %37, %cst_42 {dimension_numbers = #tpu.dot_dimension_numbers<[1], [0], [0], [1], [0, 0, 1, 1], [], []>} : vector<72x16xf32>, vector<16x16xf32>, vector<72x16xf32> -> vector<72x16xf32>
    %39 = arith.addf %32, %38 : vector<72x16xf32>
    %40 = tpu.iota {dimensions = array<i32: 0>} : vector<72x1xi32>
    %cst_43 = arith.constant 1.000000e+00 : f32
    %41 = vector.broadcast %cst_43 : f32 to vector<72x1xf32>
    %c8_i32 = arith.constant 8 : i32
    %42 = vector.broadcast %c8_i32 : i32 to vector<72x1xi32>
    %43 = arith.cmpi eq, %40, %42 : vector<72x1xi32>
    %cst_44 = arith.constant 0.000000e+00 : f32
    %44 = vector.broadcast %cst_44 : f32 to vector<72x1xf32>
    %45 = arith.select %43, %44, %41 : vector<72x1xi1>, vector<72x1xf32>
    %c17_i32 = arith.constant 17 : i32
    %46 = vector.broadcast %c17_i32 : i32 to vector<72x1xi32>
    %47 = arith.cmpi eq, %40, %46 : vector<72x1xi32>
    %cst_45 = arith.constant 0.000000e+00 : f32
    %48 = vector.broadcast %cst_45 : f32 to vector<72x1xf32>
    %49 = arith.select %47, %48, %45 : vector<72x1xi1>, vector<72x1xf32>
    %c26_i32 = arith.constant 26 : i32
    %50 = vector.broadcast %c26_i32 : i32 to vector<72x1xi32>
    %51 = arith.cmpi eq, %40, %50 : vector<72x1xi32>
    %cst_46 = arith.constant 0.000000e+00 : f32
    %52 = vector.broadcast %cst_46 : f32 to vector<72x1xf32>
    %53 = arith.select %51, %52, %49 : vector<72x1xi1>, vector<72x1xf32>
    %c35_i32 = arith.constant 35 : i32
    %54 = vector.broadcast %c35_i32 : i32 to vector<72x1xi32>
    %55 = arith.cmpi eq, %40, %54 : vector<72x1xi32>
    %cst_47 = arith.constant 0.000000e+00 : f32
    %56 = vector.broadcast %cst_47 : f32 to vector<72x1xf32>
    %57 = arith.select %55, %56, %53 : vector<72x1xi1>, vector<72x1xf32>
    %c44_i32 = arith.constant 44 : i32
    %58 = vector.broadcast %c44_i32 : i32 to vector<72x1xi32>
    %59 = arith.cmpi eq, %40, %58 : vector<72x1xi32>
    %cst_48 = arith.constant 0.000000e+00 : f32
    %60 = vector.broadcast %cst_48 : f32 to vector<72x1xf32>
    %61 = arith.select %59, %60, %57 : vector<72x1xi1>, vector<72x1xf32>
    %c53_i32 = arith.constant 53 : i32
    %62 = vector.broadcast %c53_i32 : i32 to vector<72x1xi32>
    %63 = arith.cmpi eq, %40, %62 : vector<72x1xi32>
    %cst_49 = arith.constant 0.000000e+00 : f32
    %64 = vector.broadcast %cst_49 : f32 to vector<72x1xf32>
    %65 = arith.select %63, %64, %61 : vector<72x1xi1>, vector<72x1xf32>
    %c62_i32 = arith.constant 62 : i32
    %66 = vector.broadcast %c62_i32 : i32 to vector<72x1xi32>
    %67 = arith.cmpi eq, %40, %66 : vector<72x1xi32>
    %cst_50 = arith.constant 0.000000e+00 : f32
    %68 = vector.broadcast %cst_50 : f32 to vector<72x1xf32>
    %69 = arith.select %67, %68, %65 : vector<72x1xi1>, vector<72x1xf32>
    %c71_i32 = arith.constant 71 : i32
    %70 = vector.broadcast %c71_i32 : i32 to vector<72x1xi32>
    %71 = arith.cmpi eq, %40, %70 : vector<72x1xi32>
    %cst_51 = arith.constant 0.000000e+00 : f32
    %72 = vector.broadcast %cst_51 : f32 to vector<72x1xf32>
    %73 = arith.select %71, %72, %69 : vector<72x1xi1>, vector<72x1xf32>
    %c0_52 = arith.constant 0 : index
    %c0_53 = arith.constant 0 : index
    %74 = vector.load %arg4[%c0_52, %c0_53] : memref<1x16xf32, #tpu.memory_space<vmem>>, vector<1x16xf32>
    %75 = vector.broadcast %74 : vector<1x16xf32> to vector<72x16xf32>
    %76 = arith.addf %39, %75 : vector<72x16xf32>
    %cst_54 = arith.constant 0.000000e+00 : f32
    %77 = vector.broadcast %cst_54 : f32 to vector<72x16xf32>
    %78 = arith.maximumf %76, %77 : vector<72x16xf32>
    %79 = vector.broadcast %73 : vector<72x1xf32> to vector<72x16xf32>
    %80 = arith.mulf %78, %79 : vector<72x16xf32>
    %cst_55 = arith.constant 0.000000e+00 : f32
    %81 = vector.broadcast %cst_55 : f32 to vector<10x16xf32>
    %c0_56 = arith.constant 0 : index
    %c0_57 = arith.constant 0 : index
    %82 = vector.load %arg41[%c0_56, %c0_57] : memref<99x16xf32, #tpu.memory_space<vmem>>, vector<10x16xf32>
    tpu.vector_store %arg41[%c0_56, %c0_57], %81 {strides = array<i32>} : memref<99x16xf32, #tpu.memory_space<vmem>>, vector<10x16xf32>,
    %cst_58 = arith.constant 0.000000e+00 : f32
    %83 = vector.broadcast %cst_58 : f32 to vector<17x16xf32>
    %c82 = arith.constant 82 : index
    %c0_59 = arith.constant 0 : index
    %84 = vector.load %arg41[%c82, %c0_59] : memref<99x16xf32, #tpu.memory_space<vmem>>, vector<17x16xf32>
    tpu.vector_store %arg41[%c82, %c0_59], %83 {strides = array<i32>} : memref<99x16xf32, #tpu.memory_space<vmem>>, vector<17x16xf32>,
    %c10_60 = arith.constant 10 : index
    %c0_61 = arith.constant 0 : index
    %85 = vector.load %arg41[%c10_60, %c0_61] : memref<99x16xf32, #tpu.memory_space<vmem>>, vector<72x16xf32>
    tpu.vector_store %arg41[%c10_60, %c0_61], %80 {strides = array<i32>} : memref<99x16xf32, #tpu.memory_space<vmem>>, vector<72x16xf32>,
    %cst_62 = arith.constant 0.000000e+00 : f32
    %86 = vector.broadcast %cst_62 : f32 to vector<72x16xf32>
    %c0_63 = arith.constant 0 : index
    %c0_64 = arith.constant 0 : index
    %87 = vector.load %arg41[%c0_63, %c0_64] : memref<99x16xf32, #tpu.memory_space<vmem>>, vector<72x16xf32>
    %c0_65 = arith.constant 0 : index
    %c0_66 = arith.constant 0 : index
    %c0_67 = arith.constant 0 : index
    %c0_68 = arith.constant 0 : index
    %88 = vector.load %arg5[%c0_65, %c0_66, %c0_67, %c0_68] : memref<3x3x16x16xf32, #tpu.memory_space<vmem>>, vector<1x1x16x16xf32>
    %89 = vector.shape_cast %88 : vector<1x1x16x16xf32> to vector<16x16xf32>
    %cst_69 = arith.constant dense<0.000000e+00> : vector<72x16xf32>
    %90 = tpu.matmul %87, %89, %cst_69 {dimension_numbers = #tpu.dot_dimension_numbers<[1], [0], [0], [1], [0, 0, 1, 1], [], []>} : vector<72x16xf32>, vector<16x16xf32>, vector<72x16xf32> -> vector<72x16xf32>
    %91 = arith.addf %86, %90 : vector<72x16xf32>
    %c1_70 = arith.constant 1 : index
    %c0_71 = arith.constant 0 : index
    %92 = vector.load %arg41[%c1_70, %c0_71] : memref<99x16xf32, #tpu.memory_space<vmem>>, vector<72x16xf32>
    %c0_72 = arith.constant 0 : index
    %c1_73 = arith.constant 1 : index
    %c0_74 = arith.constant 0 : index
    %c0_75 = arith.constant 0 : index
    %93 = vector.load %arg5[%c0_72, %c1_73, %c0_74, %c0_75] : memref<3x3x16x16xf32, #tpu.memory_space<vmem>>, vector<1x1x16x16xf32>
    %94 = vector.shape_cast %93 : vector<1x1x16x16xf32> to vector<16x16xf32>
    %cst_76 = arith.constant dense<0.000000e+00> : vector<72x16xf32>
    %95 = tpu.matmul %92, %94, %cst_76 {dimension_numbers = #tpu.dot_dimension_numbers<[1], [0], [0], [1], [0, 0, 1, 1], [], []>} : vector<72x16xf32>, vector<16x16xf32>, vector<72x16xf32> -> vector<72x16xf32>
    %96 = arith.addf %91, %95 : vector<72x16xf32>
    %c2_77 = arith.constant 2 : index
    %c0_78 = arith.constant 0 : index
    %97 = vector.load %arg41[%c2_77, %c0_78] : memref<99x16xf32, #tpu.memory_space<vmem>>, vector<72x16xf32>
    %c0_79 = arith.constant 0 : index
    %c2_80 = arith.constant 2 : index
    %c0_81 = arith.constant 0 : index
    %c0_82 = arith.constant 0 : index
    %98 = vector.load %arg5[%c0_79, %c2_80, %c0_81, %c0_82] : memref<3x3x16x16xf32, #tpu.memory_space<vmem>>, vector<1x1x16x16xf32>
    %99 = vector.shape_cast %98 : vector<1x1x16x16xf32> to vector<16x16xf32>
    %cst_83 = arith.constant dense<0.000000e+00> : vector<72x16xf32>
    %100 = tpu.matmul %97, %99, %cst_83 {dimension_numbers = #tpu.dot_dimension_numbers<[1], [0], [0], [1], [0, 0, 1, 1], [], []>} : vector<72x16xf32>, vector<16x16xf32>, vector<72x16xf32> -> vector<72x16xf32>
    %101 = arith.addf %96, %100 : vector<72x16xf32>
    %c9_84 = arith.constant 9 : index
    %c0_85 = arith.constant 0 : index
    %102 = vector.load %arg41[%c9_84, %c0_85] : memref<99x16xf32, #tpu.memory_space<vmem>>, vector<72x16xf32>
    %c1_86 = arith.constant 1 : index
    %c0_87 = arith.constant 0 : index
    %c0_88 = arith.constant 0 : index
    %c0_89 = arith.constant 0 : index
    %103 = vector.load %arg5[%c1_86, %c0_87, %c0_88, %c0_89] : memref<3x3x16x16xf32, #tpu.memory_space<vmem>>, vector<1x1x16x16xf32>
    %104 = vector.shape_cast %103 : vector<1x1x16x16xf32> to vector<16x16xf32>
    %cst_90 = arith.constant dense<0.000000e+00> : vector<72x16xf32>
    %105 = tpu.matmul %102, %104, %cst_90 {dimension_numbers = #tpu.dot_dimension_numbers<[1], [0], [0], [1], [0, 0, 1, 1], [], []>} : vector<72x16xf32>, vector<16x16xf32>, vector<72x16xf32> -> vector<72x16xf32>
    %106 = arith.addf %101, %105 : vector<72x16xf32>
    %c10_91 = arith.constant 10 : index
    %c0_92 = arith.constant 0 : index
    %107 = vector.load %arg41[%c10_91, %c0_92] : memref<99x16xf32, #tpu.memory_space<vmem>>, vector<72x16xf32>
    %c1_93 = arith.constant 1 : index
    %c1_94 = arith.constant 1 : index
    %c0_95 = arith.constant 0 : index
    %c0_96 = arith.constant 0 : index
    %108 = vector.load %arg5[%c1_93, %c1_94, %c0_95, %c0_96] : memref<3x3x16x16xf32, #tpu.memory_space<vmem>>, vector<1x1x16x16xf32>
    %109 = vector.shape_cast %108 : vector<1x1x16x16xf32> to vector<16x16xf32>
    %cst_97 = arith.constant dense<0.000000e+00> : vector<72x16xf32>
    %110 = tpu.matmul %107, %109, %cst_97 {dimension_numbers = #tpu.dot_dimension_numbers<[1], [0], [0], [1], [0, 0, 1, 1], [], []>} : vector<72x16xf32>, vector<16x16xf32>, vector<72x16xf32> -> vector<72x16xf32>
    %111 = arith.addf %106, %110 : vector<72x16xf32>
    %c11 = arith.constant 11 : index
    %c0_98 = arith.constant 0 : index
    %112 = vector.load %arg41[%c11, %c0_98] : memref<99x16xf32, #tpu.memory_space<vmem>>, vector<72x16xf32>
    %c1_99 = arith.constant 1 : index
    %c2_100 = arith.constant 2 : index
    %c0_101 = arith.constant 0 : index
    %c0_102 = arith.constant 0 : index
    %113 = vector.load %arg5[%c1_99, %c2_100, %c0_101, %c0_102] : memref<3x3x16x16xf32, #tpu.memory_space<vmem>>, vector<1x1x16x16xf32>
    %114 = vector.shape_cast %113 : vector<1x1x16x16xf32> to vector<16x16xf32>
    %cst_103 = arith.constant dense<0.000000e+00> : vector<72x16xf32>
    %115 = tpu.matmul %112, %114, %cst_103 {dimension_numbers = #tpu.dot_dimension_numbers<[1], [0], [0], [1], [0, 0, 1, 1], [], []>} : vector<72x16xf32>, vector<16x16xf32>, vector<72x16xf32> -> vector<72x16xf32>
    %116 = arith.addf %111, %115 : vector<72x16xf32>
    %c18 = arith.constant 18 : index
    %c0_104 = arith.constant 0 : index
    %117 = vector.load %arg41[%c18, %c0_104] : memref<99x16xf32, #tpu.memory_space<vmem>>, vector<72x16xf32>
    %c2_105 = arith.constant 2 : index
    %c0_106 = arith.constant 0 : index
    %c0_107 = arith.constant 0 : index
    %c0_108 = arith.constant 0 : index
    %118 = vector.load %arg5[%c2_105, %c0_106, %c0_107, %c0_108] : memref<3x3x16x16xf32, #tpu.memory_space<vmem>>, vector<1x1x16x16xf32>
    %119 = vector.shape_cast %118 : vector<1x1x16x16xf32> to vector<16x16xf32>
    %cst_109 = arith.constant dense<0.000000e+00> : vector<72x16xf32>
    %120 = tpu.matmul %117, %119, %cst_109 {dimension_numbers = #tpu.dot_dimension_numbers<[1], [0], [0], [1], [0, 0, 1, 1], [], []>} : vector<72x16xf32>, vector<16x16xf32>, vector<72x16xf32> -> vector<72x16xf32>
    %121 = arith.addf %116, %120 : vector<72x16xf32>
    %c19 = arith.constant 19 : index
    %c0_110 = arith.constant 0 : index
    %122 = vector.load %arg41[%c19, %c0_110] : memref<99x16xf32, #tpu.memory_space<vmem>>, vector<72x16xf32>
    %c2_111 = arith.constant 2 : index
    %c1_112 = arith.constant 1 : index
    %c0_113 = arith.constant 0 : index
    %c0_114 = arith.constant 0 : index
    %123 = vector.load %arg5[%c2_111, %c1_112, %c0_113, %c0_114] : memref<3x3x16x16xf32, #tpu.memory_space<vmem>>, vector<1x1x16x16xf32>
    %124 = vector.shape_cast %123 : vector<1x1x16x16xf32> to vector<16x16xf32>
    %cst_115 = arith.constant dense<0.000000e+00> : vector<72x16xf32>
    %125 = tpu.matmul %122, %124, %cst_115 {dimension_numbers = #tpu.dot_dimension_numbers<[1], [0], [0], [1], [0, 0, 1, 1], [], []>} : vector<72x16xf32>, vector<16x16xf32>, vector<72x16xf32> -> vector<72x16xf32>
    %126 = arith.addf %121, %125 : vector<72x16xf32>
    %c20 = arith.constant 20 : index
    %c0_116 = arith.constant 0 : index
    %127 = vector.load %arg41[%c20, %c0_116] : memref<99x16xf32, #tpu.memory_space<vmem>>, vector<72x16xf32>
    %c2_117 = arith.constant 2 : index
    %c2_118 = arith.constant 2 : index
    %c0_119 = arith.constant 0 : index
    %c0_120 = arith.constant 0 : index
    %128 = vector.load %arg5[%c2_117, %c2_118, %c0_119, %c0_120] : memref<3x3x16x16xf32, #tpu.memory_space<vmem>>, vector<1x1x16x16xf32>
    %129 = vector.shape_cast %128 : vector<1x1x16x16xf32> to vector<16x16xf32>
    %cst_121 = arith.constant dense<0.000000e+00> : vector<72x16xf32>
    %130 = tpu.matmul %127, %129, %cst_121 {dimension_numbers = #tpu.dot_dimension_numbers<[1], [0], [0], [1], [0, 0, 1, 1], [], []>} : vector<72x16xf32>, vector<16x16xf32>, vector<72x16xf32> -> vector<72x16xf32>
    %131 = arith.addf %126, %130 : vector<72x16xf32>
    %132 = vector.broadcast %73 : vector<72x1xf32> to vector<72x16xf32>
    %133 = arith.mulf %131, %132 : vector<72x16xf32>
    %cst_122 = arith.constant dense<0.000000e+00> : vector<16xf32>
    %134 = vector.multi_reduction <add>, %133, %cst_122 [0] : vector<72x16xf32> to vector<16xf32>
    %135 = vector.shape_cast %134 : vector<16xf32> to vector<1x16xf32>
    %cst_123 = arith.constant 1.562500e-02 : f32
    %136 = vector.broadcast %cst_123 : f32 to vector<1x16xf32>
    %137 = arith.mulf %135, %136 : vector<1x16xf32>
    %c0_124 = arith.constant 0 : index
    %c0_125 = arith.constant 0 : index
    %138 = vector.load %arg8[%c0_124, %c0_125] : memref<16x8xf32, #tpu.memory_space<vmem>>, vector<16x8xf32>
    %cst_126 = arith.constant dense<0.000000e+00> : vector<1x8xf32>
    %139 = tpu.matmul %137, %138, %cst_126 {dimension_numbers = #tpu.dot_dimension_numbers<[1], [0], [0], [1], [0, 0, 1, 1], [], []>} : vector<1x16xf32>, vector<16x8xf32>, vector<1x8xf32> -> vector<1x8xf32>
    %cst_127 = arith.constant 0.000000e+00 : f32
    %140 = vector.broadcast %cst_127 : f32 to vector<1x8xf32>
    %141 = arith.maximumf %139, %140 : vector<1x8xf32>
    %c0_128 = arith.constant 0 : index
    %c0_129 = arith.constant 0 : index
    %142 = vector.load %arg9[%c0_128, %c0_129] : memref<8x16xf32, #tpu.memory_space<vmem>>, vector<8x16xf32>
    %cst_130 = arith.constant dense<0.000000e+00> : vector<1x16xf32>
    %143 = tpu.matmul %141, %142, %cst_130 {dimension_numbers = #tpu.dot_dimension_numbers<[1], [0], [0], [1], [0, 0, 1, 1], [], []>} : vector<1x8xf32>, vector<8x16xf32>, vector<1x16xf32> -> vector<1x16xf32>
    %144 = arith.negf %143 : vector<1x16xf32>
    %145 = math.exp %144 : vector<1x16xf32>
    %cst_131 = arith.constant 1.000000e+00 : f32
    %146 = vector.broadcast %cst_131 : f32 to vector<1x16xf32>
    %147 = arith.addf %146, %145 : vector<1x16xf32>
    %148 = arith.divf %146, %147 : vector<1x16xf32>
    %c0_132 = arith.constant 0 : index
    %c1_133 = arith.constant 1 : index
    %c0_134 = arith.constant 0 : index
    %c0_135 = arith.constant 0 : index
    %149 = vector.load %arg1[%c0_132, %c1_133, %c0_134, %c0_135] : memref<1x2x90x32xf32, #tpu.memory_space<vmem>>, vector<1x1x72x32xf32>
    %150 = vector.shape_cast %149 : vector<1x1x72x32xf32> to vector<72x32xf32>
    %c0_136 = arith.constant 0 : index
    %c0_137 = arith.constant 0 : index
    %151 = vector.load %arg6[%c0_136, %c0_137] : memref<32x16xf32, #tpu.memory_space<vmem>>, vector<32x16xf32>
    %cst_138 = arith.constant dense<0.000000e+00> : vector<72x16xf32>
    %152 = tpu.matmul %150, %151, %cst_138 {dimension_numbers = #tpu.dot_dimension_numbers<[1], [0], [0], [1], [0, 0, 1, 1], [], []>} : vector<72x32xf32>, vector<32x16xf32>, vector<72x16xf32> -> vector<72x16xf32>
    %c0_139 = arith.constant 0 : index
    %c0_140 = arith.constant 0 : index
    %153 = vector.load %arg7[%c0_139, %c0_140] : memref<1x16xf32, #tpu.memory_space<vmem>>, vector<1x16xf32>
    %154 = vector.broadcast %153 : vector<1x16xf32> to vector<72x16xf32>
    %155 = arith.addf %152, %154 : vector<72x16xf32>
    %156 = vector.broadcast %148 : vector<1x16xf32> to vector<72x16xf32>
    %157 = arith.mulf %131, %156 : vector<72x16xf32>
    %158 = arith.addf %157, %155 : vector<72x16xf32>
    %cst_141 = arith.constant 0.000000e+00 : f32
    %159 = vector.broadcast %cst_141 : f32 to vector<72x16xf32>
    %160 = arith.maximumf %158, %159 : vector<72x16xf32>
    %c0_142 = arith.constant 0 : index
    %c0_143 = arith.constant 0 : index
    %c0_144 = arith.constant 0 : index
    %161 = vector.load %arg34[%c0_142, %c0_143, %c0_144] : memref<2x30x72xf32, #tpu.memory_space<vmem>>, vector<1x30x72xf32>
    %162 = vector.shape_cast %161 : vector<1x30x72xf32> to vector<30x72xf32>
    %cst_145 = arith.constant dense<0.000000e+00> : vector<30x16xf32>
    %163 = tpu.matmul %162, %160, %cst_145 {dimension_numbers = #tpu.dot_dimension_numbers<[1], [0], [0], [1], [0, 0, 1, 1], [], []>} : vector<30x72xf32>, vector<72x16xf32>, vector<30x16xf32> -> vector<30x16xf32>
    %c0_146 = arith.constant 0 : index
    %c0_147 = arith.constant 0 : index
    %c0_148 = arith.constant 0 : index
    %164 = vector.load %arg35[%c0_146, %c0_147, %c0_148] : memref<2x30x72xf32, #tpu.memory_space<vmem>>, vector<1x30x72xf32>
    %165 = vector.shape_cast %164 : vector<1x30x72xf32> to vector<30x72xf32>
    %cst_149 = arith.constant dense<0.000000e+00> : vector<30x16xf32>
    %166 = tpu.matmul %165, %160, %cst_149 {dimension_numbers = #tpu.dot_dimension_numbers<[1], [0], [0], [1], [0, 0, 1, 1], [], []>} : vector<30x72xf32>, vector<72x16xf32>, vector<30x16xf32> -> vector<30x16xf32>
    %167 = tpu.concatenate %163, %166 in 1 : vector<30x16xf32>, vector<30x16xf32> -> vector<30x32xf32>
    %c0_150 = arith.constant 0 : index
    %c0_151 = arith.constant 0 : index
    %c0_152 = arith.constant 0 : index
    %168 = vector.load %arg45[%c0_150, %c0_151, %c0_152] : memref<2x30x32xf32, #tpu.memory_space<vmem>>, vector<1x30x32xf32>
    %169 = vector.shape_cast %168 : vector<1x30x32xf32> to vector<30x32xf32>
    %170 = vector.shape_cast %167 : vector<30x32xf32> to vector<1x30x32xf32>
    tpu.vector_store %arg45[%c0_150, %c0_151, %c0_152], %170 {strides = array<i32>} : memref<2x30x32xf32, #tpu.memory_space<vmem>>, vector<1x30x32xf32>,
    %c1_153 = arith.constant 1 : index
    %c0_154 = arith.constant 0 : index
    %c0_155 = arith.constant 0 : index
    %171 = vector.load %arg34[%c1_153, %c0_154, %c0_155] : memref<2x30x72xf32, #tpu.memory_space<vmem>>, vector<1x30x72xf32>
    %172 = vector.shape_cast %171 : vector<1x30x72xf32> to vector<30x72xf32>
    %cst_156 = arith.constant dense<0.000000e+00> : vector<30x16xf32>
    %173 = tpu.matmul %172, %160, %cst_156 {dimension_numbers = #tpu.dot_dimension_numbers<[1], [0], [0], [1], [0, 0, 1, 1], [], []>} : vector<30x72xf32>, vector<72x16xf32>, vector<30x16xf32> -> vector<30x16xf32>
    %c1_157 = arith.constant 1 : index
    %c0_158 = arith.constant 0 : index
    %c0_159 = arith.constant 0 : index
    %174 = vector.load %arg35[%c1_157, %c0_158, %c0_159] : memref<2x30x72xf32, #tpu.memory_space<vmem>>, vector<1x30x72xf32>
    %175 = vector.shape_cast %174 : vector<1x30x72xf32> to vector<30x72xf32>
    %cst_160 = arith.constant dense<0.000000e+00> : vector<30x16xf32>
    %176 = tpu.matmul %175, %160, %cst_160 {dimension_numbers = #tpu.dot_dimension_numbers<[1], [0], [0], [1], [0, 0, 1, 1], [], []>} : vector<30x72xf32>, vector<72x16xf32>, vector<30x16xf32> -> vector<30x16xf32>
    %177 = tpu.concatenate %173, %176 in 1 : vector<30x16xf32>, vector<30x16xf32> -> vector<30x32xf32>
    %c1_161 = arith.constant 1 : index
    %c0_162 = arith.constant 0 : index
    %c0_163 = arith.constant 0 : index
    %178 = vector.load %arg45[%c1_161, %c0_162, %c0_163] : memref<2x30x32xf32, #tpu.memory_space<vmem>>, vector<1x30x32xf32>
    %179 = vector.shape_cast %178 : vector<1x30x32xf32> to vector<30x32xf32>
    %180 = vector.shape_cast %177 : vector<30x32xf32> to vector<1x30x32xf32>
    tpu.vector_store %arg45[%c1_161, %c0_162, %c0_163], %180 {strides = array<i32>} : memref<2x30x32xf32, #tpu.memory_space<vmem>>, vector<1x30x32xf32>,
    %cst_164 = arith.constant 0.000000e+00 : f32
    %181 = vector.broadcast %cst_164 : f32 to vector<20x64xf32>
    %c0_165 = arith.constant 0 : index
    %c0_166 = arith.constant 0 : index
    %c0_167 = arith.constant 0 : index
    %182 = vector.load %arg45[%c0_165, %c0_166, %c0_167] : memref<2x30x32xf32, #tpu.memory_space<vmem>>, vector<1x20x32xf32>
    %183 = vector.shape_cast %182 : vector<1x20x32xf32> to vector<20x32xf32>
    %c0_168 = arith.constant 0 : index
    %c0_169 = arith.constant 0 : index
    %c0_170 = arith.constant 0 : index
    %184 = vector.load %arg10[%c0_168, %c0_169, %c0_170] : memref<3x32x64xf32, #tpu.memory_space<vmem>>, vector<1x32x64xf32>
    %185 = vector.shape_cast %184 : vector<1x32x64xf32> to vector<32x64xf32>
    %cst_171 = arith.constant dense<0.000000e+00> : vector<20x64xf32>
    %186 = tpu.matmul %183, %185, %cst_171 {dimension_numbers = #tpu.dot_dimension_numbers<[1], [0], [0], [1], [0, 0, 1, 1], [], []>} : vector<20x32xf32>, vector<32x64xf32>, vector<20x64xf32> -> vector<20x64xf32>
    %187 = arith.addf %181, %186 : vector<20x64xf32>
    %c0_172 = arith.constant 0 : index
    %c1_173 = arith.constant 1 : index
    %c0_174 = arith.constant 0 : index
    %188 = vector.load %arg45[%c0_172, %c1_173, %c0_174] : memref<2x30x32xf32, #tpu.memory_space<vmem>>, vector<1x20x32xf32>
    %189 = vector.shape_cast %188 : vector<1x20x32xf32> to vector<20x32xf32>
    %190 = vector.extract_strided_slice %189 {offsets = [0, 0], sizes = [20, 16], strides = [1, 1]} : vector<20x32xf32> to vector<20x16xf32>
    %c0_175 = arith.constant 0 : index
    %c0_176 = arith.constant 0 : index
    %c0_177 = arith.constant 0 : index
    %191 = vector.load %arg11[%c0_175, %c0_176, %c0_177] : memref<3x16x64xf32, #tpu.memory_space<vmem>>, vector<1x16x64xf32>
    %192 = vector.shape_cast %191 : vector<1x16x64xf32> to vector<16x64xf32>
    %cst_178 = arith.constant dense<0.000000e+00> : vector<20x64xf32>
    %193 = tpu.matmul %190, %192, %cst_178 {dimension_numbers = #tpu.dot_dimension_numbers<[1], [0], [0], [1], [0, 0, 1, 1], [], []>} : vector<20x16xf32>, vector<16x64xf32>, vector<20x64xf32> -> vector<20x64xf32>
    %194 = arith.addf %187, %193 : vector<20x64xf32>
    %c1_179 = arith.constant 1 : index
    %c0_180 = arith.constant 0 : index
    %c0_181 = arith.constant 0 : index
    %195 = vector.load %arg45[%c1_179, %c0_180, %c0_181] : memref<2x30x32xf32, #tpu.memory_space<vmem>>, vector<1x20x32xf32>
    %196 = vector.shape_cast %195 : vector<1x20x32xf32> to vector<20x32xf32>
    %c1_182 = arith.constant 1 : index
    %c0_183 = arith.constant 0 : index
    %c0_184 = arith.constant 0 : index
    %197 = vector.load %arg10[%c1_182, %c0_183, %c0_184] : memref<3x32x64xf32, #tpu.memory_space<vmem>>, vector<1x32x64xf32>
    %198 = vector.shape_cast %197 : vector<1x32x64xf32> to vector<32x64xf32>
    %cst_185 = arith.constant dense<0.000000e+00> : vector<20x64xf32>
    %199 = tpu.matmul %196, %198, %cst_185 {dimension_numbers = #tpu.dot_dimension_numbers<[1], [0], [0], [1], [0, 0, 1, 1], [], []>} : vector<20x32xf32>, vector<32x64xf32>, vector<20x64xf32> -> vector<20x64xf32>
    %200 = arith.addf %194, %199 : vector<20x64xf32>
    %c1_186 = arith.constant 1 : index
    %c1_187 = arith.constant 1 : index
    %c0_188 = arith.constant 0 : index
    %201 = vector.load %arg45[%c1_186, %c1_187, %c0_188] : memref<2x30x32xf32, #tpu.memory_space<vmem>>, vector<1x20x32xf32>
    %202 = vector.shape_cast %201 : vector<1x20x32xf32> to vector<20x32xf32>
    %203 = vector.extract_strided_slice %202 {offsets = [0, 0], sizes = [20, 16], strides = [1, 1]} : vector<20x32xf32> to vector<20x16xf32>
    %c1_189 = arith.constant 1 : index
    %c0_190 = arith.constant 0 : index
    %c0_191 = arith.constant 0 : index
    %204 = vector.load %arg11[%c1_189, %c0_190, %c0_191] : memref<3x16x64xf32, #tpu.memory_space<vmem>>, vector<1x16x64xf32>
    %205 = vector.shape_cast %204 : vector<1x16x64xf32> to vector<16x64xf32>
    %cst_192 = arith.constant dense<0.000000e+00> : vector<20x64xf32>
    %206 = tpu.matmul %203, %205, %cst_192 {dimension_numbers = #tpu.dot_dimension_numbers<[1], [0], [0], [1], [0, 0, 1, 1], [], []>} : vector<20x16xf32>, vector<16x64xf32>, vector<20x64xf32> -> vector<20x64xf32>
    %207 = arith.addf %200, %206 : vector<20x64xf32>
    %c0_193 = arith.constant 0 : index
    %c5 = arith.constant 5 : index
    %c0_194 = arith.constant 0 : index
    %208 = vector.load %arg45[%c0_193, %c5, %c0_194] : memref<2x30x32xf32, #tpu.memory_space<vmem>>, vector<1x20x32xf32>
    %209 = vector.shape_cast %208 : vector<1x20x32xf32> to vector<20x32xf32>
    %c2_195 = arith.constant 2 : index
    %c0_196 = arith.constant 0 : index
    %c0_197 = arith.constant 0 : index
    %210 = vector.load %arg10[%c2_195, %c0_196, %c0_197] : memref<3x32x64xf32, #tpu.memory_space<vmem>>, vector<1x32x64xf32>
    %211 = vector.shape_cast %210 : vector<1x32x64xf32> to vector<32x64xf32>
    %cst_198 = arith.constant dense<0.000000e+00> : vector<20x64xf32>
    %212 = tpu.matmul %209, %211, %cst_198 {dimension_numbers = #tpu.dot_dimension_numbers<[1], [0], [0], [1], [0, 0, 1, 1], [], []>} : vector<20x32xf32>, vector<32x64xf32>, vector<20x64xf32> -> vector<20x64xf32>
    %213 = arith.addf %207, %212 : vector<20x64xf32>
    %c0_199 = arith.constant 0 : index
    %c6 = arith.constant 6 : index
    %c0_200 = arith.constant 0 : index
    %214 = vector.load %arg45[%c0_199, %c6, %c0_200] : memref<2x30x32xf32, #tpu.memory_space<vmem>>, vector<1x20x32xf32>
    %215 = vector.shape_cast %214 : vector<1x20x32xf32> to vector<20x32xf32>
    %216 = vector.extract_strided_slice %215 {offsets = [0, 0], sizes = [20, 16], strides = [1, 1]} : vector<20x32xf32> to vector<20x16xf32>
    %c2_201 = arith.constant 2 : index
    %c0_202 = arith.constant 0 : index
    %c0_203 = arith.constant 0 : index
    %217 = vector.load %arg11[%c2_201, %c0_202, %c0_203] : memref<3x16x64xf32, #tpu.memory_space<vmem>>, vector<1x16x64xf32>
    %218 = vector.shape_cast %217 : vector<1x16x64xf32> to vector<16x64xf32>
    %cst_204 = arith.constant dense<0.000000e+00> : vector<20x64xf32>
    %219 = tpu.matmul %216, %218, %cst_204 {dimension_numbers = #tpu.dot_dimension_numbers<[1], [0], [0], [1], [0, 0, 1, 1], [], []>} : vector<20x16xf32>, vector<16x64xf32>, vector<20x64xf32> -> vector<20x64xf32>
    %220 = arith.addf %213, %219 : vector<20x64xf32>
    %221 = tpu.iota {dimensions = array<i32: 0>} : vector<20x1xi32>
    %cst_205 = arith.constant 1.000000e+00 : f32
    %222 = vector.broadcast %cst_205 : f32 to vector<20x1xf32>
    %c4_i32 = arith.constant 4 : i32
    %223 = vector.broadcast %c4_i32 : i32 to vector<20x1xi32>
    %224 = arith.cmpi eq, %221, %223 : vector<20x1xi32>
    %cst_206 = arith.constant 0.000000e+00 : f32
    %225 = vector.broadcast %cst_206 : f32 to vector<20x1xf32>
    %226 = arith.select %224, %225, %222 : vector<20x1xi1>, vector<20x1xf32>
    %c9_i32 = arith.constant 9 : i32
    %227 = vector.broadcast %c9_i32 : i32 to vector<20x1xi32>
    %228 = arith.cmpi eq, %221, %227 : vector<20x1xi32>
    %cst_207 = arith.constant 0.000000e+00 : f32
    %229 = vector.broadcast %cst_207 : f32 to vector<20x1xf32>
    %230 = arith.select %228, %229, %226 : vector<20x1xi1>, vector<20x1xf32>
    %c14_i32 = arith.constant 14 : i32
    %231 = vector.broadcast %c14_i32 : i32 to vector<20x1xi32>
    %232 = arith.cmpi eq, %221, %231 : vector<20x1xi32>
    %cst_208 = arith.constant 0.000000e+00 : f32
    %233 = vector.broadcast %cst_208 : f32 to vector<20x1xf32>
    %234 = arith.select %232, %233, %230 : vector<20x1xi1>, vector<20x1xf32>
    %c19_i32 = arith.constant 19 : i32
    %235 = vector.broadcast %c19_i32 : i32 to vector<20x1xi32>
    %236 = arith.cmpi eq, %221, %235 : vector<20x1xi32>
    %cst_209 = arith.constant 0.000000e+00 : f32
    %237 = vector.broadcast %cst_209 : f32 to vector<20x1xf32>
    %238 = arith.select %236, %237, %234 : vector<20x1xi1>, vector<20x1xf32>
    %c0_210 = arith.constant 0 : index
    %c0_211 = arith.constant 0 : index
    %239 = vector.load %arg12[%c0_210, %c0_211] : memref<1x64xf32, #tpu.memory_space<vmem>>, vector<1x64xf32>
    %240 = vector.broadcast %239 : vector<1x64xf32> to vector<20x64xf32>
    %241 = arith.addf %220, %240 : vector<20x64xf32>
    %cst_212 = arith.constant 0.000000e+00 : f32
    %242 = vector.broadcast %cst_212 : f32 to vector<20x64xf32>
    %243 = arith.maximumf %241, %242 : vector<20x64xf32>
    %244 = vector.broadcast %238 : vector<20x1xf32> to vector<20x64xf32>
    %245 = arith.mulf %243, %244 : vector<20x64xf32>
    %cst_213 = arith.constant 0.000000e+00 : f32
    %246 = vector.broadcast %cst_213 : f32 to vector<6x64xf32>
    %c0_214 = arith.constant 0 : index
    %c0_215 = arith.constant 0 : index
    %247 = vector.load %arg42[%c0_214, %c0_215] : memref<35x64xf32, #tpu.memory_space<vmem>>, vector<6x64xf32>
    tpu.vector_store %arg42[%c0_214, %c0_215], %246 {strides = array<i32>} : memref<35x64xf32, #tpu.memory_space<vmem>>, vector<6x64xf32>,
    %cst_216 = arith.constant 0.000000e+00 : f32
    %248 = vector.broadcast %cst_216 : f32 to vector<9x64xf32>
    %c26 = arith.constant 26 : index
    %c0_217 = arith.constant 0 : index
    %249 = vector.load %arg42[%c26, %c0_217] : memref<35x64xf32, #tpu.memory_space<vmem>>, vector<9x64xf32>
    tpu.vector_store %arg42[%c26, %c0_217], %248 {strides = array<i32>} : memref<35x64xf32, #tpu.memory_space<vmem>>, vector<9x64xf32>,
    %c6_218 = arith.constant 6 : index
    %c0_219 = arith.constant 0 : index
    %250 = vector.load %arg42[%c6_218, %c0_219] : memref<35x64xf32, #tpu.memory_space<vmem>>, vector<20x64xf32>
    tpu.vector_store %arg42[%c6_218, %c0_219], %245 {strides = array<i32>} : memref<35x64xf32, #tpu.memory_space<vmem>>, vector<20x64xf32>,
    %cst_220 = arith.constant 0.000000e+00 : f32
    %251 = vector.broadcast %cst_220 : f32 to vector<20x64xf32>
    %c0_221 = arith.constant 0 : index
    %c0_222 = arith.constant 0 : index
    %252 = vector.load %arg42[%c0_221, %c0_222] : memref<35x64xf32, #tpu.memory_space<vmem>>, vector<20x64xf32>
    %c0_223 = arith.constant 0 : index
    %c0_224 = arith.constant 0 : index
    %c0_225 = arith.constant 0 : index
    %c0_226 = arith.constant 0 : index
    %253 = vector.load %arg13[%c0_223, %c0_224, %c0_225, %c0_226] : memref<3x3x64x64xf32, #tpu.memory_space<vmem>>, vector<1x1x64x64xf32>
    %254 = vector.shape_cast %253 : vector<1x1x64x64xf32> to vector<64x64xf32>
    %cst_227 = arith.constant dense<0.000000e+00> : vector<20x64xf32>
    %255 = tpu.matmul %252, %254, %cst_227 {dimension_numbers = #tpu.dot_dimension_numbers<[1], [0], [0], [1], [0, 0, 1, 1], [], []>} : vector<20x64xf32>, vector<64x64xf32>, vector<20x64xf32> -> vector<20x64xf32>
    %256 = arith.addf %251, %255 : vector<20x64xf32>
    %c1_228 = arith.constant 1 : index
    %c0_229 = arith.constant 0 : index
    %257 = vector.load %arg42[%c1_228, %c0_229] : memref<35x64xf32, #tpu.memory_space<vmem>>, vector<20x64xf32>
    %c0_230 = arith.constant 0 : index
    %c1_231 = arith.constant 1 : index
    %c0_232 = arith.constant 0 : index
    %c0_233 = arith.constant 0 : index
    %258 = vector.load %arg13[%c0_230, %c1_231, %c0_232, %c0_233] : memref<3x3x64x64xf32, #tpu.memory_space<vmem>>, vector<1x1x64x64xf32>
    %259 = vector.shape_cast %258 : vector<1x1x64x64xf32> to vector<64x64xf32>
    %cst_234 = arith.constant dense<0.000000e+00> : vector<20x64xf32>
    %260 = tpu.matmul %257, %259, %cst_234 {dimension_numbers = #tpu.dot_dimension_numbers<[1], [0], [0], [1], [0, 0, 1, 1], [], []>} : vector<20x64xf32>, vector<64x64xf32>, vector<20x64xf32> -> vector<20x64xf32>
    %261 = arith.addf %256, %260 : vector<20x64xf32>
    %c2_235 = arith.constant 2 : index
    %c0_236 = arith.constant 0 : index
    %262 = vector.load %arg42[%c2_235, %c0_236] : memref<35x64xf32, #tpu.memory_space<vmem>>, vector<20x64xf32>
    %c0_237 = arith.constant 0 : index
    %c2_238 = arith.constant 2 : index
    %c0_239 = arith.constant 0 : index
    %c0_240 = arith.constant 0 : index
    %263 = vector.load %arg13[%c0_237, %c2_238, %c0_239, %c0_240] : memref<3x3x64x64xf32, #tpu.memory_space<vmem>>, vector<1x1x64x64xf32>
    %264 = vector.shape_cast %263 : vector<1x1x64x64xf32> to vector<64x64xf32>
    %cst_241 = arith.constant dense<0.000000e+00> : vector<20x64xf32>
    %265 = tpu.matmul %262, %264, %cst_241 {dimension_numbers = #tpu.dot_dimension_numbers<[1], [0], [0], [1], [0, 0, 1, 1], [], []>} : vector<20x64xf32>, vector<64x64xf32>, vector<20x64xf32> -> vector<20x64xf32>
    %266 = arith.addf %261, %265 : vector<20x64xf32>
    %c5_242 = arith.constant 5 : index
    %c0_243 = arith.constant 0 : index
    %267 = vector.load %arg42[%c5_242, %c0_243] : memref<35x64xf32, #tpu.memory_space<vmem>>, vector<20x64xf32>
    %c1_244 = arith.constant 1 : index
    %c0_245 = arith.constant 0 : index
    %c0_246 = arith.constant 0 : index
    %c0_247 = arith.constant 0 : index
    %268 = vector.load %arg13[%c1_244, %c0_245, %c0_246, %c0_247] : memref<3x3x64x64xf32, #tpu.memory_space<vmem>>, vector<1x1x64x64xf32>
    %269 = vector.shape_cast %268 : vector<1x1x64x64xf32> to vector<64x64xf32>
    %cst_248 = arith.constant dense<0.000000e+00> : vector<20x64xf32>
    %270 = tpu.matmul %267, %269, %cst_248 {dimension_numbers = #tpu.dot_dimension_numbers<[1], [0], [0], [1], [0, 0, 1, 1], [], []>} : vector<20x64xf32>, vector<64x64xf32>, vector<20x64xf32> -> vector<20x64xf32>
    %271 = arith.addf %266, %270 : vector<20x64xf32>
    %c6_249 = arith.constant 6 : index
    %c0_250 = arith.constant 0 : index
    %272 = vector.load %arg42[%c6_249, %c0_250] : memref<35x64xf32, #tpu.memory_space<vmem>>, vector<20x64xf32>
    %c1_251 = arith.constant 1 : index
    %c1_252 = arith.constant 1 : index
    %c0_253 = arith.constant 0 : index
    %c0_254 = arith.constant 0 : index
    %273 = vector.load %arg13[%c1_251, %c1_252, %c0_253, %c0_254] : memref<3x3x64x64xf32, #tpu.memory_space<vmem>>, vector<1x1x64x64xf32>
    %274 = vector.shape_cast %273 : vector<1x1x64x64xf32> to vector<64x64xf32>
    %cst_255 = arith.constant dense<0.000000e+00> : vector<20x64xf32>
    %275 = tpu.matmul %272, %274, %cst_255 {dimension_numbers = #tpu.dot_dimension_numbers<[1], [0], [0], [1], [0, 0, 1, 1], [], []>} : vector<20x64xf32>, vector<64x64xf32>, vector<20x64xf32> -> vector<20x64xf32>
    %276 = arith.addf %271, %275 : vector<20x64xf32>
    %c7 = arith.constant 7 : index
    %c0_256 = arith.constant 0 : index
    %277 = vector.load %arg42[%c7, %c0_256] : memref<35x64xf32, #tpu.memory_space<vmem>>, vector<20x64xf32>
    %c1_257 = arith.constant 1 : index
    %c2_258 = arith.constant 2 : index
    %c0_259 = arith.constant 0 : index
    %c0_260 = arith.constant 0 : index
    %278 = vector.load %arg13[%c1_257, %c2_258, %c0_259, %c0_260] : memref<3x3x64x64xf32, #tpu.memory_space<vmem>>, vector<1x1x64x64xf32>
    %279 = vector.shape_cast %278 : vector<1x1x64x64xf32> to vector<64x64xf32>
    %cst_261 = arith.constant dense<0.000000e+00> : vector<20x64xf32>
    %280 = tpu.matmul %277, %279, %cst_261 {dimension_numbers = #tpu.dot_dimension_numbers<[1], [0], [0], [1], [0, 0, 1, 1], [], []>} : vector<20x64xf32>, vector<64x64xf32>, vector<20x64xf32> -> vector<20x64xf32>
    %281 = arith.addf %276, %280 : vector<20x64xf32>
    %c10_262 = arith.constant 10 : index
    %c0_263 = arith.constant 0 : index
    %282 = vector.load %arg42[%c10_262, %c0_263] : memref<35x64xf32, #tpu.memory_space<vmem>>, vector<20x64xf32>
    %c2_264 = arith.constant 2 : index
    %c0_265 = arith.constant 0 : index
    %c0_266 = arith.constant 0 : index
    %c0_267 = arith.constant 0 : index
    %283 = vector.load %arg13[%c2_264, %c0_265, %c0_266, %c0_267] : memref<3x3x64x64xf32, #tpu.memory_space<vmem>>, vector<1x1x64x64xf32>
    %284 = vector.shape_cast %283 : vector<1x1x64x64xf32> to vector<64x64xf32>
    %cst_268 = arith.constant dense<0.000000e+00> : vector<20x64xf32>
    %285 = tpu.matmul %282, %284, %cst_268 {dimension_numbers = #tpu.dot_dimension_numbers<[1], [0], [0], [1], [0, 0, 1, 1], [], []>} : vector<20x64xf32>, vector<64x64xf32>, vector<20x64xf32> -> vector<20x64xf32>
    %286 = arith.addf %281, %285 : vector<20x64xf32>
    %c11_269 = arith.constant 11 : index
    %c0_270 = arith.constant 0 : index
    %287 = vector.load %arg42[%c11_269, %c0_270] : memref<35x64xf32, #tpu.memory_space<vmem>>, vector<20x64xf32>
    %c2_271 = arith.constant 2 : index
    %c1_272 = arith.constant 1 : index
    %c0_273 = arith.constant 0 : index
    %c0_274 = arith.constant 0 : index
    %288 = vector.load %arg13[%c2_271, %c1_272, %c0_273, %c0_274] : memref<3x3x64x64xf32, #tpu.memory_space<vmem>>, vector<1x1x64x64xf32>
    %289 = vector.shape_cast %288 : vector<1x1x64x64xf32> to vector<64x64xf32>
    %cst_275 = arith.constant dense<0.000000e+00> : vector<20x64xf32>
    %290 = tpu.matmul %287, %289, %cst_275 {dimension_numbers = #tpu.dot_dimension_numbers<[1], [0], [0], [1], [0, 0, 1, 1], [], []>} : vector<20x64xf32>, vector<64x64xf32>, vector<20x64xf32> -> vector<20x64xf32>
    %291 = arith.addf %286, %290 : vector<20x64xf32>
    %c12 = arith.constant 12 : index
    %c0_276 = arith.constant 0 : index
    %292 = vector.load %arg42[%c12, %c0_276] : memref<35x64xf32, #tpu.memory_space<vmem>>, vector<20x64xf32>
    %c2_277 = arith.constant 2 : index
    %c2_278 = arith.constant 2 : index
    %c0_279 = arith.constant 0 : index
    %c0_280 = arith.constant 0 : index
    %293 = vector.load %arg13[%c2_277, %c2_278, %c0_279, %c0_280] : memref<3x3x64x64xf32, #tpu.memory_space<vmem>>, vector<1x1x64x64xf32>
    %294 = vector.shape_cast %293 : vector<1x1x64x64xf32> to vector<64x64xf32>
    %cst_281 = arith.constant dense<0.000000e+00> : vector<20x64xf32>
    %295 = tpu.matmul %292, %294, %cst_281 {dimension_numbers = #tpu.dot_dimension_numbers<[1], [0], [0], [1], [0, 0, 1, 1], [], []>} : vector<20x64xf32>, vector<64x64xf32>, vector<20x64xf32> -> vector<20x64xf32>
    %296 = arith.addf %291, %295 : vector<20x64xf32>
    %297 = vector.broadcast %238 : vector<20x1xf32> to vector<20x64xf32>
    %298 = arith.mulf %296, %297 : vector<20x64xf32>
    %cst_282 = arith.constant dense<0.000000e+00> : vector<64xf32>
    %299 = vector.multi_reduction <add>, %298, %cst_282 [0] : vector<20x64xf32> to vector<64xf32>
    %300 = vector.shape_cast %299 : vector<64xf32> to vector<1x64xf32>
    %cst_283 = arith.constant 6.250000e-02 : f32
    %301 = vector.broadcast %cst_283 : f32 to vector<1x64xf32>
    %302 = arith.mulf %300, %301 : vector<1x64xf32>
    %c0_284 = arith.constant 0 : index
    %c0_285 = arith.constant 0 : index
    %303 = vector.load %arg16[%c0_284, %c0_285] : memref<64x8xf32, #tpu.memory_space<vmem>>, vector<64x8xf32>
    %cst_286 = arith.constant dense<0.000000e+00> : vector<1x8xf32>
    %304 = tpu.matmul %302, %303, %cst_286 {dimension_numbers = #tpu.dot_dimension_numbers<[1], [0], [0], [1], [0, 0, 1, 1], [], []>} : vector<1x64xf32>, vector<64x8xf32>, vector<1x8xf32> -> vector<1x8xf32>
    %cst_287 = arith.constant 0.000000e+00 : f32
    %305 = vector.broadcast %cst_287 : f32 to vector<1x8xf32>
    %306 = arith.maximumf %304, %305 : vector<1x8xf32>
    %c0_288 = arith.constant 0 : index
    %c0_289 = arith.constant 0 : index
    %307 = vector.load %arg17[%c0_288, %c0_289] : memref<8x64xf32, #tpu.memory_space<vmem>>, vector<8x64xf32>
    %cst_290 = arith.constant dense<0.000000e+00> : vector<1x64xf32>
    %308 = tpu.matmul %306, %307, %cst_290 {dimension_numbers = #tpu.dot_dimension_numbers<[1], [0], [0], [1], [0, 0, 1, 1], [], []>} : vector<1x8xf32>, vector<8x64xf32>, vector<1x64xf32> -> vector<1x64xf32>
    %309 = arith.negf %308 : vector<1x64xf32>
    %310 = math.exp %309 : vector<1x64xf32>
    %cst_291 = arith.constant 1.000000e+00 : f32
    %311 = vector.broadcast %cst_291 : f32 to vector<1x64xf32>
    %312 = arith.addf %311, %310 : vector<1x64xf32>
    %313 = arith.divf %311, %312 : vector<1x64xf32>
    %c1_292 = arith.constant 1 : index
    %c0_293 = arith.constant 0 : index
    %c0_294 = arith.constant 0 : index
    %314 = vector.load %arg45[%c1_292, %c0_293, %c0_294] : memref<2x30x32xf32, #tpu.memory_space<vmem>>, vector<1x20x32xf32>
    %315 = vector.shape_cast %314 : vector<1x20x32xf32> to vector<20x32xf32>
    %c0_295 = arith.constant 0 : index
    %c0_296 = arith.constant 0 : index
    %316 = vector.load %arg14[%c0_295, %c0_296] : memref<32x64xf32, #tpu.memory_space<vmem>>, vector<32x64xf32>
    %cst_297 = arith.constant dense<0.000000e+00> : vector<20x64xf32>
    %317 = tpu.matmul %315, %316, %cst_297 {dimension_numbers = #tpu.dot_dimension_numbers<[1], [0], [0], [1], [0, 0, 1, 1], [], []>} : vector<20x32xf32>, vector<32x64xf32>, vector<20x64xf32> -> vector<20x64xf32>
    %c0_298 = arith.constant 0 : index
    %c0_299 = arith.constant 0 : index
    %318 = vector.load %arg15[%c0_298, %c0_299] : memref<1x64xf32, #tpu.memory_space<vmem>>, vector<1x64xf32>
    %319 = vector.broadcast %318 : vector<1x64xf32> to vector<20x64xf32>
    %320 = arith.addf %317, %319 : vector<20x64xf32>
    %321 = vector.broadcast %313 : vector<1x64xf32> to vector<20x64xf32>
    %322 = arith.mulf %296, %321 : vector<20x64xf32>
    %323 = arith.addf %322, %320 : vector<20x64xf32>
    %cst_300 = arith.constant 0.000000e+00 : f32
    %324 = vector.broadcast %cst_300 : f32 to vector<20x64xf32>
    %325 = arith.maximumf %323, %324 : vector<20x64xf32>
    %c0_301 = arith.constant 0 : index
    %c0_302 = arith.constant 0 : index
    %c0_303 = arith.constant 0 : index
    %326 = vector.load %arg36[%c0_301, %c0_302, %c0_303] : memref<2x12x20xf32, #tpu.memory_space<vmem>>, vector<1x12x20xf32>
    %327 = vector.shape_cast %326 : vector<1x12x20xf32> to vector<12x20xf32>
    %cst_304 = arith.constant dense<0.000000e+00> : vector<12x64xf32>
    %328 = tpu.matmul %327, %325, %cst_304 {dimension_numbers = #tpu.dot_dimension_numbers<[1], [0], [0], [1], [0, 0, 1, 1], [], []>} : vector<12x20xf32>, vector<20x64xf32>, vector<12x64xf32> -> vector<12x64xf32>
    %c0_305 = arith.constant 0 : index
    %c0_306 = arith.constant 0 : index
    %c0_307 = arith.constant 0 : index
    %329 = vector.load %arg37[%c0_305, %c0_306, %c0_307] : memref<2x12x20xf32, #tpu.memory_space<vmem>>, vector<1x12x20xf32>
    %330 = vector.shape_cast %329 : vector<1x12x20xf32> to vector<12x20xf32>
    %cst_308 = arith.constant dense<0.000000e+00> : vector<12x64xf32>
    %331 = tpu.matmul %330, %325, %cst_308 {dimension_numbers = #tpu.dot_dimension_numbers<[1], [0], [0], [1], [0, 0, 1, 1], [], []>} : vector<12x20xf32>, vector<20x64xf32>, vector<12x64xf32> -> vector<12x64xf32>
    %332 = tpu.concatenate %328, %331 in 1 : vector<12x64xf32>, vector<12x64xf32> -> vector<12x128xf32>
    %c0_309 = arith.constant 0 : index
    %c0_310 = arith.constant 0 : index
    %c0_311 = arith.constant 0 : index
    %333 = vector.load %arg46[%c0_309, %c0_310, %c0_311] : memref<2x12x128xf32, #tpu.memory_space<vmem>>, vector<1x12x128xf32>
    %334 = vector.shape_cast %333 : vector<1x12x128xf32> to vector<12x128xf32>
    %335 = vector.shape_cast %332 : vector<12x128xf32> to vector<1x12x128xf32>
    tpu.vector_store %arg46[%c0_309, %c0_310, %c0_311], %335 {strides = array<i32>} : memref<2x12x128xf32, #tpu.memory_space<vmem>>, vector<1x12x128xf32>,
    %c1_312 = arith.constant 1 : index
    %c0_313 = arith.constant 0 : index
    %c0_314 = arith.constant 0 : index
    %336 = vector.load %arg36[%c1_312, %c0_313, %c0_314] : memref<2x12x20xf32, #tpu.memory_space<vmem>>, vector<1x12x20xf32>
    %337 = vector.shape_cast %336 : vector<1x12x20xf32> to vector<12x20xf32>
    %cst_315 = arith.constant dense<0.000000e+00> : vector<12x64xf32>
    %338 = tpu.matmul %337, %325, %cst_315 {dimension_numbers = #tpu.dot_dimension_numbers<[1], [0], [0], [1], [0, 0, 1, 1], [], []>} : vector<12x20xf32>, vector<20x64xf32>, vector<12x64xf32> -> vector<12x64xf32>
    %c1_316 = arith.constant 1 : index
    %c0_317 = arith.constant 0 : index
    %c0_318 = arith.constant 0 : index
    %339 = vector.load %arg37[%c1_316, %c0_317, %c0_318] : memref<2x12x20xf32, #tpu.memory_space<vmem>>, vector<1x12x20xf32>
    %340 = vector.shape_cast %339 : vector<1x12x20xf32> to vector<12x20xf32>
    %cst_319 = arith.constant dense<0.000000e+00> : vector<12x64xf32>
    %341 = tpu.matmul %340, %325, %cst_319 {dimension_numbers = #tpu.dot_dimension_numbers<[1], [0], [0], [1], [0, 0, 1, 1], [], []>} : vector<12x20xf32>, vector<20x64xf32>, vector<12x64xf32> -> vector<12x64xf32>
    %342 = tpu.concatenate %338, %341 in 1 : vector<12x64xf32>, vector<12x64xf32> -> vector<12x128xf32>
    %c1_320 = arith.constant 1 : index
    %c0_321 = arith.constant 0 : index
    %c0_322 = arith.constant 0 : index
    %343 = vector.load %arg46[%c1_320, %c0_321, %c0_322] : memref<2x12x128xf32, #tpu.memory_space<vmem>>, vector<1x12x128xf32>
    %344 = vector.shape_cast %343 : vector<1x12x128xf32> to vector<12x128xf32>
    %345 = vector.shape_cast %342 : vector<12x128xf32> to vector<1x12x128xf32>
    tpu.vector_store %arg46[%c1_320, %c0_321, %c0_322], %345 {strides = array<i32>} : memref<2x12x128xf32, #tpu.memory_space<vmem>>, vector<1x12x128xf32>,
    %cst_323 = arith.constant 0.000000e+00 : f32
    %346 = vector.broadcast %cst_323 : f32 to vector<6x128xf32>
    %c0_324 = arith.constant 0 : index
    %c0_325 = arith.constant 0 : index
    %c0_326 = arith.constant 0 : index
    %347 = vector.load %arg46[%c0_324, %c0_325, %c0_326] : memref<2x12x128xf32, #tpu.memory_space<vmem>>, vector<1x6x128xf32>
    %348 = vector.shape_cast %347 : vector<1x6x128xf32> to vector<6x128xf32>
    %c0_327 = arith.constant 0 : index
    %c0_328 = arith.constant 0 : index
    %c0_329 = arith.constant 0 : index
    %349 = vector.load %arg18[%c0_327, %c0_328, %c0_329] : memref<3x128x128xf32, #tpu.memory_space<vmem>>, vector<1x128x128xf32>
    %350 = vector.shape_cast %349 : vector<1x128x128xf32> to vector<128x128xf32>
    %cst_330 = arith.constant dense<0.000000e+00> : vector<6x128xf32>
    %351 = tpu.matmul %348, %350, %cst_330 {dimension_numbers = #tpu.dot_dimension_numbers<[1], [0], [0], [1], [0, 0, 1, 1], [], []>} : vector<6x128xf32>, vector<128x128xf32>, vector<6x128xf32> -> vector<6x128xf32>
    %352 = arith.addf %346, %351 : vector<6x128xf32>
    %c0_331 = arith.constant 0 : index
    %c1_332 = arith.constant 1 : index
    %c0_333 = arith.constant 0 : index
    %353 = vector.load %arg46[%c0_331, %c1_332, %c0_333] : memref<2x12x128xf32, #tpu.memory_space<vmem>>, vector<1x6x128xf32>
    %354 = vector.shape_cast %353 : vector<1x6x128xf32> to vector<6x128xf32>
    %355 = vector.extract_strided_slice %354 {offsets = [0, 0], sizes = [6, 64], strides = [1, 1]} : vector<6x128xf32> to vector<6x64xf32>
    %c0_334 = arith.constant 0 : index
    %c0_335 = arith.constant 0 : index
    %c0_336 = arith.constant 0 : index
    %356 = vector.load %arg19[%c0_334, %c0_335, %c0_336] : memref<3x64x128xf32, #tpu.memory_space<vmem>>, vector<1x64x128xf32>
    %357 = vector.shape_cast %356 : vector<1x64x128xf32> to vector<64x128xf32>
    %cst_337 = arith.constant dense<0.000000e+00> : vector<6x128xf32>
    %358 = tpu.matmul %355, %357, %cst_337 {dimension_numbers = #tpu.dot_dimension_numbers<[1], [0], [0], [1], [0, 0, 1, 1], [], []>} : vector<6x64xf32>, vector<64x128xf32>, vector<6x128xf32> -> vector<6x128xf32>
    %359 = arith.addf %352, %358 : vector<6x128xf32>
    %c1_338 = arith.constant 1 : index
    %c0_339 = arith.constant 0 : index
    %c0_340 = arith.constant 0 : index
    %360 = vector.load %arg46[%c1_338, %c0_339, %c0_340] : memref<2x12x128xf32, #tpu.memory_space<vmem>>, vector<1x6x128xf32>
    %361 = vector.shape_cast %360 : vector<1x6x128xf32> to vector<6x128xf32>
    %c1_341 = arith.constant 1 : index
    %c0_342 = arith.constant 0 : index
    %c0_343 = arith.constant 0 : index
    %362 = vector.load %arg18[%c1_341, %c0_342, %c0_343] : memref<3x128x128xf32, #tpu.memory_space<vmem>>, vector<1x128x128xf32>
    %363 = vector.shape_cast %362 : vector<1x128x128xf32> to vector<128x128xf32>
    %cst_344 = arith.constant dense<0.000000e+00> : vector<6x128xf32>
    %364 = tpu.matmul %361, %363, %cst_344 {dimension_numbers = #tpu.dot_dimension_numbers<[1], [0], [0], [1], [0, 0, 1, 1], [], []>} : vector<6x128xf32>, vector<128x128xf32>, vector<6x128xf32> -> vector<6x128xf32>
    %365 = arith.addf %359, %364 : vector<6x128xf32>
    %c1_345 = arith.constant 1 : index
    %c1_346 = arith.constant 1 : index
    %c0_347 = arith.constant 0 : index
    %366 = vector.load %arg46[%c1_345, %c1_346, %c0_347] : memref<2x12x128xf32, #tpu.memory_space<vmem>>, vector<1x6x128xf32>
    %367 = vector.shape_cast %366 : vector<1x6x128xf32> to vector<6x128xf32>
    %368 = vector.extract_strided_slice %367 {offsets = [0, 0], sizes = [6, 64], strides = [1, 1]} : vector<6x128xf32> to vector<6x64xf32>
    %c1_348 = arith.constant 1 : index
    %c0_349 = arith.constant 0 : index
    %c0_350 = arith.constant 0 : index
    %369 = vector.load %arg19[%c1_348, %c0_349, %c0_350] : memref<3x64x128xf32, #tpu.memory_space<vmem>>, vector<1x64x128xf32>
    %370 = vector.shape_cast %369 : vector<1x64x128xf32> to vector<64x128xf32>
    %cst_351 = arith.constant dense<0.000000e+00> : vector<6x128xf32>
    %371 = tpu.matmul %368, %370, %cst_351 {dimension_numbers = #tpu.dot_dimension_numbers<[1], [0], [0], [1], [0, 0, 1, 1], [], []>} : vector<6x64xf32>, vector<64x128xf32>, vector<6x128xf32> -> vector<6x128xf32>
    %372 = arith.addf %365, %371 : vector<6x128xf32>
    %c0_352 = arith.constant 0 : index
    %c3 = arith.constant 3 : index
    %c0_353 = arith.constant 0 : index
    %373 = vector.load %arg46[%c0_352, %c3, %c0_353] : memref<2x12x128xf32, #tpu.memory_space<vmem>>, vector<1x6x128xf32>
    %374 = vector.shape_cast %373 : vector<1x6x128xf32> to vector<6x128xf32>
    %c2_354 = arith.constant 2 : index
    %c0_355 = arith.constant 0 : index
    %c0_356 = arith.constant 0 : index
    %375 = vector.load %arg18[%c2_354, %c0_355, %c0_356] : memref<3x128x128xf32, #tpu.memory_space<vmem>>, vector<1x128x128xf32>
    %376 = vector.shape_cast %375 : vector<1x128x128xf32> to vector<128x128xf32>
    %cst_357 = arith.constant dense<0.000000e+00> : vector<6x128xf32>
    %377 = tpu.matmul %374, %376, %cst_357 {dimension_numbers = #tpu.dot_dimension_numbers<[1], [0], [0], [1], [0, 0, 1, 1], [], []>} : vector<6x128xf32>, vector<128x128xf32>, vector<6x128xf32> -> vector<6x128xf32>
    %378 = arith.addf %372, %377 : vector<6x128xf32>
    %c0_358 = arith.constant 0 : index
    %c4 = arith.constant 4 : index
    %c0_359 = arith.constant 0 : index
    %379 = vector.load %arg46[%c0_358, %c4, %c0_359] : memref<2x12x128xf32, #tpu.memory_space<vmem>>, vector<1x6x128xf32>
    %380 = vector.shape_cast %379 : vector<1x6x128xf32> to vector<6x128xf32>
    %381 = vector.extract_strided_slice %380 {offsets = [0, 0], sizes = [6, 64], strides = [1, 1]} : vector<6x128xf32> to vector<6x64xf32>
    %c2_360 = arith.constant 2 : index
    %c0_361 = arith.constant 0 : index
    %c0_362 = arith.constant 0 : index
    %382 = vector.load %arg19[%c2_360, %c0_361, %c0_362] : memref<3x64x128xf32, #tpu.memory_space<vmem>>, vector<1x64x128xf32>
    %383 = vector.shape_cast %382 : vector<1x64x128xf32> to vector<64x128xf32>
    %cst_363 = arith.constant dense<0.000000e+00> : vector<6x128xf32>
    %384 = tpu.matmul %381, %383, %cst_363 {dimension_numbers = #tpu.dot_dimension_numbers<[1], [0], [0], [1], [0, 0, 1, 1], [], []>} : vector<6x64xf32>, vector<64x128xf32>, vector<6x128xf32> -> vector<6x128xf32>
    %385 = arith.addf %378, %384 : vector<6x128xf32>
    %386 = tpu.iota {dimensions = array<i32: 0>} : vector<6x1xi32>
    %cst_364 = arith.constant 1.000000e+00 : f32
    %387 = vector.broadcast %cst_364 : f32 to vector<6x1xf32>
    %c2_i32 = arith.constant 2 : i32
    %388 = vector.broadcast %c2_i32 : i32 to vector<6x1xi32>
    %389 = arith.cmpi eq, %386, %388 : vector<6x1xi32>
    %cst_365 = arith.constant 0.000000e+00 : f32
    %390 = vector.broadcast %cst_365 : f32 to vector<6x1xf32>
    %391 = arith.select %389, %390, %387 : vector<6x1xi1>, vector<6x1xf32>
    %c5_i32 = arith.constant 5 : i32
    %392 = vector.broadcast %c5_i32 : i32 to vector<6x1xi32>
    %393 = arith.cmpi eq, %386, %392 : vector<6x1xi32>
    %cst_366 = arith.constant 0.000000e+00 : f32
    %394 = vector.broadcast %cst_366 : f32 to vector<6x1xf32>
    %395 = arith.select %393, %394, %391 : vector<6x1xi1>, vector<6x1xf32>
    %c0_367 = arith.constant 0 : index
    %c0_368 = arith.constant 0 : index
    %396 = vector.load %arg20[%c0_367, %c0_368] : memref<1x128xf32, #tpu.memory_space<vmem>>, vector<1x128xf32>
    %397 = vector.broadcast %396 : vector<1x128xf32> to vector<6x128xf32>
    %398 = arith.addf %385, %397 : vector<6x128xf32>
    %cst_369 = arith.constant 0.000000e+00 : f32
    %399 = vector.broadcast %cst_369 : f32 to vector<6x128xf32>
    %400 = arith.maximumf %398, %399 : vector<6x128xf32>
    %401 = vector.broadcast %395 : vector<6x1xf32> to vector<6x128xf32>
    %402 = arith.mulf %400, %401 : vector<6x128xf32>
    %cst_370 = arith.constant 0.000000e+00 : f32
    %403 = vector.broadcast %cst_370 : f32 to vector<4x128xf32>
    %c0_371 = arith.constant 0 : index
    %c0_372 = arith.constant 0 : index
    %404 = vector.load %arg43[%c0_371, %c0_372] : memref<15x128xf32, #tpu.memory_space<vmem>>, vector<4x128xf32>
    tpu.vector_store %arg43[%c0_371, %c0_372], %403 {strides = array<i32>} : memref<15x128xf32, #tpu.memory_space<vmem>>, vector<4x128xf32>,
    %cst_373 = arith.constant 0.000000e+00 : f32
    %405 = vector.broadcast %cst_373 : f32 to vector<5x128xf32>
    %c10_374 = arith.constant 10 : index
    %c0_375 = arith.constant 0 : index
    %406 = vector.load %arg43[%c10_374, %c0_375] : memref<15x128xf32, #tpu.memory_space<vmem>>, vector<5x128xf32>
    tpu.vector_store %arg43[%c10_374, %c0_375], %405 {strides = array<i32>} : memref<15x128xf32, #tpu.memory_space<vmem>>, vector<5x128xf32>,
    %c4_376 = arith.constant 4 : index
    %c0_377 = arith.constant 0 : index
    %407 = vector.load %arg43[%c4_376, %c0_377] : memref<15x128xf32, #tpu.memory_space<vmem>>, vector<6x128xf32>
    tpu.vector_store %arg43[%c4_376, %c0_377], %402 {strides = array<i32>} : memref<15x128xf32, #tpu.memory_space<vmem>>, vector<6x128xf32>,
    %cst_378 = arith.constant 0.000000e+00 : f32
    %408 = vector.broadcast %cst_378 : f32 to vector<6x128xf32>
    %c0_379 = arith.constant 0 : index
    %c0_380 = arith.constant 0 : index
    %409 = vector.load %arg43[%c0_379, %c0_380] : memref<15x128xf32, #tpu.memory_space<vmem>>, vector<6x128xf32>
    %c0_381 = arith.constant 0 : index
    %c0_382 = arith.constant 0 : index
    %c0_383 = arith.constant 0 : index
    %c0_384 = arith.constant 0 : index
    %410 = vector.load %arg21[%c0_381, %c0_382, %c0_383, %c0_384] : memref<3x3x128x128xf32, #tpu.memory_space<vmem>>, vector<1x1x128x128xf32>
    %411 = vector.shape_cast %410 : vector<1x1x128x128xf32> to vector<128x128xf32>
    %cst_385 = arith.constant dense<0.000000e+00> : vector<6x128xf32>
    %412 = tpu.matmul %409, %411, %cst_385 {dimension_numbers = #tpu.dot_dimension_numbers<[1], [0], [0], [1], [0, 0, 1, 1], [], []>} : vector<6x128xf32>, vector<128x128xf32>, vector<6x128xf32> -> vector<6x128xf32>
    %413 = arith.addf %408, %412 : vector<6x128xf32>
    %c1_386 = arith.constant 1 : index
    %c0_387 = arith.constant 0 : index
    %414 = vector.load %arg43[%c1_386, %c0_387] : memref<15x128xf32, #tpu.memory_space<vmem>>, vector<6x128xf32>
    %c0_388 = arith.constant 0 : index
    %c1_389 = arith.constant 1 : index
    %c0_390 = arith.constant 0 : index
    %c0_391 = arith.constant 0 : index
    %415 = vector.load %arg21[%c0_388, %c1_389, %c0_390, %c0_391] : memref<3x3x128x128xf32, #tpu.memory_space<vmem>>, vector<1x1x128x128xf32>
    %416 = vector.shape_cast %415 : vector<1x1x128x128xf32> to vector<128x128xf32>
    %cst_392 = arith.constant dense<0.000000e+00> : vector<6x128xf32>
    %417 = tpu.matmul %414, %416, %cst_392 {dimension_numbers = #tpu.dot_dimension_numbers<[1], [0], [0], [1], [0, 0, 1, 1], [], []>} : vector<6x128xf32>, vector<128x128xf32>, vector<6x128xf32> -> vector<6x128xf32>
    %418 = arith.addf %413, %417 : vector<6x128xf32>
    %c2_393 = arith.constant 2 : index
    %c0_394 = arith.constant 0 : index
    %419 = vector.load %arg43[%c2_393, %c0_394] : memref<15x128xf32, #tpu.memory_space<vmem>>, vector<6x128xf32>
    %c0_395 = arith.constant 0 : index
    %c2_396 = arith.constant 2 : index
    %c0_397 = arith.constant 0 : index
    %c0_398 = arith.constant 0 : index
    %420 = vector.load %arg21[%c0_395, %c2_396, %c0_397, %c0_398] : memref<3x3x128x128xf32, #tpu.memory_space<vmem>>, vector<1x1x128x128xf32>
    %421 = vector.shape_cast %420 : vector<1x1x128x128xf32> to vector<128x128xf32>
    %cst_399 = arith.constant dense<0.000000e+00> : vector<6x128xf32>
    %422 = tpu.matmul %419, %421, %cst_399 {dimension_numbers = #tpu.dot_dimension_numbers<[1], [0], [0], [1], [0, 0, 1, 1], [], []>} : vector<6x128xf32>, vector<128x128xf32>, vector<6x128xf32> -> vector<6x128xf32>
    %423 = arith.addf %418, %422 : vector<6x128xf32>
    %c3_400 = arith.constant 3 : index
    %c0_401 = arith.constant 0 : index
    %424 = vector.load %arg43[%c3_400, %c0_401] : memref<15x128xf32, #tpu.memory_space<vmem>>, vector<6x128xf32>
    %c1_402 = arith.constant 1 : index
    %c0_403 = arith.constant 0 : index
    %c0_404 = arith.constant 0 : index
    %c0_405 = arith.constant 0 : index
    %425 = vector.load %arg21[%c1_402, %c0_403, %c0_404, %c0_405] : memref<3x3x128x128xf32, #tpu.memory_space<vmem>>, vector<1x1x128x128xf32>
    %426 = vector.shape_cast %425 : vector<1x1x128x128xf32> to vector<128x128xf32>
    %cst_406 = arith.constant dense<0.000000e+00> : vector<6x128xf32>
    %427 = tpu.matmul %424, %426, %cst_406 {dimension_numbers = #tpu.dot_dimension_numbers<[1], [0], [0], [1], [0, 0, 1, 1], [], []>} : vector<6x128xf32>, vector<128x128xf32>, vector<6x128xf32> -> vector<6x128xf32>
    %428 = arith.addf %423, %427 : vector<6x128xf32>
    %c4_407 = arith.constant 4 : index
    %c0_408 = arith.constant 0 : index
    %429 = vector.load %arg43[%c4_407, %c0_408] : memref<15x128xf32, #tpu.memory_space<vmem>>, vector<6x128xf32>
    %c1_409 = arith.constant 1 : index
    %c1_410 = arith.constant 1 : index
    %c0_411 = arith.constant 0 : index
    %c0_412 = arith.constant 0 : index
    %430 = vector.load %arg21[%c1_409, %c1_410, %c0_411, %c0_412] : memref<3x3x128x128xf32, #tpu.memory_space<vmem>>, vector<1x1x128x128xf32>
    %431 = vector.shape_cast %430 : vector<1x1x128x128xf32> to vector<128x128xf32>
    %cst_413 = arith.constant dense<0.000000e+00> : vector<6x128xf32>
    %432 = tpu.matmul %429, %431, %cst_413 {dimension_numbers = #tpu.dot_dimension_numbers<[1], [0], [0], [1], [0, 0, 1, 1], [], []>} : vector<6x128xf32>, vector<128x128xf32>, vector<6x128xf32> -> vector<6x128xf32>
    %433 = arith.addf %428, %432 : vector<6x128xf32>
    %c5_414 = arith.constant 5 : index
    %c0_415 = arith.constant 0 : index
    %434 = vector.load %arg43[%c5_414, %c0_415] : memref<15x128xf32, #tpu.memory_space<vmem>>, vector<6x128xf32>
    %c1_416 = arith.constant 1 : index
    %c2_417 = arith.constant 2 : index
    %c0_418 = arith.constant 0 : index
    %c0_419 = arith.constant 0 : index
    %435 = vector.load %arg21[%c1_416, %c2_417, %c0_418, %c0_419] : memref<3x3x128x128xf32, #tpu.memory_space<vmem>>, vector<1x1x128x128xf32>
    %436 = vector.shape_cast %435 : vector<1x1x128x128xf32> to vector<128x128xf32>
    %cst_420 = arith.constant dense<0.000000e+00> : vector<6x128xf32>
    %437 = tpu.matmul %434, %436, %cst_420 {dimension_numbers = #tpu.dot_dimension_numbers<[1], [0], [0], [1], [0, 0, 1, 1], [], []>} : vector<6x128xf32>, vector<128x128xf32>, vector<6x128xf32> -> vector<6x128xf32>
    %438 = arith.addf %433, %437 : vector<6x128xf32>
    %c6_421 = arith.constant 6 : index
    %c0_422 = arith.constant 0 : index
    %439 = vector.load %arg43[%c6_421, %c0_422] : memref<15x128xf32, #tpu.memory_space<vmem>>, vector<6x128xf32>
    %c2_423 = arith.constant 2 : index
    %c0_424 = arith.constant 0 : index
    %c0_425 = arith.constant 0 : index
    %c0_426 = arith.constant 0 : index
    %440 = vector.load %arg21[%c2_423, %c0_424, %c0_425, %c0_426] : memref<3x3x128x128xf32, #tpu.memory_space<vmem>>, vector<1x1x128x128xf32>
    %441 = vector.shape_cast %440 : vector<1x1x128x128xf32> to vector<128x128xf32>
    %cst_427 = arith.constant dense<0.000000e+00> : vector<6x128xf32>
    %442 = tpu.matmul %439, %441, %cst_427 {dimension_numbers = #tpu.dot_dimension_numbers<[1], [0], [0], [1], [0, 0, 1, 1], [], []>} : vector<6x128xf32>, vector<128x128xf32>, vector<6x128xf32> -> vector<6x128xf32>
    %443 = arith.addf %438, %442 : vector<6x128xf32>
    %c7_428 = arith.constant 7 : index
    %c0_429 = arith.constant 0 : index
    %444 = vector.load %arg43[%c7_428, %c0_429] : memref<15x128xf32, #tpu.memory_space<vmem>>, vector<6x128xf32>
    %c2_430 = arith.constant 2 : index
    %c1_431 = arith.constant 1 : index
    %c0_432 = arith.constant 0 : index
    %c0_433 = arith.constant 0 : index
    %445 = vector.load %arg21[%c2_430, %c1_431, %c0_432, %c0_433] : memref<3x3x128x128xf32, #tpu.memory_space<vmem>>, vector<1x1x128x128xf32>
    %446 = vector.shape_cast %445 : vector<1x1x128x128xf32> to vector<128x128xf32>
    %cst_434 = arith.constant dense<0.000000e+00> : vector<6x128xf32>
    %447 = tpu.matmul %444, %446, %cst_434 {dimension_numbers = #tpu.dot_dimension_numbers<[1], [0], [0], [1], [0, 0, 1, 1], [], []>} : vector<6x128xf32>, vector<128x128xf32>, vector<6x128xf32> -> vector<6x128xf32>
    %448 = arith.addf %443, %447 : vector<6x128xf32>
    %c8 = arith.constant 8 : index
    %c0_435 = arith.constant 0 : index
    %449 = vector.load %arg43[%c8, %c0_435] : memref<15x128xf32, #tpu.memory_space<vmem>>, vector<6x128xf32>
    %c2_436 = arith.constant 2 : index
    %c2_437 = arith.constant 2 : index
    %c0_438 = arith.constant 0 : index
    %c0_439 = arith.constant 0 : index
    %450 = vector.load %arg21[%c2_436, %c2_437, %c0_438, %c0_439] : memref<3x3x128x128xf32, #tpu.memory_space<vmem>>, vector<1x1x128x128xf32>
    %451 = vector.shape_cast %450 : vector<1x1x128x128xf32> to vector<128x128xf32>
    %cst_440 = arith.constant dense<0.000000e+00> : vector<6x128xf32>
    %452 = tpu.matmul %449, %451, %cst_440 {dimension_numbers = #tpu.dot_dimension_numbers<[1], [0], [0], [1], [0, 0, 1, 1], [], []>} : vector<6x128xf32>, vector<128x128xf32>, vector<6x128xf32> -> vector<6x128xf32>
    %453 = arith.addf %448, %452 : vector<6x128xf32>
    %454 = vector.broadcast %395 : vector<6x1xf32> to vector<6x128xf32>
    %455 = arith.mulf %453, %454 : vector<6x128xf32>
    %cst_441 = arith.constant dense<0.000000e+00> : vector<128xf32>
    %456 = vector.multi_reduction <add>, %455, %cst_441 [0] : vector<6x128xf32> to vector<128xf32>
    %457 = vector.shape_cast %456 : vector<128xf32> to vector<1x128xf32>
    %cst_442 = arith.constant 2.500000e-01 : f32
    %458 = vector.broadcast %cst_442 : f32 to vector<1x128xf32>
    %459 = arith.mulf %457, %458 : vector<1x128xf32>
    %c0_443 = arith.constant 0 : index
    %c0_444 = arith.constant 0 : index
    %460 = vector.load %arg24[%c0_443, %c0_444] : memref<128x8xf32, #tpu.memory_space<vmem>>, vector<128x8xf32>
    %cst_445 = arith.constant dense<0.000000e+00> : vector<1x8xf32>
    %461 = tpu.matmul %459, %460, %cst_445 {dimension_numbers = #tpu.dot_dimension_numbers<[1], [0], [0], [1], [0, 0, 1, 1], [], []>} : vector<1x128xf32>, vector<128x8xf32>, vector<1x8xf32> -> vector<1x8xf32>
    %cst_446 = arith.constant 0.000000e+00 : f32
    %462 = vector.broadcast %cst_446 : f32 to vector<1x8xf32>
    %463 = arith.maximumf %461, %462 : vector<1x8xf32>
    %c0_447 = arith.constant 0 : index
    %c0_448 = arith.constant 0 : index
    %464 = vector.load %arg25[%c0_447, %c0_448] : memref<8x128xf32, #tpu.memory_space<vmem>>, vector<8x128xf32>
    %cst_449 = arith.constant dense<0.000000e+00> : vector<1x128xf32>
    %465 = tpu.matmul %463, %464, %cst_449 {dimension_numbers = #tpu.dot_dimension_numbers<[1], [0], [0], [1], [0, 0, 1, 1], [], []>} : vector<1x8xf32>, vector<8x128xf32>, vector<1x128xf32> -> vector<1x128xf32>
    %466 = arith.negf %465 : vector<1x128xf32>
    %467 = math.exp %466 : vector<1x128xf32>
    %cst_450 = arith.constant 1.000000e+00 : f32
    %468 = vector.broadcast %cst_450 : f32 to vector<1x128xf32>
    %469 = arith.addf %468, %467 : vector<1x128xf32>
    %470 = arith.divf %468, %469 : vector<1x128xf32>
    %c1_451 = arith.constant 1 : index
    %c0_452 = arith.constant 0 : index
    %c0_453 = arith.constant 0 : index
    %471 = vector.load %arg46[%c1_451, %c0_452, %c0_453] : memref<2x12x128xf32, #tpu.memory_space<vmem>>, vector<1x6x128xf32>
    %472 = vector.shape_cast %471 : vector<1x6x128xf32> to vector<6x128xf32>
    %c0_454 = arith.constant 0 : index
    %c0_455 = arith.constant 0 : index
    %473 = vector.load %arg22[%c0_454, %c0_455] : memref<128x128xf32, #tpu.memory_space<vmem>>, vector<128x128xf32>
    %cst_456 = arith.constant dense<0.000000e+00> : vector<6x128xf32>
    %474 = tpu.matmul %472, %473, %cst_456 {dimension_numbers = #tpu.dot_dimension_numbers<[1], [0], [0], [1], [0, 0, 1, 1], [], []>} : vector<6x128xf32>, vector<128x128xf32>, vector<6x128xf32> -> vector<6x128xf32>
    %c0_457 = arith.constant 0 : index
    %c0_458 = arith.constant 0 : index
    %475 = vector.load %arg23[%c0_457, %c0_458] : memref<1x128xf32, #tpu.memory_space<vmem>>, vector<1x128xf32>
    %476 = vector.broadcast %475 : vector<1x128xf32> to vector<6x128xf32>
    %477 = arith.addf %474, %476 : vector<6x128xf32>
    %478 = vector.broadcast %470 : vector<1x128xf32> to vector<6x128xf32>
    %479 = arith.mulf %453, %478 : vector<6x128xf32>
    %480 = arith.addf %479, %477 : vector<6x128xf32>
    %cst_459 = arith.constant 0.000000e+00 : f32
    %481 = vector.broadcast %cst_459 : f32 to vector<6x128xf32>
    %482 = arith.maximumf %480, %481 : vector<6x128xf32>
    %c0_460 = arith.constant 0 : index
    %c0_461 = arith.constant 0 : index
    %c0_462 = arith.constant 0 : index
    %483 = vector.load %arg38[%c0_460, %c0_461, %c0_462] : memref<2x6x6xf32, #tpu.memory_space<vmem>>, vector<1x6x6xf32>
    %484 = vector.shape_cast %483 : vector<1x6x6xf32> to vector<6x6xf32>
    %cst_463 = arith.constant dense<0.000000e+00> : vector<6x128xf32>
    %485 = tpu.matmul %484, %482, %cst_463 {dimension_numbers = #tpu.dot_dimension_numbers<[1], [0], [0], [1], [0, 0, 1, 1], [], []>} : vector<6x6xf32>, vector<6x128xf32>, vector<6x128xf32> -> vector<6x128xf32>
    %c0_464 = arith.constant 0 : index
    %c0_465 = arith.constant 0 : index
    %c0_466 = arith.constant 0 : index
    %486 = vector.load %arg39[%c0_464, %c0_465, %c0_466] : memref<2x6x6xf32, #tpu.memory_space<vmem>>, vector<1x6x6xf32>
    %487 = vector.shape_cast %486 : vector<1x6x6xf32> to vector<6x6xf32>
    %cst_467 = arith.constant dense<0.000000e+00> : vector<6x128xf32>
    %488 = tpu.matmul %487, %482, %cst_467 {dimension_numbers = #tpu.dot_dimension_numbers<[1], [0], [0], [1], [0, 0, 1, 1], [], []>} : vector<6x6xf32>, vector<6x128xf32>, vector<6x128xf32> -> vector<6x128xf32>
    %489 = tpu.concatenate %485, %488 in 1 : vector<6x128xf32>, vector<6x128xf32> -> vector<6x256xf32>
    %c0_468 = arith.constant 0 : index
    %c0_469 = arith.constant 0 : index
    %c0_470 = arith.constant 0 : index
    %490 = vector.load %arg47[%c0_468, %c0_469, %c0_470] : memref<2x6x256xf32, #tpu.memory_space<vmem>>, vector<1x6x256xf32>
    %491 = vector.shape_cast %490 : vector<1x6x256xf32> to vector<6x256xf32>
    %492 = vector.shape_cast %489 : vector<6x256xf32> to vector<1x6x256xf32>
    tpu.vector_store %arg47[%c0_468, %c0_469, %c0_470], %492 {strides = array<i32>} : memref<2x6x256xf32, #tpu.memory_space<vmem>>, vector<1x6x256xf32>,
    %c1_471 = arith.constant 1 : index
    %c0_472 = arith.constant 0 : index
    %c0_473 = arith.constant 0 : index
    %493 = vector.load %arg38[%c1_471, %c0_472, %c0_473] : memref<2x6x6xf32, #tpu.memory_space<vmem>>, vector<1x6x6xf32>
    %494 = vector.shape_cast %493 : vector<1x6x6xf32> to vector<6x6xf32>
    %cst_474 = arith.constant dense<0.000000e+00> : vector<6x128xf32>
    %495 = tpu.matmul %494, %482, %cst_474 {dimension_numbers = #tpu.dot_dimension_numbers<[1], [0], [0], [1], [0, 0, 1, 1], [], []>} : vector<6x6xf32>, vector<6x128xf32>, vector<6x128xf32> -> vector<6x128xf32>
    %c1_475 = arith.constant 1 : index
    %c0_476 = arith.constant 0 : index
    %c0_477 = arith.constant 0 : index
    %496 = vector.load %arg39[%c1_475, %c0_476, %c0_477] : memref<2x6x6xf32, #tpu.memory_space<vmem>>, vector<1x6x6xf32>
    %497 = vector.shape_cast %496 : vector<1x6x6xf32> to vector<6x6xf32>
    %cst_478 = arith.constant dense<0.000000e+00> : vector<6x128xf32>
    %498 = tpu.matmul %497, %482, %cst_478 {dimension_numbers = #tpu.dot_dimension_numbers<[1], [0], [0], [1], [0, 0, 1, 1], [], []>} : vector<6x6xf32>, vector<6x128xf32>, vector<6x128xf32> -> vector<6x128xf32>
    %499 = tpu.concatenate %495, %498 in 1 : vector<6x128xf32>, vector<6x128xf32> -> vector<6x256xf32>
    %c1_479 = arith.constant 1 : index
    %c0_480 = arith.constant 0 : index
    %c0_481 = arith.constant 0 : index
    %500 = vector.load %arg47[%c1_479, %c0_480, %c0_481] : memref<2x6x256xf32, #tpu.memory_space<vmem>>, vector<1x6x256xf32>
    %501 = vector.shape_cast %500 : vector<1x6x256xf32> to vector<6x256xf32>
    %502 = vector.shape_cast %499 : vector<6x256xf32> to vector<1x6x256xf32>
    tpu.vector_store %arg47[%c1_479, %c0_480, %c0_481], %502 {strides = array<i32>} : memref<2x6x256xf32, #tpu.memory_space<vmem>>, vector<1x6x256xf32>,
    %cst_482 = arith.constant 0.000000e+00 : f32
    %503 = vector.broadcast %cst_482 : f32 to vector<2x256xf32>
    %c0_483 = arith.constant 0 : index
    %c0_484 = arith.constant 0 : index
    %c0_485 = arith.constant 0 : index
    %504 = vector.load %arg47[%c0_483, %c0_484, %c0_485] : memref<2x6x256xf32, #tpu.memory_space<vmem>>, vector<1x2x256xf32>
    %505 = vector.shape_cast %504 : vector<1x2x256xf32> to vector<2x256xf32>
    %c0_486 = arith.constant 0 : index
    %c0_487 = arith.constant 0 : index
    %c0_488 = arith.constant 0 : index
    %506 = vector.load %arg26[%c0_486, %c0_487, %c0_488] : memref<3x256x256xf32, #tpu.memory_space<vmem>>, vector<1x256x256xf32>
    %507 = vector.shape_cast %506 : vector<1x256x256xf32> to vector<256x256xf32>
    %cst_489 = arith.constant dense<0.000000e+00> : vector<2x256xf32>
    %508 = tpu.matmul %505, %507, %cst_489 {dimension_numbers = #tpu.dot_dimension_numbers<[1], [0], [0], [1], [0, 0, 1, 1], [], []>} : vector<2x256xf32>, vector<256x256xf32>, vector<2x256xf32> -> vector<2x256xf32>
    %509 = arith.addf %503, %508 : vector<2x256xf32>
    %c0_490 = arith.constant 0 : index
    %c1_491 = arith.constant 1 : index
    %c0_492 = arith.constant 0 : index
    %510 = vector.load %arg47[%c0_490, %c1_491, %c0_492] : memref<2x6x256xf32, #tpu.memory_space<vmem>>, vector<1x2x256xf32>
    %511 = vector.shape_cast %510 : vector<1x2x256xf32> to vector<2x256xf32>
    %512 = vector.extract_strided_slice %511 {offsets = [0, 0], sizes = [2, 128], strides = [1, 1]} : vector<2x256xf32> to vector<2x128xf32>
    %c0_493 = arith.constant 0 : index
    %c0_494 = arith.constant 0 : index
    %c0_495 = arith.constant 0 : index
    %513 = vector.load %arg27[%c0_493, %c0_494, %c0_495] : memref<3x128x256xf32, #tpu.memory_space<vmem>>, vector<1x128x256xf32>
    %514 = vector.shape_cast %513 : vector<1x128x256xf32> to vector<128x256xf32>
    %cst_496 = arith.constant dense<0.000000e+00> : vector<2x256xf32>
    %515 = tpu.matmul %512, %514, %cst_496 {dimension_numbers = #tpu.dot_dimension_numbers<[1], [0], [0], [1], [0, 0, 1, 1], [], []>} : vector<2x128xf32>, vector<128x256xf32>, vector<2x256xf32> -> vector<2x256xf32>
    %516 = arith.addf %509, %515 : vector<2x256xf32>
    %c1_497 = arith.constant 1 : index
    %c0_498 = arith.constant 0 : index
    %c0_499 = arith.constant 0 : index
    %517 = vector.load %arg47[%c1_497, %c0_498, %c0_499] : memref<2x6x256xf32, #tpu.memory_space<vmem>>, vector<1x2x256xf32>
    %518 = vector.shape_cast %517 : vector<1x2x256xf32> to vector<2x256xf32>
    %c1_500 = arith.constant 1 : index
    %c0_501 = arith.constant 0 : index
    %c0_502 = arith.constant 0 : index
    %519 = vector.load %arg26[%c1_500, %c0_501, %c0_502] : memref<3x256x256xf32, #tpu.memory_space<vmem>>, vector<1x256x256xf32>
    %520 = vector.shape_cast %519 : vector<1x256x256xf32> to vector<256x256xf32>
    %cst_503 = arith.constant dense<0.000000e+00> : vector<2x256xf32>
    %521 = tpu.matmul %518, %520, %cst_503 {dimension_numbers = #tpu.dot_dimension_numbers<[1], [0], [0], [1], [0, 0, 1, 1], [], []>} : vector<2x256xf32>, vector<256x256xf32>, vector<2x256xf32> -> vector<2x256xf32>
    %522 = arith.addf %516, %521 : vector<2x256xf32>
    %c1_504 = arith.constant 1 : index
    %c1_505 = arith.constant 1 : index
    %c0_506 = arith.constant 0 : index
    %523 = vector.load %arg47[%c1_504, %c1_505, %c0_506] : memref<2x6x256xf32, #tpu.memory_space<vmem>>, vector<1x2x256xf32>
    %524 = vector.shape_cast %523 : vector<1x2x256xf32> to vector<2x256xf32>
    %525 = vector.extract_strided_slice %524 {offsets = [0, 0], sizes = [2, 128], strides = [1, 1]} : vector<2x256xf32> to vector<2x128xf32>
    %c1_507 = arith.constant 1 : index
    %c0_508 = arith.constant 0 : index
    %c0_509 = arith.constant 0 : index
    %526 = vector.load %arg27[%c1_507, %c0_508, %c0_509] : memref<3x128x256xf32, #tpu.memory_space<vmem>>, vector<1x128x256xf32>
    %527 = vector.shape_cast %526 : vector<1x128x256xf32> to vector<128x256xf32>
    %cst_510 = arith.constant dense<0.000000e+00> : vector<2x256xf32>
    %528 = tpu.matmul %525, %527, %cst_510 {dimension_numbers = #tpu.dot_dimension_numbers<[1], [0], [0], [1], [0, 0, 1, 1], [], []>} : vector<2x128xf32>, vector<128x256xf32>, vector<2x256xf32> -> vector<2x256xf32>
    %529 = arith.addf %522, %528 : vector<2x256xf32>
    %c0_511 = arith.constant 0 : index
    %c2_512 = arith.constant 2 : index
    %c0_513 = arith.constant 0 : index
    %530 = vector.load %arg47[%c0_511, %c2_512, %c0_513] : memref<2x6x256xf32, #tpu.memory_space<vmem>>, vector<1x2x256xf32>
    %531 = vector.shape_cast %530 : vector<1x2x256xf32> to vector<2x256xf32>
    %c2_514 = arith.constant 2 : index
    %c0_515 = arith.constant 0 : index
    %c0_516 = arith.constant 0 : index
    %532 = vector.load %arg26[%c2_514, %c0_515, %c0_516] : memref<3x256x256xf32, #tpu.memory_space<vmem>>, vector<1x256x256xf32>
    %533 = vector.shape_cast %532 : vector<1x256x256xf32> to vector<256x256xf32>
    %cst_517 = arith.constant dense<0.000000e+00> : vector<2x256xf32>
    %534 = tpu.matmul %531, %533, %cst_517 {dimension_numbers = #tpu.dot_dimension_numbers<[1], [0], [0], [1], [0, 0, 1, 1], [], []>} : vector<2x256xf32>, vector<256x256xf32>, vector<2x256xf32> -> vector<2x256xf32>
    %535 = arith.addf %529, %534 : vector<2x256xf32>
    %c0_518 = arith.constant 0 : index
    %c3_519 = arith.constant 3 : index
    %c0_520 = arith.constant 0 : index
    %536 = vector.load %arg47[%c0_518, %c3_519, %c0_520] : memref<2x6x256xf32, #tpu.memory_space<vmem>>, vector<1x2x256xf32>
    %537 = vector.shape_cast %536 : vector<1x2x256xf32> to vector<2x256xf32>
    %538 = vector.extract_strided_slice %537 {offsets = [0, 0], sizes = [2, 128], strides = [1, 1]} : vector<2x256xf32> to vector<2x128xf32>
    %c2_521 = arith.constant 2 : index
    %c0_522 = arith.constant 0 : index
    %c0_523 = arith.constant 0 : index
    %539 = vector.load %arg27[%c2_521, %c0_522, %c0_523] : memref<3x128x256xf32, #tpu.memory_space<vmem>>, vector<1x128x256xf32>
    %540 = vector.shape_cast %539 : vector<1x128x256xf32> to vector<128x256xf32>
    %cst_524 = arith.constant dense<0.000000e+00> : vector<2x256xf32>
    %541 = tpu.matmul %538, %540, %cst_524 {dimension_numbers = #tpu.dot_dimension_numbers<[1], [0], [0], [1], [0, 0, 1, 1], [], []>} : vector<2x128xf32>, vector<128x256xf32>, vector<2x256xf32> -> vector<2x256xf32>
    %542 = arith.addf %535, %541 : vector<2x256xf32>
    %543 = tpu.iota {dimensions = array<i32: 0>} : vector<2x1xi32>
    %cst_525 = arith.constant 1.000000e+00 : f32
    %544 = vector.broadcast %cst_525 : f32 to vector<2x1xf32>
    %c1_i32 = arith.constant 1 : i32
    %545 = vector.broadcast %c1_i32 : i32 to vector<2x1xi32>
    %546 = arith.cmpi eq, %543, %545 : vector<2x1xi32>
    %cst_526 = arith.constant 0.000000e+00 : f32
    %547 = vector.broadcast %cst_526 : f32 to vector<2x1xf32>
    %548 = arith.select %546, %547, %544 : vector<2x1xi1>, vector<2x1xf32>
    %c0_527 = arith.constant 0 : index
    %c0_528 = arith.constant 0 : index
    %549 = vector.load %arg28[%c0_527, %c0_528] : memref<1x256xf32, #tpu.memory_space<vmem>>, vector<1x256xf32>
    %550 = vector.broadcast %549 : vector<1x256xf32> to vector<2x256xf32>
    %551 = arith.addf %542, %550 : vector<2x256xf32>
    %cst_529 = arith.constant 0.000000e+00 : f32
    %552 = vector.broadcast %cst_529 : f32 to vector<2x256xf32>
    %553 = arith.maximumf %551, %552 : vector<2x256xf32>
    %554 = vector.broadcast %548 : vector<2x1xf32> to vector<2x256xf32>
    %555 = arith.mulf %553, %554 : vector<2x256xf32>
    %cst_530 = arith.constant 0.000000e+00 : f32
    %556 = vector.broadcast %cst_530 : f32 to vector<3x256xf32>
    %c0_531 = arith.constant 0 : index
    %c0_532 = arith.constant 0 : index
    %557 = vector.load %arg44[%c0_531, %c0_532] : memref<8x256xf32, #tpu.memory_space<vmem>>, vector<3x256xf32>
    tpu.vector_store %arg44[%c0_531, %c0_532], %556 {strides = array<i32>} : memref<8x256xf32, #tpu.memory_space<vmem>>, vector<3x256xf32>,
    %cst_533 = arith.constant 0.000000e+00 : f32
    %558 = vector.broadcast %cst_533 : f32 to vector<3x256xf32>
    %c5_534 = arith.constant 5 : index
    %c0_535 = arith.constant 0 : index
    %559 = vector.load %arg44[%c5_534, %c0_535] : memref<8x256xf32, #tpu.memory_space<vmem>>, vector<3x256xf32>
    tpu.vector_store %arg44[%c5_534, %c0_535], %558 {strides = array<i32>} : memref<8x256xf32, #tpu.memory_space<vmem>>, vector<3x256xf32>,
    %c3_536 = arith.constant 3 : index
    %c0_537 = arith.constant 0 : index
    %560 = vector.load %arg44[%c3_536, %c0_537] : memref<8x256xf32, #tpu.memory_space<vmem>>, vector<2x256xf32>
    tpu.vector_store %arg44[%c3_536, %c0_537], %555 {strides = array<i32>} : memref<8x256xf32, #tpu.memory_space<vmem>>, vector<2x256xf32>,
    %cst_538 = arith.constant 0.000000e+00 : f32
    %561 = vector.broadcast %cst_538 : f32 to vector<2x256xf32>
    %c0_539 = arith.constant 0 : index
    %c0_540 = arith.constant 0 : index
    %562 = vector.load %arg44[%c0_539, %c0_540] : memref<8x256xf32, #tpu.memory_space<vmem>>, vector<2x256xf32>
    %c0_541 = arith.constant 0 : index
    %c0_542 = arith.constant 0 : index
    %c0_543 = arith.constant 0 : index
    %c0_544 = arith.constant 0 : index
    %563 = vector.load %arg29[%c0_541, %c0_542, %c0_543, %c0_544] : memref<3x3x256x256xf32, #tpu.memory_space<vmem>>, vector<1x1x256x256xf32>
    %564 = vector.shape_cast %563 : vector<1x1x256x256xf32> to vector<256x256xf32>
    %cst_545 = arith.constant dense<0.000000e+00> : vector<2x256xf32>
    %565 = tpu.matmul %562, %564, %cst_545 {dimension_numbers = #tpu.dot_dimension_numbers<[1], [0], [0], [1], [0, 0, 1, 1], [], []>} : vector<2x256xf32>, vector<256x256xf32>, vector<2x256xf32> -> vector<2x256xf32>
    %566 = arith.addf %561, %565 : vector<2x256xf32>
    %c1_546 = arith.constant 1 : index
    %c0_547 = arith.constant 0 : index
    %567 = vector.load %arg44[%c1_546, %c0_547] : memref<8x256xf32, #tpu.memory_space<vmem>>, vector<2x256xf32>
    %c0_548 = arith.constant 0 : index
    %c1_549 = arith.constant 1 : index
    %c0_550 = arith.constant 0 : index
    %c0_551 = arith.constant 0 : index
    %568 = vector.load %arg29[%c0_548, %c1_549, %c0_550, %c0_551] : memref<3x3x256x256xf32, #tpu.memory_space<vmem>>, vector<1x1x256x256xf32>
    %569 = vector.shape_cast %568 : vector<1x1x256x256xf32> to vector<256x256xf32>
    %cst_552 = arith.constant dense<0.000000e+00> : vector<2x256xf32>
    %570 = tpu.matmul %567, %569, %cst_552 {dimension_numbers = #tpu.dot_dimension_numbers<[1], [0], [0], [1], [0, 0, 1, 1], [], []>} : vector<2x256xf32>, vector<256x256xf32>, vector<2x256xf32> -> vector<2x256xf32>
    %571 = arith.addf %566, %570 : vector<2x256xf32>
    %c2_553 = arith.constant 2 : index
    %c0_554 = arith.constant 0 : index
    %572 = vector.load %arg44[%c2_553, %c0_554] : memref<8x256xf32, #tpu.memory_space<vmem>>, vector<2x256xf32>
    %c0_555 = arith.constant 0 : index
    %c2_556 = arith.constant 2 : index
    %c0_557 = arith.constant 0 : index
    %c0_558 = arith.constant 0 : index
    %573 = vector.load %arg29[%c0_555, %c2_556, %c0_557, %c0_558] : memref<3x3x256x256xf32, #tpu.memory_space<vmem>>, vector<1x1x256x256xf32>
    %574 = vector.shape_cast %573 : vector<1x1x256x256xf32> to vector<256x256xf32>
    %cst_559 = arith.constant dense<0.000000e+00> : vector<2x256xf32>
    %575 = tpu.matmul %572, %574, %cst_559 {dimension_numbers = #tpu.dot_dimension_numbers<[1], [0], [0], [1], [0, 0, 1, 1], [], []>} : vector<2x256xf32>, vector<256x256xf32>, vector<2x256xf32> -> vector<2x256xf32>
    %576 = arith.addf %571, %575 : vector<2x256xf32>
    %c2_560 = arith.constant 2 : index
    %c0_561 = arith.constant 0 : index
    %577 = vector.load %arg44[%c2_560, %c0_561] : memref<8x256xf32, #tpu.memory_space<vmem>>, vector<2x256xf32>
    %c1_562 = arith.constant 1 : index
    %c0_563 = arith.constant 0 : index
    %c0_564 = arith.constant 0 : index
    %c0_565 = arith.constant 0 : index
    %578 = vector.load %arg29[%c1_562, %c0_563, %c0_564, %c0_565] : memref<3x3x256x256xf32, #tpu.memory_space<vmem>>, vector<1x1x256x256xf32>
    %579 = vector.shape_cast %578 : vector<1x1x256x256xf32> to vector<256x256xf32>
    %cst_566 = arith.constant dense<0.000000e+00> : vector<2x256xf32>
    %580 = tpu.matmul %577, %579, %cst_566 {dimension_numbers = #tpu.dot_dimension_numbers<[1], [0], [0], [1], [0, 0, 1, 1], [], []>} : vector<2x256xf32>, vector<256x256xf32>, vector<2x256xf32> -> vector<2x256xf32>
    %581 = arith.addf %576, %580 : vector<2x256xf32>
    %c3_567 = arith.constant 3 : index
    %c0_568 = arith.constant 0 : index
    %582 = vector.load %arg44[%c3_567, %c0_568] : memref<8x256xf32, #tpu.memory_space<vmem>>, vector<2x256xf32>
    %c1_569 = arith.constant 1 : index
    %c1_570 = arith.constant 1 : index
    %c0_571 = arith.constant 0 : index
    %c0_572 = arith.constant 0 : index
    %583 = vector.load %arg29[%c1_569, %c1_570, %c0_571, %c0_572] : memref<3x3x256x256xf32, #tpu.memory_space<vmem>>, vector<1x1x256x256xf32>
    %584 = vector.shape_cast %583 : vector<1x1x256x256xf32> to vector<256x256xf32>
    %cst_573 = arith.constant dense<0.000000e+00> : vector<2x256xf32>
    %585 = tpu.matmul %582, %584, %cst_573 {dimension_numbers = #tpu.dot_dimension_numbers<[1], [0], [0], [1], [0, 0, 1, 1], [], []>} : vector<2x256xf32>, vector<256x256xf32>, vector<2x256xf32> -> vector<2x256xf32>
    %586 = arith.addf %581, %585 : vector<2x256xf32>
    %c4_574 = arith.constant 4 : index
    %c0_575 = arith.constant 0 : index
    %587 = vector.load %arg44[%c4_574, %c0_575] : memref<8x256xf32, #tpu.memory_space<vmem>>, vector<2x256xf32>
    %c1_576 = arith.constant 1 : index
    %c2_577 = arith.constant 2 : index
    %c0_578 = arith.constant 0 : index
    %c0_579 = arith.constant 0 : index
    %588 = vector.load %arg29[%c1_576, %c2_577, %c0_578, %c0_579] : memref<3x3x256x256xf32, #tpu.memory_space<vmem>>, vector<1x1x256x256xf32>
    %589 = vector.shape_cast %588 : vector<1x1x256x256xf32> to vector<256x256xf32>
    %cst_580 = arith.constant dense<0.000000e+00> : vector<2x256xf32>
    %590 = tpu.matmul %587, %589, %cst_580 {dimension_numbers = #tpu.dot_dimension_numbers<[1], [0], [0], [1], [0, 0, 1, 1], [], []>} : vector<2x256xf32>, vector<256x256xf32>, vector<2x256xf32> -> vector<2x256xf32>
    %591 = arith.addf %586, %590 : vector<2x256xf32>
    %c4_581 = arith.constant 4 : index
    %c0_582 = arith.constant 0 : index
    %592 = vector.load %arg44[%c4_581, %c0_582] : memref<8x256xf32, #tpu.memory_space<vmem>>, vector<2x256xf32>
    %c2_583 = arith.constant 2 : index
    %c0_584 = arith.constant 0 : index
    %c0_585 = arith.constant 0 : index
    %c0_586 = arith.constant 0 : index
    %593 = vector.load %arg29[%c2_583, %c0_584, %c0_585, %c0_586] : memref<3x3x256x256xf32, #tpu.memory_space<vmem>>, vector<1x1x256x256xf32>
    %594 = vector.shape_cast %593 : vector<1x1x256x256xf32> to vector<256x256xf32>
    %cst_587 = arith.constant dense<0.000000e+00> : vector<2x256xf32>
    %595 = tpu.matmul %592, %594, %cst_587 {dimension_numbers = #tpu.dot_dimension_numbers<[1], [0], [0], [1], [0, 0, 1, 1], [], []>} : vector<2x256xf32>, vector<256x256xf32>, vector<2x256xf32> -> vector<2x256xf32>
    %596 = arith.addf %591, %595 : vector<2x256xf32>
    %c5_588 = arith.constant 5 : index
    %c0_589 = arith.constant 0 : index
    %597 = vector.load %arg44[%c5_588, %c0_589] : memref<8x256xf32, #tpu.memory_space<vmem>>, vector<2x256xf32>
    %c2_590 = arith.constant 2 : index
    %c1_591 = arith.constant 1 : index
    %c0_592 = arith.constant 0 : index
    %c0_593 = arith.constant 0 : index
    %598 = vector.load %arg29[%c2_590, %c1_591, %c0_592, %c0_593] : memref<3x3x256x256xf32, #tpu.memory_space<vmem>>, vector<1x1x256x256xf32>
    %599 = vector.shape_cast %598 : vector<1x1x256x256xf32> to vector<256x256xf32>
    %cst_594 = arith.constant dense<0.000000e+00> : vector<2x256xf32>
    %600 = tpu.matmul %597, %599, %cst_594 {dimension_numbers = #tpu.dot_dimension_numbers<[1], [0], [0], [1], [0, 0, 1, 1], [], []>} : vector<2x256xf32>, vector<256x256xf32>, vector<2x256xf32> -> vector<2x256xf32>
    %601 = arith.addf %596, %600 : vector<2x256xf32>
    %c6_595 = arith.constant 6 : index
    %c0_596 = arith.constant 0 : index
    %602 = vector.load %arg44[%c6_595, %c0_596] : memref<8x256xf32, #tpu.memory_space<vmem>>, vector<2x256xf32>
    %c2_597 = arith.constant 2 : index
    %c2_598 = arith.constant 2 : index
    %c0_599 = arith.constant 0 : index
    %c0_600 = arith.constant 0 : index
    %603 = vector.load %arg29[%c2_597, %c2_598, %c0_599, %c0_600] : memref<3x3x256x256xf32, #tpu.memory_space<vmem>>, vector<1x1x256x256xf32>
    %604 = vector.shape_cast %603 : vector<1x1x256x256xf32> to vector<256x256xf32>
    %cst_601 = arith.constant dense<0.000000e+00> : vector<2x256xf32>
    %605 = tpu.matmul %602, %604, %cst_601 {dimension_numbers = #tpu.dot_dimension_numbers<[1], [0], [0], [1], [0, 0, 1, 1], [], []>} : vector<2x256xf32>, vector<256x256xf32>, vector<2x256xf32> -> vector<2x256xf32>
    %606 = arith.addf %601, %605 : vector<2x256xf32>
    %607 = vector.broadcast %548 : vector<2x1xf32> to vector<2x256xf32>
    %608 = arith.mulf %606, %607 : vector<2x256xf32>
    %cst_602 = arith.constant dense<0.000000e+00> : vector<256xf32>
    %609 = vector.multi_reduction <add>, %608, %cst_602 [0] : vector<2x256xf32> to vector<256xf32>
    %610 = vector.shape_cast %609 : vector<256xf32> to vector<1x256xf32>
    %cst_603 = arith.constant 1.000000e+00 : f32
    %611 = vector.broadcast %cst_603 : f32 to vector<1x256xf32>
    %612 = arith.mulf %610, %611 : vector<1x256xf32>
    %c0_604 = arith.constant 0 : index
    %c0_605 = arith.constant 0 : index
    %613 = vector.load %arg32[%c0_604, %c0_605] : memref<256x16xf32, #tpu.memory_space<vmem>>, vector<256x16xf32>
    %cst_606 = arith.constant dense<0.000000e+00> : vector<1x16xf32>
    %614 = tpu.matmul %612, %613, %cst_606 {dimension_numbers = #tpu.dot_dimension_numbers<[1], [0], [0], [1], [0, 0, 1, 1], [], []>} : vector<1x256xf32>, vector<256x16xf32>, vector<1x16xf32> -> vector<1x16xf32>
    %cst_607 = arith.constant 0.000000e+00 : f32
    %615 = vector.broadcast %cst_607 : f32 to vector<1x16xf32>
    %616 = arith.maximumf %614, %615 : vector<1x16xf32>
    %c0_608 = arith.constant 0 : index
    %c0_609 = arith.constant 0 : index
    %617 = vector.load %arg33[%c0_608, %c0_609] : memref<16x256xf32, #tpu.memory_space<vmem>>, vector<16x256xf32>
    %cst_610 = arith.constant dense<0.000000e+00> : vector<1x256xf32>
    %618 = tpu.matmul %616, %617, %cst_610 {dimension_numbers = #tpu.dot_dimension_numbers<[1], [0], [0], [1], [0, 0, 1, 1], [], []>} : vector<1x16xf32>, vector<16x256xf32>, vector<1x256xf32> -> vector<1x256xf32>
    %619 = arith.negf %618 : vector<1x256xf32>
    %620 = math.exp %619 : vector<1x256xf32>
    %cst_611 = arith.constant 1.000000e+00 : f32
    %621 = vector.broadcast %cst_611 : f32 to vector<1x256xf32>
    %622 = arith.addf %621, %620 : vector<1x256xf32>
    %623 = arith.divf %621, %622 : vector<1x256xf32>
    %c1_612 = arith.constant 1 : index
    %c0_613 = arith.constant 0 : index
    %c0_614 = arith.constant 0 : index
    %624 = vector.load %arg47[%c1_612, %c0_613, %c0_614] : memref<2x6x256xf32, #tpu.memory_space<vmem>>, vector<1x2x256xf32>
    %625 = vector.shape_cast %624 : vector<1x2x256xf32> to vector<2x256xf32>
    %c0_615 = arith.constant 0 : index
    %c0_616 = arith.constant 0 : index
    %626 = vector.load %arg30[%c0_615, %c0_616] : memref<256x256xf32, #tpu.memory_space<vmem>>, vector<256x256xf32>
    %cst_617 = arith.constant dense<0.000000e+00> : vector<2x256xf32>
    %627 = tpu.matmul %625, %626, %cst_617 {dimension_numbers = #tpu.dot_dimension_numbers<[1], [0], [0], [1], [0, 0, 1, 1], [], []>} : vector<2x256xf32>, vector<256x256xf32>, vector<2x256xf32> -> vector<2x256xf32>
    %c0_618 = arith.constant 0 : index
    %c0_619 = arith.constant 0 : index
    %628 = vector.load %arg31[%c0_618, %c0_619] : memref<1x256xf32, #tpu.memory_space<vmem>>, vector<1x256xf32>
    %629 = vector.broadcast %628 : vector<1x256xf32> to vector<2x256xf32>
    %630 = arith.addf %627, %629 : vector<2x256xf32>
    %631 = vector.broadcast %623 : vector<1x256xf32> to vector<2x256xf32>
    %632 = arith.mulf %606, %631 : vector<2x256xf32>
    %633 = arith.addf %632, %630 : vector<2x256xf32>
    %cst_620 = arith.constant 0.000000e+00 : f32
    %634 = vector.broadcast %cst_620 : f32 to vector<2x256xf32>
    %635 = arith.maximumf %633, %634 : vector<2x256xf32>
    %636 = vector.extract_strided_slice %635 {offsets = [0, 0], sizes = [1, 256], strides = [1, 1]} : vector<2x256xf32> to vector<1x256xf32>
    %c0_621 = arith.constant 0 : index
    %c0_622 = arith.constant 0 : index
    %c0_623 = arith.constant 0 : index
    %c0_624 = arith.constant 0 : index
    %637 = vector.load %arg40[%c0_621, %c0_622, %c0_623, %c0_624] : memref<1x1x1x256xf32, #tpu.memory_space<vmem>>, vector<1x1x1x256xf32>
    %638 = vector.shape_cast %637 : vector<1x1x1x256xf32> to vector<1x256xf32>
    %639 = vector.shape_cast %636 : vector<1x256xf32> to vector<1x1x1x256xf32>
    tpu.vector_store %arg40[%c0_621, %c0_622, %c0_623, %c0_624], %639 {strides = array<i32>} : memref<1x1x1x256xf32, #tpu.memory_space<vmem>>, vector<1x1x1x256xf32>,
    return
  }
  func.func @transform_0(%arg0: i32) -> (i32, i32, i32, i32) {
    %c0_i32 = arith.constant 0 : i32
    %c0_i32_0 = arith.constant 0 : i32
    %c0_i32_1 = arith.constant 0 : i32
    %c0_i32_2 = arith.constant 0 : i32
    return %arg0, %c0_i32, %c0_i32_0, %c0_i32_1 : i32, i32, i32, i32
  }
  func.func @transform_1(%arg0: i32) -> (i32, i32, i32) {
    %c0_i32 = arith.constant 0 : i32
    %c0_i32_0 = arith.constant 0 : i32
    %c0_i32_1 = arith.constant 0 : i32
    %c0_i32_2 = arith.constant 0 : i32
    return %c0_i32, %c0_i32_0, %c0_i32_1 : i32, i32, i32
  }
  func.func @transform_2(%arg0: i32) -> (i32, i32, i32) {
    %c0_i32 = arith.constant 0 : i32
    %c0_i32_0 = arith.constant 0 : i32
    %c0_i32_1 = arith.constant 0 : i32
    %c0_i32_2 = arith.constant 0 : i32
    return %c0_i32, %c0_i32_0, %c0_i32_1 : i32, i32, i32
  }
  func.func @transform_3(%arg0: i32) -> (i32, i32) {
    %c0_i32 = arith.constant 0 : i32
    %c0_i32_0 = arith.constant 0 : i32
    %c0_i32_1 = arith.constant 0 : i32
    return %c0_i32, %c0_i32_0 : i32, i32
  }
  func.func @transform_4(%arg0: i32) -> (i32, i32, i32, i32) {
    %c0_i32 = arith.constant 0 : i32
    %c0_i32_0 = arith.constant 0 : i32
    %c0_i32_1 = arith.constant 0 : i32
    %c0_i32_2 = arith.constant 0 : i32
    %c0_i32_3 = arith.constant 0 : i32
    return %c0_i32, %c0_i32_0, %c0_i32_1, %c0_i32_2 : i32, i32, i32, i32
  }
  func.func @transform_5(%arg0: i32) -> (i32, i32) {
    %c0_i32 = arith.constant 0 : i32
    %c0_i32_0 = arith.constant 0 : i32
    %c0_i32_1 = arith.constant 0 : i32
    return %c0_i32, %c0_i32_0 : i32, i32
  }
  func.func @transform_6(%arg0: i32) -> (i32, i32) {
    %c0_i32 = arith.constant 0 : i32
    %c0_i32_0 = arith.constant 0 : i32
    %c0_i32_1 = arith.constant 0 : i32
    return %c0_i32, %c0_i32_0 : i32, i32
  }
  func.func @transform_7(%arg0: i32) -> (i32, i32) {
    %c0_i32 = arith.constant 0 : i32
    %c0_i32_0 = arith.constant 0 : i32
    %c0_i32_1 = arith.constant 0 : i32
    return %c0_i32, %c0_i32_0 : i32, i32
  }
  func.func @transform_8(%arg0: i32) -> (i32, i32) {
    %c0_i32 = arith.constant 0 : i32
    %c0_i32_0 = arith.constant 0 : i32
    %c0_i32_1 = arith.constant 0 : i32
    return %c0_i32, %c0_i32_0 : i32, i32
  }
  func.func @transform_9(%arg0: i32) -> (i32, i32, i32) {
    %c0_i32 = arith.constant 0 : i32
    %c0_i32_0 = arith.constant 0 : i32
    %c0_i32_1 = arith.constant 0 : i32
    %c0_i32_2 = arith.constant 0 : i32
    return %c0_i32, %c0_i32_0, %c0_i32_1 : i32, i32, i32
  }
  func.func @transform_10(%arg0: i32) -> (i32, i32, i32) {
    %c0_i32 = arith.constant 0 : i32
    %c0_i32_0 = arith.constant 0 : i32
    %c0_i32_1 = arith.constant 0 : i32
    %c0_i32_2 = arith.constant 0 : i32
    return %c0_i32, %c0_i32_0, %c0_i32_1 : i32, i32, i32
  }
  func.func @transform_11(%arg0: i32) -> (i32, i32) {
    %c0_i32 = arith.constant 0 : i32
    %c0_i32_0 = arith.constant 0 : i32
    %c0_i32_1 = arith.constant 0 : i32
    return %c0_i32, %c0_i32_0 : i32, i32
  }
  func.func @transform_12(%arg0: i32) -> (i32, i32, i32, i32) {
    %c0_i32 = arith.constant 0 : i32
    %c0_i32_0 = arith.constant 0 : i32
    %c0_i32_1 = arith.constant 0 : i32
    %c0_i32_2 = arith.constant 0 : i32
    %c0_i32_3 = arith.constant 0 : i32
    return %c0_i32, %c0_i32_0, %c0_i32_1, %c0_i32_2 : i32, i32, i32, i32
  }
  func.func @transform_13(%arg0: i32) -> (i32, i32) {
    %c0_i32 = arith.constant 0 : i32
    %c0_i32_0 = arith.constant 0 : i32
    %c0_i32_1 = arith.constant 0 : i32
    return %c0_i32, %c0_i32_0 : i32, i32
  }
  func.func @transform_14(%arg0: i32) -> (i32, i32) {
    %c0_i32 = arith.constant 0 : i32
    %c0_i32_0 = arith.constant 0 : i32
    %c0_i32_1 = arith.constant 0 : i32
    return %c0_i32, %c0_i32_0 : i32, i32
  }
  func.func @transform_15(%arg0: i32) -> (i32, i32) {
    %c0_i32 = arith.constant 0 : i32
    %c0_i32_0 = arith.constant 0 : i32
    %c0_i32_1 = arith.constant 0 : i32
    return %c0_i32, %c0_i32_0 : i32, i32
  }
  func.func @transform_16(%arg0: i32) -> (i32, i32) {
    %c0_i32 = arith.constant 0 : i32
    %c0_i32_0 = arith.constant 0 : i32
    %c0_i32_1 = arith.constant 0 : i32
    return %c0_i32, %c0_i32_0 : i32, i32
  }
  func.func @transform_17(%arg0: i32) -> (i32, i32, i32) {
    %c0_i32 = arith.constant 0 : i32
    %c0_i32_0 = arith.constant 0 : i32
    %c0_i32_1 = arith.constant 0 : i32
    %c0_i32_2 = arith.constant 0 : i32
    return %c0_i32, %c0_i32_0, %c0_i32_1 : i32, i32, i32
  }
  func.func @transform_18(%arg0: i32) -> (i32, i32, i32) {
    %c0_i32 = arith.constant 0 : i32
    %c0_i32_0 = arith.constant 0 : i32
    %c0_i32_1 = arith.constant 0 : i32
    %c0_i32_2 = arith.constant 0 : i32
    return %c0_i32, %c0_i32_0, %c0_i32_1 : i32, i32, i32
  }
  func.func @transform_19(%arg0: i32) -> (i32, i32) {
    %c0_i32 = arith.constant 0 : i32
    %c0_i32_0 = arith.constant 0 : i32
    %c0_i32_1 = arith.constant 0 : i32
    return %c0_i32, %c0_i32_0 : i32, i32
  }
  func.func @transform_20(%arg0: i32) -> (i32, i32, i32, i32) {
    %c0_i32 = arith.constant 0 : i32
    %c0_i32_0 = arith.constant 0 : i32
    %c0_i32_1 = arith.constant 0 : i32
    %c0_i32_2 = arith.constant 0 : i32
    %c0_i32_3 = arith.constant 0 : i32
    return %c0_i32, %c0_i32_0, %c0_i32_1, %c0_i32_2 : i32, i32, i32, i32
  }
  func.func @transform_21(%arg0: i32) -> (i32, i32) {
    %c0_i32 = arith.constant 0 : i32
    %c0_i32_0 = arith.constant 0 : i32
    %c0_i32_1 = arith.constant 0 : i32
    return %c0_i32, %c0_i32_0 : i32, i32
  }
  func.func @transform_22(%arg0: i32) -> (i32, i32) {
    %c0_i32 = arith.constant 0 : i32
    %c0_i32_0 = arith.constant 0 : i32
    %c0_i32_1 = arith.constant 0 : i32
    return %c0_i32, %c0_i32_0 : i32, i32
  }
  func.func @transform_23(%arg0: i32) -> (i32, i32) {
    %c0_i32 = arith.constant 0 : i32
    %c0_i32_0 = arith.constant 0 : i32
    %c0_i32_1 = arith.constant 0 : i32
    return %c0_i32, %c0_i32_0 : i32, i32
  }
  func.func @transform_24(%arg0: i32) -> (i32, i32) {
    %c0_i32 = arith.constant 0 : i32
    %c0_i32_0 = arith.constant 0 : i32
    %c0_i32_1 = arith.constant 0 : i32
    return %c0_i32, %c0_i32_0 : i32, i32
  }
  func.func @transform_25(%arg0: i32) -> (i32, i32, i32) {
    %c0_i32 = arith.constant 0 : i32
    %c0_i32_0 = arith.constant 0 : i32
    %c0_i32_1 = arith.constant 0 : i32
    %c0_i32_2 = arith.constant 0 : i32
    return %c0_i32, %c0_i32_0, %c0_i32_1 : i32, i32, i32
  }
  func.func @transform_26(%arg0: i32) -> (i32, i32, i32) {
    %c0_i32 = arith.constant 0 : i32
    %c0_i32_0 = arith.constant 0 : i32
    %c0_i32_1 = arith.constant 0 : i32
    %c0_i32_2 = arith.constant 0 : i32
    return %c0_i32, %c0_i32_0, %c0_i32_1 : i32, i32, i32
  }
  func.func @transform_27(%arg0: i32) -> (i32, i32) {
    %c0_i32 = arith.constant 0 : i32
    %c0_i32_0 = arith.constant 0 : i32
    %c0_i32_1 = arith.constant 0 : i32
    return %c0_i32, %c0_i32_0 : i32, i32
  }
  func.func @transform_28(%arg0: i32) -> (i32, i32, i32, i32) {
    %c0_i32 = arith.constant 0 : i32
    %c0_i32_0 = arith.constant 0 : i32
    %c0_i32_1 = arith.constant 0 : i32
    %c0_i32_2 = arith.constant 0 : i32
    %c0_i32_3 = arith.constant 0 : i32
    return %c0_i32, %c0_i32_0, %c0_i32_1, %c0_i32_2 : i32, i32, i32, i32
  }
  func.func @transform_29(%arg0: i32) -> (i32, i32) {
    %c0_i32 = arith.constant 0 : i32
    %c0_i32_0 = arith.constant 0 : i32
    %c0_i32_1 = arith.constant 0 : i32
    return %c0_i32, %c0_i32_0 : i32, i32
  }
  func.func @transform_30(%arg0: i32) -> (i32, i32) {
    %c0_i32 = arith.constant 0 : i32
    %c0_i32_0 = arith.constant 0 : i32
    %c0_i32_1 = arith.constant 0 : i32
    return %c0_i32, %c0_i32_0 : i32, i32
  }
  func.func @transform_31(%arg0: i32) -> (i32, i32) {
    %c0_i32 = arith.constant 0 : i32
    %c0_i32_0 = arith.constant 0 : i32
    %c0_i32_1 = arith.constant 0 : i32
    return %c0_i32, %c0_i32_0 : i32, i32
  }
  func.func @transform_32(%arg0: i32) -> (i32, i32) {
    %c0_i32 = arith.constant 0 : i32
    %c0_i32_0 = arith.constant 0 : i32
    %c0_i32_1 = arith.constant 0 : i32
    return %c0_i32, %c0_i32_0 : i32, i32
  }
  func.func @transform_33(%arg0: i32) -> (i32, i32, i32) {
    %c0_i32 = arith.constant 0 : i32
    %c0_i32_0 = arith.constant 0 : i32
    %c0_i32_1 = arith.constant 0 : i32
    %c0_i32_2 = arith.constant 0 : i32
    return %c0_i32, %c0_i32_0, %c0_i32_1 : i32, i32, i32
  }
  func.func @transform_34(%arg0: i32) -> (i32, i32, i32) {
    %c0_i32 = arith.constant 0 : i32
    %c0_i32_0 = arith.constant 0 : i32
    %c0_i32_1 = arith.constant 0 : i32
    %c0_i32_2 = arith.constant 0 : i32
    return %c0_i32, %c0_i32_0, %c0_i32_1 : i32, i32, i32
  }
  func.func @transform_35(%arg0: i32) -> (i32, i32, i32) {
    %c0_i32 = arith.constant 0 : i32
    %c0_i32_0 = arith.constant 0 : i32
    %c0_i32_1 = arith.constant 0 : i32
    %c0_i32_2 = arith.constant 0 : i32
    return %c0_i32, %c0_i32_0, %c0_i32_1 : i32, i32, i32
  }
  func.func @transform_36(%arg0: i32) -> (i32, i32, i32) {
    %c0_i32 = arith.constant 0 : i32
    %c0_i32_0 = arith.constant 0 : i32
    %c0_i32_1 = arith.constant 0 : i32
    %c0_i32_2 = arith.constant 0 : i32
    return %c0_i32, %c0_i32_0, %c0_i32_1 : i32, i32, i32
  }
  func.func @transform_37(%arg0: i32) -> (i32, i32, i32) {
    %c0_i32 = arith.constant 0 : i32
    %c0_i32_0 = arith.constant 0 : i32
    %c0_i32_1 = arith.constant 0 : i32
    %c0_i32_2 = arith.constant 0 : i32
    return %c0_i32, %c0_i32_0, %c0_i32_1 : i32, i32, i32
  }
  func.func @transform_38(%arg0: i32) -> (i32, i32, i32) {
    %c0_i32 = arith.constant 0 : i32
    %c0_i32_0 = arith.constant 0 : i32
    %c0_i32_1 = arith.constant 0 : i32
    %c0_i32_2 = arith.constant 0 : i32
    return %c0_i32, %c0_i32_0, %c0_i32_1 : i32, i32, i32
  }
  func.func @transform_39(%arg0: i32) -> (i32, i32, i32, i32) {
    %c0_i32 = arith.constant 0 : i32
    %c0_i32_0 = arith.constant 0 : i32
    %c0_i32_1 = arith.constant 0 : i32
    %c0_i32_2 = arith.constant 0 : i32
    return %arg0, %c0_i32, %c0_i32_0, %c0_i32_1 : i32, i32, i32, i32
  }
}

</mosaic_0001>

<llo_original>
// kernel: noise_analysis_forward.1
$region0: #{noise_analysis_forward.1}
  #allocation0 [shape = 'u32[]', space=smem, size = 0x4, offset = 0x4, fixed_abs, tag = 'smem constant byte address 0x4 - core index']
  #allocation1 [shape = 'u32[72,128]{1,0:T(1,128)}', space=vmem, size = 0x9000, scoped, tag = 'internal scratch']
  #allocation2 [shape = 'f32[99,16]{1,0:T(8,128)}', space=vmem, size = 0xd000, scoped, tag = 'scratch operand']
  #allocation3 [shape = 'f32[35,64]{1,0:T(8,128)}', space=vmem, size = 0x5000, scoped, tag = 'scratch operand']
  #allocation4 [shape = 'f32[15,128]{1,0:T(8,128)}', space=vmem, size = 0x2000, scoped, tag = 'scratch operand']
  #allocation5 [shape = 'f32[8,256]{1,0:T(8,128)}', space=vmem, size = 0x2000, scoped, tag = 'scratch operand']
  #allocation6 [shape = 'f32[2,30,32]{2,1,0:T(8,128)}', space=vmem, size = 0x8000, scoped, tag = 'scratch operand']
  #allocation7 [shape = 'f32[2,12,128]{2,1,0:T(8,128)}', space=vmem, size = 0x4000, scoped, tag = 'scratch operand']
  #allocation8 [shape = 'f32[2,6,256]{2,1,0:T(8,128)}', space=vmem, size = 0x4000, scoped, tag = 'scratch operand']
  %s0 = inlined_call_operand.smem [shape: u32[40], index: -1, kind: input, shape index: {}]
  %s1 = sld [smem:[%s0]]
  %s2 = scalar_lea.smem %s0, 1
  %s3 = sld [smem:[%s2]]
  %s4 = scalar_lea.smem %s0, 2
  %s5 = sld [smem:[%s4]]
  %s6 = scalar_lea.smem %s0, 3
  %s7 = sld [smem:[%s6]]
  %s8 = scalar_lea.smem %s0, 4
  %s9 = sld [smem:[%s8]]
  %s10 = scalar_lea.smem %s0, 5
  %s11 = sld [smem:[%s10]]
  %s12 = scalar_lea.smem %s0, 6
  %s13 = sld [smem:[%s12]]
  %s14 = scalar_lea.smem %s0, 7
  %s15 = sld [smem:[%s14]]
  %s16 = scalar_lea.smem %s0, 8
  %s17 = sld [smem:[%s16]]
  %s18 = scalar_lea.smem %s0, 9
  %s19 = sld [smem:[%s18]]
  %s20 = scalar_lea.smem %s0, 10
  %s21 = sld [smem:[%s20]]
  %s22 = scalar_lea.smem %s0, 11
  %s23 = sld [smem:[%s22]]
  %s24 = scalar_lea.smem %s0, 12
  %s25 = sld [smem:[%s24]]
  %s26 = scalar_lea.smem %s0, 13
  %s27 = sld [smem:[%s26]]
  %s28 = scalar_lea.smem %s0, 14
  %s29 = sld [smem:[%s28]]
  %s30 = scalar_lea.smem %s0, 15
  %s31 = sld [smem:[%s30]]
  %s32 = scalar_lea.smem %s0, 16
  %s33 = sld [smem:[%s32]]
  %s34 = scalar_lea.smem %s0, 17
  %s35 = sld [smem:[%s34]]
  %s36 = scalar_lea.smem %s0, 18
  %s37 = sld [smem:[%s36]]
  %s38 = scalar_lea.smem %s0, 19
  %s39 = sld [smem:[%s38]]
  %s40 = scalar_lea.smem %s0, 20
  %s41 = sld [smem:[%s40]]
  %s42 = scalar_lea.smem %s0, 21
  %s43 = sld [smem:[%s42]]
  %s44 = scalar_lea.smem %s0, 22
  %s45 = sld [smem:[%s44]]
  %s46 = scalar_lea.smem %s0, 23
  %s47 = sld [smem:[%s46]]
  %s48 = scalar_lea.smem %s0, 24
  %s49 = sld [smem:[%s48]]
  %s50 = scalar_lea.smem %s0, 25
  %s51 = sld [smem:[%s50]]
  %s52 = scalar_lea.smem %s0, 26
  %s53 = sld [smem:[%s52]]
  %s54 = scalar_lea.smem %s0, 27
  %s55 = sld [smem:[%s54]]
  %s56 = scalar_lea.smem %s0, 28
  %s57 = sld [smem:[%s56]]
  %s58 = scalar_lea.smem %s0, 29
  %s59 = sld [smem:[%s58]]
  %s60 = scalar_lea.smem %s0, 30
  %s61 = sld [smem:[%s60]]
  %s62 = scalar_lea.smem %s0, 31
  %s63 = sld [smem:[%s62]]
  %s64 = scalar_lea.smem %s0, 32
  %s65 = sld [smem:[%s64]]
  %s66 = scalar_lea.smem %s0, 33
  %s67 = sld [smem:[%s66]]
  %s68 = scalar_lea.smem %s0, 34
  %s69 = sld [smem:[%s68]]
  %s70 = scalar_lea.smem %s0, 35
  %s71 = sld [smem:[%s70]]
  %s72 = scalar_lea.smem %s0, 36
  %s73 = sld [smem:[%s72]]
  %s74 = scalar_lea.smem %s0, 37
  %s75 = sld [smem:[%s74]]
  %s76 = scalar_lea.smem %s0, 38
  %s77 = sld [smem:[%s76]]
  %s78 = scalar_lea.smem %s0, 39
  %s79 = sld [smem:[%s78]]
  %s80 = sld [smem:[#allocation0]]
  $region189: #{noise_analysis_forward.1} parent=0
    _
  %s82 = ssub.s32 1, %s80
  %s83 = scalar_select 0, %s82, %s80
  $region1: #{noise_analysis_forward.1} parent=0
    #allocation9 [shape = 'u8[2048]{0}', space=vmem, size = 0x800, scoped, tag = 'output window, operand 0']
    #allocation10 [shape = 's32[2]{0}', space=sflag, size = 0x8, scoped, tag = 'scoped memory for noise_analysis_forward.1']
    %84 = vsyncpa [#allocation10], 0
    %s85 = scalar_lea.sflag [#allocation10], 1
    %86 = vsyncpa %s85, 0
    loop: start=0, step=1, limit=4
    $region2: #{noise_analysis_forward.1} parent=1 // loop_pre_header
      _
    $region3: #{noise_analysis_forward.1} parent=1 // loop_header
      %s88 = sphi 0, %s92
      %p89 = scmp.ge.s32.totalorder %s88, 4
      %s98 = sphi 0, %s100
      %s101 = sphi 0, %s98
      %s102 = sphi 0, %s101
      %s118 = sphi 0, %s102
      %s122 = sphi 0, %s122
      %s124 = sphi 0, %s122
      %s125 = sphi 0, %s124
      %s139 = sphi 0, %s125
      %s143 = sphi 0, %s143
      %s145 = sphi 0, %s143
      %s146 = sphi 0, %s145
      %s160 = sphi 0, %s146
      %s164 = sphi 0, %s164
      %s166 = sphi 0, %s164
      %s167 = sphi 0, %s166
      %s181 = sphi 0, %s167
      %s185 = sphi 0, %s185
      %s187 = sphi 0, %s185
      %s188 = sphi 0, %s187
      %s202 = sphi 0, %s188
      %s206 = sphi 0, %s206
      %s208 = sphi 0, %s206
      %s209 = sphi 0, %s208
      %s223 = sphi 0, %s209
      %s227 = sphi 0, %s227
      %s229 = sphi 0, %s227
      %s230 = sphi 0, %s229
      %s244 = sphi 0, %s230
      %s248 = sphi 0, %s248
      %s250 = sphi 0, %s248
      %s251 = sphi 0, %s250
      %s265 = sphi 0, %s251
      %s269 = sphi 0, %s269
      %s271 = sphi 0, %s269
      %s272 = sphi 0, %s271
      %s286 = sphi 0, %s272
      %s290 = sphi 0, %s290
      %s292 = sphi 0, %s290
      %s293 = sphi 0, %s292
      %s307 = sphi 0, %s293
      %s311 = sphi 0, %s311
      %s313 = sphi 0, %s311
      %s314 = sphi 0, %s313
      %s328 = sphi 0, %s314
      %s332 = sphi 0, %s332
      %s334 = sphi 0, %s332
      %s335 = sphi 0, %s334
      %s349 = sphi 0, %s335
      %s353 = sphi 0, %s353
      %s355 = sphi 0, %s353
      %s356 = sphi 0, %s355
      %s370 = sphi 0, %s356
      %s374 = sphi 0, %s374
      %s376 = sphi 0, %s374
      %s377 = sphi 0, %s376
      %s391 = sphi 0, %s377
      %s395 = sphi 0, %s395
      %s397 = sphi 0, %s395
      %s398 = sphi 0, %s397
      %s412 = sphi 0, %s398
      %s416 = sphi 0, %s416
      %s418 = sphi 0, %s416
      %s419 = sphi 0, %s418
      %s433 = sphi 0, %s419
      %s437 = sphi 0, %s437
      %s439 = sphi 0, %s437
      %s440 = sphi 0, %s439
      %s454 = sphi 0, %s440
      %s458 = sphi 0, %s458
      %s460 = sphi 0, %s458
      %s461 = sphi 0, %s460
      %s475 = sphi 0, %s461
      %s479 = sphi 0, %s479
      %s481 = sphi 0, %s479
      %s482 = sphi 0, %s481
      %s496 = sphi 0, %s482
      %s500 = sphi 0, %s500
      %s502 = sphi 0, %s500
      %s503 = sphi 0, %s502
      %s517 = sphi 0, %s503
      %s521 = sphi 0, %s521
      %s523 = sphi 0, %s521
      %s524 = sphi 0, %s523
      %s538 = sphi 0, %s524
      %s542 = sphi 0, %s542
      %s544 = sphi 0, %s542
      %s545 = sphi 0, %s544
      %s559 = sphi 0, %s545
      %s563 = sphi 0, %s563
      %s565 = sphi 0, %s563
      %s566 = sphi 0, %s565
      %s580 = sphi 0, %s566
      %s584 = sphi 0, %s584
      %s586 = sphi 0, %s584
      %s587 = sphi 0, %s586
      %s601 = sphi 0, %s587
      %s605 = sphi 0, %s605
      %s607 = sphi 0, %s605
      %s608 = sphi 0, %s607
      %s622 = sphi 0, %s608
      %s626 = sphi 0, %s626
      %s628 = sphi 0, %s626
      %s629 = sphi 0, %s628
      %s643 = sphi 0, %s629
      %s647 = sphi 0, %s647
      %s649 = sphi 0, %s647
      %s650 = sphi 0, %s649
      %s664 = sphi 0, %s650
      %s668 = sphi 0, %s668
      %s670 = sphi 0, %s668
      %s671 = sphi 0, %s670
      %s685 = sphi 0, %s671
      %s689 = sphi 0, %s689
      %s691 = sphi 0, %s689
      %s692 = sphi 0, %s691
      %s706 = sphi 0, %s692
      %s710 = sphi 0, %s710
      %s712 = sphi 0, %s710
      %s713 = sphi 0, %s712
      %s727 = sphi 0, %s713
      %s731 = sphi 0, %s731
      %s733 = sphi 0, %s731
      %s734 = sphi 0, %s733
      %s748 = sphi 0, %s734
      %s752 = sphi 0, %s752
      %s754 = sphi 0, %s752
      %s755 = sphi 0, %s754
      %s769 = sphi 0, %s755
      %s773 = sphi 0, %s773
      %s775 = sphi 0, %s773
      %s776 = sphi 0, %s775
      %s790 = sphi 0, %s776
      %s794 = sphi 0, %s794
      %s796 = sphi 0, %s794
      %s797 = sphi 0, %s796
      %s811 = sphi 0, %s797
      %s815 = sphi 0, %s815
      %s817 = sphi 0, %s815
      %s818 = sphi 0, %s817
      %s832 = sphi 0, %s818
      %s836 = sphi 0, %s836
      %s838 = sphi 0, %s836
      %s839 = sphi 0, %s838
      %s853 = sphi 0, %s839
      %s857 = sphi 0, %s857
      %s859 = sphi 0, %s857
      %s860 = sphi 0, %s859
      %s874 = sphi 0, %s860
      %s878 = sphi 0, %s878
      %s880 = sphi 0, %s878
      %s881 = sphi 0, %s880
      %s895 = sphi 0, %s881
      %s899 = sphi 0, %s899
      %s901 = sphi 0, %s899
      %s902 = sphi 0, %s901
      %s916 = sphi 0, %s902
      %s922 = sphi 0, %s924
      %s925 = sphi 0, %s922
      %s926 = sphi 0, %s925
      %s942 = sphi 0, %s926
    $region4: #{noise_analysis_forward.1} parent=1 // loop_header_branch
      %91 = sbr.rel (%p89) target = $region8
    $region5: #{noise_analysis_forward.1} parent=1 // loop_body
      %s93 = ssub.s32 %s88, 1
      %s94 = ssub.s32 %s88, 2
      %s95 = sadd.s32 %s88, 1
      %s96 = ssub.s32 %s88, %s95
      %p97 = scmp.eq.s32.totalorder %s96, 0
      %s99 = sadd.s32 %s98, 1
      %s100 = scalar_select %p97, %s98, %s99
      %p103 = pneg %p97
      %p104 = scmp.eq.s32.totalorder %s88, 1
      %p105 = por %p103, %p104
      %p106 = scmp.ne.s32.totalorder %s98, %s101
      %p107 = scmp.eq.s32.totalorder %s88, 0
      %p108 = por %p106, %p107
      %p109 = scmp.ne.s32.totalorder %s98, %s101
      %p110 = scmp.eq.s32.totalorder %s93, 1
      %p111 = por %p109, %p110
      %p112 = scmp.ne.s32.totalorder %s101, %s102
      %p113 = scmp.eq.s32.totalorder %s93, 0
      %p114 = por %p112, %p113
      %p115 = scmp.ne.s32.totalorder %s101, %s102
      %p116 = scmp.eq.s32.totalorder %s94, 1
      %p117 = por %p115, %p116
      %p119 = scmp.ne.s32.totalorder %s102, %s118
      %p120 = scmp.eq.s32.totalorder %s94, 0
      %p121 = por %p119, %p120
      %s123 = sadd.s32 %s122, 1
      %p126 = scmp.eq.s32.totalorder %s88, 1
      %p127 = scmp.ne.s32.totalorder %s122, %s124
      %p128 = scmp.eq.s32.totalorder %s88, 0
      %p129 = por %p127, %p128
      %p130 = scmp.ne.s32.totalorder %s122, %s124
      %p131 = scmp.eq.s32.totalorder %s93, 1
      %p132 = por %p130, %p131
      %p133 = scmp.ne.s32.totalorder %s124, %s125
      %p134 = scmp.eq.s32.totalorder %s93, 0
      %p135 = por %p133, %p134
      %p136 = scmp.ne.s32.totalorder %s124, %s125
      %p137 = scmp.eq.s32.totalorder %s94, 1
      %p138 = por %p136, %p137
      %p140 = scmp.ne.s32.totalorder %s125, %s139
      %p141 = scmp.eq.s32.totalorder %s94, 0
      %p142 = por %p140, %p141
      %s144 = sadd.s32 %s143, 1
      %p147 = scmp.eq.s32.totalorder %s88, 1
      %p148 = scmp.ne.s32.totalorder %s143, %s145
      %p149 = scmp.eq.s32.totalorder %s88, 0
      %p150 = por %p148, %p149
      %p151 = scmp.ne.s32.totalorder %s143, %s145
      %p152 = scmp.eq.s32.totalorder %s93, 1
      %p153 = por %p151, %p152
      %p154 = scmp.ne.s32.totalorder %s145, %s146
      %p155 = scmp.eq.s32.totalorder %s93, 0
      %p156 = por %p154, %p155
      %p157 = scmp.ne.s32.totalorder %s145, %s146
      %p158 = scmp.eq.s32.totalorder %s94, 1
      %p159 = por %p157, %p158
      %p161 = scmp.ne.s32.totalorder %s146, %s160
      %p162 = scmp.eq.s32.totalorder %s94, 0
      %p163 = por %p161, %p162
      %s165 = sadd.s32 %s164, 1
      %p168 = scmp.eq.s32.totalorder %s88, 1
      %p169 = scmp.ne.s32.totalorder %s164, %s166
      %p170 = scmp.eq.s32.totalorder %s88, 0
      %p171 = por %p169, %p170
      %p172 = scmp.ne.s32.totalorder %s164, %s166
      %p173 = scmp.eq.s32.totalorder %s93, 1
      %p174 = por %p172, %p173
      %p175 = scmp.ne.s32.totalorder %s166, %s167
      %p176 = scmp.eq.s32.totalorder %s93, 0
      %p177 = por %p175, %p176
      %p178 = scmp.ne.s32.totalorder %s166, %s167
      %p179 = scmp.eq.s32.totalorder %s94, 1
      %p180 = por %p178, %p179
      %p182 = scmp.ne.s32.totalorder %s167, %s181
      %p183 = scmp.eq.s32.totalorder %s94, 0
      %p184 = por %p182, %p183
      %s186 = sadd.s32 %s185, 1
      %p189 = scmp.eq.s32.totalorder %s88, 1
      %p190 = scmp.ne.s32.totalorder %s185, %s187
      %p191 = scmp.eq.s32.totalorder %s88, 0
      %p192 = por %p190, %p191
      %p193 = scmp.ne.s32.totalorder %s185, %s187
      %p194 = scmp.eq.s32.totalorder %s93, 1
      %p195 = por %p193, %p194
      %p196 = scmp.ne.s32.totalorder %s187, %s188
      %p197 = scmp.eq.s32.totalorder %s93, 0
      %p198 = por %p196, %p197
      %p199 = scmp.ne.s32.totalorder %s187, %s188
      %p200 = scmp.eq.s32.totalorder %s94, 1
      %p201 = por %p199, %p200
      %p203 = scmp.ne.s32.totalorder %s188, %s202
      %p204 = scmp.eq.s32.totalorder %s94, 0
      %p205 = por %p203, %p204
      %s207 = sadd.s32 %s206, 1
      %p210 = scmp.eq.s32.totalorder %s88, 1
      %p211 = scmp.ne.s32.totalorder %s206, %s208
      %p212 = scmp.eq.s32.totalorder %s88, 0
      %p213 = por %p211, %p212
      %p214 = scmp.ne.s32.totalorder %s206, %s208
      %p215 = scmp.eq.s32.totalorder %s93, 1
      %p216 = por %p214, %p215
      %p217 = scmp.ne.s32.totalorder %s208, %s209
      %p218 = scmp.eq.s32.totalorder %s93, 0
      %p219 = por %p217, %p218
      %p220 = scmp.ne.s32.totalorder %s208, %s209
      %p221 = scmp.eq.s32.totalorder %s94, 1
      %p222 = por %p220, %p221
      %p224 = scmp.ne.s32.totalorder %s209, %s223
      %p225 = scmp.eq.s32.totalorder %s94, 0
      %p226 = por %p224, %p225
      %s228 = sadd.s32 %s227, 1
      %p231 = scmp.eq.s32.totalorder %s88, 1
      %p232 = scmp.ne.s32.totalorder %s227, %s229
      %p233 = scmp.eq.s32.totalorder %s88, 0
      %p234 = por %p232, %p233
      %p235 = scmp.ne.s32.totalorder %s227, %s229
      %p236 = scmp.eq.s32.totalorder %s93, 1
      %p237 = por %p235, %p236
      %p238 = scmp.ne.s32.totalorder %s229, %s230
      %p239 = scmp.eq.s32.totalorder %s93, 0
      %p240 = por %p238, %p239
      %p241 = scmp.ne.s32.totalorder %s229, %s230
      %p242 = scmp.eq.s32.totalorder %s94, 1
      %p243 = por %p241, %p242
      %p245 = scmp.ne.s32.totalorder %s230, %s244
      %p246 = scmp.eq.s32.totalorder %s94, 0
      %p247 = por %p245, %p246
      %s249 = sadd.s32 %s248, 1
      %p252 = scmp.eq.s32.totalorder %s88, 1
      %p253 = scmp.ne.s32.totalorder %s248, %s250
      %p254 = scmp.eq.s32.totalorder %s88, 0
      %p255 = por %p253, %p254
      %p256 = scmp.ne.s32.totalorder %s248, %s250
      %p257 = scmp.eq.s32.totalorder %s93, 1
      %p258 = por %p256, %p257
      %p259 = scmp.ne.s32.totalorder %s250, %s251
      %p260 = scmp.eq.s32.totalorder %s93, 0
      %p261 = por %p259, %p260
      %p262 = scmp.ne.s32.totalorder %s250, %s251
      %p263 = scmp.eq.s32.totalorder %s94, 1
      %p264 = por %p262, %p263
      %p266 = scmp.ne.s32.totalorder %s251, %s265
      %p267 = scmp.eq.s32.totalorder %s94, 0
      %p268 = por %p266, %p267
      %s270 = sadd.s32 %s269, 1
      %p273 = scmp.eq.s32.totalorder %s88, 1
      %p274 = scmp.ne.s32.totalorder %s269, %s271
      %p275 = scmp.eq.s32.totalorder %s88, 0
      %p276 = por %p274, %p275
      %p277 = scmp.ne.s32.totalorder %s269, %s271
      %p278 = scmp.eq.s32.totalorder %s93, 1
      %p279 = por %p277, %p278
      %p280 = scmp.ne.s32.totalorder %s271, %s272
      %p281 = scmp.eq.s32.totalorder %s93, 0
      %p282 = por %p280, %p281
      %p283 = scmp.ne.s32.totalorder %s271, %s272
      %p284 = scmp.eq.s32.totalorder %s94, 1
      %p285 = por %p283, %p284
      %p287 = scmp.ne.s32.totalorder %s272, %s286
      %p288 = scmp.eq.s32.totalorder %s94, 0
      %p289 = por %p287, %p288
      %s291 = sadd.s32 %s290, 1
      %p294 = scmp.eq.s32.totalorder %s88, 1
      %p295 = scmp.ne.s32.totalorder %s290, %s292
      %p296 = scmp.eq.s32.totalorder %s88, 0
      %p297 = por %p295, %p296
      %p298 = scmp.ne.s32.totalorder %s290, %s292
      %p299 = scmp.eq.s32.totalorder %s93, 1
      %p300 = por %p298, %p299
      %p301 = scmp.ne.s32.totalorder %s292, %s293
      %p302 = scmp.eq.s32.totalorder %s93, 0
      %p303 = por %p301, %p302
      %p304 = scmp.ne.s32.totalorder %s292, %s293
      %p305 = scmp.eq.s32.totalorder %s94, 1
      %p306 = por %p304, %p305
      %p308 = scmp.ne.s32.totalorder %s293, %s307
      %p309 = scmp.eq.s32.totalorder %s94, 0
      %p310 = por %p308, %p309
      %s312 = sadd.s32 %s311, 1
      %p315 = scmp.eq.s32.totalorder %s88, 1
      %p316 = scmp.ne.s32.totalorder %s311, %s313
      %p317 = scmp.eq.s32.totalorder %s88, 0
      %p318 = por %p316, %p317
      %p319 = scmp.ne.s32.totalorder %s311, %s313
      %p320 = scmp.eq.s32.totalorder %s93, 1
      %p321 = por %p319, %p320
      %p322 = scmp.ne.s32.totalorder %s313, %s314
      %p323 = scmp.eq.s32.totalorder %s93, 0
      %p324 = por %p322, %p323
      %p325 = scmp.ne.s32.totalorder %s313, %s314
      %p326 = scmp.eq.s32.totalorder %s94, 1
      %p327 = por %p325, %p326
      %p329 = scmp.ne.s32.totalorder %s314, %s328
      %p330 = scmp.eq.s32.totalorder %s94, 0
      %p331 = por %p329, %p330
      %s333 = sadd.s32 %s332, 1
      %p336 = scmp.eq.s32.totalorder %s88, 1
      %p337 = scmp.ne.s32.totalorder %s332, %s334
      %p338 = scmp.eq.s32.totalorder %s88, 0
      %p339 = por %p337, %p338
      %p340 = scmp.ne.s32.totalorder %s332, %s334
      %p341 = scmp.eq.s32.totalorder %s93, 1
      %p342 = por %p340, %p341
      %p343 = scmp.ne.s32.totalorder %s334, %s335
      %p344 = scmp.eq.s32.totalorder %s93, 0
      %p345 = por %p343, %p344
      %p346 = scmp.ne.s32.totalorder %s334, %s335
      %p347 = scmp.eq.s32.totalorder %s94, 1
      %p348 = por %p346, %p347
      %p350 = scmp.ne.s32.totalorder %s335, %s349
      %p351 = scmp.eq.s32.totalorder %s94, 0
      %p352 = por %p350, %p351
      %s354 = sadd.s32 %s353, 1
      %p357 = scmp.eq.s32.totalorder %s88, 1
      %p358 = scmp.ne.s32.totalorder %s353, %s355
      %p359 = scmp.eq.s32.totalorder %s88, 0
      %p360 = por %p358, %p359
      %p361 = scmp.ne.s32.totalorder %s353, %s355
      %p362 = scmp.eq.s32.totalorder %s93, 1
      %p363 = por %p361, %p362
      %p364 = scmp.ne.s32.totalorder %s355, %s356
      %p365 = scmp.eq.s32.totalorder %s93, 0
      %p366 = por %p364, %p365
      %p367 = scmp.ne.s32.totalorder %s355, %s356
      %p368 = scmp.eq.s32.totalorder %s94, 1
      %p369 = por %p367, %p368
      %p371 = scmp.ne.s32.totalorder %s356, %s370
      %p372 = scmp.eq.s32.totalorder %s94, 0
      %p373 = por %p371, %p372
      %s375 = sadd.s32 %s374, 1
      %p378 = scmp.eq.s32.totalorder %s88, 1
      %p379 = scmp.ne.s32.totalorder %s374, %s376
      %p380 = scmp.eq.s32.totalorder %s88, 0
      %p381 = por %p379, %p380
      %p382 = scmp.ne.s32.totalorder %s374, %s376
      %p383 = scmp.eq.s32.totalorder %s93, 1
      %p384 = por %p382, %p383
      %p385 = scmp.ne.s32.totalorder %s376, %s377
      %p386 = scmp.eq.s32.totalorder %s93, 0
      %p387 = por %p385, %p386
      %p388 = scmp.ne.s32.totalorder %s376, %s377
      %p389 = scmp.eq.s32.totalorder %s94, 1
      %p390 = por %p388, %p389
      %p392 = scmp.ne.s32.totalorder %s377, %s391
      %p393 = scmp.eq.s32.totalorder %s94, 0
      %p394 = por %p392, %p393
      %s396 = sadd.s32 %s395, 1
      %p399 = scmp.eq.s32.totalorder %s88, 1
      %p400 = scmp.ne.s32.totalorder %s395, %s397
      %p401 = scmp.eq.s32.totalorder %s88, 0
      %p402 = por %p400, %p401
      %p403 = scmp.ne.s32.totalorder %s395, %s397
      %p404 = scmp.eq.s32.totalorder %s93, 1
      %p405 = por %p403, %p404
      %p406 = scmp.ne.s32.totalorder %s397, %s398
      %p407 = scmp.eq.s32.totalorder %s93, 0
      %p408 = por %p406, %p407
      %p409 = scmp.ne.s32.totalorder %s397, %s398
      %p410 = scmp.eq.s32.totalorder %s94, 1
      %p411 = por %p409, %p410
      %p413 = scmp.ne.s32.totalorder %s398, %s412
      %p414 = scmp.eq.s32.totalorder %s94, 0
      %p415 = por %p413, %p414
      %s417 = sadd.s32 %s416, 1
      %p420 = scmp.eq.s32.totalorder %s88, 1
      %p421 = scmp.ne.s32.totalorder %s416, %s418
      %p422 = scmp.eq.s32.totalorder %s88, 0
      %p423 = por %p421, %p422
      %p424 = scmp.ne.s32.totalorder %s416, %s418
      %p425 = scmp.eq.s32.totalorder %s93, 1
      %p426 = por %p424, %p425
      %p427 = scmp.ne.s32.totalorder %s418, %s419
      %p428 = scmp.eq.s32.totalorder %s93, 0
      %p429 = por %p427, %p428
      %p430 = scmp.ne.s32.totalorder %s418, %s419
      %p431 = scmp.eq.s32.totalorder %s94, 1
      %p432 = por %p430, %p431
      %p434 = scmp.ne.s32.totalorder %s419, %s433
      %p435 = scmp.eq.s32.totalorder %s94, 0
      %p436 = por %p434, %p435
      %s438 = sadd.s32 %s437, 1
      %p441 = scmp.eq.s32.totalorder %s88, 1
      %p442 = scmp.ne.s32.totalorder %s437, %s439
      %p443 = scmp.eq.s32.totalorder %s88, 0
      %p444 = por %p442, %p443
      %p445 = scmp.ne.s32.totalorder %s437, %s439
      %p446 = scmp.eq.s32.totalorder %s93, 1
      %p447 = por %p445, %p446
      %p448 = scmp.ne.s32.totalorder %s439, %s440
      %p449 = scmp.eq.s32.totalorder %s93, 0
      %p450 = por %p448, %p449
      %p451 = scmp.ne.s32.totalorder %s439, %s440
      %p452 = scmp.eq.s32.totalorder %s94, 1
      %p453 = por %p451, %p452
      %p455 = scmp.ne.s32.totalorder %s440, %s454
      %p456 = scmp.eq.s32.totalorder %s94, 0
      %p457 = por %p455, %p456
      %s459 = sadd.s32 %s458, 1
      %p462 = scmp.eq.s32.totalorder %s88, 1
      %p463 = scmp.ne.s32.totalorder %s458, %s460
      %p464 = scmp.eq.s32.totalorder %s88, 0
      %p465 = por %p463, %p464
      %p466 = scmp.ne.s32.totalorder %s458, %s460
      %p467 = scmp.eq.s32.totalorder %s93, 1
      %p468 = por %p466, %p467
      %p469 = scmp.ne.s32.totalorder %s460, %s461
      %p470 = scmp.eq.s32.totalorder %s93, 0
      %p471 = por %p469, %p470
      %p472 = scmp.ne.s32.totalorder %s460, %s461
      %p473 = scmp.eq.s32.totalorder %s94, 1
      %p474 = por %p472, %p473
      %p476 = scmp.ne.s32.totalorder %s461, %s475
      %p477 = scmp.eq.s32.totalorder %s94, 0
      %p478 = por %p476, %p477
      %s480 = sadd.s32 %s479, 1
      %p483 = scmp.eq.s32.totalorder %s88, 1
      %p484 = scmp.ne.s32.totalorder %s479, %s481
      %p485 = scmp.eq.s32.totalorder %s88, 0
      %p486 = por %p484, %p485
      %p487 = scmp.ne.s32.totalorder %s479, %s481
      %p488 = scmp.eq.s32.totalorder %s93, 1
      %p489 = por %p487, %p488
      %p490 = scmp.ne.s32.totalorder %s481, %s482
      %p491 = scmp.eq.s32.totalorder %s93, 0
      %p492 = por %p490, %p491
      %p493 = scmp.ne.s32.totalorder %s481, %s482
      %p494 = scmp.eq.s32.totalorder %s94, 1
      %p495 = por %p493, %p494
      %p497 = scmp.ne.s32.totalorder %s482, %s496
      %p498 = scmp.eq.s32.totalorder %s94, 0
      %p499 = por %p497, %p498
      %s501 = sadd.s32 %s500, 1
      %p504 = scmp.eq.s32.totalorder %s88, 1
      %p505 = scmp.ne.s32.totalorder %s500, %s502
      %p506 = scmp.eq.s32.totalorder %s88, 0
      %p507 = por %p505, %p506
      %p508 = scmp.ne.s32.totalorder %s500, %s502
      %p509 = scmp.eq.s32.totalorder %s93, 1
      %p510 = por %p508, %p509
      %p511 = scmp.ne.s32.totalorder %s502, %s503
      %p512 = scmp.eq.s32.totalorder %s93, 0
      %p513 = por %p511, %p512
      %p514 = scmp.ne.s32.totalorder %s502, %s503
      %p515 = scmp.eq.s32.totalorder %s94, 1
      %p516 = por %p514, %p515
      %p518 = scmp.ne.s32.totalorder %s503, %s517
      %p519 = scmp.eq.s32.totalorder %s94, 0
      %p520 = por %p518, %p519
      %s522 = sadd.s32 %s521, 1
      %p525 = scmp.eq.s32.totalorder %s88, 1
      %p526 = scmp.ne.s32.totalorder %s521, %s523
      %p527 = scmp.eq.s32.totalorder %s88, 0
      %p528 = por %p526, %p527
      %p529 = scmp.ne.s32.totalorder %s521, %s523
      %p530 = scmp.eq.s32.totalorder %s93, 1
      %p531 = por %p529, %p530
      %p532 = scmp.ne.s32.totalorder %s523, %s524
      %p533 = scmp.eq.s32.totalorder %s93, 0
      %p534 = por %p532, %p533
      %p535 = scmp.ne.s32.totalorder %s523, %s524
      %p536 = scmp.eq.s32.totalorder %s94, 1
      %p537 = por %p535, %p536
      %p539 = scmp.ne.s32.totalorder %s524, %s538
      %p540 = scmp.eq.s32.totalorder %s94, 0
      %p541 = por %p539, %p540
      %s543 = sadd.s32 %s542, 1
      %p546 = scmp.eq.s32.totalorder %s88, 1
      %p547 = scmp.ne.s32.totalorder %s542, %s544
      %p548 = scmp.eq.s32.totalorder %s88, 0
      %p549 = por %p547, %p548
      %p550 = scmp.ne.s32.totalorder %s542, %s544
      %p551 = scmp.eq.s32.totalorder %s93, 1
      %p552 = por %p550, %p551
      %p553 = scmp.ne.s32.totalorder %s544, %s545
      %p554 = scmp.eq.s32.totalorder %s93, 0
      %p555 = por %p553, %p554
      %p556 = scmp.ne.s32.totalorder %s544, %s545
      %p557 = scmp.eq.s32.totalorder %s94, 1
      %p558 = por %p556, %p557
      %p560 = scmp.ne.s32.totalorder %s545, %s559
      %p561 = scmp.eq.s32.totalorder %s94, 0
      %p562 = por %p560, %p561
      %s564 = sadd.s32 %s563, 1
      %p567 = scmp.eq.s32.totalorder %s88, 1
      %p568 = scmp.ne.s32.totalorder %s563, %s565
      %p569 = scmp.eq.s32.totalorder %s88, 0
      %p570 = por %p568, %p569
      %p571 = scmp.ne.s32.totalorder %s563, %s565
      %p572 = scmp.eq.s32.totalorder %s93, 1
      %p573 = por %p571, %p572
      %p574 = scmp.ne.s32.totalorder %s565, %s566
      %p575 = scmp.eq.s32.totalorder %s93, 0
      %p576 = por %p574, %p575
      %p577 = scmp.ne.s32.totalorder %s565, %s566
      %p578 = scmp.eq.s32.totalorder %s94, 1
      %p579 = por %p577, %p578
      %p581 = scmp.ne.s32.totalorder %s566, %s580
      %p582 = scmp.eq.s32.totalorder %s94, 0
      %p583 = por %p581, %p582
      %s585 = sadd.s32 %s584, 1
      %p588 = scmp.eq.s32.totalorder %s88, 1
      %p589 = scmp.ne.s32.totalorder %s584, %s586
      %p590 = scmp.eq.s32.totalorder %s88, 0
      %p591 = por %p589, %p590
      %p592 = scmp.ne.s32.totalorder %s584, %s586
      %p593 = scmp.eq.s32.totalorder %s93, 1
      %p594 = por %p592, %p593
      %p595 = scmp.ne.s32.totalorder %s586, %s587
      %p596 = scmp.eq.s32.totalorder %s93, 0
      %p597 = por %p595, %p596
      %p598 = scmp.ne.s32.totalorder %s586, %s587
      %p599 = scmp.eq.s32.totalorder %s94, 1
      %p600 = por %p598, %p599
      %p602 = scmp.ne.s32.totalorder %s587, %s601
      %p603 = scmp.eq.s32.totalorder %s94, 0
      %p604 = por %p602, %p603
      %s606 = sadd.s32 %s605, 1
      %p609 = scmp.eq.s32.totalorder %s88, 1
      %p610 = scmp.ne.s32.totalorder %s605, %s607
      %p611 = scmp.eq.s32.totalorder %s88, 0
      %p612 = por %p610, %p611
      %p613 = scmp.ne.s32.totalorder %s605, %s607
      %p614 = scmp.eq.s32.totalorder %s93, 1
      %p615 = por %p613, %p614
      %p616 = scmp.ne.s32.totalorder %s607, %s608
      %p617 = scmp.eq.s32.totalorder %s93, 0
      %p618 = por %p616, %p617
      %p619 = scmp.ne.s32.totalorder %s607, %s608
      %p620 = scmp.eq.s32.totalorder %s94, 1
      %p621 = por %p619, %p620
      %p623 = scmp.ne.s32.totalorder %s608, %s622
      %p624 = scmp.eq.s32.totalorder %s94, 0
      %p625 = por %p623, %p624
      %s627 = sadd.s32 %s626, 1
      %p630 = scmp.eq.s32.totalorder %s88, 1
      %p631 = scmp.ne.s32.totalorder %s626, %s628
      %p632 = scmp.eq.s32.totalorder %s88, 0
      %p633 = por %p631, %p632
      %p634 = scmp.ne.s32.totalorder %s626, %s628
      %p635 = scmp.eq.s32.totalorder %s93, 1
      %p636 = por %p634, %p635
      %p637 = scmp.ne.s32.totalorder %s628, %s629
      %p638 = scmp.eq.s32.totalorder %s93, 0
      %p639 = por %p637, %p638
      %p640 = scmp.ne.s32.totalorder %s628, %s629
      %p641 = scmp.eq.s32.totalorder %s94, 1
      %p642 = por %p640, %p641
      %p644 = scmp.ne.s32.totalorder %s629, %s643
      %p645 = scmp.eq.s32.totalorder %s94, 0
      %p646 = por %p644, %p645
      %s648 = sadd.s32 %s647, 1
      %p651 = scmp.eq.s32.totalorder %s88, 1
      %p652 = scmp.ne.s32.totalorder %s647, %s649
      %p653 = scmp.eq.s32.totalorder %s88, 0
      %p654 = por %p652, %p653
      %p655 = scmp.ne.s32.totalorder %s647, %s649
      %p656 = scmp.eq.s32.totalorder %s93, 1
      %p657 = por %p655, %p656
      %p658 = scmp.ne.s32.totalorder %s649, %s650
      %p659 = scmp.eq.s32.totalorder %s93, 0
      %p660 = por %p658, %p659
      %p661 = scmp.ne.s32.totalorder %s649, %s650
      %p662 = scmp.eq.s32.totalorder %s94, 1
      %p663 = por %p661, %p662
      %p665 = scmp.ne.s32.totalorder %s650, %s664
      %p666 = scmp.eq.s32.totalorder %s94, 0
      %p667 = por %p665, %p666
      %s669 = sadd.s32 %s668, 1
      %p672 = scmp.eq.s32.totalorder %s88, 1
      %p673 = scmp.ne.s32.totalorder %s668, %s670
      %p674 = scmp.eq.s32.totalorder %s88, 0
      %p675 = por %p673, %p674
      %p676 = scmp.ne.s32.totalorder %s668, %s670
      %p677 = scmp.eq.s32.totalorder %s93, 1
      %p678 = por %p676, %p677
      %p679 = scmp.ne.s32.totalorder %s670, %s671
      %p680 = scmp.eq.s32.totalorder %s93, 0
      %p681 = por %p679, %p680
      %p682 = scmp.ne.s32.totalorder %s670, %s671
      %p683 = scmp.eq.s32.totalorder %s94, 1
      %p684 = por %p682, %p683
      %p686 = scmp.ne.s32.totalorder %s671, %s685
      %p687 = scmp.eq.s32.totalorder %s94, 0
      %p688 = por %p686, %p687
      %s690 = sadd.s32 %s689, 1
      %p693 = scmp.eq.s32.totalorder %s88, 1
      %p694 = scmp.ne.s32.totalorder %s689, %s691
      %p695 = scmp.eq.s32.totalorder %s88, 0
      %p696 = por %p694, %p695
      %p697 = scmp.ne.s32.totalorder %s689, %s691
      %p698 = scmp.eq.s32.totalorder %s93, 1
      %p699 = por %p697, %p698
      %p700 = scmp.ne.s32.totalorder %s691, %s692
      %p701 = scmp.eq.s32.totalorder %s93, 0
      %p702 = por %p700, %p701
      %p703 = scmp.ne.s32.totalorder %s691, %s692
      %p704 = scmp.eq.s32.totalorder %s94, 1
      %p705 = por %p703, %p704
      %p707 = scmp.ne.s32.totalorder %s692, %s706
      %p708 = scmp.eq.s32.totalorder %s94, 0
      %p709 = por %p707, %p708
      %s711 = sadd.s32 %s710, 1
      %p714 = scmp.eq.s32.totalorder %s88, 1
      %p715 = scmp.ne.s32.totalorder %s710, %s712
      %p716 = scmp.eq.s32.totalorder %s88, 0
      %p717 = por %p715, %p716
      %p718 = scmp.ne.s32.totalorder %s710, %s712
      %p719 = scmp.eq.s32.totalorder %s93, 1
      %p720 = por %p718, %p719
      %p721 = scmp.ne.s32.totalorder %s712, %s713
      %p722 = scmp.eq.s32.totalorder %s93, 0
      %p723 = por %p721, %p722
      %p724 = scmp.ne.s32.totalorder %s712, %s713
      %p725 = scmp.eq.s32.totalorder %s94, 1
      %p726 = por %p724, %p725
      %p728 = scmp.ne.s32.totalorder %s713, %s727
      %p729 = scmp.eq.s32.totalorder %s94, 0
      %p730 = por %p728, %p729
      %s732 = sadd.s32 %s731, 1
      %p735 = scmp.eq.s32.totalorder %s88, 1
      %p736 = scmp.ne.s32.totalorder %s731, %s733
      %p737 = scmp.eq.s32.totalorder %s88, 0
      %p738 = por %p736, %p737
      %p739 = scmp.ne.s32.totalorder %s731, %s733
      %p740 = scmp.eq.s32.totalorder %s93, 1
      %p741 = por %p739, %p740
      %p742 = scmp.ne.s32.totalorder %s733, %s734
      %p743 = scmp.eq.s32.totalorder %s93, 0
      %p744 = por %p742, %p743
      %p745 = scmp.ne.s32.totalorder %s733, %s734
      %p746 = scmp.eq.s32.totalorder %s94, 1
      %p747 = por %p745, %p746
      %p749 = scmp.ne.s32.totalorder %s734, %s748
      %p750 = scmp.eq.s32.totalorder %s94, 0
      %p751 = por %p749, %p750
      %s753 = sadd.s32 %s752, 1
      %p756 = scmp.eq.s32.totalorder %s88, 1
      %p757 = scmp.ne.s32.totalorder %s752, %s754
      %p758 = scmp.eq.s32.totalorder %s88, 0
      %p759 = por %p757, %p758
      %p760 = scmp.ne.s32.totalorder %s752, %s754
      %p761 = scmp.eq.s32.totalorder %s93, 1
      %p762 = por %p760, %p761
      %p763 = scmp.ne.s32.totalorder %s754, %s755
      %p764 = scmp.eq.s32.totalorder %s93, 0
      %p765 = por %p763, %p764
      %p766 = scmp.ne.s32.totalorder %s754, %s755
      %p767 = scmp.eq.s32.totalorder %s94, 1
      %p768 = por %p766, %p767
      %p770 = scmp.ne.s32.totalorder %s755, %s769
      %p771 = scmp.eq.s32.totalorder %s94, 0
      %p772 = por %p770, %p771
      %s774 = sadd.s32 %s773, 1
      %p777 = scmp.eq.s32.totalorder %s88, 1
      %p778 = scmp.ne.s32.totalorder %s773, %s775
      %p779 = scmp.eq.s32.totalorder %s88, 0
      %p780 = por %p778, %p779
      %p781 = scmp.ne.s32.totalorder %s773, %s775
      %p782 = scmp.eq.s32.totalorder %s93, 1
      %p783 = por %p781, %p782
      %p784 = scmp.ne.s32.totalorder %s775, %s776
      %p785 = scmp.eq.s32.totalorder %s93, 0
      %p786 = por %p784, %p785
      %p787 = scmp.ne.s32.totalorder %s775, %s776
      %p788 = scmp.eq.s32.totalorder %s94, 1
      %p789 = por %p787, %p788
      %p791 = scmp.ne.s32.totalorder %s776, %s790
      %p792 = scmp.eq.s32.totalorder %s94, 0
      %p793 = por %p791, %p792
      %s795 = sadd.s32 %s794, 1
      %p798 = scmp.eq.s32.totalorder %s88, 1
      %p799 = scmp.ne.s32.totalorder %s794, %s796
      %p800 = scmp.eq.s32.totalorder %s88, 0
      %p801 = por %p799, %p800
      %p802 = scmp.ne.s32.totalorder %s794, %s796
      %p803 = scmp.eq.s32.totalorder %s93, 1
      %p804 = por %p802, %p803
      %p805 = scmp.ne.s32.totalorder %s796, %s797
      %p806 = scmp.eq.s32.totalorder %s93, 0
      %p807 = por %p805, %p806
      %p808 = scmp.ne.s32.totalorder %s796, %s797
      %p809 = scmp.eq.s32.totalorder %s94, 1
      %p810 = por %p808, %p809
      %p812 = scmp.ne.s32.totalorder %s797, %s811
      %p813 = scmp.eq.s32.totalorder %s94, 0
      %p814 = por %p812, %p813
      %s816 = sadd.s32 %s815, 1
      %p819 = scmp.eq.s32.totalorder %s88, 1
      %p820 = scmp.ne.s32.totalorder %s815, %s817
      %p821 = scmp.eq.s32.totalorder %s88, 0
      %p822 = por %p820, %p821
      %p823 = scmp.ne.s32.totalorder %s815, %s817
      %p824 = scmp.eq.s32.totalorder %s93, 1
      %p825 = por %p823, %p824
      %p826 = scmp.ne.s32.totalorder %s817, %s818
      %p827 = scmp.eq.s32.totalorder %s93, 0
      %p828 = por %p826, %p827
      %p829 = scmp.ne.s32.totalorder %s817, %s818
      %p830 = scmp.eq.s32.totalorder %s94, 1
      %p831 = por %p829, %p830
      %p833 = scmp.ne.s32.totalorder %s818, %s832
      %p834 = scmp.eq.s32.totalorder %s94, 0
      %p835 = por %p833, %p834
      %s837 = sadd.s32 %s836, 1
      %p840 = scmp.eq.s32.totalorder %s88, 1
      %p841 = scmp.ne.s32.totalorder %s836, %s838
      %p842 = scmp.eq.s32.totalorder %s88, 0
      %p843 = por %p841, %p842
      %p844 = scmp.ne.s32.totalorder %s836, %s838
      %p845 = scmp.eq.s32.totalorder %s93, 1
      %p846 = por %p844, %p845
      %p847 = scmp.ne.s32.totalorder %s838, %s839
      %p848 = scmp.eq.s32.totalorder %s93, 0
      %p849 = por %p847, %p848
      %p850 = scmp.ne.s32.totalorder %s838, %s839
      %p851 = scmp.eq.s32.totalorder %s94, 1
      %p852 = por %p850, %p851
      %p854 = scmp.ne.s32.totalorder %s839, %s853
      %p855 = scmp.eq.s32.totalorder %s94, 0
      %p856 = por %p854, %p855
      %s858 = sadd.s32 %s857, 1
      %p861 = scmp.eq.s32.totalorder %s88, 1
      %p862 = scmp.ne.s32.totalorder %s857, %s859
      %p863 = scmp.eq.s32.totalorder %s88, 0
      %p864 = por %p862, %p863
      %p865 = scmp.ne.s32.totalorder %s857, %s859
      %p866 = scmp.eq.s32.totalorder %s93, 1
      %p867 = por %p865, %p866
      %p868 = scmp.ne.s32.totalorder %s859, %s860
      %p869 = scmp.eq.s32.totalorder %s93, 0
      %p870 = por %p868, %p869
      %p871 = scmp.ne.s32.totalorder %s859, %s860
      %p872 = scmp.eq.s32.totalorder %s94, 1
      %p873 = por %p871, %p872
      %p875 = scmp.ne.s32.totalorder %s860, %s874
      %p876 = scmp.eq.s32.totalorder %s94, 0
      %p877 = por %p875, %p876
      %s879 = sadd.s32 %s878, 1
      %p882 = scmp.eq.s32.totalorder %s88, 1
      %p883 = scmp.ne.s32.totalorder %s878, %s880
      %p884 = scmp.eq.s32.totalorder %s88, 0
      %p885 = por %p883, %p884
      %p886 = scmp.ne.s32.totalorder %s878, %s880
      %p887 = scmp.eq.s32.totalorder %s93, 1
      %p888 = por %p886, %p887
      %p889 = scmp.ne.s32.totalorder %s880, %s881
      %p890 = scmp.eq.s32.totalorder %s93, 0
      %p891 = por %p889, %p890
      %p892 = scmp.ne.s32.totalorder %s880, %s881
      %p893 = scmp.eq.s32.totalorder %s94, 1
      %p894 = por %p892, %p893
      %p896 = scmp.ne.s32.totalorder %s881, %s895
      %p897 = scmp.eq.s32.totalorder %s94, 0
      %p898 = por %p896, %p897
      %s900 = sadd.s32 %s899, 1
      %p903 = scmp.eq.s32.totalorder %s88, 1
      %p904 = scmp.ne.s32.totalorder %s899, %s901
      %p905 = scmp.eq.s32.totalorder %s88, 0
      %p906 = por %p904, %p905
      %p907 = scmp.ne.s32.totalorder %s899, %s901
      %p908 = scmp.eq.s32.totalorder %s93, 1
      %p909 = por %p907, %p908
      %p910 = scmp.ne.s32.totalorder %s901, %s902
      %p911 = scmp.eq.s32.totalorder %s93, 0
      %p912 = por %p910, %p911
      %p913 = scmp.ne.s32.totalorder %s901, %s902
      %p914 = scmp.eq.s32.totalorder %s94, 1
      %p915 = por %p913, %p914
      %p917 = scmp.ne.s32.totalorder %s902, %s916
      %p918 = scmp.eq.s32.totalorder %s94, 0
      %p919 = por %p917, %p918
      %s920 = ssub.s32 %s88, %s95
      %p921 = scmp.eq.s32.totalorder %s920, 0
      %s923 = sadd.s32 %s922, 1
      %s924 = scalar_select %p921, %s922, %s923
      %p927 = pneg %p921
      %p928 = scmp.eq.s32.totalorder %s88, 1
      %p929 = por %p927, %p928
      %p930 = scmp.ne.s32.totalorder %s922, %s925
      %p931 = scmp.eq.s32.totalorder %s88, 0
      %p932 = por %p930, %p931
      %p933 = scmp.ne.s32.totalorder %s922, %s925
      %p934 = scmp.eq.s32.totalorder %s93, 1
      %p935 = por %p933, %p934
      %p936 = scmp.ne.s32.totalorder %s925, %s926
      %p937 = scmp.eq.s32.totalorder %s93, 0
      %p938 = por %p936, %p937
      %p939 = scmp.ne.s32.totalorder %s925, %s926
      %p940 = scmp.eq.s32.totalorder %s94, 1
      %p941 = por %p939, %p940
      %p943 = scmp.ne.s32.totalorder %s926, %s942
      %p944 = scmp.eq.s32.totalorder %s94, 0
      %p945 = por %p943, %p944
      %p946 = scmp.le.s32.totalorder 1, %s88
      %p947 = scmp.lt.s32.totalorder %s88, 3
      %p948 = pnand %p946, %p947
      %p949 = pneg %p948
      // Predicated region
      $region9: #{noise_analysis_forward.1} parent=5 // pred_check
        _
      $region10: #{noise_analysis_forward.1} parent=5 // pred_check_branch
        %951 = sbr.rel (%p948) target = $region12
      $region11: #{noise_analysis_forward.1} parent=5 // pred_region
        %s952 = ssub.s32 %s88, 1
        // Predicated region
        $region13: #{noise_analysis_forward.1} parent=11 // pred_check
          %p953 = pneg %p135
        $region14: #{noise_analysis_forward.1} parent=11 // pred_check_branch
          %955 = sbr.rel (%p953) target = $region16
        $region15: #{noise_analysis_forward.1} parent=11 // pred_region
          _
        $region16: #{noise_analysis_forward.1} parent=11 // pred_fallthru
          _
        // Predicated region
        $region17: #{noise_analysis_forward.1} parent=11 // pred_check
          %p956 = pneg %p156
        $region18: #{noise_analysis_forward.1} parent=11 // pred_check_branch
          %958 = sbr.rel (%p956) target = $region20
        $region19: #{noise_analysis_forward.1} parent=11 // pred_region
          _
        $region20: #{noise_analysis_forward.1} parent=11 // pred_fallthru
          _
        // Predicated region
        $region21: #{noise_analysis_forward.1} parent=11 // pred_check
          %p959 = pneg %p177
        $region22: #{noise_analysis_forward.1} parent=11 // pred_check_branch
          %961 = sbr.rel (%p959) target = $region24
        $region23: #{noise_analysis_forward.1} parent=11 // pred_region
          _
        $region24: #{noise_analysis_forward.1} parent=11 // pred_fallthru
          _
        // Predicated region
        $region25: #{noise_analysis_forward.1} parent=11 // pred_check
          %p962 = pneg %p198
        $region26: #{noise_analysis_forward.1} parent=11 // pred_check_branch
          %964 = sbr.rel (%p962) target = $region28
        $region27: #{noise_analysis_forward.1} parent=11 // pred_region
          _
        $region28: #{noise_analysis_forward.1} parent=11 // pred_fallthru
          _
        // Predicated region
        $region29: #{noise_analysis_forward.1} parent=11 // pred_check
          %p965 = pneg %p219
        $region30: #{noise_analysis_forward.1} parent=11 // pred_check_branch
          %967 = sbr.rel (%p965) target = $region32
        $region31: #{noise_analysis_forward.1} parent=11 // pred_region
          _
        $region32: #{noise_analysis_forward.1} parent=11 // pred_fallthru
          _
        // Predicated region
        $region33: #{noise_analysis_forward.1} parent=11 // pred_check
          %p968 = pneg %p240
        $region34: #{noise_analysis_forward.1} parent=11 // pred_check_branch
          %970 = sbr.rel (%p968) target = $region36
        $region35: #{noise_analysis_forward.1} parent=11 // pred_region
          _
        $region36: #{noise_analysis_forward.1} parent=11 // pred_fallthru
          _
        // Predicated region
        $region37: #{noise_analysis_forward.1} parent=11 // pred_check
          %p971 = pneg %p261
        $region38: #{noise_analysis_forward.1} parent=11 // pred_check_branch
          %973 = sbr.rel (%p971) target = $region40
        $region39: #{noise_analysis_forward.1} parent=11 // pred_region
          _
        $region40: #{noise_analysis_forward.1} parent=11 // pred_fallthru
          _
        // Predicated region
        $region41: #{noise_analysis_forward.1} parent=11 // pred_check
          %p974 = pneg %p282
        $region42: #{noise_analysis_forward.1} parent=11 // pred_check_branch
          %976 = sbr.rel (%p974) target = $region44
        $region43: #{noise_analysis_forward.1} parent=11 // pred_region
          _
        $region44: #{noise_analysis_forward.1} parent=11 // pred_fallthru
          _
        // Predicated region
        $region45: #{noise_analysis_forward.1} parent=11 // pred_check
          %p977 = pneg %p303
        $region46: #{noise_analysis_forward.1} parent=11 // pred_check_branch
          %979 = sbr.rel (%p977) target = $region48
        $region47: #{noise_analysis_forward.1} parent=11 // pred_region
          _
        $region48: #{noise_analysis_forward.1} parent=11 // pred_fallthru
          _
        // Predicated region
        $region49: #{noise_analysis_forward.1} parent=11 // pred_check
          %p980 = pneg %p324
        $region50: #{noise_analysis_forward.1} parent=11 // pred_check_branch
          %982 = sbr.rel (%p980) target = $region52
        $region51: #{noise_analysis_forward.1} parent=11 // pred_region
          _
        $region52: #{noise_analysis_forward.1} parent=11 // pred_fallthru
          _
        // Predicated region
        $region53: #{noise_analysis_forward.1} parent=11 // pred_check
          %p983 = pneg %p345
        $region54: #{noise_analysis_forward.1} parent=11 // pred_check_branch
          %985 = sbr.rel (%p983) target = $region56
        $region55: #{noise_analysis_forward.1} parent=11 // pred_region
          _
        $region56: #{noise_analysis_forward.1} parent=11 // pred_fallthru
          _
        // Predicated region
        $region57: #{noise_analysis_forward.1} parent=11 // pred_check
          %p986 = pneg %p366
        $region58: #{noise_analysis_forward.1} parent=11 // pred_check_branch
          %988 = sbr.rel (%p986) target = $region60
        $region59: #{noise_analysis_forward.1} parent=11 // pred_region
          _
        $region60: #{noise_analysis_forward.1} parent=11 // pred_fallthru
          _
        // Predicated region
        $region61: #{noise_analysis_forward.1} parent=11 // pred_check
          %p989 = pneg %p387
        $region62: #{noise_analysis_forward.1} parent=11 // pred_check_branch
          %991 = sbr.rel (%p989) target = $region64
        $region63: #{noise_analysis_forward.1} parent=11 // pred_region
          _
        $region64: #{noise_analysis_forward.1} parent=11 // pred_fallthru
          _
        // Predicated region
        $region65: #{noise_analysis_forward.1} parent=11 // pred_check
          %p992 = pneg %p408
        $region66: #{noise_analysis_forward.1} parent=11 // pred_check_branch
          %994 = sbr.rel (%p992) target = $region68
        $region67: #{noise_analysis_forward.1} parent=11 // pred_region
          _
        $region68: #{noise_analysis_forward.1} parent=11 // pred_fallthru
          _
        // Predicated region
        $region69: #{noise_analysis_forward.1} parent=11 // pred_check
          %p995 = pneg %p429
        $region70: #{noise_analysis_forward.1} parent=11 // pred_check_branch
          %997 = sbr.rel (%p995) target = $region72
        $region71: #{noise_analysis_forward.1} parent=11 // pred_region
          _
        $region72: #{noise_analysis_forward.1} parent=11 // pred_fallthru
          _
        // Predicated region
        $region73: #{noise_analysis_forward.1} parent=11 // pred_check
          %p998 = pneg %p450
        $region74: #{noise_analysis_forward.1} parent=11 // pred_check_branch
          %1000 = sbr.rel (%p998) target = $region76
        $region75: #{noise_analysis_forward.1} parent=11 // pred_region
          _
        $region76: #{noise_analysis_forward.1} parent=11 // pred_fallthru
          _
        // Predicated region
        $region77: #{noise_analysis_forward.1} parent=11 // pred_check
          %p1001 = pneg %p471
        $region78: #{noise_analysis_forward.1} parent=11 // pred_check_branch
          %1003 = sbr.rel (%p1001) target = $region80
        $region79: #{noise_analysis_forward.1} parent=11 // pred_region
          _
        $region80: #{noise_analysis_forward.1} parent=11 // pred_fallthru
          _
        // Predicated region
        $region81: #{noise_analysis_forward.1} parent=11 // pred_check
          %p1004 = pneg %p492
        $region82: #{noise_analysis_forward.1} parent=11 // pred_check_branch
          %1006 = sbr.rel (%p1004) target = $region84
        $region83: #{noise_analysis_forward.1} parent=11 // pred_region
          _
        $region84: #{noise_analysis_forward.1} parent=11 // pred_fallthru
          _
        // Predicated region
        $region85: #{noise_analysis_forward.1} parent=11 // pred_check
          %p1007 = pneg %p513
        $region86: #{noise_analysis_forward.1} parent=11 // pred_check_branch
          %1009 = sbr.rel (%p1007) target = $region88
        $region87: #{noise_analysis_forward.1} parent=11 // pred_region
          _
        $region88: #{noise_analysis_forward.1} parent=11 // pred_fallthru
          _
        // Predicated region
        $region89: #{noise_analysis_forward.1} parent=11 // pred_check
          %p1010 = pneg %p534
        $region90: #{noise_analysis_forward.1} parent=11 // pred_check_branch
          %1012 = sbr.rel (%p1010) target = $region92
        $region91: #{noise_analysis_forward.1} parent=11 // pred_region
          _
        $region92: #{noise_analysis_forward.1} parent=11 // pred_fallthru
          _
        // Predicated region
        $region93: #{noise_analysis_forward.1} parent=11 // pred_check
          %p1013 = pneg %p555
        $region94: #{noise_analysis_forward.1} parent=11 // pred_check_branch
          %1015 = sbr.rel (%p1013) target = $region96
        $region95: #{noise_analysis_forward.1} parent=11 // pred_region
          _
        $region96: #{noise_analysis_forward.1} parent=11 // pred_fallthru
          _
        // Predicated region
        $region97: #{noise_analysis_forward.1} parent=11 // pred_check
          %p1016 = pneg %p576
        $region98: #{noise_analysis_forward.1} parent=11 // pred_check_branch
          %1018 = sbr.rel (%p1016) target = $region100
        $region99: #{noise_analysis_forward.1} parent=11 // pred_region
          _
        $region100: #{noise_analysis_forward.1} parent=11 // pred_fallthru
          _
        // Predicated region
        $region101: #{noise_analysis_forward.1} parent=11 // pred_check
          %p1019 = pneg %p597
        $region102: #{noise_analysis_forward.1} parent=11 // pred_check_branch
          %1021 = sbr.rel (%p1019) target = $region104
        $region103: #{noise_analysis_forward.1} parent=11 // pred_region
          _
        $region104: #{noise_analysis_forward.1} parent=11 // pred_fallthru
          _
        // Predicated region
        $region105: #{noise_analysis_forward.1} parent=11 // pred_check
          %p1022 = pneg %p618
        $region106: #{noise_analysis_forward.1} parent=11 // pred_check_branch
          %1024 = sbr.rel (%p1022) target = $region108
        $region107: #{noise_analysis_forward.1} parent=11 // pred_region
          _
        $region108: #{noise_analysis_forward.1} parent=11 // pred_fallthru
          _
        // Predicated region
        $region109: #{noise_analysis_forward.1} parent=11 // pred_check
          %p1025 = pneg %p639
        $region110: #{noise_analysis_forward.1} parent=11 // pred_check_branch
          %1027 = sbr.rel (%p1025) target = $region112
        $region111: #{noise_analysis_forward.1} parent=11 // pred_region
          _
        $region112: #{noise_analysis_forward.1} parent=11 // pred_fallthru
          _
        // Predicated region
        $region113: #{noise_analysis_forward.1} parent=11 // pred_check
          %p1028 = pneg %p660
        $region114: #{noise_analysis_forward.1} parent=11 // pred_check_branch
          %1030 = sbr.rel (%p1028) target = $region116
        $region115: #{noise_analysis_forward.1} parent=11 // pred_region
          _
        $region116: #{noise_analysis_forward.1} parent=11 // pred_fallthru
          _
        // Predicated region
        $region117: #{noise_analysis_forward.1} parent=11 // pred_check
          %p1031 = pneg %p681
        $region118: #{noise_analysis_forward.1} parent=11 // pred_check_branch
          %1033 = sbr.rel (%p1031) target = $region120
        $region119: #{noise_analysis_forward.1} parent=11 // pred_region
          _
        $region120: #{noise_analysis_forward.1} parent=11 // pred_fallthru
          _
        // Predicated region
        $region121: #{noise_analysis_forward.1} parent=11 // pred_check
          %p1034 = pneg %p702
        $region122: #{noise_analysis_forward.1} parent=11 // pred_check_branch
          %1036 = sbr.rel (%p1034) target = $region124
        $region123: #{noise_analysis_forward.1} parent=11 // pred_region
          _
        $region124: #{noise_analysis_forward.1} parent=11 // pred_fallthru
          _
        // Predicated region
        $region125: #{noise_analysis_forward.1} parent=11 // pred_check
          %p1037 = pneg %p723
        $region126: #{noise_analysis_forward.1} parent=11 // pred_check_branch
          %1039 = sbr.rel (%p1037) target = $region128
        $region127: #{noise_analysis_forward.1} parent=11 // pred_region
          _
        $region128: #{noise_analysis_forward.1} parent=11 // pred_fallthru
          _
        // Predicated region
        $region129: #{noise_analysis_forward.1} parent=11 // pred_check
          %p1040 = pneg %p744
        $region130: #{noise_analysis_forward.1} parent=11 // pred_check_branch
          %1042 = sbr.rel (%p1040) target = $region132
        $region131: #{noise_analysis_forward.1} parent=11 // pred_region
          _
        $region132: #{noise_analysis_forward.1} parent=11 // pred_fallthru
          _
        // Predicated region
        $region133: #{noise_analysis_forward.1} parent=11 // pred_check
          %p1043 = pneg %p765
        $region134: #{noise_analysis_forward.1} parent=11 // pred_check_branch
          %1045 = sbr.rel (%p1043) target = $region136
        $region135: #{noise_analysis_forward.1} parent=11 // pred_region
          _
        $region136: #{noise_analysis_forward.1} parent=11 // pred_fallthru
          _
        // Predicated region
        $region137: #{noise_analysis_forward.1} parent=11 // pred_check
          %p1046 = pneg %p786
        $region138: #{noise_analysis_forward.1} parent=11 // pred_check_branch
          %1048 = sbr.rel (%p1046) target = $region140
        $region139: #{noise_analysis_forward.1} parent=11 // pred_region
          _
        $region140: #{noise_analysis_forward.1} parent=11 // pred_fallthru
          _
        // Predicated region
        $region141: #{noise_analysis_forward.1} parent=11 // pred_check
          %p1049 = pneg %p807
        $region142: #{noise_analysis_forward.1} parent=11 // pred_check_branch
          %1051 = sbr.rel (%p1049) target = $region144
        $region143: #{noise_analysis_forward.1} parent=11 // pred_region
          _
        $region144: #{noise_analysis_forward.1} parent=11 // pred_fallthru
          _
        // Predicated region
        $region145: #{noise_analysis_forward.1} parent=11 // pred_check
          %p1052 = pneg %p828
        $region146: #{noise_analysis_forward.1} parent=11 // pred_check_branch
          %1054 = sbr.rel (%p1052) target = $region148
        $region147: #{noise_analysis_forward.1} parent=11 // pred_region
          _
        $region148: #{noise_analysis_forward.1} parent=11 // pred_fallthru
          _
        // Predicated region
        $region149: #{noise_analysis_forward.1} parent=11 // pred_check
          %p1055 = pneg %p849
        $region150: #{noise_analysis_forward.1} parent=11 // pred_check_branch
          %1057 = sbr.rel (%p1055) target = $region152
        $region151: #{noise_analysis_forward.1} parent=11 // pred_region
          _
        $region152: #{noise_analysis_forward.1} parent=11 // pred_fallthru
          _
        // Predicated region
        $region153: #{noise_analysis_forward.1} parent=11 // pred_check
          %p1058 = pneg %p870
        $region154: #{noise_analysis_forward.1} parent=11 // pred_check_branch
          %1060 = sbr.rel (%p1058) target = $region156
        $region155: #{noise_analysis_forward.1} parent=11 // pred_region
          _
        $region156: #{noise_analysis_forward.1} parent=11 // pred_fallthru
          _
        // Predicated region
        $region157: #{noise_analysis_forward.1} parent=11 // pred_check
          %p1061 = pneg %p891
        $region158: #{noise_analysis_forward.1} parent=11 // pred_check_branch
          %1063 = sbr.rel (%p1061) target = $region160
        $region159: #{noise_analysis_forward.1} parent=11 // pred_region
          _
        $region160: #{noise_analysis_forward.1} parent=11 // pred_fallthru
          _
        // Predicated region
        $region161: #{noise_analysis_forward.1} parent=11 // pred_check
          %p1064 = pneg %p912
        $region162: #{noise_analysis_forward.1} parent=11 // pred_check_branch
          %1066 = sbr.rel (%p1064) target = $region164
        $region163: #{noise_analysis_forward.1} parent=11 // pred_region
          _
        $region164: #{noise_analysis_forward.1} parent=11 // pred_fallthru
          _
      $region12: #{noise_analysis_forward.1} parent=5 // pred_fallthru
        _
      %p1067 = scmp.lt.s32.totalorder %s88, 2
      // Predicated region
      $region165: #{noise_analysis_forward.1} parent=5 // pred_check
        %p1068 = pneg %p1067
      $region166: #{noise_analysis_forward.1} parent=5 // pred_check_branch
        %1070 = sbr.rel (%p1068) target = $region168
      $region167: #{noise_analysis_forward.1} parent=5 // pred_region
        // Predicated region
        $region169: #{noise_analysis_forward.1} parent=167 // pred_check
          %p1071 = pneg %p108
        $region170: #{noise_analysis_forward.1} parent=167 // pred_check_branch
          %1073 = sbr.rel (%p1071) target = $region172
        $region171: #{noise_analysis_forward.1} parent=167 // pred_region
          %p1074 = scmp.lt.s32.totalorder %s88, 1
          %s1075 = scalar_select %p1074, %s88, 1
          %s1076 = smul.addr %s1075, 24
          %s1077 = smul.addr %s1076, 8
          %s1078 = scalar_lea.vmem %s1, %s1077
        $region172: #{noise_analysis_forward.1} parent=167 // pred_fallthru
          _
      $region168: #{noise_analysis_forward.1} parent=5 // pred_fallthru
        _
      %p1079 = scmp.le.s32.totalorder 1, %s88
      %p1080 = scmp.lt.s32.totalorder %s88, 3
      %p1081 = pnand %p1079, %p1080
      %p1082 = pneg %p1081
      // Predicated region
      $region173: #{noise_analysis_forward.1} parent=5 // pred_check
        _
      $region174: #{noise_analysis_forward.1} parent=5 // pred_check_branch
        %1084 = sbr.rel (%p1081) target = $region176
      $region175: #{noise_analysis_forward.1} parent=5 // pred_region
        %s1085 = ssub.s32 %s88, 1
        %p1086 = scmp.lt.s32.totalorder %s93, 1
        %s1087 = scalar_select %p1086, %s93, 1
        %s1088 = smul.addr %s1087, 24
        %s1089 = smul.addr %s1088, 8
        %s1090 = scalar_lea.vmem %s1, %s1089
        %p1091 = pneg %p114
        %p1092 = pneg %p111
        %p1093 = pneg %p135
        %p1094 = pneg %p132
        %p1095 = pneg %p156
        %p1096 = pneg %p153
        %p1097 = pneg %p177
        %p1098 = pneg %p174
        %p1099 = pneg %p198
        %p1100 = pneg %p195
        %p1101 = pneg %p219
        %p1102 = pneg %p216
        %p1103 = pneg %p240
        %p1104 = pneg %p237
        %p1105 = pneg %p261
        %p1106 = pneg %p258
        %p1107 = pneg %p282
        %p1108 = pneg %p279
        %p1109 = pneg %p303
        %p1110 = pneg %p300
        %p1111 = pneg %p324
        %p1112 = pneg %p321
        %p1113 = pneg %p345
        %p1114 = pneg %p342
        %p1115 = pneg %p366
        %p1116 = pneg %p363
        %p1117 = pneg %p387
        %p1118 = pneg %p384
        %p1119 = pneg %p408
        %p1120 = pneg %p405
        %p1121 = pneg %p429
        %p1122 = pneg %p426
        %p1123 = pneg %p450
        %p1124 = pneg %p447
        %p1125 = pneg %p471
        %p1126 = pneg %p468
        %p1127 = pneg %p492
        %p1128 = pneg %p489
        %p1129 = pneg %p513
        %p1130 = pneg %p510
        %p1131 = pneg %p534
        %p1132 = pneg %p531
        %p1133 = pneg %p555
        %p1134 = pneg %p552
        %p1135 = pneg %p576
        %p1136 = pneg %p573
        %p1137 = pneg %p597
        %p1138 = pneg %p594
        %p1139 = pneg %p618
        %p1140 = pneg %p615
        %p1141 = pneg %p639
        %p1142 = pneg %p636
        %p1143 = pneg %p660
        %p1144 = pneg %p657
        %p1145 = pneg %p681
        %p1146 = pneg %p678
        %p1147 = pneg %p702
        %p1148 = pneg %p699
        %p1149 = pneg %p723
        %p1150 = pneg %p720
        %p1151 = pneg %p744
        %p1152 = pneg %p741
        %p1153 = pneg %p765
        %p1154 = pneg %p762
        %p1155 = pneg %p786
        %p1156 = pneg %p783
        %p1157 = pneg %p807
        %p1158 = pneg %p804
        %p1159 = pneg %p828
        %p1160 = pneg %p825
        %p1161 = pneg %p849
        %p1162 = pneg %p846
        %p1163 = pneg %p870
        %p1164 = pneg %p867
        %p1165 = pneg %p891
        %p1166 = pneg %p888
        %p1167 = pneg %p912
        %p1168 = pneg %p909
        %p1169 = pneg %p938
        %p1170 = pneg %p935
        %s1171 = sand.u32 %s925, 1
        %s1172 = scalar_lea.sflag [#allocation10], %s1171
        %s1173 = sand.u32 %s925, 1
        %s1174 = smul.addr %s1173, 2
        %s1175 = scalar_lea.vmem [#allocation9], %s1174
        %p1176 = scmp.lt.s32.totalorder %s93, 1
        %s1177 = scalar_select %p1176, %s93, 1
        %s1178 = smul.addr %s1177, 24
        %s1179 = smul.addr %s1178, 8
        %s1180 = scalar_lea.vmem %s1, %s1179
        %v1181 = vld [vmem:[%s1180] sm:$0xff]
        %v1182 = vld [vmem:[%s1180 + $0x8] sm:$0xff]
        %v1183 = vld [vmem:[%s1180 + $0x10] sm:$0xff]
        %v1184 = vld [vmem:[%s1180 + $0x18] sm:$0xff]
        %v1185 = vld [vmem:[%s1180 + $0x20] sm:$0xff]
        %v1186 = vld [vmem:[%s1180 + $0x28] sm:$0xff]
        %v1187 = vld [vmem:[%s1180 + $0x30] sm:$0xff]
        %v1188 = vld [vmem:[%s1180 + $0x38] sm:$0xff]
        %v1189 = vld [vmem:[%s1180 + $0x40] sm:$0xff]
        %v1190 = vld [vmem:[%s3] sm:$0xff]
        %v1191 = vld [vmem:[%s3 + $0x8] sm:$0xff]
        %v1192 = vld [vmem:[%s3 + $0x10] sm:$0xff]
        %v1193 = vld [vmem:[%s3 + $0x18] sm:$0xff]
        %v1194 = vld [vmem:[%s1180 + $0x1] sm:$0xff]
        %v1195 = vld [vmem:[%s1180 + $0x9] sm:$0xff]
        %v1196 = vld [vmem:[%s1180 + $0x11] sm:$0xff]
        %v1197 = vld [vmem:[%s1180 + $0x19] sm:$0xff]
        %v1198 = vld [vmem:[%s1180 + $0x21] sm:$0xff]
        %v1199 = vld [vmem:[%s1180 + $0x29] sm:$0xff]
        %v1200 = vld [vmem:[%s1180 + $0x31] sm:$0xff]
        %v1201 = vld [vmem:[%s1180 + $0x39] sm:$0xff]
        %v1202 = vld [vmem:[%s1180 + $0x41] sm:$0xff]
        %v1203 = vld [vmem:[%s5] sm:$0xff]
        %v1204 = vld [vmem:[%s5 + $0x8] sm:$0xff]
        %vm1205 = vcmask 130048
        %v1207 = vsel %vm1205, %v1194, 0
        %v1210 = vsel %vm1205, %v1195, 0
        %v1213 = vsel %vm1205, %v1196, 0
        %v1216 = vsel %vm1205, %v1197, 0
        %v1219 = vsel %vm1205, %v1198, 0
        %v1222 = vsel %vm1205, %v1199, 0
        %v1225 = vsel %vm1205, %v1200, 0
        %v1228 = vsel %vm1205, %v1201, 0
        %v1231 = vsel %vm1205, %v1202, 0
        %1233 = vmatpush.msra.mxu0 0.0
        %1234 = vmatpush.msra.mxu0 0.0
        %1235 = vmatpush.msra.mxu0 0.0
        %1236 = vmatpush.msra.mxu0 0.0
        %1237 = vmatpush.msra.mxu0 0.0
        %1238 = vmatpush.msra.mxu0 0.0
        %1239 = vmatpush.msra.mxu0 0.0
        %1240 = vmatpush.msra.mxu0 0.0
        %1241 = vmatpush.msra.mxu0 0.0
        %1242 = vmatpush.msra.mxu0 0.0
        %1243 = vmatpush.msra.mxu0 0.0
        %1244 = vmatpush.msra.mxu0 0.0
        %1245 = vmatpush.msra.mxu0 0.0
        %1246 = vmatpush.msra.mxu0 0.0
        %1247 = vmatpush.msra.mxu0 %v1204
        %1248 = vmatpush.msra.mxu0 %v1203
        %1249 = vmatmul.f32.gmra.mxu0 %v1207
        %v1250 = vpop.f32.mrf.mxu0
        %v1251 = vadd.f32 0.0, %v1250
        %1252 = vmatmul.f32.gmra.mxu0 %v1210
        %v1253 = vpop.f32.mrf.mxu0
        %v1254 = vadd.f32 0.0, %v1253
        %1255 = vmatmul.f32.gmra.mxu0 %v1213
        %v1256 = vpop.f32.mrf.mxu0
        %v1257 = vadd.f32 0.0, %v1256
        %1258 = vmatmul.f32.gmra.mxu0 %v1216
        %v1259 = vpop.f32.mrf.mxu0
        %v1260 = vadd.f32 0.0, %v1259
        %1261 = vmatmul.f32.gmra.mxu0 %v1219
        %v1262 = vpop.f32.mrf.mxu0
        %v1263 = vadd.f32 0.0, %v1262
        %1264 = vmatmul.f32.gmra.mxu0 %v1222
        %v1265 = vpop.f32.mrf.mxu0
        %v1266 = vadd.f32 0.0, %v1265
        %1267 = vmatmul.f32.gmra.mxu0 %v1225
        %v1268 = vpop.f32.mrf.mxu0
        %v1269 = vadd.f32 0.0, %v1268
        %1270 = vmatmul.f32.gmra.mxu0 %v1228
        %v1271 = vpop.f32.mrf.mxu0
        %v1272 = vadd.f32 0.0, %v1271
        %1273 = vmatmul.f32.gmra.mxu0 %v1231
        %v1274 = vpop.f32.mrf.mxu0
        %v1275 = vadd.f32 0.0, %v1274
        %1276 = vdwg.mxu0
        %vm1277 = vcmask 261120
        %v1279 = vsel %vm1277, %v1181, 0
        %v1282 = vsel %vm1277, %v1182, 0
        %v1285 = vsel %vm1277, %v1183, 0
        %v1288 = vsel %vm1277, %v1184, 0
        %v1291 = vsel %vm1277, %v1185, 0
        %v1294 = vsel %vm1277, %v1186, 0
        %v1297 = vsel %vm1277, %v1187, 0
        %v1300 = vsel %vm1277, %v1188, 0
        %v1303 = vsel %vm1277, %v1189, 0
        %1305 = vmatpush.msra.mxu0 0.0
        %1306 = vmatpush.msra.mxu0 0.0
        %1307 = vmatpush.msra.mxu0 0.0
        %1308 = vmatpush.msra.mxu0 0.0
        %1309 = vmatpush.msra.mxu0 0.0
        %1310 = vmatpush.msra.mxu0 0.0
        %1311 = vmatpush.msra.mxu0 0.0
        %1312 = vmatpush.msra.mxu0 0.0
        %1313 = vmatpush.msra.mxu0 0.0
        %1314 = vmatpush.msra.mxu0 0.0
        %1315 = vmatpush.msra.mxu0 0.0
        %1316 = vmatpush.msra.mxu0 0.0
        %1317 = vmatpush.msra.mxu0 %v1193
        %1318 = vmatpush.msra.mxu0 %v1192
        %1319 = vmatpush.msra.mxu0 %v1191
        %1320 = vmatpush.msra.mxu0 %v1190
        %1321 = vmatmul.f32.gmra.mxu0 %v1279
        %v1322 = vpop.f32.mrf.mxu0
        %v1323 = vadd.f32 %v1251, %v1322
        %1324 = vmatmul.f32.gmra.mxu0 %v1282
        %v1325 = vpop.f32.mrf.mxu0
        %v1326 = vadd.f32 %v1254, %v1325
        %1327 = vmatmul.f32.gmra.mxu0 %v1285
        %v1328 = vpop.f32.mrf.mxu0
        %v1329 = vadd.f32 %v1257, %v1328
        %1330 = vmatmul.f32.gmra.mxu0 %v1288
        %v1331 = vpop.f32.mrf.mxu0
        %v1332 = vadd.f32 %v1260, %v1331
        %1333 = vmatmul.f32.gmra.mxu0 %v1291
        %v1334 = vpop.f32.mrf.mxu0
        %v1335 = vadd.f32 %v1263, %v1334
        %1336 = vmatmul.f32.gmra.mxu0 %v1294
        %v1337 = vpop.f32.mrf.mxu0
        %v1338 = vadd.f32 %v1266, %v1337
        %1339 = vmatmul.f32.gmra.mxu0 %v1297
        %v1340 = vpop.f32.mrf.mxu0
        %v1341 = vadd.f32 %v1269, %v1340
        %1342 = vmatmul.f32.gmra.mxu0 %v1300
        %v1343 = vpop.f32.mrf.mxu0
        %v1344 = vadd.f32 %v1272, %v1343
        %1345 = vmatmul.f32.gmra.mxu0 %v1303
        %v1346 = vpop.f32.mrf.mxu0
        %v1347 = vadd.f32 %v1275, %v1346
        %1348 = vdwg.mxu0
        %s1349 = scalar_lea.vmem %s1180, 96
        %v1350 = vld [vmem:[%s1349] sm:$0xff]
        %v1351 = vld [vmem:[%s1349 + $0x8] sm:$0xff]
        %v1352 = vld [vmem:[%s1349 + $0x10] sm:$0xff]
        %v1353 = vld [vmem:[%s1349 + $0x18] sm:$0xff]
        %v1354 = vld [vmem:[%s1349 + $0x20] sm:$0xff]
        %v1355 = vld [vmem:[%s1349 + $0x28] sm:$0xff]
        %v1356 = vld [vmem:[%s1349 + $0x30] sm:$0xff]
        %v1357 = vld [vmem:[%s1349 + $0x38] sm:$0xff]
        %v1358 = vld [vmem:[%s1349 + $0x40] sm:$0xff]
        %s1359 = scalar_lea.vmem %s3, 32
        %v1360 = vld [vmem:[%s1359] sm:$0xff]
        %v1361 = vld [vmem:[%s1359 + $0x8] sm:$0xff]
        %v1362 = vld [vmem:[%s1359 + $0x10] sm:$0xff]
        %v1363 = vld [vmem:[%s1359 + $0x18] sm:$0xff]
        %v1365 = vsel %vm1277, %v1350, 0
        %v1368 = vsel %vm1277, %v1351, 0
        %v1371 = vsel %vm1277, %v1352, 0
        %v1374 = vsel %vm1277, %v1353, 0
        %v1377 = vsel %vm1277, %v1354, 0
        %v1380 = vsel %vm1277, %v1355, 0
        %v1383 = vsel %vm1277, %v1356, 0
        %v1386 = vsel %vm1277, %v1357, 0
        %v1389 = vsel %vm1277, %v1358, 0
        %1391 = vmatpush.msra.mxu0 0.0
        %1392 = vmatpush.msra.mxu0 0.0
        %1393 = vmatpush.msra.mxu0 0.0
        %1394 = vmatpush.msra.mxu0 0.0
        %1395 = vmatpush.msra.mxu0 0.0
        %1396 = vmatpush.msra.mxu0 0.0
        %1397 = vmatpush.msra.mxu0 0.0
        %1398 = vmatpush.msra.mxu0 0.0
        %1399 = vmatpush.msra.mxu0 0.0
        %1400 = vmatpush.msra.mxu0 0.0
        %1401 = vmatpush.msra.mxu0 0.0
        %1402 = vmatpush.msra.mxu0 0.0
        %1403 = vmatpush.msra.mxu0 %v1363
        %1404 = vmatpush.msra.mxu0 %v1362
        %1405 = vmatpush.msra.mxu0 %v1361
        %1406 = vmatpush.msra.mxu0 %v1360
        %1407 = vmatmul.f32.gmra.mxu0 %v1365
        %v1408 = vpop.f32.mrf.mxu0
        %v1409 = vadd.f32 0.0, %v1408
        %1410 = vmatmul.f32.gmra.mxu0 %v1368
        %v1411 = vpop.f32.mrf.mxu0
        %v1412 = vadd.f32 0.0, %v1411
        %1413 = vmatmul.f32.gmra.mxu0 %v1371
        %v1414 = vpop.f32.mrf.mxu0
        %v1415 = vadd.f32 0.0, %v1414
        %1416 = vmatmul.f32.gmra.mxu0 %v1374
        %v1417 = vpop.f32.mrf.mxu0
        %v1418 = vadd.f32 0.0, %v1417
        %1419 = vmatmul.f32.gmra.mxu0 %v1377
        %v1420 = vpop.f32.mrf.mxu0
        %v1421 = vadd.f32 0.0, %v1420
        %1422 = vmatmul.f32.gmra.mxu0 %v1380
        %v1423 = vpop.f32.mrf.mxu0
        %v1424 = vadd.f32 0.0, %v1423
        %1425 = vmatmul.f32.gmra.mxu0 %v1383
        %v1426 = vpop.f32.mrf.mxu0
        %v1427 = vadd.f32 0.0, %v1426
        %1428 = vmatmul.f32.gmra.mxu0 %v1386
        %v1429 = vpop.f32.mrf.mxu0
        %v1430 = vadd.f32 0.0, %v1429
        %1431 = vmatmul.f32.gmra.mxu0 %v1389
        %v1432 = vpop.f32.mrf.mxu0
        %v1433 = vadd.f32 0.0, %v1432
        %1434 = vdwg.mxu0
        %v1435 = vadd.f32 %v1323, %v1409
        %v1436 = vadd.f32 %v1326, %v1412
        %v1437 = vadd.f32 %v1329, %v1415
        %v1438 = vadd.f32 %v1332, %v1418
        %v1439 = vadd.f32 %v1335, %v1421
        %v1440 = vadd.f32 %v1338, %v1424
        %v1441 = vadd.f32 %v1341, %v1427
        %v1442 = vadd.f32 %v1344, %v1430
        %v1443 = vadd.f32 %v1347, %v1433
        %v1444 = vld [vmem:[%s1349 + $0x1] sm:$0xff]
        %v1445 = vld [vmem:[%s1349 + $0x9] sm:$0xff]
        %v1446 = vld [vmem:[%s1349 + $0x11] sm:$0xff]
        %v1447 = vld [vmem:[%s1349 + $0x19] sm:$0xff]
        %v1448 = vld [vmem:[%s1349 + $0x21] sm:$0xff]
        %v1449 = vld [vmem:[%s1349 + $0x29] sm:$0xff]
        %v1450 = vld [vmem:[%s1349 + $0x31] sm:$0xff]
        %v1451 = vld [vmem:[%s1349 + $0x39] sm:$0xff]
        %v1452 = vld [vmem:[%s1349 + $0x41] sm:$0xff]
        %s1453 = scalar_lea.vmem %s5, 16
        %v1454 = vld [vmem:[%s1453] sm:$0xff]
        %v1455 = vld [vmem:[%s1453 + $0x8] sm:$0xff]
        %v1457 = vsel %vm1205, %v1444, 0
        %v1460 = vsel %vm1205, %v1445, 0
        %v1463 = vsel %vm1205, %v1446, 0
        %v1466 = vsel %vm1205, %v1447, 0
        %v1469 = vsel %vm1205, %v1448, 0
        %v1472 = vsel %vm1205, %v1449, 0
        %v1475 = vsel %vm1205, %v1450, 0
        %v1478 = vsel %vm1205, %v1451, 0
        %v1481 = vsel %vm1205, %v1452, 0
        %1483 = vmatpush.msra.mxu0 0.0
        %1484 = vmatpush.msra.mxu0 0.0
        %1485 = vmatpush.msra.mxu0 0.0
        %1486 = vmatpush.msra.mxu0 0.0
        %1487 = vmatpush.msra.mxu0 0.0
        %1488 = vmatpush.msra.mxu0 0.0
        %1489 = vmatpush.msra.mxu0 0.0
        %1490 = vmatpush.msra.mxu0 0.0
        %1491 = vmatpush.msra.mxu0 0.0
        %1492 = vmatpush.msra.mxu0 0.0
        %1493 = vmatpush.msra.mxu0 0.0
        %1494 = vmatpush.msra.mxu0 0.0
        %1495 = vmatpush.msra.mxu0 0.0
        %1496 = vmatpush.msra.mxu0 0.0
        %1497 = vmatpush.msra.mxu0 %v1455
        %1498 = vmatpush.msra.mxu0 %v1454
        %1499 = vmatmul.f32.gmra.mxu0 %v1457
        %v1500 = vpop.f32.mrf.mxu0
        %v1501 = vadd.f32 0.0, %v1500
        %1502 = vmatmul.f32.gmra.mxu0 %v1460
        %v1503 = vpop.f32.mrf.mxu0
        %v1504 = vadd.f32 0.0, %v1503
        %1505 = vmatmul.f32.gmra.mxu0 %v1463
        %v1506 = vpop.f32.mrf.mxu0
        %v1507 = vadd.f32 0.0, %v1506
        %1508 = vmatmul.f32.gmra.mxu0 %v1466
        %v1509 = vpop.f32.mrf.mxu0
        %v1510 = vadd.f32 0.0, %v1509
        %1511 = vmatmul.f32.gmra.mxu0 %v1469
        %v1512 = vpop.f32.mrf.mxu0
        %v1513 = vadd.f32 0.0, %v1512
        %1514 = vmatmul.f32.gmra.mxu0 %v1472
        %v1515 = vpop.f32.mrf.mxu0
        %v1516 = vadd.f32 0.0, %v1515
        %1517 = vmatmul.f32.gmra.mxu0 %v1475
        %v1518 = vpop.f32.mrf.mxu0
        %v1519 = vadd.f32 0.0, %v1518
        %1520 = vmatmul.f32.gmra.mxu0 %v1478
        %v1521 = vpop.f32.mrf.mxu0
        %v1522 = vadd.f32 0.0, %v1521
        %1523 = vmatmul.f32.gmra.mxu0 %v1481
        %v1524 = vpop.f32.mrf.mxu0
        %v1525 = vadd.f32 0.0, %v1524
        %1526 = vdwg.mxu0
        %v1527 = vadd.f32 %v1435, %v1501
        %v1528 = vadd.f32 %v1436, %v1504
        %v1529 = vadd.f32 %v1437, %v1507
        %v1530 = vadd.f32 %v1438, %v1510
        %v1531 = vadd.f32 %v1439, %v1513
        %v1532 = vadd.f32 %v1440, %v1516
        %v1533 = vadd.f32 %v1441, %v1519
        %v1534 = vadd.f32 %v1442, %v1522
        %v1535 = vadd.f32 %v1443, %v1525
        %v1536 = vld [vmem:[%s1180 + $0x9] sm:$0xff]
        %v1537 = vld [vmem:[%s1180 + $0x11] sm:$0xff]
        %v1538 = vld [vmem:[%s1180 + $0x19] sm:$0xff]
        %v1539 = vld [vmem:[%s1180 + $0x21] sm:$0xff]
        %v1540 = vld [vmem:[%s1180 + $0x29] sm:$0xff]
        %v1541 = vld [vmem:[%s1180 + $0x31] sm:$0xff]
        %v1542 = vld [vmem:[%s1180 + $0x39] sm:$0xff]
        %v1543 = vld [vmem:[%s1180 + $0x41] sm:$0xff]
        %v1544 = vld [vmem:[%s1180 + $0x49] sm:$0xff]
        %s1545 = scalar_lea.vmem %s3, 64
        %v1546 = vld [vmem:[%s1545] sm:$0xff]
        %v1547 = vld [vmem:[%s1545 + $0x8] sm:$0xff]
        %v1548 = vld [vmem:[%s1545 + $0x10] sm:$0xff]
        %v1549 = vld [vmem:[%s1545 + $0x18] sm:$0xff]
        %v1551 = vsel %vm1277, %v1536, 0
        %v1554 = vsel %vm1277, %v1537, 0
        %v1557 = vsel %vm1277, %v1538, 0
        %v1560 = vsel %vm1277, %v1539, 0
        %v1563 = vsel %vm1277, %v1540, 0
        %v1566 = vsel %vm1277, %v1541, 0
        %v1569 = vsel %vm1277, %v1542, 0
        %v1572 = vsel %vm1277, %v1543, 0
        %v1575 = vsel %vm1277, %v1544, 0
        %1577 = vmatpush.msra.mxu0 0.0
        %1578 = vmatpush.msra.mxu0 0.0
        %1579 = vmatpush.msra.mxu0 0.0
        %1580 = vmatpush.msra.mxu0 0.0
        %1581 = vmatpush.msra.mxu0 0.0
        %1582 = vmatpush.msra.mxu0 0.0
        %1583 = vmatpush.msra.mxu0 0.0
        %1584 = vmatpush.msra.mxu0 0.0
        %1585 = vmatpush.msra.mxu0 0.0
        %1586 = vmatpush.msra.mxu0 0.0
        %1587 = vmatpush.msra.mxu0 0.0
        %1588 = vmatpush.msra.mxu0 0.0
        %1589 = vmatpush.msra.mxu0 %v1549
        %1590 = vmatpush.msra.mxu0 %v1548
        %1591 = vmatpush.msra.mxu0 %v1547
        %1592 = vmatpush.msra.mxu0 %v1546
        %1593 = vmatmul.f32.gmra.mxu0 %v1551
        %v1594 = vpop.f32.mrf.mxu0
        %v1595 = vadd.f32 0.0, %v1594
        %1596 = vmatmul.f32.gmra.mxu0 %v1554
        %v1597 = vpop.f32.mrf.mxu0
        %v1598 = vadd.f32 0.0, %v1597
        %1599 = vmatmul.f32.gmra.mxu0 %v1557
        %v1600 = vpop.f32.mrf.mxu0
        %v1601 = vadd.f32 0.0, %v1600
        %1602 = vmatmul.f32.gmra.mxu0 %v1560
        %v1603 = vpop.f32.mrf.mxu0
        %v1604 = vadd.f32 0.0, %v1603
        %1605 = vmatmul.f32.gmra.mxu0 %v1563
        %v1606 = vpop.f32.mrf.mxu0
        %v1607 = vadd.f32 0.0, %v1606
        %1608 = vmatmul.f32.gmra.mxu0 %v1566
        %v1609 = vpop.f32.mrf.mxu0
        %v1610 = vadd.f32 0.0, %v1609
        %1611 = vmatmul.f32.gmra.mxu0 %v1569
        %v1612 = vpop.f32.mrf.mxu0
        %v1613 = vadd.f32 0.0, %v1612
        %1614 = vmatmul.f32.gmra.mxu0 %v1572
        %v1615 = vpop.f32.mrf.mxu0
        %v1616 = vadd.f32 0.0, %v1615
        %1617 = vmatmul.f32.gmra.mxu0 %v1575
        %v1618 = vpop.f32.mrf.mxu0
        %v1619 = vadd.f32 0.0, %v1618
        %1620 = vdwg.mxu0
        %v1621 = vadd.f32 %v1527, %v1595
        %v1622 = vadd.f32 %v1528, %v1598
        %v1623 = vadd.f32 %v1529, %v1601
        %v1624 = vadd.f32 %v1530, %v1604
        %v1625 = vadd.f32 %v1531, %v1607
        %v1626 = vadd.f32 %v1532, %v1610
        %v1627 = vadd.f32 %v1533, %v1613
        %v1628 = vadd.f32 %v1534, %v1616
        %v1629 = vadd.f32 %v1535, %v1619
        %v1630 = vld [vmem:[%s1180 + $0xa] sm:$0xff]
        %v1631 = vld [vmem:[%s1180 + $0x12] sm:$0xff]
        %v1632 = vld [vmem:[%s1180 + $0x1a] sm:$0xff]
        %v1633 = vld [vmem:[%s1180 + $0x22] sm:$0xff]
        %v1634 = vld [vmem:[%s1180 + $0x2a] sm:$0xff]
        %v1635 = vld [vmem:[%s1180 + $0x32] sm:$0xff]
        %v1636 = vld [vmem:[%s1180 + $0x3a] sm:$0xff]
        %v1637 = vld [vmem:[%s1180 + $0x42] sm:$0xff]
        %v1638 = vld [vmem:[%s1180 + $0x4a] sm:$0xff]
        %s1639 = scalar_lea.vmem %s5, 32
        %v1640 = vld [vmem:[%s1639] sm:$0xff]
        %v1641 = vld [vmem:[%s1639 + $0x8] sm:$0xff]
        %v1643 = vsel %vm1205, %v1630, 0
        %v1646 = vsel %vm1205, %v1631, 0
        %v1649 = vsel %vm1205, %v1632, 0
        %v1652 = vsel %vm1205, %v1633, 0
        %v1655 = vsel %vm1205, %v1634, 0
        %v1658 = vsel %vm1205, %v1635, 0
        %v1661 = vsel %vm1205, %v1636, 0
        %v1664 = vsel %vm1205, %v1637, 0
        %v1667 = vsel %vm1205, %v1638, 0
        %1669 = vmatpush.msra.mxu0 0.0
        %1670 = vmatpush.msra.mxu0 0.0
        %1671 = vmatpush.msra.mxu0 0.0
        %1672 = vmatpush.msra.mxu0 0.0
        %1673 = vmatpush.msra.mxu0 0.0
        %1674 = vmatpush.msra.mxu0 0.0
        %1675 = vmatpush.msra.mxu0 0.0
        %1676 = vmatpush.msra.mxu0 0.0
        %1677 = vmatpush.msra.mxu0 0.0
        %1678 = vmatpush.msra.mxu0 0.0
        %1679 = vmatpush.msra.mxu0 0.0
        %1680 = vmatpush.msra.mxu0 0.0
        %1681 = vmatpush.msra.mxu0 0.0
        %1682 = vmatpush.msra.mxu0 0.0
        %1683 = vmatpush.msra.mxu0 %v1641
        %1684 = vmatpush.msra.mxu0 %v1640
        %1685 = vmatmul.f32.gmra.mxu0 %v1643
        %v1686 = vpop.f32.mrf.mxu0
        %v1687 = vadd.f32 0.0, %v1686
        %1688 = vmatmul.f32.gmra.mxu0 %v1646
        %v1689 = vpop.f32.mrf.mxu0
        %v1690 = vadd.f32 0.0, %v1689
        %1691 = vmatmul.f32.gmra.mxu0 %v1649
        %v1692 = vpop.f32.mrf.mxu0
        %v1693 = vadd.f32 0.0, %v1692
        %1694 = vmatmul.f32.gmra.mxu0 %v1652
        %v1695 = vpop.f32.mrf.mxu0
        %v1696 = vadd.f32 0.0, %v1695
        %1697 = vmatmul.f32.gmra.mxu0 %v1655
        %v1698 = vpop.f32.mrf.mxu0
        %v1699 = vadd.f32 0.0, %v1698
        %1700 = vmatmul.f32.gmra.mxu0 %v1658
        %v1701 = vpop.f32.mrf.mxu0
        %v1702 = vadd.f32 0.0, %v1701
        %1703 = vmatmul.f32.gmra.mxu0 %v1661
        %v1704 = vpop.f32.mrf.mxu0
        %v1705 = vadd.f32 0.0, %v1704
        %1706 = vmatmul.f32.gmra.mxu0 %v1664
        %v1707 = vpop.f32.mrf.mxu0
        %v1708 = vadd.f32 0.0, %v1707
        %1709 = vmatmul.f32.gmra.mxu0 %v1667
        %v1710 = vpop.f32.mrf.mxu0
        %v1711 = vadd.f32 0.0, %v1710
        %1712 = vdwg.mxu0
        %v1713 = vadd.f32 %v1621, %v1687
        %v1714 = vadd.f32 %v1622, %v1690
        %v1715 = vadd.f32 %v1623, %v1693
        %v1716 = vadd.f32 %v1624, %v1696
        %v1717 = vadd.f32 %v1625, %v1699
        %v1718 = vadd.f32 %v1626, %v1702
        %v1719 = vadd.f32 %v1627, %v1705
        %v1720 = vadd.f32 %v1628, %v1708
        %v1721 = vadd.f32 %v1629, %v1711
        %v1722 = vlaneseq
        %v1723 = vshrl.u32 %v1722, 7
        %v1724 = vadd.s32 %v1723, 8
        %v1725 = vadd.s32 %v1723, 16
        %v1726 = vadd.s32 %v1723, 24
        %v1727 = vadd.s32 %v1723, 32
        %v1728 = vadd.s32 %v1723, 40
        %v1729 = vadd.s32 %v1723, 48
        %v1730 = vadd.s32 %v1723, 56
        %v1731 = vadd.s32 %v1723, 64
        %vm1732 = vcmp.eq.s32.totalorder %v1723, 8
        %vm1733 = vcmp.eq.s32.totalorder %v1724, 8
        %vm1734 = vcmp.eq.s32.totalorder %v1725, 8
        %vm1735 = vcmp.eq.s32.totalorder %v1726, 8
        %vm1736 = vcmp.eq.s32.totalorder %v1727, 8
        %vm1737 = vcmp.eq.s32.totalorder %v1728, 8
        %vm1738 = vcmp.eq.s32.totalorder %v1729, 8
        %vm1739 = vcmp.eq.s32.totalorder %v1730, 8
        %vm1740 = vcmp.eq.s32.totalorder %v1731, 8
        %v1741 = vsel %vm1732, 0.0, 1.0
        %v1742 = vsel %vm1733, 0.0, 1.0
        %v1743 = vsel %vm1734, 0.0, 1.0
        %v1744 = vsel %vm1735, 0.0, 1.0
        %v1745 = vsel %vm1736, 0.0, 1.0
        %v1746 = vsel %vm1737, 0.0, 1.0
        %v1747 = vsel %vm1738, 0.0, 1.0
        %v1748 = vsel %vm1739, 0.0, 1.0
        %v1749 = vsel %vm1740, 0.0, 1.0
        %vm1750 = vcmp.eq.s32.totalorder %v1723, 17
        %vm1751 = vcmp.eq.s32.totalorder %v1724, 17
        %vm1752 = vcmp.eq.s32.totalorder %v1725, 17
        %vm1753 = vcmp.eq.s32.totalorder %v1726, 17
        %vm1754 = vcmp.eq.s32.totalorder %v1727, 17
        %vm1755 = vcmp.eq.s32.totalorder %v1728, 17
        %vm1756 = vcmp.eq.s32.totalorder %v1729, 17
        %vm1757 = vcmp.eq.s32.totalorder %v1730, 17
        %vm1758 = vcmp.eq.s32.totalorder %v1731, 17
        %v1759 = vsel %vm1750, 0.0, %v1741
        %v1760 = vsel %vm1751, 0.0, %v1742
        %v1761 = vsel %vm1752, 0.0, %v1743
        %v1762 = vsel %vm1753, 0.0, %v1744
        %v1763 = vsel %vm1754, 0.0, %v1745
        %v1764 = vsel %vm1755, 0.0, %v1746
        %v1765 = vsel %vm1756, 0.0, %v1747
        %v1766 = vsel %vm1757, 0.0, %v1748
        %v1767 = vsel %vm1758, 0.0, %v1749
        %vm1768 = vcmp.eq.s32.totalorder %v1723, 26
        %vm1769 = vcmp.eq.s32.totalorder %v1724, 26
        %vm1770 = vcmp.eq.s32.totalorder %v1725, 26
        %vm1771 = vcmp.eq.s32.totalorder %v1726, 26
        %vm1772 = vcmp.eq.s32.totalorder %v1727, 26
        %vm1773 = vcmp.eq.s32.totalorder %v1728, 26
        %vm1774 = vcmp.eq.s32.totalorder %v1729, 26
        %vm1775 = vcmp.eq.s32.totalorder %v1730, 26
        %vm1776 = vcmp.eq.s32.totalorder %v1731, 26
        %v1777 = vsel %vm1768, 0.0, %v1759
        %v1778 = vsel %vm1769, 0.0, %v1760
        %v1779 = vsel %vm1770, 0.0, %v1761
        %v1780 = vsel %vm1771, 0.0, %v1762
        %v1781 = vsel %vm1772, 0.0, %v1763
        %v1782 = vsel %vm1773, 0.0, %v1764
        %v1783 = vsel %vm1774, 0.0, %v1765
        %v1784 = vsel %vm1775, 0.0, %v1766
        %v1785 = vsel %vm1776, 0.0, %v1767
        %vm1786 = vcmp.eq.s32.totalorder %v1723, 35
        %vm1787 = vcmp.eq.s32.totalorder %v1724, 35
        %vm1788 = vcmp.eq.s32.totalorder %v1725, 35
        %vm1789 = vcmp.eq.s32.totalorder %v1726, 35
        %vm1790 = vcmp.eq.s32.totalorder %v1727, 35
        %vm1791 = vcmp.eq.s32.totalorder %v1728, 35
        %vm1792 = vcmp.eq.s32.totalorder %v1729, 35
        %vm1793 = vcmp.eq.s32.totalorder %v1730, 35
        %vm1794 = vcmp.eq.s32.totalorder %v1731, 35
        %v1795 = vsel %vm1786, 0.0, %v1777
        %v1796 = vsel %vm1787, 0.0, %v1778
        %v1797 = vsel %vm1788, 0.0, %v1779
        %v1798 = vsel %vm1789, 0.0, %v1780
        %v1799 = vsel %vm1790, 0.0, %v1781
        %v1800 = vsel %vm1791, 0.0, %v1782
        %v1801 = vsel %vm1792, 0.0, %v1783
        %v1802 = vsel %vm1793, 0.0, %v1784
        %v1803 = vsel %vm1794, 0.0, %v1785
        %vm1804 = vcmp.eq.s32.totalorder %v1723, 44
        %vm1805 = vcmp.eq.s32.totalorder %v1724, 44
        %vm1806 = vcmp.eq.s32.totalorder %v1725, 44
        %vm1807 = vcmp.eq.s32.totalorder %v1726, 44
        %vm1808 = vcmp.eq.s32.totalorder %v1727, 44
        %vm1809 = vcmp.eq.s32.totalorder %v1728, 44
        %vm1810 = vcmp.eq.s32.totalorder %v1729, 44
        %vm1811 = vcmp.eq.s32.totalorder %v1730, 44
        %vm1812 = vcmp.eq.s32.totalorder %v1731, 44
        %v1813 = vsel %vm1804, 0.0, %v1795
        %v1814 = vsel %vm1805, 0.0, %v1796
        %v1815 = vsel %vm1806, 0.0, %v1797
        %v1816 = vsel %vm1807, 0.0, %v1798
        %v1817 = vsel %vm1808, 0.0, %v1799
        %v1818 = vsel %vm1809, 0.0, %v1800
        %v1819 = vsel %vm1810, 0.0, %v1801
        %v1820 = vsel %vm1811, 0.0, %v1802
        %v1821 = vsel %vm1812, 0.0, %v1803
        %vm1822 = vcmp.eq.s32.totalorder %v1723, 53
        %vm1823 = vcmp.eq.s32.totalorder %v1724, 53
        %vm1824 = vcmp.eq.s32.totalorder %v1725, 53
        %vm1825 = vcmp.eq.s32.totalorder %v1726, 53
        %vm1826 = vcmp.eq.s32.totalorder %v1727, 53
        %vm1827 = vcmp.eq.s32.totalorder %v1728, 53
        %vm1828 = vcmp.eq.s32.totalorder %v1729, 53
        %vm1829 = vcmp.eq.s32.totalorder %v1730, 53
        %vm1830 = vcmp.eq.s32.totalorder %v1731, 53
        %v1831 = vsel %vm1822, 0.0, %v1813
        %v1832 = vsel %vm1823, 0.0, %v1814
        %v1833 = vsel %vm1824, 0.0, %v1815
        %v1834 = vsel %vm1825, 0.0, %v1816
        %v1835 = vsel %vm1826, 0.0, %v1817
        %v1836 = vsel %vm1827, 0.0, %v1818
        %v1837 = vsel %vm1828, 0.0, %v1819
        %v1838 = vsel %vm1829, 0.0, %v1820
        %v1839 = vsel %vm1830, 0.0, %v1821
        %vm1840 = vcmp.eq.s32.totalorder %v1723, 62
        %vm1841 = vcmp.eq.s32.totalorder %v1724, 62
        %vm1842 = vcmp.eq.s32.totalorder %v1725, 62
        %vm1843 = vcmp.eq.s32.totalorder %v1726, 62
        %vm1844 = vcmp.eq.s32.totalorder %v1727, 62
        %vm1845 = vcmp.eq.s32.totalorder %v1728, 62
        %vm1846 = vcmp.eq.s32.totalorder %v1729, 62
        %vm1847 = vcmp.eq.s32.totalorder %v1730, 62
        %vm1848 = vcmp.eq.s32.totalorder %v1731, 62
        %v1849 = vsel %vm1840, 0.0, %v1831
        %v1850 = vsel %vm1841, 0.0, %v1832
        %v1851 = vsel %vm1842, 0.0, %v1833
        %v1852 = vsel %vm1843, 0.0, %v1834
        %v1853 = vsel %vm1844, 0.0, %v1835
        %v1854 = vsel %vm1845, 0.0, %v1836
        %v1855 = vsel %vm1846, 0.0, %v1837
        %v1856 = vsel %vm1847, 0.0, %v1838
        %v1857 = vsel %vm1848, 0.0, %v1839
        %vm1858 = vcmp.eq.s32.totalorder %v1723, 71
        %vm1859 = vcmp.eq.s32.totalorder %v1724, 71
        %vm1860 = vcmp.eq.s32.totalorder %v1725, 71
        %vm1861 = vcmp.eq.s32.totalorder %v1726, 71
        %vm1862 = vcmp.eq.s32.totalorder %v1727, 71
        %vm1863 = vcmp.eq.s32.totalorder %v1728, 71
        %vm1864 = vcmp.eq.s32.totalorder %v1729, 71
        %vm1865 = vcmp.eq.s32.totalorder %v1730, 71
        %vm1866 = vcmp.eq.s32.totalorder %v1731, 71
        %v1867 = vsel %vm1858, 0.0, %v1849
        %v1868 = vsel %vm1859, 0.0, %v1850
        %v1869 = vsel %vm1860, 0.0, %v1851
        %v1870 = vsel %vm1861, 0.0, %v1852
        %v1871 = vsel %vm1862, 0.0, %v1853
        %v1872 = vsel %vm1863, 0.0, %v1854
        %v1873 = vsel %vm1864, 0.0, %v1855
        %v1874 = vsel %vm1865, 0.0, %v1856
        %v1875 = vsel %vm1866, 0.0, %v1857
        %v1876 = vld [vmem:[%s7] sm:$0x1]
        %v1878 = vperm.slane %v1876, 0
        %v1880 = vadd.f32 %v1713, %v1878
        %v1881 = vadd.f32 %v1714, %v1878
        %v1882 = vadd.f32 %v1715, %v1878
        %v1883 = vadd.f32 %v1716, %v1878
        %v1884 = vadd.f32 %v1717, %v1878
        %v1885 = vadd.f32 %v1718, %v1878
        %v1886 = vadd.f32 %v1719, %v1878
        %v1887 = vadd.f32 %v1720, %v1878
        %v1888 = vadd.f32 %v1721, %v1878
        %v1889 = vmax.f32 %v1880, 0.0
        %v1890 = vmax.f32 %v1881, 0.0
        %v1891 = vmax.f32 %v1882, 0.0
        %v1892 = vmax.f32 %v1883, 0.0
        %v1893 = vmax.f32 %v1884, 0.0
        %v1894 = vmax.f32 %v1885, 0.0
        %v1895 = vmax.f32 %v1886, 0.0
        %v1896 = vmax.f32 %v1887, 0.0
        %v1897 = vmax.f32 %v1888, 0.0
        %v1898 = vmul.f32 %v1889, %v1867
        %v1899 = vmul.f32 %v1890, %v1868
        %v1900 = vmul.f32 %v1891, %v1869
        %v1901 = vmul.f32 %v1892, %v1870
        %v1902 = vmul.f32 %v1893, %v1871
        %v1903 = vmul.f32 %v1894, %v1872
        %v1904 = vmul.f32 %v1895, %v1873
        %v1905 = vmul.f32 %v1896, %v1874
        %v1906 = vmul.f32 %v1897, %v1875
        %1907 = vst.msk [vmem:[#allocation2] sm:$0xff] %vm1205, 0.0
        %vm1908 = vcmask 123904
        %1909 = vst.msk [vmem:[#allocation2 + $0x8] sm:$0x3] %vm1908, 0.0
        %1910 = vst.msk [vmem:[#allocation2 + $0x52] sm:$0xff] %vm1205, 0.0
        %1911 = vst.msk [vmem:[#allocation2 + $0x5a] sm:$0xff] %vm1205, 0.0
        %vm1912 = vcmask 122880
        %1913 = vst.msk [vmem:[#allocation2 + $0x62] sm:$0x1] %vm1912, 0.0
        %1914 = vst.msk [vmem:[#allocation2 + $0xa] sm:$0xff] %vm1205, %v1898
        %1915 = vst.msk [vmem:[#allocation2 + $0x12] sm:$0xff] %vm1205, %v1899
        %1916 = vst.msk [vmem:[#allocation2 + $0x1a] sm:$0xff] %vm1205, %v1900
        %1917 = vst.msk [vmem:[#allocation2 + $0x22] sm:$0xff] %vm1205, %v1901
        %1918 = vst.msk [vmem:[#allocation2 + $0x2a] sm:$0xff] %vm1205, %v1902
        %1919 = vst.msk [vmem:[#allocation2 + $0x32] sm:$0xff] %vm1205, %v1903
        %1920 = vst.msk [vmem:[#allocation2 + $0x3a] sm:$0xff] %vm1205, %v1904
        %1921 = vst.msk [vmem:[#allocation2 + $0x42] sm:$0xff] %vm1205, %v1905
        %1922 = vst.msk [vmem:[#allocation2 + $0x4a] sm:$0xff] %vm1205, %v1906
        %v1923 = vld [vmem:[#allocation2] sm:$0xff]
        %v1924 = vld [vmem:[#allocation2 + $0x8] sm:$0xff]
        %v1925 = vld [vmem:[#allocation2 + $0x10] sm:$0xff]
        %v1926 = vld [vmem:[#allocation2 + $0x18] sm:$0xff]
        %v1927 = vld [vmem:[#allocation2 + $0x20] sm:$0xff]
        %v1928 = vld [vmem:[#allocation2 + $0x28] sm:$0xff]
        %v1929 = vld [vmem:[#allocation2 + $0x30] sm:$0xff]
        %v1930 = vld [vmem:[#allocation2 + $0x38] sm:$0xff]
        %v1931 = vld [vmem:[#allocation2 + $0x40] sm:$0xff]
        %v1932 = vld [vmem:[%s9] sm:$0xff]
        %v1933 = vld [vmem:[%s9 + $0x8] sm:$0xff]
        %v1934 = vld [vmem:[#allocation2 + $0x1] sm:$0xff]
        %v1935 = vld [vmem:[#allocation2 + $0x9] sm:$0xff]
        %v1936 = vld [vmem:[#allocation2 + $0x11] sm:$0xff]
        %v1937 = vld [vmem:[#allocation2 + $0x19] sm:$0xff]
        %v1938 = vld [vmem:[#allocation2 + $0x21] sm:$0xff]
        %v1939 = vld [vmem:[#allocation2 + $0x29] sm:$0xff]
        %v1940 = vld [vmem:[#allocation2 + $0x31] sm:$0xff]
        %v1941 = vld [vmem:[#allocation2 + $0x39] sm:$0xff]
        %v1942 = vld [vmem:[#allocation2 + $0x41] sm:$0xff]
        %s1943 = scalar_lea.vmem %s9, 16
        %v1944 = vld [vmem:[%s1943] sm:$0xff]
        %v1945 = vld [vmem:[%s1943 + $0x8] sm:$0xff]
        %v1947 = vsel %vm1205, %v1934, 0
        %v1950 = vsel %vm1205, %v1935, 0
        %v1953 = vsel %vm1205, %v1936, 0
        %v1956 = vsel %vm1205, %v1937, 0
        %v1959 = vsel %vm1205, %v1938, 0
        %v1962 = vsel %vm1205, %v1939, 0
        %v1965 = vsel %vm1205, %v1940, 0
        %v1968 = vsel %vm1205, %v1941, 0
        %v1971 = vsel %vm1205, %v1942, 0
        %1973 = vmatpush.msra.mxu0 0.0
        %1974 = vmatpush.msra.mxu0 0.0
        %1975 = vmatpush.msra.mxu0 0.0
        %1976 = vmatpush.msra.mxu0 0.0
        %1977 = vmatpush.msra.mxu0 0.0
        %1978 = vmatpush.msra.mxu0 0.0
        %1979 = vmatpush.msra.mxu0 0.0
        %1980 = vmatpush.msra.mxu0 0.0
        %1981 = vmatpush.msra.mxu0 0.0
        %1982 = vmatpush.msra.mxu0 0.0
        %1983 = vmatpush.msra.mxu0 0.0
        %1984 = vmatpush.msra.mxu0 0.0
        %1985 = vmatpush.msra.mxu0 0.0
        %1986 = vmatpush.msra.mxu0 0.0
        %1987 = vmatpush.msra.mxu0 %v1945
        %1988 = vmatpush.msra.mxu0 %v1944
        %1989 = vmatmul.f32.gmra.mxu0 %v1947
        %v1990 = vpop.f32.mrf.mxu0
        %v1991 = vadd.f32 0.0, %v1990
        %1992 = vmatmul.f32.gmra.mxu0 %v1950
        %v1993 = vpop.f32.mrf.mxu0
        %v1994 = vadd.f32 0.0, %v1993
        %1995 = vmatmul.f32.gmra.mxu0 %v1953
        %v1996 = vpop.f32.mrf.mxu0
        %v1997 = vadd.f32 0.0, %v1996
        %1998 = vmatmul.f32.gmra.mxu0 %v1956
        %v1999 = vpop.f32.mrf.mxu0
        %v2000 = vadd.f32 0.0, %v1999
        %2001 = vmatmul.f32.gmra.mxu0 %v1959
        %v2002 = vpop.f32.mrf.mxu0
        %v2003 = vadd.f32 0.0, %v2002
        %2004 = vmatmul.f32.gmra.mxu0 %v1962
        %v2005 = vpop.f32.mrf.mxu0
        %v2006 = vadd.f32 0.0, %v2005
        %2007 = vmatmul.f32.gmra.mxu0 %v1965
        %v2008 = vpop.f32.mrf.mxu0
        %v2009 = vadd.f32 0.0, %v2008
        %2010 = vmatmul.f32.gmra.mxu0 %v1968
        %v2011 = vpop.f32.mrf.mxu0
        %v2012 = vadd.f32 0.0, %v2011
        %2013 = vmatmul.f32.gmra.mxu0 %v1971
        %v2014 = vpop.f32.mrf.mxu0
        %v2015 = vadd.f32 0.0, %v2014
        %2016 = vdwg.mxu0
        %v2018 = vsel %vm1205, %v1923, 0
        %v2021 = vsel %vm1205, %v1924, 0
        %v2024 = vsel %vm1205, %v1925, 0
        %v2027 = vsel %vm1205, %v1926, 0
        %v2030 = vsel %vm1205, %v1927, 0
        %v2033 = vsel %vm1205, %v1928, 0
        %v2036 = vsel %vm1205, %v1929, 0
        %v2039 = vsel %vm1205, %v1930, 0
        %v2042 = vsel %vm1205, %v1931, 0
        %2044 = vmatpush.msra.mxu0 0.0
        %2045 = vmatpush.msra.mxu0 0.0
        %2046 = vmatpush.msra.mxu0 0.0
        %2047 = vmatpush.msra.mxu0 0.0
        %2048 = vmatpush.msra.mxu0 0.0
        %2049 = vmatpush.msra.mxu0 0.0
        %2050 = vmatpush.msra.mxu0 0.0
        %2051 = vmatpush.msra.mxu0 0.0
        %2052 = vmatpush.msra.mxu0 0.0
        %2053 = vmatpush.msra.mxu0 0.0
        %2054 = vmatpush.msra.mxu0 0.0
        %2055 = vmatpush.msra.mxu0 0.0
        %2056 = vmatpush.msra.mxu0 0.0
        %2057 = vmatpush.msra.mxu0 0.0
        %2058 = vmatpush.msra.mxu0 %v1933
        %2059 = vmatpush.msra.mxu0 %v1932
        %2060 = vmatmul.f32.gmra.mxu0 %v2018
        %v2061 = vpop.f32.mrf.mxu0
        %v2062 = vadd.f32 %v1991, %v2061
        %2063 = vmatmul.f32.gmra.mxu0 %v2021
        %v2064 = vpop.f32.mrf.mxu0
        %v2065 = vadd.f32 %v1994, %v2064
        %2066 = vmatmul.f32.gmra.mxu0 %v2024
        %v2067 = vpop.f32.mrf.mxu0
        %v2068 = vadd.f32 %v1997, %v2067
        %2069 = vmatmul.f32.gmra.mxu0 %v2027
        %v2070 = vpop.f32.mrf.mxu0
        %v2071 = vadd.f32 %v2000, %v2070
        %2072 = vmatmul.f32.gmra.mxu0 %v2030
        %v2073 = vpop.f32.mrf.mxu0
        %v2074 = vadd.f32 %v2003, %v2073
        %2075 = vmatmul.f32.gmra.mxu0 %v2033
        %v2076 = vpop.f32.mrf.mxu0
        %v2077 = vadd.f32 %v2006, %v2076
        %2078 = vmatmul.f32.gmra.mxu0 %v2036
        %v2079 = vpop.f32.mrf.mxu0
        %v2080 = vadd.f32 %v2009, %v2079
        %2081 = vmatmul.f32.gmra.mxu0 %v2039
        %v2082 = vpop.f32.mrf.mxu0
        %v2083 = vadd.f32 %v2012, %v2082
        %2084 = vmatmul.f32.gmra.mxu0 %v2042
        %v2085 = vpop.f32.mrf.mxu0
        %v2086 = vadd.f32 %v2015, %v2085
        %2087 = vdwg.mxu0
        %v2088 = vld [vmem:[#allocation2 + $0x2] sm:$0xff]
        %v2089 = vld [vmem:[#allocation2 + $0xa] sm:$0xff]
        %v2090 = vld [vmem:[#allocation2 + $0x12] sm:$0xff]
        %v2091 = vld [vmem:[#allocation2 + $0x1a] sm:$0xff]
        %v2092 = vld [vmem:[#allocation2 + $0x22] sm:$0xff]
        %v2093 = vld [vmem:[#allocation2 + $0x2a] sm:$0xff]
        %v2094 = vld [vmem:[#allocation2 + $0x32] sm:$0xff]
        %v2095 = vld [vmem:[#allocation2 + $0x3a] sm:$0xff]
        %v2096 = vld [vmem:[#allocation2 + $0x42] sm:$0xff]
        %s2097 = scalar_lea.vmem %s9, 32
        %v2098 = vld [vmem:[%s2097] sm:$0xff]
        %v2099 = vld [vmem:[%s2097 + $0x8] sm:$0xff]
        %v2101 = vsel %vm1205, %v2088, 0
        %v2104 = vsel %vm1205, %v2089, 0
        %v2107 = vsel %vm1205, %v2090, 0
        %v2110 = vsel %vm1205, %v2091, 0
        %v2113 = vsel %vm1205, %v2092, 0
        %v2116 = vsel %vm1205, %v2093, 0
        %v2119 = vsel %vm1205, %v2094, 0
        %v2122 = vsel %vm1205, %v2095, 0
        %v2125 = vsel %vm1205, %v2096, 0
        %2127 = vmatpush.msra.mxu0 0.0
        %2128 = vmatpush.msra.mxu0 0.0
        %2129 = vmatpush.msra.mxu0 0.0
        %2130 = vmatpush.msra.mxu0 0.0
        %2131 = vmatpush.msra.mxu0 0.0
        %2132 = vmatpush.msra.mxu0 0.0
        %2133 = vmatpush.msra.mxu0 0.0
        %2134 = vmatpush.msra.mxu0 0.0
        %2135 = vmatpush.msra.mxu0 0.0
        %2136 = vmatpush.msra.mxu0 0.0
        %2137 = vmatpush.msra.mxu0 0.0
        %2138 = vmatpush.msra.mxu0 0.0
        %2139 = vmatpush.msra.mxu0 0.0
        %2140 = vmatpush.msra.mxu0 0.0
        %2141 = vmatpush.msra.mxu0 %v2099
        %2142 = vmatpush.msra.mxu0 %v2098
        %2143 = vmatmul.f32.gmra.mxu0 %v2101
        %v2144 = vpop.f32.mrf.mxu0
        %v2145 = vadd.f32 0.0, %v2144
        %2146 = vmatmul.f32.gmra.mxu0 %v2104
        %v2147 = vpop.f32.mrf.mxu0
        %v2148 = vadd.f32 0.0, %v2147
        %2149 = vmatmul.f32.gmra.mxu0 %v2107
        %v2150 = vpop.f32.mrf.mxu0
        %v2151 = vadd.f32 0.0, %v2150
        %2152 = vmatmul.f32.gmra.mxu0 %v2110
        %v2153 = vpop.f32.mrf.mxu0
        %v2154 = vadd.f32 0.0, %v2153
        %2155 = vmatmul.f32.gmra.mxu0 %v2113
        %v2156 = vpop.f32.mrf.mxu0
        %v2157 = vadd.f32 0.0, %v2156
        %2158 = vmatmul.f32.gmra.mxu0 %v2116
        %v2159 = vpop.f32.mrf.mxu0
        %v2160 = vadd.f32 0.0, %v2159
        %2161 = vmatmul.f32.gmra.mxu0 %v2119
        %v2162 = vpop.f32.mrf.mxu0
        %v2163 = vadd.f32 0.0, %v2162
        %2164 = vmatmul.f32.gmra.mxu0 %v2122
        %v2165 = vpop.f32.mrf.mxu0
        %v2166 = vadd.f32 0.0, %v2165
        %2167 = vmatmul.f32.gmra.mxu0 %v2125
        %v2168 = vpop.f32.mrf.mxu0
        %v2169 = vadd.f32 0.0, %v2168
        %2170 = vdwg.mxu0
        %v2171 = vadd.f32 %v2062, %v2145
        %v2172 = vadd.f32 %v2065, %v2148
        %v2173 = vadd.f32 %v2068, %v2151
        %v2174 = vadd.f32 %v2071, %v2154
        %v2175 = vadd.f32 %v2074, %v2157
        %v2176 = vadd.f32 %v2077, %v2160
        %v2177 = vadd.f32 %v2080, %v2163
        %v2178 = vadd.f32 %v2083, %v2166
        %v2179 = vadd.f32 %v2086, %v2169
        %v2180 = vld [vmem:[#allocation2 + $0x9] sm:$0xff]
        %v2181 = vld [vmem:[#allocation2 + $0x11] sm:$0xff]
        %v2182 = vld [vmem:[#allocation2 + $0x19] sm:$0xff]
        %v2183 = vld [vmem:[#allocation2 + $0x21] sm:$0xff]
        %v2184 = vld [vmem:[#allocation2 + $0x29] sm:$0xff]
        %v2185 = vld [vmem:[#allocation2 + $0x31] sm:$0xff]
        %v2186 = vld [vmem:[#allocation2 + $0x39] sm:$0xff]
        %v2187 = vld [vmem:[#allocation2 + $0x41] sm:$0xff]
        %v2188 = vld [vmem:[#allocation2 + $0x49] sm:$0xff]
        %s2189 = scalar_lea.vmem %s9, 48
        %v2190 = vld [vmem:[%s2189] sm:$0xff]
        %v2191 = vld [vmem:[%s2189 + $0x8] sm:$0xff]
        %v2193 = vsel %vm1205, %v2180, 0
        %v2196 = vsel %vm1205, %v2181, 0
        %v2199 = vsel %vm1205, %v2182, 0
        %v2202 = vsel %vm1205, %v2183, 0
        %v2205 = vsel %vm1205, %v2184, 0
        %v2208 = vsel %vm1205, %v2185, 0
        %v2211 = vsel %vm1205, %v2186, 0
        %v2214 = vsel %vm1205, %v2187, 0
        %v2217 = vsel %vm1205, %v2188, 0
        %2219 = vmatpush.msra.mxu0 0.0
        %2220 = vmatpush.msra.mxu0 0.0
        %2221 = vmatpush.msra.mxu0 0.0
        %2222 = vmatpush.msra.mxu0 0.0
        %2223 = vmatpush.msra.mxu0 0.0
        %2224 = vmatpush.msra.mxu0 0.0
        %2225 = vmatpush.msra.mxu0 0.0
        %2226 = vmatpush.msra.mxu0 0.0
        %2227 = vmatpush.msra.mxu0 0.0
        %2228 = vmatpush.msra.mxu0 0.0
        %2229 = vmatpush.msra.mxu0 0.0
        %2230 = vmatpush.msra.mxu0 0.0
        %2231 = vmatpush.msra.mxu0 0.0
        %2232 = vmatpush.msra.mxu0 0.0
        %2233 = vmatpush.msra.mxu0 %v2191
        %2234 = vmatpush.msra.mxu0 %v2190
        %2235 = vmatmul.f32.gmra.mxu0 %v2193
        %v2236 = vpop.f32.mrf.mxu0
        %v2237 = vadd.f32 0.0, %v2236
        %2238 = vmatmul.f32.gmra.mxu0 %v2196
        %v2239 = vpop.f32.mrf.mxu0
        %v2240 = vadd.f32 0.0, %v2239
        %2241 = vmatmul.f32.gmra.mxu0 %v2199
        %v2242 = vpop.f32.mrf.mxu0
        %v2243 = vadd.f32 0.0, %v2242
        %2244 = vmatmul.f32.gmra.mxu0 %v2202
        %v2245 = vpop.f32.mrf.mxu0
        %v2246 = vadd.f32 0.0, %v2245
        %2247 = vmatmul.f32.gmra.mxu0 %v2205
        %v2248 = vpop.f32.mrf.mxu0
        %v2249 = vadd.f32 0.0, %v2248
        %2250 = vmatmul.f32.gmra.mxu0 %v2208
        %v2251 = vpop.f32.mrf.mxu0
        %v2252 = vadd.f32 0.0, %v2251
        %2253 = vmatmul.f32.gmra.mxu0 %v2211
        %v2254 = vpop.f32.mrf.mxu0
        %v2255 = vadd.f32 0.0, %v2254
        %2256 = vmatmul.f32.gmra.mxu0 %v2214
        %v2257 = vpop.f32.mrf.mxu0
        %v2258 = vadd.f32 0.0, %v2257
        %2259 = vmatmul.f32.gmra.mxu0 %v2217
        %v2260 = vpop.f32.mrf.mxu0
        %v2261 = vadd.f32 0.0, %v2260
        %2262 = vdwg.mxu0
        %v2263 = vadd.f32 %v2171, %v2237
        %v2264 = vadd.f32 %v2172, %v2240
        %v2265 = vadd.f32 %v2173, %v2243
        %v2266 = vadd.f32 %v2174, %v2246
        %v2267 = vadd.f32 %v2175, %v2249
        %v2268 = vadd.f32 %v2176, %v2252
        %v2269 = vadd.f32 %v2177, %v2255
        %v2270 = vadd.f32 %v2178, %v2258
        %v2271 = vadd.f32 %v2179, %v2261
        %v2272 = vld [vmem:[#allocation2 + $0xa] sm:$0xff]
        %v2273 = vld [vmem:[#allocation2 + $0x12] sm:$0xff]
        %v2274 = vld [vmem:[#allocation2 + $0x1a] sm:$0xff]
        %v2275 = vld [vmem:[#allocation2 + $0x22] sm:$0xff]
        %v2276 = vld [vmem:[#allocation2 + $0x2a] sm:$0xff]
        %v2277 = vld [vmem:[#allocation2 + $0x32] sm:$0xff]
        %v2278 = vld [vmem:[#allocation2 + $0x3a] sm:$0xff]
        %v2279 = vld [vmem:[#allocation2 + $0x42] sm:$0xff]
        %v2280 = vld [vmem:[#allocation2 + $0x4a] sm:$0xff]
        %s2281 = scalar_lea.vmem %s9, 64
        %v2282 = vld [vmem:[%s2281] sm:$0xff]
        %v2283 = vld [vmem:[%s2281 + $0x8] sm:$0xff]
        %v2285 = vsel %vm1205, %v2272, 0
        %v2288 = vsel %vm1205, %v2273, 0
        %v2291 = vsel %vm1205, %v2274, 0
        %v2294 = vsel %vm1205, %v2275, 0
        %v2297 = vsel %vm1205, %v2276, 0
        %v2300 = vsel %vm1205, %v2277, 0
        %v2303 = vsel %vm1205, %v2278, 0
        %v2306 = vsel %vm1205, %v2279, 0
        %v2309 = vsel %vm1205, %v2280, 0
        %2311 = vmatpush.msra.mxu0 0.0
        %2312 = vmatpush.msra.mxu0 0.0
        %2313 = vmatpush.msra.mxu0 0.0
        %2314 = vmatpush.msra.mxu0 0.0
        %2315 = vmatpush.msra.mxu0 0.0
        %2316 = vmatpush.msra.mxu0 0.0
        %2317 = vmatpush.msra.mxu0 0.0
        %2318 = vmatpush.msra.mxu0 0.0
        %2319 = vmatpush.msra.mxu0 0.0
        %2320 = vmatpush.msra.mxu0 0.0
        %2321 = vmatpush.msra.mxu0 0.0
        %2322 = vmatpush.msra.mxu0 0.0
        %2323 = vmatpush.msra.mxu0 0.0
        %2324 = vmatpush.msra.mxu0 0.0
        %2325 = vmatpush.msra.mxu0 %v2283
        %2326 = vmatpush.msra.mxu0 %v2282
        %2327 = vmatmul.f32.gmra.mxu0 %v2285
        %v2328 = vpop.f32.mrf.mxu0
        %v2329 = vadd.f32 0.0, %v2328
        %2330 = vmatmul.f32.gmra.mxu0 %v2288
        %v2331 = vpop.f32.mrf.mxu0
        %v2332 = vadd.f32 0.0, %v2331
        %2333 = vmatmul.f32.gmra.mxu0 %v2291
        %v2334 = vpop.f32.mrf.mxu0
        %v2335 = vadd.f32 0.0, %v2334
        %2336 = vmatmul.f32.gmra.mxu0 %v2294
        %v2337 = vpop.f32.mrf.mxu0
        %v2338 = vadd.f32 0.0, %v2337
        %2339 = vmatmul.f32.gmra.mxu0 %v2297
        %v2340 = vpop.f32.mrf.mxu0
        %v2341 = vadd.f32 0.0, %v2340
        %2342 = vmatmul.f32.gmra.mxu0 %v2300
        %v2343 = vpop.f32.mrf.mxu0
        %v2344 = vadd.f32 0.0, %v2343
        %2345 = vmatmul.f32.gmra.mxu0 %v2303
        %v2346 = vpop.f32.mrf.mxu0
        %v2347 = vadd.f32 0.0, %v2346
        %2348 = vmatmul.f32.gmra.mxu0 %v2306
        %v2349 = vpop.f32.mrf.mxu0
        %v2350 = vadd.f32 0.0, %v2349
        %2351 = vmatmul.f32.gmra.mxu0 %v2309
        %v2352 = vpop.f32.mrf.mxu0
        %v2353 = vadd.f32 0.0, %v2352
        %2354 = vdwg.mxu0
        %v2355 = vadd.f32 %v2263, %v2329
        %v2356 = vadd.f32 %v2264, %v2332
        %v2357 = vadd.f32 %v2265, %v2335
        %v2358 = vadd.f32 %v2266, %v2338
        %v2359 = vadd.f32 %v2267, %v2341
        %v2360 = vadd.f32 %v2268, %v2344
        %v2361 = vadd.f32 %v2269, %v2347
        %v2362 = vadd.f32 %v2270, %v2350
        %v2363 = vadd.f32 %v2271, %v2353
        %v2364 = vld [vmem:[#allocation2 + $0xb] sm:$0xff]
        %v2365 = vld [vmem:[#allocation2 + $0x13] sm:$0xff]
        %v2366 = vld [vmem:[#allocation2 + $0x1b] sm:$0xff]
        %v2367 = vld [vmem:[#allocation2 + $0x23] sm:$0xff]
        %v2368 = vld [vmem:[#allocation2 + $0x2b] sm:$0xff]
        %v2369 = vld [vmem:[#allocation2 + $0x33] sm:$0xff]
        %v2370 = vld [vmem:[#allocation2 + $0x3b] sm:$0xff]
        %v2371 = vld [vmem:[#allocation2 + $0x43] sm:$0xff]
        %v2372 = vld [vmem:[#allocation2 + $0x4b] sm:$0xff]
        %s2373 = scalar_lea.vmem %s9, 80
        %v2374 = vld [vmem:[%s2373] sm:$0xff]
        %v2375 = vld [vmem:[%s2373 + $0x8] sm:$0xff]
        %v2377 = vsel %vm1205, %v2364, 0
        %v2380 = vsel %vm1205, %v2365, 0
        %v2383 = vsel %vm1205, %v2366, 0
        %v2386 = vsel %vm1205, %v2367, 0
        %v2389 = vsel %vm1205, %v2368, 0
        %v2392 = vsel %vm1205, %v2369, 0
        %v2395 = vsel %vm1205, %v2370, 0
        %v2398 = vsel %vm1205, %v2371, 0
        %v2401 = vsel %vm1205, %v2372, 0
        %2403 = vmatpush.msra.mxu0 0.0
        %2404 = vmatpush.msra.mxu0 0.0
        %2405 = vmatpush.msra.mxu0 0.0
        %2406 = vmatpush.msra.mxu0 0.0
        %2407 = vmatpush.msra.mxu0 0.0
        %2408 = vmatpush.msra.mxu0 0.0
        %2409 = vmatpush.msra.mxu0 0.0
        %2410 = vmatpush.msra.mxu0 0.0
        %2411 = vmatpush.msra.mxu0 0.0
        %2412 = vmatpush.msra.mxu0 0.0
        %2413 = vmatpush.msra.mxu0 0.0
        %2414 = vmatpush.msra.mxu0 0.0
        %2415 = vmatpush.msra.mxu0 0.0
        %2416 = vmatpush.msra.mxu0 0.0
        %2417 = vmatpush.msra.mxu0 %v2375
        %2418 = vmatpush.msra.mxu0 %v2374
        %2419 = vmatmul.f32.gmra.mxu0 %v2377
        %v2420 = vpop.f32.mrf.mxu0
        %v2421 = vadd.f32 0.0, %v2420
        %2422 = vmatmul.f32.gmra.mxu0 %v2380
        %v2423 = vpop.f32.mrf.mxu0
        %v2424 = vadd.f32 0.0, %v2423
        %2425 = vmatmul.f32.gmra.mxu0 %v2383
        %v2426 = vpop.f32.mrf.mxu0
        %v2427 = vadd.f32 0.0, %v2426
        %2428 = vmatmul.f32.gmra.mxu0 %v2386
        %v2429 = vpop.f32.mrf.mxu0
        %v2430 = vadd.f32 0.0, %v2429
        %2431 = vmatmul.f32.gmra.mxu0 %v2389
        %v2432 = vpop.f32.mrf.mxu0
        %v2433 = vadd.f32 0.0, %v2432
        %2434 = vmatmul.f32.gmra.mxu0 %v2392
        %v2435 = vpop.f32.mrf.mxu0
        %v2436 = vadd.f32 0.0, %v2435
        %2437 = vmatmul.f32.gmra.mxu0 %v2395
        %v2438 = vpop.f32.mrf.mxu0
        %v2439 = vadd.f32 0.0, %v2438
        %2440 = vmatmul.f32.gmra.mxu0 %v2398
        %v2441 = vpop.f32.mrf.mxu0
        %v2442 = vadd.f32 0.0, %v2441
        %2443 = vmatmul.f32.gmra.mxu0 %v2401
        %v2444 = vpop.f32.mrf.mxu0
        %v2445 = vadd.f32 0.0, %v2444
        %2446 = vdwg.mxu0
        %v2447 = vadd.f32 %v2355, %v2421
        %v2448 = vadd.f32 %v2356, %v2424
        %v2449 = vadd.f32 %v2357, %v2427
        %v2450 = vadd.f32 %v2358, %v2430
        %v2451 = vadd.f32 %v2359, %v2433
        %v2452 = vadd.f32 %v2360, %v2436
        %v2453 = vadd.f32 %v2361, %v2439
        %v2454 = vadd.f32 %v2362, %v2442
        %v2455 = vadd.f32 %v2363, %v2445
        %v2456 = vld [vmem:[#allocation2 + $0x12] sm:$0xff]
        %v2457 = vld [vmem:[#allocation2 + $0x1a] sm:$0xff]
        %v2458 = vld [vmem:[#allocation2 + $0x22] sm:$0xff]
        %v2459 = vld [vmem:[#allocation2 + $0x2a] sm:$0xff]
        %v2460 = vld [vmem:[#allocation2 + $0x32] sm:$0xff]
        %v2461 = vld [vmem:[#allocation2 + $0x3a] sm:$0xff]
        %v2462 = vld [vmem:[#allocation2 + $0x42] sm:$0xff]
        %v2463 = vld [vmem:[#allocation2 + $0x4a] sm:$0xff]
        %v2464 = vld [vmem:[#allocation2 + $0x52] sm:$0xff]
        %s2465 = scalar_lea.vmem %s9, 96
        %v2466 = vld [vmem:[%s2465] sm:$0xff]
        %v2467 = vld [vmem:[%s2465 + $0x8] sm:$0xff]
        %v2469 = vsel %vm1205, %v2456, 0
        %v2472 = vsel %vm1205, %v2457, 0
        %v2475 = vsel %vm1205, %v2458, 0
        %v2478 = vsel %vm1205, %v2459, 0
        %v2481 = vsel %vm1205, %v2460, 0
        %v2484 = vsel %vm1205, %v2461, 0
        %v2487 = vsel %vm1205, %v2462, 0
        %v2490 = vsel %vm1205, %v2463, 0
        %v2493 = vsel %vm1205, %v2464, 0
        %2495 = vmatpush.msra.mxu0 0.0
        %2496 = vmatpush.msra.mxu0 0.0
        %2497 = vmatpush.msra.mxu0 0.0
        %2498 = vmatpush.msra.mxu0 0.0
        %2499 = vmatpush.msra.mxu0 0.0
        %2500 = vmatpush.msra.mxu0 0.0
        %2501 = vmatpush.msra.mxu0 0.0
        %2502 = vmatpush.msra.mxu0 0.0
        %2503 = vmatpush.msra.mxu0 0.0
        %2504 = vmatpush.msra.mxu0 0.0
        %2505 = vmatpush.msra.mxu0 0.0
        %2506 = vmatpush.msra.mxu0 0.0
        %2507 = vmatpush.msra.mxu0 0.0
        %2508 = vmatpush.msra.mxu0 0.0
        %2509 = vmatpush.msra.mxu0 %v2467
        %2510 = vmatpush.msra.mxu0 %v2466
        %2511 = vmatmul.f32.gmra.mxu0 %v2469
        %v2512 = vpop.f32.mrf.mxu0
        %v2513 = vadd.f32 0.0, %v2512
        %2514 = vmatmul.f32.gmra.mxu0 %v2472
        %v2515 = vpop.f32.mrf.mxu0
        %v2516 = vadd.f32 0.0, %v2515
        %2517 = vmatmul.f32.gmra.mxu0 %v2475
        %v2518 = vpop.f32.mrf.mxu0
        %v2519 = vadd.f32 0.0, %v2518
        %2520 = vmatmul.f32.gmra.mxu0 %v2478
        %v2521 = vpop.f32.mrf.mxu0
        %v2522 = vadd.f32 0.0, %v2521
        %2523 = vmatmul.f32.gmra.mxu0 %v2481
        %v2524 = vpop.f32.mrf.mxu0
        %v2525 = vadd.f32 0.0, %v2524
        %2526 = vmatmul.f32.gmra.mxu0 %v2484
        %v2527 = vpop.f32.mrf.mxu0
        %v2528 = vadd.f32 0.0, %v2527
        %2529 = vmatmul.f32.gmra.mxu0 %v2487
        %v2530 = vpop.f32.mrf.mxu0
        %v2531 = vadd.f32 0.0, %v2530
        %2532 = vmatmul.f32.gmra.mxu0 %v2490
        %v2533 = vpop.f32.mrf.mxu0
        %v2534 = vadd.f32 0.0, %v2533
        %2535 = vmatmul.f32.gmra.mxu0 %v2493
        %v2536 = vpop.f32.mrf.mxu0
        %v2537 = vadd.f32 0.0, %v2536
        %2538 = vdwg.mxu0
        %v2539 = vadd.f32 %v2447, %v2513
        %v2540 = vadd.f32 %v2448, %v2516
        %v2541 = vadd.f32 %v2449, %v2519
        %v2542 = vadd.f32 %v2450, %v2522
        %v2543 = vadd.f32 %v2451, %v2525
        %v2544 = vadd.f32 %v2452, %v2528
        %v2545 = vadd.f32 %v2453, %v2531
        %v2546 = vadd.f32 %v2454, %v2534
        %v2547 = vadd.f32 %v2455, %v2537
        %v2548 = vld [vmem:[#allocation2 + $0x13] sm:$0xff]
        %v2549 = vld [vmem:[#allocation2 + $0x1b] sm:$0xff]
        %v2550 = vld [vmem:[#allocation2 + $0x23] sm:$0xff]
        %v2551 = vld [vmem:[#allocation2 + $0x2b] sm:$0xff]
        %v2552 = vld [vmem:[#allocation2 + $0x33] sm:$0xff]
        %v2553 = vld [vmem:[#allocation2 + $0x3b] sm:$0xff]
        %v2554 = vld [vmem:[#allocation2 + $0x43] sm:$0xff]
        %v2555 = vld [vmem:[#allocation2 + $0x4b] sm:$0xff]
        %v2556 = vld [vmem:[#allocation2 + $0x53] sm:$0xff]
        %s2557 = scalar_lea.vmem %s9, 112
        %v2558 = vld [vmem:[%s2557] sm:$0xff]
        %v2559 = vld [vmem:[%s2557 + $0x8] sm:$0xff]
        %v2561 = vsel %vm1205, %v2548, 0
        %v2564 = vsel %vm1205, %v2549, 0
        %v2567 = vsel %vm1205, %v2550, 0
        %v2570 = vsel %vm1205, %v2551, 0
        %v2573 = vsel %vm1205, %v2552, 0
        %v2576 = vsel %vm1205, %v2553, 0
        %v2579 = vsel %vm1205, %v2554, 0
        %v2582 = vsel %vm1205, %v2555, 0
        %v2585 = vsel %vm1205, %v2556, 0
        %2587 = vmatpush.msra.mxu0 0.0
        %2588 = vmatpush.msra.mxu0 0.0
        %2589 = vmatpush.msra.mxu0 0.0
        %2590 = vmatpush.msra.mxu0 0.0
        %2591 = vmatpush.msra.mxu0 0.0
        %2592 = vmatpush.msra.mxu0 0.0
        %2593 = vmatpush.msra.mxu0 0.0
        %2594 = vmatpush.msra.mxu0 0.0
        %2595 = vmatpush.msra.mxu0 0.0
        %2596 = vmatpush.msra.mxu0 0.0
        %2597 = vmatpush.msra.mxu0 0.0
        %2598 = vmatpush.msra.mxu0 0.0
        %2599 = vmatpush.msra.mxu0 0.0
        %2600 = vmatpush.msra.mxu0 0.0
        %2601 = vmatpush.msra.mxu0 %v2559
        %2602 = vmatpush.msra.mxu0 %v2558
        %2603 = vmatmul.f32.gmra.mxu0 %v2561
        %v2604 = vpop.f32.mrf.mxu0
        %v2605 = vadd.f32 0.0, %v2604
        %2606 = vmatmul.f32.gmra.mxu0 %v2564
        %v2607 = vpop.f32.mrf.mxu0
        %v2608 = vadd.f32 0.0, %v2607
        %2609 = vmatmul.f32.gmra.mxu0 %v2567
        %v2610 = vpop.f32.mrf.mxu0
        %v2611 = vadd.f32 0.0, %v2610
        %2612 = vmatmul.f32.gmra.mxu0 %v2570
        %v2613 = vpop.f32.mrf.mxu0
        %v2614 = vadd.f32 0.0, %v2613
        %2615 = vmatmul.f32.gmra.mxu0 %v2573
        %v2616 = vpop.f32.mrf.mxu0
        %v2617 = vadd.f32 0.0, %v2616
        %2618 = vmatmul.f32.gmra.mxu0 %v2576
        %v2619 = vpop.f32.mrf.mxu0
        %v2620 = vadd.f32 0.0, %v2619
        %2621 = vmatmul.f32.gmra.mxu0 %v2579
        %v2622 = vpop.f32.mrf.mxu0
        %v2623 = vadd.f32 0.0, %v2622
        %2624 = vmatmul.f32.gmra.mxu0 %v2582
        %v2625 = vpop.f32.mrf.mxu0
        %v2626 = vadd.f32 0.0, %v2625
        %2627 = vmatmul.f32.gmra.mxu0 %v2585
        %v2628 = vpop.f32.mrf.mxu0
        %v2629 = vadd.f32 0.0, %v2628
        %2630 = vdwg.mxu0
        %v2631 = vadd.f32 %v2539, %v2605
        %v2632 = vadd.f32 %v2540, %v2608
        %v2633 = vadd.f32 %v2541, %v2611
        %v2634 = vadd.f32 %v2542, %v2614
        %v2635 = vadd.f32 %v2543, %v2617
        %v2636 = vadd.f32 %v2544, %v2620
        %v2637 = vadd.f32 %v2545, %v2623
        %v2638 = vadd.f32 %v2546, %v2626
        %v2639 = vadd.f32 %v2547, %v2629
        %v2640 = vld [vmem:[#allocation2 + $0x14] sm:$0xff]
        %v2641 = vld [vmem:[#allocation2 + $0x1c] sm:$0xff]
        %v2642 = vld [vmem:[#allocation2 + $0x24] sm:$0xff]
        %v2643 = vld [vmem:[#allocation2 + $0x2c] sm:$0xff]
        %v2644 = vld [vmem:[#allocation2 + $0x34] sm:$0xff]
        %v2645 = vld [vmem:[#allocation2 + $0x3c] sm:$0xff]
        %v2646 = vld [vmem:[#allocation2 + $0x44] sm:$0xff]
        %v2647 = vld [vmem:[#allocation2 + $0x4c] sm:$0xff]
        %v2648 = vld [vmem:[#allocation2 + $0x54] sm:$0xff]
        %s2649 = scalar_lea.vmem %s9, 128
        %v2650 = vld [vmem:[%s2649] sm:$0xff]
        %v2651 = vld [vmem:[%s2649 + $0x8] sm:$0xff]
        %v2653 = vsel %vm1205, %v2640, 0
        %v2656 = vsel %vm1205, %v2641, 0
        %v2659 = vsel %vm1205, %v2642, 0
        %v2662 = vsel %vm1205, %v2643, 0
        %v2665 = vsel %vm1205, %v2644, 0
        %v2668 = vsel %vm1205, %v2645, 0
        %v2671 = vsel %vm1205, %v2646, 0
        %v2674 = vsel %vm1205, %v2647, 0
        %v2677 = vsel %vm1205, %v2648, 0
        %2679 = vmatpush.msra.mxu0 0.0
        %2680 = vmatpush.msra.mxu0 0.0
        %2681 = vmatpush.msra.mxu0 0.0
        %2682 = vmatpush.msra.mxu0 0.0
        %2683 = vmatpush.msra.mxu0 0.0
        %2684 = vmatpush.msra.mxu0 0.0
        %2685 = vmatpush.msra.mxu0 0.0
        %2686 = vmatpush.msra.mxu0 0.0
        %2687 = vmatpush.msra.mxu0 0.0
        %2688 = vmatpush.msra.mxu0 0.0
        %2689 = vmatpush.msra.mxu0 0.0
        %2690 = vmatpush.msra.mxu0 0.0
        %2691 = vmatpush.msra.mxu0 0.0
        %2692 = vmatpush.msra.mxu0 0.0
        %2693 = vmatpush.msra.mxu0 %v2651
        %2694 = vmatpush.msra.mxu0 %v2650
        %2695 = vmatmul.f32.gmra.mxu0 %v2653
        %v2696 = vpop.f32.mrf.mxu0
        %v2697 = vadd.f32 0.0, %v2696
        %2698 = vmatmul.f32.gmra.mxu0 %v2656
        %v2699 = vpop.f32.mrf.mxu0
        %v2700 = vadd.f32 0.0, %v2699
        %2701 = vmatmul.f32.gmra.mxu0 %v2659
        %v2702 = vpop.f32.mrf.mxu0
        %v2703 = vadd.f32 0.0, %v2702
        %2704 = vmatmul.f32.gmra.mxu0 %v2662
        %v2705 = vpop.f32.mrf.mxu0
        %v2706 = vadd.f32 0.0, %v2705
        %2707 = vmatmul.f32.gmra.mxu0 %v2665
        %v2708 = vpop.f32.mrf.mxu0
        %v2709 = vadd.f32 0.0, %v2708
        %2710 = vmatmul.f32.gmra.mxu0 %v2668
        %v2711 = vpop.f32.mrf.mxu0
        %v2712 = vadd.f32 0.0, %v2711
        %2713 = vmatmul.f32.gmra.mxu0 %v2671
        %v2714 = vpop.f32.mrf.mxu0
        %v2715 = vadd.f32 0.0, %v2714
        %2716 = vmatmul.f32.gmra.mxu0 %v2674
        %v2717 = vpop.f32.mrf.mxu0
        %v2718 = vadd.f32 0.0, %v2717
        %2719 = vmatmul.f32.gmra.mxu0 %v2677
        %v2720 = vpop.f32.mrf.mxu0
        %v2721 = vadd.f32 0.0, %v2720
        %2722 = vdwg.mxu0
        %v2723 = vadd.f32 %v2631, %v2697
        %v2724 = vadd.f32 %v2632, %v2700
        %v2725 = vadd.f32 %v2633, %v2703
        %v2726 = vadd.f32 %v2634, %v2706
        %v2727 = vadd.f32 %v2635, %v2709
        %v2728 = vadd.f32 %v2636, %v2712
        %v2729 = vadd.f32 %v2637, %v2715
        %v2730 = vadd.f32 %v2638, %v2718
        %v2731 = vadd.f32 %v2639, %v2721
        %v2732 = vmul.f32 %v2723, %v1867
        %v2733 = vmul.f32 %v2724, %v1868
        %v2734 = vmul.f32 %v2725, %v1869
        %v2735 = vmul.f32 %v2726, %v1870
        %v2736 = vmul.f32 %v2727, %v1871
        %v2737 = vmul.f32 %v2728, %v1872
        %v2738 = vmul.f32 %v2729, %v1873
        %v2739 = vmul.f32 %v2730, %v1874
        %v2740 = vmul.f32 %v2731, %v1875
        %v2741 = vsel %vm1205, %v2732, 0.0
        %v2742 = vsel %vm1205, %v2733, 0.0
        %v2743 = vadd.f32 %v2741, %v2742
        %v2744 = vsel %vm1205, %v2734, 0.0
        %v2745 = vadd.f32 %v2743, %v2744
        %v2746 = vsel %vm1205, %v2735, 0.0
        %v2747 = vadd.f32 %v2745, %v2746
        %v2748 = vsel %vm1205, %v2736, 0.0
        %v2749 = vadd.f32 %v2747, %v2748
        %v2750 = vsel %vm1205, %v2737, 0.0
        %v2751 = vadd.f32 %v2749, %v2750
        %v2752 = vsel %vm1205, %v2738, 0.0
        %v2753 = vadd.f32 %v2751, %v2752
        %v2754 = vsel %vm1205, %v2739, 0.0
        %v2755 = vadd.f32 %v2753, %v2754
        %v2756 = vsel %vm1205, %v2740, 0.0
        %v2757 = vadd.f32 %v2755, %v2756
        %v2758 = vrot.slane %v2757, 4
        %v2759 = vadd.f32 %v2757, %v2758
        %v2760 = vrot.slane %v2759, 2
        %v2761 = vadd.f32 %v2759, %v2760
        %v2762 = vrot.slane %v2761, 1
        %v2763 = vadd.f32 %v2761, %v2762
        %v2764 = vmul.f32 %v2763, 0.015625
        %v2765 = vld [vmem:[%s15] sm:$0xff]
        %v2766 = vld [vmem:[%s15 + $0x8] sm:$0xff]
        %v2768 = vsel %vm1205, %v2764, 0
        %2770 = vmatpush.msra.mxu0 0.0
        %2771 = vmatpush.msra.mxu0 0.0
        %2772 = vmatpush.msra.mxu0 0.0
        %2773 = vmatpush.msra.mxu0 0.0
        %2774 = vmatpush.msra.mxu0 0.0
        %2775 = vmatpush.msra.mxu0 0.0
        %2776 = vmatpush.msra.mxu0 0.0
        %2777 = vmatpush.msra.mxu0 0.0
        %2778 = vmatpush.msra.mxu0 0.0
        %2779 = vmatpush.msra.mxu0 0.0
        %2780 = vmatpush.msra.mxu0 0.0
        %2781 = vmatpush.msra.mxu0 0.0
        %2782 = vmatpush.msra.mxu0 0.0
        %2783 = vmatpush.msra.mxu0 0.0
        %2784 = vmatpush.msra.mxu0 %v2766
        %2785 = vmatpush.msra.mxu0 %v2765
        %2786 = vmatmul.f32.gmra.mxu0 %v2768
        %v2787 = vpop.f32.mrf.mxu0
        %v2788 = vadd.f32 0.0, %v2787
        %2789 = vdwg.mxu0
        %v2790 = vmax.f32 %v2788, 0.0
        %v2791 = vld [vmem:[%s17] sm:$0xff]
        %vm2792 = vcmask 64512
        %v2794 = vsel %vm2792, %v2790, 0
        %2796 = vmatpush.msra.mxu0 0.0
        %2797 = vmatpush.msra.mxu0 0.0
        %2798 = vmatpush.msra.mxu0 0.0
        %2799 = vmatpush.msra.mxu0 0.0
        %2800 = vmatpush.msra.mxu0 0.0
        %2801 = vmatpush.msra.mxu0 0.0
        %2802 = vmatpush.msra.mxu0 0.0
        %2803 = vmatpush.msra.mxu0 0.0
        %2804 = vmatpush.msra.mxu0 0.0
        %2805 = vmatpush.msra.mxu0 0.0
        %2806 = vmatpush.msra.mxu0 0.0
        %2807 = vmatpush.msra.mxu0 0.0
        %2808 = vmatpush.msra.mxu0 0.0
        %2809 = vmatpush.msra.mxu0 0.0
        %2810 = vmatpush.msra.mxu0 0.0
        %2811 = vmatpush.msra.mxu0 %v2791
        %2812 = vmatmul.f32.gmra.mxu0 %v2794
        %v2813 = vpop.f32.mrf.mxu0
        %v2814 = vadd.f32 0.0, %v2813
        %2815 = vdwg.mxu0
        %v2816 = vxor.u32 %v2814, 2147483648
        %v2817 = vmul.f32 %v2816, 1.442695
        %v2818 = vpow.pop %v2817
        %v2819 = vadd.f32 %v2818, 1.0
        %v2820 = vrcp.pop %v2819
        %v2821 = vmul.f32 %v2819, %v2820
        %v2822 = vsub.f32 1.0, %v2821
        %v2823 = vmul.f32 %v2820, %v2822
        %v2824 = vadd.f32 %v2820, %v2823
        %vm2825 = vweird.f32 %v2819
        %vm2826 = vweird.f32 %v2820
        %vm2827 = vmor %vm2825, %vm2826
        %v2828 = vsel %vm2827, %v2820, %v2824
        %v2829 = vand.u32 2147483647, %v2819
        %vm2830 = vcmp.eq.f32.partialorder %v2829, 8.507059e+37
        %v2831 = vand.u32 %v2819, 2147483648
        %v2832 = vor.u32 1.1754944e-38, %v2831
        %v2833 = vsel %vm2830, %v2832, %v2828
        %v2834 = vmul.f32 1.0, %v2833
        %v2835 = vld [vmem:[%s1349] sm:$0xff]
        %v2836 = vld [vmem:[%s1349 + $0x8] sm:$0xff]
        %v2837 = vld [vmem:[%s1349 + $0x10] sm:$0xff]
        %v2838 = vld [vmem:[%s1349 + $0x18] sm:$0xff]
        %v2839 = vld [vmem:[%s1349 + $0x20] sm:$0xff]
        %v2840 = vld [vmem:[%s1349 + $0x28] sm:$0xff]
        %v2841 = vld [vmem:[%s1349 + $0x30] sm:$0xff]
        %v2842 = vld [vmem:[%s1349 + $0x38] sm:$0xff]
        %v2843 = vld [vmem:[%s1349 + $0x40] sm:$0xff]
        %v2844 = vld [vmem:[%s11] sm:$0xff]
        %v2845 = vld [vmem:[%s11 + $0x8] sm:$0xff]
        %v2846 = vld [vmem:[%s11 + $0x10] sm:$0xff]
        %v2847 = vld [vmem:[%s11 + $0x18] sm:$0xff]
        %v2848 = vld [vmem:[%s13] sm:$0x1]
        %v2850 = vperm.slane %v2848, 0
        %v2853 = vsel %vm1277, %v2835, 0
        %v2856 = vsel %vm1277, %v2836, 0
        %v2859 = vsel %vm1277, %v2837, 0
        %v2862 = vsel %vm1277, %v2838, 0
        %v2865 = vsel %vm1277, %v2839, 0
        %v2868 = vsel %vm1277, %v2840, 0
        %v2871 = vsel %vm1277, %v2841, 0
        %v2874 = vsel %vm1277, %v2842, 0
        %v2877 = vsel %vm1277, %v2843, 0
        %2879 = vmatpush.msra.mxu0 0.0
        %2880 = vmatpush.msra.mxu0 0.0
        %2881 = vmatpush.msra.mxu0 0.0
        %2882 = vmatpush.msra.mxu0 0.0
        %2883 = vmatpush.msra.mxu0 0.0
        %2884 = vmatpush.msra.mxu0 0.0
        %2885 = vmatpush.msra.mxu0 0.0
        %2886 = vmatpush.msra.mxu0 0.0
        %2887 = vmatpush.msra.mxu0 0.0
        %2888 = vmatpush.msra.mxu0 0.0
        %2889 = vmatpush.msra.mxu0 0.0
        %2890 = vmatpush.msra.mxu0 0.0
        %2891 = vmatpush.msra.mxu0 %v2847
        %2892 = vmatpush.msra.mxu0 %v2846
        %2893 = vmatpush.msra.mxu0 %v2845
        %2894 = vmatpush.msra.mxu0 %v2844
        %2895 = vmatmul.f32.gmra.mxu0 %v2853
        %v2896 = vpop.f32.mrf.mxu0
        %v2897 = vadd.f32 %v2850, %v2896
        %2898 = vmatmul.f32.gmra.mxu0 %v2856
        %v2899 = vpop.f32.mrf.mxu0
        %v2900 = vadd.f32 %v2850, %v2899
        %2901 = vmatmul.f32.gmra.mxu0 %v2859
        %v2902 = vpop.f32.mrf.mxu0
        %v2903 = vadd.f32 %v2850, %v2902
        %2904 = vmatmul.f32.gmra.mxu0 %v2862
        %v2905 = vpop.f32.mrf.mxu0
        %v2906 = vadd.f32 %v2850, %v2905
        %2907 = vmatmul.f32.gmra.mxu0 %v2865
        %v2908 = vpop.f32.mrf.mxu0
        %v2909 = vadd.f32 %v2850, %v2908
        %2910 = vmatmul.f32.gmra.mxu0 %v2868
        %v2911 = vpop.f32.mrf.mxu0
        %v2912 = vadd.f32 %v2850, %v2911
        %2913 = vmatmul.f32.gmra.mxu0 %v2871
        %v2914 = vpop.f32.mrf.mxu0
        %v2915 = vadd.f32 %v2850, %v2914
        %2916 = vmatmul.f32.gmra.mxu0 %v2874
        %v2917 = vpop.f32.mrf.mxu0
        %v2918 = vadd.f32 %v2850, %v2917
        %2919 = vmatmul.f32.gmra.mxu0 %v2877
        %v2920 = vpop.f32.mrf.mxu0
        %v2921 = vadd.f32 %v2850, %v2920
        %2922 = vdwg.mxu0
        %v2923 = vperm.slane %v2834, 0
        %v2924 = vmul.f32 %v2723, %v2923
        %v2925 = vmul.f32 %v2724, %v2923
        %v2926 = vmul.f32 %v2725, %v2923
        %v2927 = vmul.f32 %v2726, %v2923
        %v2928 = vmul.f32 %v2727, %v2923
        %v2929 = vmul.f32 %v2728, %v2923
        %v2930 = vmul.f32 %v2729, %v2923
        %v2931 = vmul.f32 %v2730, %v2923
        %v2932 = vmul.f32 %v2731, %v2923
        %v2933 = vadd.f32 %v2924, %v2897
        %v2934 = vadd.f32 %v2925, %v2900
        %v2935 = vadd.f32 %v2926, %v2903
        %v2936 = vadd.f32 %v2927, %v2906
        %v2937 = vadd.f32 %v2928, %v2909
        %v2938 = vadd.f32 %v2929, %v2912
        %v2939 = vadd.f32 %v2930, %v2915
        %v2940 = vadd.f32 %v2931, %v2918
        %v2941 = vadd.f32 %v2932, %v2921
        %v2942 = vmax.f32 %v2933, 0.0
        %v2943 = vmax.f32 %v2934, 0.0
        %v2944 = vmax.f32 %v2935, 0.0
        %v2945 = vmax.f32 %v2936, 0.0
        %v2946 = vmax.f32 %v2937, 0.0
        %v2947 = vmax.f32 %v2938, 0.0
        %v2948 = vmax.f32 %v2939, 0.0
        %v2949 = vmax.f32 %v2940, 0.0
        %v2950 = vmax.f32 %v2941, 0.0
        %v2951 = vld [vmem:[%s67] sm:$0xff]
        %v2952 = vld [vmem:[%s67 + $0x8] sm:$0xff]
        %v2953 = vld [vmem:[%s67 + $0x10] sm:$0xff]
        %v2954 = vld [vmem:[%s67 + $0x18] sm:$0x3f]
        %vm2955 = vcmask 588800
        %v2957 = vsel %vm2955, %v2951, 0
        %v2960 = vsel %vm2955, %v2952, 0
        %v2963 = vsel %vm2955, %v2953, 0
        %v2966 = vsel %vm2955, %v2954, 0
        %2968 = vmatpush.msra.mxu0 0.0
        %2969 = vmatpush.msra.mxu0 0.0
        %2970 = vmatpush.msra.mxu0 0.0
        %2971 = vmatpush.msra.mxu0 0.0
        %2972 = vmatpush.msra.mxu0 0.0
        %2973 = vmatpush.msra.mxu0 0.0
        %2974 = vmatpush.msra.mxu0 0.0
        %2975 = vmatpush.msra.mxu0 %v2950
        %2976 = vmatpush.msra.mxu0 %v2949
        %2977 = vmatpush.msra.mxu0 %v2948
        %2978 = vmatpush.msra.mxu0 %v2947
        %2979 = vmatpush.msra.mxu0 %v2946
        %2980 = vmatpush.msra.mxu0 %v2945
        %2981 = vmatpush.msra.mxu0 %v2944
        %2982 = vmatpush.msra.mxu0 %v2943
        %2983 = vmatpush.msra.mxu0 %v2942
        %2984 = vmatmul.f32.gmra.mxu0 %v2957
        %v2985 = vpop.f32.mrf.mxu0
        %v2986 = vadd.f32 0.0, %v2985
        %2987 = vmatmul.f32.gmra.mxu0 %v2960
        %v2988 = vpop.f32.mrf.mxu0
        %v2989 = vadd.f32 0.0, %v2988
        %2990 = vmatmul.f32.gmra.mxu0 %v2963
        %v2991 = vpop.f32.mrf.mxu0
        %v2992 = vadd.f32 0.0, %v2991
        %2993 = vmatmul.f32.gmra.mxu0 %v2966
        %v2994 = vpop.f32.mrf.mxu0
        %v2995 = vadd.f32 0.0, %v2994
        %2996 = vdwg.mxu0
        %v2997 = vld [vmem:[%s69] sm:$0xff]
        %v2998 = vld [vmem:[%s69 + $0x8] sm:$0xff]
        %v2999 = vld [vmem:[%s69 + $0x10] sm:$0xff]
        %v3000 = vld [vmem:[%s69 + $0x18] sm:$0x3f]
        %v3002 = vsel %vm2955, %v2997, 0
        %v3005 = vsel %vm2955, %v2998, 0
        %v3008 = vsel %vm2955, %v2999, 0
        %v3011 = vsel %vm2955, %v3000, 0
        %3013 = vmatpush.msra.mxu0 0.0
        %3014 = vmatpush.msra.mxu0 0.0
        %3015 = vmatpush.msra.mxu0 0.0
        %3016 = vmatpush.msra.mxu0 0.0
        %3017 = vmatpush.msra.mxu0 0.0
        %3018 = vmatpush.msra.mxu0 0.0
        %3019 = vmatpush.msra.mxu0 0.0
        %3020 = vmatpush.msra.mxu0 %v2950
        %3021 = vmatpush.msra.mxu0 %v2949
        %3022 = vmatpush.msra.mxu0 %v2948
        %3023 = vmatpush.msra.mxu0 %v2947
        %3024 = vmatpush.msra.mxu0 %v2946
        %3025 = vmatpush.msra.mxu0 %v2945
        %3026 = vmatpush.msra.mxu0 %v2944
        %3027 = vmatpush.msra.mxu0 %v2943
        %3028 = vmatpush.msra.mxu0 %v2942
        %3029 = vmatmul.f32.gmra.mxu0 %v3002
        %v3030 = vpop.f32.mrf.mxu0
        %v3031 = vadd.f32 0.0, %v3030
        %3032 = vmatmul.f32.gmra.mxu0 %v3005
        %v3033 = vpop.f32.mrf.mxu0
        %v3034 = vadd.f32 0.0, %v3033
        %3035 = vmatmul.f32.gmra.mxu0 %v3008
        %v3036 = vpop.f32.mrf.mxu0
        %v3037 = vadd.f32 0.0, %v3036
        %3038 = vmatmul.f32.gmra.mxu0 %v3011
        %v3039 = vpop.f32.mrf.mxu0
        %v3040 = vadd.f32 0.0, %v3039
        %3041 = vdwg.mxu0
        %3046 = vrot.lane.b32.xlu0 %v3031, 16
        %v3047 = vpop.permute.xlu0 %3046
        %3048 = vrot.lane.b32.xlu0 %v3034, 16
        %v3049 = vpop.permute.xlu0 %3048
        %3050 = vrot.lane.b32.xlu0 %v3037, 16
        %v3051 = vpop.permute.xlu0 %3050
        %3052 = vrot.lane.b32.xlu0 %v3040, 16
        %v3053 = vpop.permute.xlu0 %3052
        %v3058 = vsel %vm1205, %v2986, %v3047
        %v3059 = vsel %vm1205, %v2989, %v3049
        %v3060 = vsel %vm1205, %v2992, %v3051
        %v3061 = vsel %vm1205, %v2995, %v3053
        %3062 = vst.msk [vmem:[#allocation6] sm:$0xff] %vm1277, %v3058
        %3063 = vst.msk [vmem:[#allocation6 + $0x8] sm:$0xff] %vm1277, %v3059
        %3064 = vst.msk [vmem:[#allocation6 + $0x10] sm:$0xff] %vm1277, %v3060
        %vm3065 = vcmask 259072
        %3066 = vst.msk [vmem:[#allocation6 + $0x18] sm:$0x3f] %vm3065, %v3061
        %s3067 = scalar_lea.vmem %s67, 32
        %v3068 = vld [vmem:[%s3067] sm:$0xff]
        %v3069 = vld [vmem:[%s3067 + $0x8] sm:$0xff]
        %v3070 = vld [vmem:[%s3067 + $0x10] sm:$0xff]
        %v3071 = vld [vmem:[%s3067 + $0x18] sm:$0x3f]
        %v3073 = vsel %vm2955, %v3068, 0
        %v3076 = vsel %vm2955, %v3069, 0
        %v3079 = vsel %vm2955, %v3070, 0
        %v3082 = vsel %vm2955, %v3071, 0
        %3084 = vmatpush.msra.mxu0 0.0
        %3085 = vmatpush.msra.mxu0 0.0
        %3086 = vmatpush.msra.mxu0 0.0
        %3087 = vmatpush.msra.mxu0 0.0
        %3088 = vmatpush.msra.mxu0 0.0
        %3089 = vmatpush.msra.mxu0 0.0
        %3090 = vmatpush.msra.mxu0 0.0
        %3091 = vmatpush.msra.mxu0 %v2950
        %3092 = vmatpush.msra.mxu0 %v2949
        %3093 = vmatpush.msra.mxu0 %v2948
        %3094 = vmatpush.msra.mxu0 %v2947
        %3095 = vmatpush.msra.mxu0 %v2946
        %3096 = vmatpush.msra.mxu0 %v2945
        %3097 = vmatpush.msra.mxu0 %v2944
        %3098 = vmatpush.msra.mxu0 %v2943
        %3099 = vmatpush.msra.mxu0 %v2942
        %3100 = vmatmul.f32.gmra.mxu0 %v3073
        %v3101 = vpop.f32.mrf.mxu0
        %v3102 = vadd.f32 0.0, %v3101
        %3103 = vmatmul.f32.gmra.mxu0 %v3076
        %v3104 = vpop.f32.mrf.mxu0
        %v3105 = vadd.f32 0.0, %v3104
        %3106 = vmatmul.f32.gmra.mxu0 %v3079
        %v3107 = vpop.f32.mrf.mxu0
        %v3108 = vadd.f32 0.0, %v3107
        %3109 = vmatmul.f32.gmra.mxu0 %v3082
        %v3110 = vpop.f32.mrf.mxu0
        %v3111 = vadd.f32 0.0, %v3110
        %3112 = vdwg.mxu0
        %s3113 = scalar_lea.vmem %s69, 32
        %v3114 = vld [vmem:[%s3113] sm:$0xff]
        %v3115 = vld [vmem:[%s3113 + $0x8] sm:$0xff]
        %v3116 = vld [vmem:[%s3113 + $0x10] sm:$0xff]
        %v3117 = vld [vmem:[%s3113 + $0x18] sm:$0x3f]
        %v3119 = vsel %vm2955, %v3114, 0
        %v3122 = vsel %vm2955, %v3115, 0
        %v3125 = vsel %vm2955, %v3116, 0
        %v3128 = vsel %vm2955, %v3117, 0
        %3130 = vmatpush.msra.mxu0 0.0
        %3131 = vmatpush.msra.mxu0 0.0
        %3132 = vmatpush.msra.mxu0 0.0
        %3133 = vmatpush.msra.mxu0 0.0
        %3134 = vmatpush.msra.mxu0 0.0
        %3135 = vmatpush.msra.mxu0 0.0
        %3136 = vmatpush.msra.mxu0 0.0
        %3137 = vmatpush.msra.mxu0 %v2950
        %3138 = vmatpush.msra.mxu0 %v2949
        %3139 = vmatpush.msra.mxu0 %v2948
        %3140 = vmatpush.msra.mxu0 %v2947
        %3141 = vmatpush.msra.mxu0 %v2946
        %3142 = vmatpush.msra.mxu0 %v2945
        %3143 = vmatpush.msra.mxu0 %v2944
        %3144 = vmatpush.msra.mxu0 %v2943
        %3145 = vmatpush.msra.mxu0 %v2942
        %3146 = vmatmul.f32.gmra.mxu0 %v3119
        %v3147 = vpop.f32.mrf.mxu0
        %v3148 = vadd.f32 0.0, %v3147
        %3149 = vmatmul.f32.gmra.mxu0 %v3122
        %v3150 = vpop.f32.mrf.mxu0
        %v3151 = vadd.f32 0.0, %v3150
        %3152 = vmatmul.f32.gmra.mxu0 %v3125
        %v3153 = vpop.f32.mrf.mxu0
        %v3154 = vadd.f32 0.0, %v3153
        %3155 = vmatmul.f32.gmra.mxu0 %v3128
        %v3156 = vpop.f32.mrf.mxu0
        %v3157 = vadd.f32 0.0, %v3156
        %3158 = vdwg.mxu0
        %3163 = vrot.lane.b32.xlu0 %v3148, 16
        %v3164 = vpop.permute.xlu0 %3163
        %3165 = vrot.lane.b32.xlu0 %v3151, 16
        %v3166 = vpop.permute.xlu0 %3165
        %3167 = vrot.lane.b32.xlu0 %v3154, 16
        %v3168 = vpop.permute.xlu0 %3167
        %3169 = vrot.lane.b32.xlu0 %v3157, 16
        %v3170 = vpop.permute.xlu0 %3169
        %v3175 = vsel %vm1205, %v3102, %v3164
        %v3176 = vsel %vm1205, %v3105, %v3166
        %v3177 = vsel %vm1205, %v3108, %v3168
        %v3178 = vsel %vm1205, %v3111, %v3170
        %s3179 = scalar_lea.vmem [#allocation6], 32
        %3180 = vst.msk [vmem:[%s3179] sm:$0xff] %vm1277, %v3175
        %3181 = vst.msk [vmem:[%s3179 + $0x8] sm:$0xff] %vm1277, %v3176
        %3182 = vst.msk [vmem:[%s3179 + $0x10] sm:$0xff] %vm1277, %v3177
        %3183 = vst.msk [vmem:[%s3179 + $0x18] sm:$0x3f] %vm3065, %v3178
        %v3184 = vld [vmem:[#allocation6] sm:$0xff]
        %v3185 = vld [vmem:[#allocation6 + $0x8] sm:$0xff]
        %v3186 = vld [vmem:[#allocation6 + $0x10] sm:$0xf]
        %v3187 = vld [vmem:[%s19] sm:$0xff]
        %v3188 = vld [vmem:[%s19 + $0x8] sm:$0xff]
        %v3189 = vld [vmem:[%s19 + $0x10] sm:$0xff]
        %v3190 = vld [vmem:[%s19 + $0x18] sm:$0xff]
        %v3191 = vld [vmem:[#allocation6 + $0x1] sm:$0xff]
        %v3192 = vld [vmem:[#allocation6 + $0x9] sm:$0xff]
        %v3193 = vld [vmem:[#allocation6 + $0x11] sm:$0xf]
        %v3194 = vld [vmem:[%s21] sm:$0xff]
        %v3195 = vld [vmem:[%s21 + $0x8] sm:$0xff]
        %v3197 = vsel %vm1205, %v3191, 0
        %v3200 = vsel %vm1205, %v3192, 0
        %v3203 = vsel %vm1205, %v3193, 0
        %3205 = vmatpush.msra.mxu0 0.0
        %3206 = vmatpush.msra.mxu0 0.0
        %3207 = vmatpush.msra.mxu0 0.0
        %3208 = vmatpush.msra.mxu0 0.0
        %3209 = vmatpush.msra.mxu0 0.0
        %3210 = vmatpush.msra.mxu0 0.0
        %3211 = vmatpush.msra.mxu0 0.0
        %3212 = vmatpush.msra.mxu0 0.0
        %3213 = vmatpush.msra.mxu0 0.0
        %3214 = vmatpush.msra.mxu0 0.0
        %3215 = vmatpush.msra.mxu0 0.0
        %3216 = vmatpush.msra.mxu0 0.0
        %3217 = vmatpush.msra.mxu0 0.0
        %3218 = vmatpush.msra.mxu0 0.0
        %3219 = vmatpush.msra.mxu0 %v3195
        %3220 = vmatpush.msra.mxu0 %v3194
        %3221 = vmatmul.f32.gmra.mxu0 %v3197
        %v3222 = vpop.f32.mrf.mxu0
        %v3223 = vadd.f32 0.0, %v3222
        %3224 = vmatmul.f32.gmra.mxu0 %v3200
        %v3225 = vpop.f32.mrf.mxu0
        %v3226 = vadd.f32 0.0, %v3225
        %3227 = vmatmul.f32.gmra.mxu0 %v3203
        %v3228 = vpop.f32.mrf.mxu0
        %v3229 = vadd.f32 0.0, %v3228
        %3230 = vdwg.mxu0
        %v3232 = vsel %vm1277, %v3184, 0
        %v3235 = vsel %vm1277, %v3185, 0
        %v3238 = vsel %vm1277, %v3186, 0
        %3240 = vmatpush.msra.mxu0 0.0
        %3241 = vmatpush.msra.mxu0 0.0
        %3242 = vmatpush.msra.mxu0 0.0
        %3243 = vmatpush.msra.mxu0 0.0
        %3244 = vmatpush.msra.mxu0 0.0
        %3245 = vmatpush.msra.mxu0 0.0
        %3246 = vmatpush.msra.mxu0 0.0
        %3247 = vmatpush.msra.mxu0 0.0
        %3248 = vmatpush.msra.mxu0 0.0
        %3249 = vmatpush.msra.mxu0 0.0
        %3250 = vmatpush.msra.mxu0 0.0
        %3251 = vmatpush.msra.mxu0 0.0
        %3252 = vmatpush.msra.mxu0 %v3190
        %3253 = vmatpush.msra.mxu0 %v3189
        %3254 = vmatpush.msra.mxu0 %v3188
        %3255 = vmatpush.msra.mxu0 %v3187
        %3256 = vmatmul.f32.gmra.mxu0 %v3232
        %v3257 = vpop.f32.mrf.mxu0
        %v3258 = vadd.f32 %v3223, %v3257
        %3259 = vmatmul.f32.gmra.mxu0 %v3235
        %v3260 = vpop.f32.mrf.mxu0
        %v3261 = vadd.f32 %v3226, %v3260
        %3262 = vmatmul.f32.gmra.mxu0 %v3238
        %v3263 = vpop.f32.mrf.mxu0
        %v3264 = vadd.f32 %v3229, %v3263
        %3265 = vdwg.mxu0
        %v3266 = vld [vmem:[%s3179] sm:$0xff]
        %v3267 = vld [vmem:[%s3179 + $0x8] sm:$0xff]
        %v3268 = vld [vmem:[%s3179 + $0x10] sm:$0xf]
        %s3269 = scalar_lea.vmem %s19, 32
        %v3270 = vld [vmem:[%s3269] sm:$0xff]
        %v3271 = vld [vmem:[%s3269 + $0x8] sm:$0xff]
        %v3272 = vld [vmem:[%s3269 + $0x10] sm:$0xff]
        %v3273 = vld [vmem:[%s3269 + $0x18] sm:$0xff]
        %v3275 = vsel %vm1277, %v3266, 0
        %v3278 = vsel %vm1277, %v3267, 0
        %v3281 = vsel %vm1277, %v3268, 0
        %3283 = vmatpush.msra.mxu0 0.0
        %3284 = vmatpush.msra.mxu0 0.0
        %3285 = vmatpush.msra.mxu0 0.0
        %3286 = vmatpush.msra.mxu0 0.0
        %3287 = vmatpush.msra.mxu0 0.0
        %3288 = vmatpush.msra.mxu0 0.0
        %3289 = vmatpush.msra.mxu0 0.0
        %3290 = vmatpush.msra.mxu0 0.0
        %3291 = vmatpush.msra.mxu0 0.0
        %3292 = vmatpush.msra.mxu0 0.0
        %3293 = vmatpush.msra.mxu0 0.0
        %3294 = vmatpush.msra.mxu0 0.0
        %3295 = vmatpush.msra.mxu0 %v3273
        %3296 = vmatpush.msra.mxu0 %v3272
        %3297 = vmatpush.msra.mxu0 %v3271
        %3298 = vmatpush.msra.mxu0 %v3270
        %3299 = vmatmul.f32.gmra.mxu0 %v3275
        %v3300 = vpop.f32.mrf.mxu0
        %v3301 = vadd.f32 0.0, %v3300
        %3302 = vmatmul.f32.gmra.mxu0 %v3278
        %v3303 = vpop.f32.mrf.mxu0
        %v3304 = vadd.f32 0.0, %v3303
        %3305 = vmatmul.f32.gmra.mxu0 %v3281
        %v3306 = vpop.f32.mrf.mxu0
        %v3307 = vadd.f32 0.0, %v3306
        %3308 = vdwg.mxu0
        %v3309 = vadd.f32 %v3258, %v3301
        %v3310 = vadd.f32 %v3261, %v3304
        %v3311 = vadd.f32 %v3264, %v3307
        %v3312 = vld [vmem:[%s3179 + $0x1] sm:$0xff]
        %v3313 = vld [vmem:[%s3179 + $0x9] sm:$0xff]
        %v3314 = vld [vmem:[%s3179 + $0x11] sm:$0xf]
        %s3315 = scalar_lea.vmem %s21, 16
        %v3316 = vld [vmem:[%s3315] sm:$0xff]
        %v3317 = vld [vmem:[%s3315 + $0x8] sm:$0xff]
        %v3319 = vsel %vm1205, %v3312, 0
        %v3322 = vsel %vm1205, %v3313, 0
        %v3325 = vsel %vm1205, %v3314, 0
        %3327 = vmatpush.msra.mxu0 0.0
        %3328 = vmatpush.msra.mxu0 0.0
        %3329 = vmatpush.msra.mxu0 0.0
        %3330 = vmatpush.msra.mxu0 0.0
        %3331 = vmatpush.msra.mxu0 0.0
        %3332 = vmatpush.msra.mxu0 0.0
        %3333 = vmatpush.msra.mxu0 0.0
        %3334 = vmatpush.msra.mxu0 0.0
        %3335 = vmatpush.msra.mxu0 0.0
        %3336 = vmatpush.msra.mxu0 0.0
        %3337 = vmatpush.msra.mxu0 0.0
        %3338 = vmatpush.msra.mxu0 0.0
        %3339 = vmatpush.msra.mxu0 0.0
        %3340 = vmatpush.msra.mxu0 0.0
        %3341 = vmatpush.msra.mxu0 %v3317
        %3342 = vmatpush.msra.mxu0 %v3316
        %3343 = vmatmul.f32.gmra.mxu0 %v3319
        %v3344 = vpop.f32.mrf.mxu0
        %v3345 = vadd.f32 0.0, %v3344
        %3346 = vmatmul.f32.gmra.mxu0 %v3322
        %v3347 = vpop.f32.mrf.mxu0
        %v3348 = vadd.f32 0.0, %v3347
        %3349 = vmatmul.f32.gmra.mxu0 %v3325
        %v3350 = vpop.f32.mrf.mxu0
        %v3351 = vadd.f32 0.0, %v3350
        %3352 = vdwg.mxu0
        %v3353 = vadd.f32 %v3309, %v3345
        %v3354 = vadd.f32 %v3310, %v3348
        %v3355 = vadd.f32 %v3311, %v3351
        %v3356 = vld [vmem:[#allocation6 + $0x5] sm:$0xff]
        %v3357 = vld [vmem:[#allocation6 + $0xd] sm:$0xff]
        %v3358 = vld [vmem:[#allocation6 + $0x15] sm:$0xf]
        %s3359 = scalar_lea.vmem %s19, 64
        %v3360 = vld [vmem:[%s3359] sm:$0xff]
        %v3361 = vld [vmem:[%s3359 + $0x8] sm:$0xff]
        %v3362 = vld [vmem:[%s3359 + $0x10] sm:$0xff]
        %v3363 = vld [vmem:[%s3359 + $0x18] sm:$0xff]
        %v3365 = vsel %vm1277, %v3356, 0
        %v3368 = vsel %vm1277, %v3357, 0
        %v3371 = vsel %vm1277, %v3358, 0
        %3373 = vmatpush.msra.mxu0 0.0
        %3374 = vmatpush.msra.mxu0 0.0
        %3375 = vmatpush.msra.mxu0 0.0
        %3376 = vmatpush.msra.mxu0 0.0
        %3377 = vmatpush.msra.mxu0 0.0
        %3378 = vmatpush.msra.mxu0 0.0
        %3379 = vmatpush.msra.mxu0 0.0
        %3380 = vmatpush.msra.mxu0 0.0
        %3381 = vmatpush.msra.mxu0 0.0
        %3382 = vmatpush.msra.mxu0 0.0
        %3383 = vmatpush.msra.mxu0 0.0
        %3384 = vmatpush.msra.mxu0 0.0
        %3385 = vmatpush.msra.mxu0 %v3363
        %3386 = vmatpush.msra.mxu0 %v3362
        %3387 = vmatpush.msra.mxu0 %v3361
        %3388 = vmatpush.msra.mxu0 %v3360
        %3389 = vmatmul.f32.gmra.mxu0 %v3365
        %v3390 = vpop.f32.mrf.mxu0
        %v3391 = vadd.f32 0.0, %v3390
        %3392 = vmatmul.f32.gmra.mxu0 %v3368
        %v3393 = vpop.f32.mrf.mxu0
        %v3394 = vadd.f32 0.0, %v3393
        %3395 = vmatmul.f32.gmra.mxu0 %v3371
        %v3396 = vpop.f32.mrf.mxu0
        %v3397 = vadd.f32 0.0, %v3396
        %3398 = vdwg.mxu0
        %v3399 = vadd.f32 %v3353, %v3391
        %v3400 = vadd.f32 %v3354, %v3394
        %v3401 = vadd.f32 %v3355, %v3397
        %v3402 = vld [vmem:[#allocation6 + $0x6] sm:$0xff]
        %v3403 = vld [vmem:[#allocation6 + $0xe] sm:$0xff]
        %v3404 = vld [vmem:[#allocation6 + $0x16] sm:$0xf]
        %s3405 = scalar_lea.vmem %s21, 32
        %v3406 = vld [vmem:[%s3405] sm:$0xff]
        %v3407 = vld [vmem:[%s3405 + $0x8] sm:$0xff]
        %v3409 = vsel %vm1205, %v3402, 0
        %v3412 = vsel %vm1205, %v3403, 0
        %v3415 = vsel %vm1205, %v3404, 0
        %3417 = vmatpush.msra.mxu0 0.0
        %3418 = vmatpush.msra.mxu0 0.0
        %3419 = vmatpush.msra.mxu0 0.0
        %3420 = vmatpush.msra.mxu0 0.0
        %3421 = vmatpush.msra.mxu0 0.0
        %3422 = vmatpush.msra.mxu0 0.0
        %3423 = vmatpush.msra.mxu0 0.0
        %3424 = vmatpush.msra.mxu0 0.0
        %3425 = vmatpush.msra.mxu0 0.0
        %3426 = vmatpush.msra.mxu0 0.0
        %3427 = vmatpush.msra.mxu0 0.0
        %3428 = vmatpush.msra.mxu0 0.0
        %3429 = vmatpush.msra.mxu0 0.0
        %3430 = vmatpush.msra.mxu0 0.0
        %3431 = vmatpush.msra.mxu0 %v3407
        %3432 = vmatpush.msra.mxu0 %v3406
        %3433 = vmatmul.f32.gmra.mxu0 %v3409
        %v3434 = vpop.f32.mrf.mxu0
        %v3435 = vadd.f32 0.0, %v3434
        %3436 = vmatmul.f32.gmra.mxu0 %v3412
        %v3437 = vpop.f32.mrf.mxu0
        %v3438 = vadd.f32 0.0, %v3437
        %3439 = vmatmul.f32.gmra.mxu0 %v3415
        %v3440 = vpop.f32.mrf.mxu0
        %v3441 = vadd.f32 0.0, %v3440
        %3442 = vdwg.mxu0
        %v3443 = vadd.f32 %v3399, %v3435
        %v3444 = vadd.f32 %v3400, %v3438
        %v3445 = vadd.f32 %v3401, %v3441
        %vm3446 = vcmp.eq.s32.totalorder %v1723, 4
        %vm3447 = vcmp.eq.s32.totalorder %v1724, 4
        %vm3448 = vcmp.eq.s32.totalorder %v1725, 4
        %v3449 = vsel %vm3446, 0.0, 1.0
        %v3450 = vsel %vm3447, 0.0, 1.0
        %v3451 = vsel %vm3448, 0.0, 1.0
        %vm3452 = vcmp.eq.s32.totalorder %v1723, 9
        %vm3453 = vcmp.eq.s32.totalorder %v1724, 9
        %vm3454 = vcmp.eq.s32.totalorder %v1725, 9
        %v3455 = vsel %vm3452, 0.0, %v3449
        %v3456 = vsel %vm3453, 0.0, %v3450
        %v3457 = vsel %vm3454, 0.0, %v3451
        %vm3458 = vcmp.eq.s32.totalorder %v1723, 14
        %vm3459 = vcmp.eq.s32.totalorder %v1724, 14
        %vm3460 = vcmp.eq.s32.totalorder %v1725, 14
        %v3461 = vsel %vm3458, 0.0, %v3455
        %v3462 = vsel %vm3459, 0.0, %v3456
        %v3463 = vsel %vm3460, 0.0, %v3457
        %vm3464 = vcmp.eq.s32.totalorder %v1723, 19
        %vm3465 = vcmp.eq.s32.totalorder %v1724, 19
        %vm3466 = vcmp.eq.s32.totalorder %v1725, 19
        %v3467 = vsel %vm3464, 0.0, %v3461
        %v3468 = vsel %vm3465, 0.0, %v3462
        %v3469 = vsel %vm3466, 0.0, %v3463
        %v3470 = vld [vmem:[%s23] sm:$0x1]
        %v3472 = vperm.slane %v3470, 0
        %v3474 = vadd.f32 %v3443, %v3472
        %v3475 = vadd.f32 %v3444, %v3472
        %v3476 = vadd.f32 %v3445, %v3472
        %v3477 = vmax.f32 %v3474, 0.0
        %v3478 = vmax.f32 %v3475, 0.0
        %v3479 = vmax.f32 %v3476, 0.0
        %v3480 = vmul.f32 %v3477, %v3467
        %v3481 = vmul.f32 %v3478, %v3468
        %v3482 = vmul.f32 %v3479, %v3469
        %vm3483 = vcmask 521216
        %3484 = vst.msk [vmem:[#allocation3] sm:$0x3f] %vm3483, 0.0
        %vm3485 = vcmask 523264
        %3486 = vst.msk [vmem:[#allocation3 + $0x1a] sm:$0xff] %vm3485, 0.0
        %vm3487 = vcmask 516096
        %3488 = vst.msk [vmem:[#allocation3 + $0x22] sm:$0x1] %vm3487, 0.0
        %3489 = vst.msk [vmem:[#allocation3 + $0x6] sm:$0xff] %vm3485, %v3480
        %3490 = vst.msk [vmem:[#allocation3 + $0xe] sm:$0xff] %vm3485, %v3481
        %vm3491 = vcmask 519168
        %3492 = vst.msk [vmem:[#allocation3 + $0x16] sm:$0xf] %vm3491, %v3482
        %v3493 = vld [vmem:[#allocation3] sm:$0xff]
        %v3494 = vld [vmem:[#allocation3 + $0x8] sm:$0xff]
        %v3495 = vld [vmem:[#allocation3 + $0x10] sm:$0xf]
        %v3496 = vld [vmem:[%s25] sm:$0xff]
        %v3497 = vld [vmem:[%s25 + $0x8] sm:$0xff]
        %v3498 = vld [vmem:[%s25 + $0x10] sm:$0xff]
        %v3499 = vld [vmem:[%s25 + $0x18] sm:$0xff]
        %v3500 = vld [vmem:[%s25 + $0x20] sm:$0xff]
        %v3501 = vld [vmem:[%s25 + $0x28] sm:$0xff]
        %v3502 = vld [vmem:[%s25 + $0x30] sm:$0xff]
        %v3503 = vld [vmem:[%s25 + $0x38] sm:$0xff]
        %v3504 = vld [vmem:[#allocation3 + $0x1] sm:$0xff]
        %v3505 = vld [vmem:[#allocation3 + $0x9] sm:$0xff]
        %v3506 = vld [vmem:[#allocation3 + $0x11] sm:$0xf]
        %s3507 = scalar_lea.vmem %s25, 64
        %v3508 = vld [vmem:[%s3507] sm:$0xff]
        %v3509 = vld [vmem:[%s3507 + $0x8] sm:$0xff]
        %v3510 = vld [vmem:[%s3507 + $0x10] sm:$0xff]
        %v3511 = vld [vmem:[%s3507 + $0x18] sm:$0xff]
        %v3512 = vld [vmem:[%s3507 + $0x20] sm:$0xff]
        %v3513 = vld [vmem:[%s3507 + $0x28] sm:$0xff]
        %v3514 = vld [vmem:[%s3507 + $0x30] sm:$0xff]
        %v3515 = vld [vmem:[%s3507 + $0x38] sm:$0xff]
        %v3517 = vsel %vm3485, %v3504, 0
        %v3520 = vsel %vm3485, %v3505, 0
        %v3523 = vsel %vm3485, %v3506, 0
        %3525 = vmatpush.msra.mxu0 0.0
        %3526 = vmatpush.msra.mxu0 0.0
        %3527 = vmatpush.msra.mxu0 0.0
        %3528 = vmatpush.msra.mxu0 0.0
        %3529 = vmatpush.msra.mxu0 0.0
        %3530 = vmatpush.msra.mxu0 0.0
        %3531 = vmatpush.msra.mxu0 0.0
        %3532 = vmatpush.msra.mxu0 0.0
        %3533 = vmatpush.msra.mxu0 %v3515
        %3534 = vmatpush.msra.mxu0 %v3514
        %3535 = vmatpush.msra.mxu0 %v3513
        %3536 = vmatpush.msra.mxu0 %v3512
        %3537 = vmatpush.msra.mxu0 %v3511
        %3538 = vmatpush.msra.mxu0 %v3510
        %3539 = vmatpush.msra.mxu0 %v3509
        %3540 = vmatpush.msra.mxu0 %v3508
        %3541 = vmatmul.f32.gmra.mxu0 %v3517
        %v3542 = vpop.f32.mrf.mxu0
        %v3543 = vadd.f32 0.0, %v3542
        %3544 = vmatmul.f32.gmra.mxu0 %v3520
        %v3545 = vpop.f32.mrf.mxu0
        %v3546 = vadd.f32 0.0, %v3545
        %3547 = vmatmul.f32.gmra.mxu0 %v3523
        %v3548 = vpop.f32.mrf.mxu0
        %v3549 = vadd.f32 0.0, %v3548
        %3550 = vdwg.mxu0
        %v3552 = vsel %vm3485, %v3493, 0
        %v3555 = vsel %vm3485, %v3494, 0
        %v3558 = vsel %vm3485, %v3495, 0
        %3560 = vmatpush.msra.mxu0 0.0
        %3561 = vmatpush.msra.mxu0 0.0
        %3562 = vmatpush.msra.mxu0 0.0
        %3563 = vmatpush.msra.mxu0 0.0
        %3564 = vmatpush.msra.mxu0 0.0
        %3565 = vmatpush.msra.mxu0 0.0
        %3566 = vmatpush.msra.mxu0 0.0
        %3567 = vmatpush.msra.mxu0 0.0
        %3568 = vmatpush.msra.mxu0 %v3503
        %3569 = vmatpush.msra.mxu0 %v3502
        %3570 = vmatpush.msra.mxu0 %v3501
        %3571 = vmatpush.msra.mxu0 %v3500
        %3572 = vmatpush.msra.mxu0 %v3499
        %3573 = vmatpush.msra.mxu0 %v3498
        %3574 = vmatpush.msra.mxu0 %v3497
        %3575 = vmatpush.msra.mxu0 %v3496
        %3576 = vmatmul.f32.gmra.mxu0 %v3552
        %v3577 = vpop.f32.mrf.mxu0
        %v3578 = vadd.f32 %v3543, %v3577
        %3579 = vmatmul.f32.gmra.mxu0 %v3555
        %v3580 = vpop.f32.mrf.mxu0
        %v3581 = vadd.f32 %v3546, %v3580
        %3582 = vmatmul.f32.gmra.mxu0 %v3558
        %v3583 = vpop.f32.mrf.mxu0
        %v3584 = vadd.f32 %v3549, %v3583
        %3585 = vdwg.mxu0
        %v3586 = vld [vmem:[#allocation3 + $0x2] sm:$0xff]
        %v3587 = vld [vmem:[#allocation3 + $0xa] sm:$0xff]
        %v3588 = vld [vmem:[#allocation3 + $0x12] sm:$0xf]
        %s3589 = scalar_lea.vmem %s25, 128
        %v3590 = vld [vmem:[%s3589] sm:$0xff]
        %v3591 = vld [vmem:[%s3589 + $0x8] sm:$0xff]
        %v3592 = vld [vmem:[%s3589 + $0x10] sm:$0xff]
        %v3593 = vld [vmem:[%s3589 + $0x18] sm:$0xff]
        %v3594 = vld [vmem:[%s3589 + $0x20] sm:$0xff]
        %v3595 = vld [vmem:[%s3589 + $0x28] sm:$0xff]
        %v3596 = vld [vmem:[%s3589 + $0x30] sm:$0xff]
        %v3597 = vld [vmem:[%s3589 + $0x38] sm:$0xff]
        %v3599 = vsel %vm3485, %v3586, 0
        %v3602 = vsel %vm3485, %v3587, 0
        %v3605 = vsel %vm3485, %v3588, 0
        %3607 = vmatpush.msra.mxu0 0.0
        %3608 = vmatpush.msra.mxu0 0.0
        %3609 = vmatpush.msra.mxu0 0.0
        %3610 = vmatpush.msra.mxu0 0.0
        %3611 = vmatpush.msra.mxu0 0.0
        %3612 = vmatpush.msra.mxu0 0.0
        %3613 = vmatpush.msra.mxu0 0.0
        %3614 = vmatpush.msra.mxu0 0.0
        %3615 = vmatpush.msra.mxu0 %v3597
        %3616 = vmatpush.msra.mxu0 %v3596
        %3617 = vmatpush.msra.mxu0 %v3595
        %3618 = vmatpush.msra.mxu0 %v3594
        %3619 = vmatpush.msra.mxu0 %v3593
        %3620 = vmatpush.msra.mxu0 %v3592
        %3621 = vmatpush.msra.mxu0 %v3591
        %3622 = vmatpush.msra.mxu0 %v3590
        %3623 = vmatmul.f32.gmra.mxu0 %v3599
        %v3624 = vpop.f32.mrf.mxu0
        %v3625 = vadd.f32 0.0, %v3624
        %3626 = vmatmul.f32.gmra.mxu0 %v3602
        %v3627 = vpop.f32.mrf.mxu0
        %v3628 = vadd.f32 0.0, %v3627
        %3629 = vmatmul.f32.gmra.mxu0 %v3605
        %v3630 = vpop.f32.mrf.mxu0
        %v3631 = vadd.f32 0.0, %v3630
        %3632 = vdwg.mxu0
        %v3633 = vadd.f32 %v3578, %v3625
        %v3634 = vadd.f32 %v3581, %v3628
        %v3635 = vadd.f32 %v3584, %v3631
        %v3636 = vld [vmem:[#allocation3 + $0x5] sm:$0xff]
        %v3637 = vld [vmem:[#allocation3 + $0xd] sm:$0xff]
        %v3638 = vld [vmem:[#allocation3 + $0x15] sm:$0xf]
        %s3639 = scalar_lea.vmem %s25, 192
        %v3640 = vld [vmem:[%s3639] sm:$0xff]
        %v3641 = vld [vmem:[%s3639 + $0x8] sm:$0xff]
        %v3642 = vld [vmem:[%s3639 + $0x10] sm:$0xff]
        %v3643 = vld [vmem:[%s3639 + $0x18] sm:$0xff]
        %v3644 = vld [vmem:[%s3639 + $0x20] sm:$0xff]
        %v3645 = vld [vmem:[%s3639 + $0x28] sm:$0xff]
        %v3646 = vld [vmem:[%s3639 + $0x30] sm:$0xff]
        %v3647 = vld [vmem:[%s3639 + $0x38] sm:$0xff]
        %v3649 = vsel %vm3485, %v3636, 0
        %v3652 = vsel %vm3485, %v3637, 0
        %v3655 = vsel %vm3485, %v3638, 0
        %3657 = vmatpush.msra.mxu0 0.0
        %3658 = vmatpush.msra.mxu0 0.0
        %3659 = vmatpush.msra.mxu0 0.0
        %3660 = vmatpush.msra.mxu0 0.0
        %3661 = vmatpush.msra.mxu0 0.0
        %3662 = vmatpush.msra.mxu0 0.0
        %3663 = vmatpush.msra.mxu0 0.0
        %3664 = vmatpush.msra.mxu0 0.0
        %3665 = vmatpush.msra.mxu0 %v3647
        %3666 = vmatpush.msra.mxu0 %v3646
        %3667 = vmatpush.msra.mxu0 %v3645
        %3668 = vmatpush.msra.mxu0 %v3644
        %3669 = vmatpush.msra.mxu0 %v3643
        %3670 = vmatpush.msra.mxu0 %v3642
        %3671 = vmatpush.msra.mxu0 %v3641
        %3672 = vmatpush.msra.mxu0 %v3640
        %3673 = vmatmul.f32.gmra.mxu0 %v3649
        %v3674 = vpop.f32.mrf.mxu0
        %v3675 = vadd.f32 0.0, %v3674
        %3676 = vmatmul.f32.gmra.mxu0 %v3652
        %v3677 = vpop.f32.mrf.mxu0
        %v3678 = vadd.f32 0.0, %v3677
        %3679 = vmatmul.f32.gmra.mxu0 %v3655
        %v3680 = vpop.f32.mrf.mxu0
        %v3681 = vadd.f32 0.0, %v3680
        %3682 = vdwg.mxu0
        %v3683 = vadd.f32 %v3633, %v3675
        %v3684 = vadd.f32 %v3634, %v3678
        %v3685 = vadd.f32 %v3635, %v3681
        %v3686 = vld [vmem:[#allocation3 + $0x6] sm:$0xff]
        %v3687 = vld [vmem:[#allocation3 + $0xe] sm:$0xff]
        %v3688 = vld [vmem:[#allocation3 + $0x16] sm:$0xf]
        %s3689 = scalar_lea.vmem %s25, 256
        %v3690 = vld [vmem:[%s3689] sm:$0xff]
        %v3691 = vld [vmem:[%s3689 + $0x8] sm:$0xff]
        %v3692 = vld [vmem:[%s3689 + $0x10] sm:$0xff]
        %v3693 = vld [vmem:[%s3689 + $0x18] sm:$0xff]
        %v3694 = vld [vmem:[%s3689 + $0x20] sm:$0xff]
        %v3695 = vld [vmem:[%s3689 + $0x28] sm:$0xff]
        %v3696 = vld [vmem:[%s3689 + $0x30] sm:$0xff]
        %v3697 = vld [vmem:[%s3689 + $0x38] sm:$0xff]
        %v3699 = vsel %vm3485, %v3686, 0
        %v3702 = vsel %vm3485, %v3687, 0
        %v3705 = vsel %vm3485, %v3688, 0
        %3707 = vmatpush.msra.mxu0 0.0
        %3708 = vmatpush.msra.mxu0 0.0
        %3709 = vmatpush.msra.mxu0 0.0
        %3710 = vmatpush.msra.mxu0 0.0
        %3711 = vmatpush.msra.mxu0 0.0
        %3712 = vmatpush.msra.mxu0 0.0
        %3713 = vmatpush.msra.mxu0 0.0
        %3714 = vmatpush.msra.mxu0 0.0
        %3715 = vmatpush.msra.mxu0 %v3697
        %3716 = vmatpush.msra.mxu0 %v3696
        %3717 = vmatpush.msra.mxu0 %v3695
        %3718 = vmatpush.msra.mxu0 %v3694
        %3719 = vmatpush.msra.mxu0 %v3693
        %3720 = vmatpush.msra.mxu0 %v3692
        %3721 = vmatpush.msra.mxu0 %v3691
        %3722 = vmatpush.msra.mxu0 %v3690
        %3723 = vmatmul.f32.gmra.mxu0 %v3699
        %v3724 = vpop.f32.mrf.mxu0
        %v3725 = vadd.f32 0.0, %v3724
        %3726 = vmatmul.f32.gmra.mxu0 %v3702
        %v3727 = vpop.f32.mrf.mxu0
        %v3728 = vadd.f32 0.0, %v3727
        %3729 = vmatmul.f32.gmra.mxu0 %v3705
        %v3730 = vpop.f32.mrf.mxu0
        %v3731 = vadd.f32 0.0, %v3730
        %3732 = vdwg.mxu0
        %v3733 = vadd.f32 %v3683, %v3725
        %v3734 = vadd.f32 %v3684, %v3728
        %v3735 = vadd.f32 %v3685, %v3731
        %v3736 = vld [vmem:[#allocation3 + $0x7] sm:$0xff]
        %v3737 = vld [vmem:[#allocation3 + $0xf] sm:$0xff]
        %v3738 = vld [vmem:[#allocation3 + $0x17] sm:$0xf]
        %s3739 = scalar_lea.vmem %s25, 320
        %v3740 = vld [vmem:[%s3739] sm:$0xff]
        %v3741 = vld [vmem:[%s3739 + $0x8] sm:$0xff]
        %v3742 = vld [vmem:[%s3739 + $0x10] sm:$0xff]
        %v3743 = vld [vmem:[%s3739 + $0x18] sm:$0xff]
        %v3744 = vld [vmem:[%s3739 + $0x20] sm:$0xff]
        %v3745 = vld [vmem:[%s3739 + $0x28] sm:$0xff]
        %v3746 = vld [vmem:[%s3739 + $0x30] sm:$0xff]
        %v3747 = vld [vmem:[%s3739 + $0x38] sm:$0xff]
        %v3749 = vsel %vm3485, %v3736, 0
        %v3752 = vsel %vm3485, %v3737, 0
        %v3755 = vsel %vm3485, %v3738, 0
        %3757 = vmatpush.msra.mxu0 0.0
        %3758 = vmatpush.msra.mxu0 0.0
        %3759 = vmatpush.msra.mxu0 0.0
        %3760 = vmatpush.msra.mxu0 0.0
        %3761 = vmatpush.msra.mxu0 0.0
        %3762 = vmatpush.msra.mxu0 0.0
        %3763 = vmatpush.msra.mxu0 0.0
        %3764 = vmatpush.msra.mxu0 0.0
        %3765 = vmatpush.msra.mxu0 %v3747
        %3766 = vmatpush.msra.mxu0 %v3746
        %3767 = vmatpush.msra.mxu0 %v3745
        %3768 = vmatpush.msra.mxu0 %v3744
        %3769 = vmatpush.msra.mxu0 %v3743
        %3770 = vmatpush.msra.mxu0 %v3742
        %3771 = vmatpush.msra.mxu0 %v3741
        %3772 = vmatpush.msra.mxu0 %v3740
        %3773 = vmatmul.f32.gmra.mxu0 %v3749
        %v3774 = vpop.f32.mrf.mxu0
        %v3775 = vadd.f32 0.0, %v3774
        %3776 = vmatmul.f32.gmra.mxu0 %v3752
        %v3777 = vpop.f32.mrf.mxu0
        %v3778 = vadd.f32 0.0, %v3777
        %3779 = vmatmul.f32.gmra.mxu0 %v3755
        %v3780 = vpop.f32.mrf.mxu0
        %v3781 = vadd.f32 0.0, %v3780
        %3782 = vdwg.mxu0
        %v3783 = vadd.f32 %v3733, %v3775
        %v3784 = vadd.f32 %v3734, %v3778
        %v3785 = vadd.f32 %v3735, %v3781
        %v3786 = vld [vmem:[#allocation3 + $0xa] sm:$0xff]
        %v3787 = vld [vmem:[#allocation3 + $0x12] sm:$0xff]
        %v3788 = vld [vmem:[#allocation3 + $0x1a] sm:$0xf]
        %s3789 = scalar_lea.vmem %s25, 384
        %v3790 = vld [vmem:[%s3789] sm:$0xff]
        %v3791 = vld [vmem:[%s3789 + $0x8] sm:$0xff]
        %v3792 = vld [vmem:[%s3789 + $0x10] sm:$0xff]
        %v3793 = vld [vmem:[%s3789 + $0x18] sm:$0xff]
        %v3794 = vld [vmem:[%s3789 + $0x20] sm:$0xff]
        %v3795 = vld [vmem:[%s3789 + $0x28] sm:$0xff]
        %v3796 = vld [vmem:[%s3789 + $0x30] sm:$0xff]
        %v3797 = vld [vmem:[%s3789 + $0x38] sm:$0xff]
        %v3799 = vsel %vm3485, %v3786, 0
        %v3802 = vsel %vm3485, %v3787, 0
        %v3805 = vsel %vm3485, %v3788, 0
        %3807 = vmatpush.msra.mxu0 0.0
        %3808 = vmatpush.msra.mxu0 0.0
        %3809 = vmatpush.msra.mxu0 0.0
        %3810 = vmatpush.msra.mxu0 0.0
        %3811 = vmatpush.msra.mxu0 0.0
        %3812 = vmatpush.msra.mxu0 0.0
        %3813 = vmatpush.msra.mxu0 0.0
        %3814 = vmatpush.msra.mxu0 0.0
        %3815 = vmatpush.msra.mxu0 %v3797
        %3816 = vmatpush.msra.mxu0 %v3796
        %3817 = vmatpush.msra.mxu0 %v3795
        %3818 = vmatpush.msra.mxu0 %v3794
        %3819 = vmatpush.msra.mxu0 %v3793
        %3820 = vmatpush.msra.mxu0 %v3792
        %3821 = vmatpush.msra.mxu0 %v3791
        %3822 = vmatpush.msra.mxu0 %v3790
        %3823 = vmatmul.f32.gmra.mxu0 %v3799
        %v3824 = vpop.f32.mrf.mxu0
        %v3825 = vadd.f32 0.0, %v3824
        %3826 = vmatmul.f32.gmra.mxu0 %v3802
        %v3827 = vpop.f32.mrf.mxu0
        %v3828 = vadd.f32 0.0, %v3827
        %3829 = vmatmul.f32.gmra.mxu0 %v3805
        %v3830 = vpop.f32.mrf.mxu0
        %v3831 = vadd.f32 0.0, %v3830
        %3832 = vdwg.mxu0
        %v3833 = vadd.f32 %v3783, %v3825
        %v3834 = vadd.f32 %v3784, %v3828
        %v3835 = vadd.f32 %v3785, %v3831
        %v3836 = vld [vmem:[#allocation3 + $0xb] sm:$0xff]
        %v3837 = vld [vmem:[#allocation3 + $0x13] sm:$0xff]
        %v3838 = vld [vmem:[#allocation3 + $0x1b] sm:$0xf]
        %s3839 = scalar_lea.vmem %s25, 448
        %v3840 = vld [vmem:[%s3839] sm:$0xff]
        %v3841 = vld [vmem:[%s3839 + $0x8] sm:$0xff]
        %v3842 = vld [vmem:[%s3839 + $0x10] sm:$0xff]
        %v3843 = vld [vmem:[%s3839 + $0x18] sm:$0xff]
        %v3844 = vld [vmem:[%s3839 + $0x20] sm:$0xff]
        %v3845 = vld [vmem:[%s3839 + $0x28] sm:$0xff]
        %v3846 = vld [vmem:[%s3839 + $0x30] sm:$0xff]
        %v3847 = vld [vmem:[%s3839 + $0x38] sm:$0xff]
        %v3849 = vsel %vm3485, %v3836, 0
        %v3852 = vsel %vm3485, %v3837, 0
        %v3855 = vsel %vm3485, %v3838, 0
        %3857 = vmatpush.msra.mxu0 0.0
        %3858 = vmatpush.msra.mxu0 0.0
        %3859 = vmatpush.msra.mxu0 0.0
        %3860 = vmatpush.msra.mxu0 0.0
        %3861 = vmatpush.msra.mxu0 0.0
        %3862 = vmatpush.msra.mxu0 0.0
        %3863 = vmatpush.msra.mxu0 0.0
        %3864 = vmatpush.msra.mxu0 0.0
        %3865 = vmatpush.msra.mxu0 %v3847
        %3866 = vmatpush.msra.mxu0 %v3846
        %3867 = vmatpush.msra.mxu0 %v3845
        %3868 = vmatpush.msra.mxu0 %v3844
        %3869 = vmatpush.msra.mxu0 %v3843
        %3870 = vmatpush.msra.mxu0 %v3842
        %3871 = vmatpush.msra.mxu0 %v3841
        %3872 = vmatpush.msra.mxu0 %v3840
        %3873 = vmatmul.f32.gmra.mxu0 %v3849
        %v3874 = vpop.f32.mrf.mxu0
        %v3875 = vadd.f32 0.0, %v3874
        %3876 = vmatmul.f32.gmra.mxu0 %v3852
        %v3877 = vpop.f32.mrf.mxu0
        %v3878 = vadd.f32 0.0, %v3877
        %3879 = vmatmul.f32.gmra.mxu0 %v3855
        %v3880 = vpop.f32.mrf.mxu0
        %v3881 = vadd.f32 0.0, %v3880
        %3882 = vdwg.mxu0
        %v3883 = vadd.f32 %v3833, %v3875
        %v3884 = vadd.f32 %v3834, %v3878
        %v3885 = vadd.f32 %v3835, %v3881
        %v3886 = vld [vmem:[#allocation3 + $0xc] sm:$0xff]
        %v3887 = vld [vmem:[#allocation3 + $0x14] sm:$0xff]
        %v3888 = vld [vmem:[#allocation3 + $0x1c] sm:$0xf]
        %s3889 = scalar_lea.vmem %s25, 512
        %v3890 = vld [vmem:[%s3889] sm:$0xff]
        %v3891 = vld [vmem:[%s3889 + $0x8] sm:$0xff]
        %v3892 = vld [vmem:[%s3889 + $0x10] sm:$0xff]
        %v3893 = vld [vmem:[%s3889 + $0x18] sm:$0xff]
        %v3894 = vld [vmem:[%s3889 + $0x20] sm:$0xff]
        %v3895 = vld [vmem:[%s3889 + $0x28] sm:$0xff]
        %v3896 = vld [vmem:[%s3889 + $0x30] sm:$0xff]
        %v3897 = vld [vmem:[%s3889 + $0x38] sm:$0xff]
        %v3899 = vsel %vm3485, %v3886, 0
        %v3902 = vsel %vm3485, %v3887, 0
        %v3905 = vsel %vm3485, %v3888, 0
        %3907 = vmatpush.msra.mxu0 0.0
        %3908 = vmatpush.msra.mxu0 0.0
        %3909 = vmatpush.msra.mxu0 0.0
        %3910 = vmatpush.msra.mxu0 0.0
        %3911 = vmatpush.msra.mxu0 0.0
        %3912 = vmatpush.msra.mxu0 0.0
        %3913 = vmatpush.msra.mxu0 0.0
        %3914 = vmatpush.msra.mxu0 0.0
        %3915 = vmatpush.msra.mxu0 %v3897
        %3916 = vmatpush.msra.mxu0 %v3896
        %3917 = vmatpush.msra.mxu0 %v3895
        %3918 = vmatpush.msra.mxu0 %v3894
        %3919 = vmatpush.msra.mxu0 %v3893
        %3920 = vmatpush.msra.mxu0 %v3892
        %3921 = vmatpush.msra.mxu0 %v3891
        %3922 = vmatpush.msra.mxu0 %v3890
        %3923 = vmatmul.f32.gmra.mxu0 %v3899
        %v3924 = vpop.f32.mrf.mxu0
        %v3925 = vadd.f32 0.0, %v3924
        %3926 = vmatmul.f32.gmra.mxu0 %v3902
        %v3927 = vpop.f32.mrf.mxu0
        %v3928 = vadd.f32 0.0, %v3927
        %3929 = vmatmul.f32.gmra.mxu0 %v3905
        %v3930 = vpop.f32.mrf.mxu0
        %v3931 = vadd.f32 0.0, %v3930
        %3932 = vdwg.mxu0
        %v3933 = vadd.f32 %v3883, %v3925
        %v3934 = vadd.f32 %v3884, %v3928
        %v3935 = vadd.f32 %v3885, %v3931
        %v3936 = vmul.f32 %v3933, %v3467
        %v3937 = vmul.f32 %v3934, %v3468
        %v3938 = vmul.f32 %v3935, %v3469
        %v3939 = vsel %vm3485, %v3936, 0.0
        %v3940 = vsel %vm3485, %v3937, 0.0
        %v3941 = vadd.f32 %v3939, %v3940
        %v3942 = vsel %vm3491, %v3938, 0.0
        %v3943 = vadd.f32 %v3941, %v3942
        %v3944 = vrot.slane %v3943, 4
        %v3945 = vadd.f32 %v3943, %v3944
        %v3946 = vrot.slane %v3945, 2
        %v3947 = vadd.f32 %v3945, %v3946
        %v3948 = vrot.slane %v3947, 1
        %v3949 = vadd.f32 %v3947, %v3948
        %v3950 = vmul.f32 %v3949, 0.0625
        %v3951 = vld [vmem:[%s31] sm:$0xff]
        %v3952 = vld [vmem:[%s31 + $0x8] sm:$0xff]
        %v3953 = vld [vmem:[%s31 + $0x10] sm:$0xff]
        %v3954 = vld [vmem:[%s31 + $0x18] sm:$0xff]
        %v3955 = vld [vmem:[%s31 + $0x20] sm:$0xff]
        %v3956 = vld [vmem:[%s31 + $0x28] sm:$0xff]
        %v3957 = vld [vmem:[%s31 + $0x30] sm:$0xff]
        %v3958 = vld [vmem:[%s31 + $0x38] sm:$0xff]
        %v3960 = vsel %vm3485, %v3950, 0
        %3962 = vmatpush.msra.mxu0 0.0
        %3963 = vmatpush.msra.mxu0 0.0
        %3964 = vmatpush.msra.mxu0 0.0
        %3965 = vmatpush.msra.mxu0 0.0
        %3966 = vmatpush.msra.mxu0 0.0
        %3967 = vmatpush.msra.mxu0 0.0
        %3968 = vmatpush.msra.mxu0 0.0
        %3969 = vmatpush.msra.mxu0 0.0
        %3970 = vmatpush.msra.mxu0 %v3958
        %3971 = vmatpush.msra.mxu0 %v3957
        %3972 = vmatpush.msra.mxu0 %v3956
        %3973 = vmatpush.msra.mxu0 %v3955
        %3974 = vmatpush.msra.mxu0 %v3954
        %3975 = vmatpush.msra.mxu0 %v3953
        %3976 = vmatpush.msra.mxu0 %v3952
        %3977 = vmatpush.msra.mxu0 %v3951
        %3978 = vmatmul.f32.gmra.mxu0 %v3960
        %v3979 = vpop.f32.mrf.mxu0
        %v3980 = vadd.f32 0.0, %v3979
        %3981 = vdwg.mxu0
        %v3982 = vmax.f32 %v3980, 0.0
        %v3983 = vld [vmem:[%s33] sm:$0xff]
        %v3985 = vsel %vm2792, %v3982, 0
        %3987 = vmatpush.msra.mxu0 0.0
        %3988 = vmatpush.msra.mxu0 0.0
        %3989 = vmatpush.msra.mxu0 0.0
        %3990 = vmatpush.msra.mxu0 0.0
        %3991 = vmatpush.msra.mxu0 0.0
        %3992 = vmatpush.msra.mxu0 0.0
        %3993 = vmatpush.msra.mxu0 0.0
        %3994 = vmatpush.msra.mxu0 0.0
        %3995 = vmatpush.msra.mxu0 0.0
        %3996 = vmatpush.msra.mxu0 0.0
        %3997 = vmatpush.msra.mxu0 0.0
        %3998 = vmatpush.msra.mxu0 0.0
        %3999 = vmatpush.msra.mxu0 0.0
        %4000 = vmatpush.msra.mxu0 0.0
        %4001 = vmatpush.msra.mxu0 0.0
        %4002 = vmatpush.msra.mxu0 %v3983
        %4003 = vmatmul.f32.gmra.mxu0 %v3985
        %v4004 = vpop.f32.mrf.mxu0
        %v4005 = vadd.f32 0.0, %v4004
        %4006 = vdwg.mxu0
        %v4007 = vxor.u32 %v4005, 2147483648
        %v4008 = vmul.f32 %v4007, 1.442695
        %v4009 = vpow.pop %v4008
        %v4010 = vadd.f32 %v4009, 1.0
        %v4011 = vrcp.pop %v4010
        %v4012 = vmul.f32 %v4010, %v4011
        %v4013 = vsub.f32 1.0, %v4012
        %v4014 = vmul.f32 %v4011, %v4013
        %v4015 = vadd.f32 %v4011, %v4014
        %vm4016 = vweird.f32 %v4010
        %vm4017 = vweird.f32 %v4011
        %vm4018 = vmor %vm4016, %vm4017
        %v4019 = vsel %vm4018, %v4011, %v4015
        %v4020 = vand.u32 2147483647, %v4010
        %vm4021 = vcmp.eq.f32.partialorder %v4020, 8.507059e+37
        %v4022 = vand.u32 %v4010, 2147483648
        %v4023 = vor.u32 1.1754944e-38, %v4022
        %v4024 = vsel %vm4021, %v4023, %v4019
        %v4025 = vmul.f32 1.0, %v4024
        %v4026 = vld [vmem:[%s3179] sm:$0xff]
        %v4027 = vld [vmem:[%s3179 + $0x8] sm:$0xff]
        %v4028 = vld [vmem:[%s3179 + $0x10] sm:$0xf]
        %v4029 = vld [vmem:[%s27] sm:$0xff]
        %v4030 = vld [vmem:[%s27 + $0x8] sm:$0xff]
        %v4031 = vld [vmem:[%s27 + $0x10] sm:$0xff]
        %v4032 = vld [vmem:[%s27 + $0x18] sm:$0xff]
        %v4033 = vld [vmem:[%s29] sm:$0x1]
        %v4035 = vperm.slane %v4033, 0
        %v4038 = vsel %vm1277, %v4026, 0
        %v4041 = vsel %vm1277, %v4027, 0
        %v4044 = vsel %vm1277, %v4028, 0
        %4046 = vmatpush.msra.mxu0 0.0
        %4047 = vmatpush.msra.mxu0 0.0
        %4048 = vmatpush.msra.mxu0 0.0
        %4049 = vmatpush.msra.mxu0 0.0
        %4050 = vmatpush.msra.mxu0 0.0
        %4051 = vmatpush.msra.mxu0 0.0
        %4052 = vmatpush.msra.mxu0 0.0
        %4053 = vmatpush.msra.mxu0 0.0
        %4054 = vmatpush.msra.mxu0 0.0
        %4055 = vmatpush.msra.mxu0 0.0
        %4056 = vmatpush.msra.mxu0 0.0
        %4057 = vmatpush.msra.mxu0 0.0
        %4058 = vmatpush.msra.mxu0 %v4032
        %4059 = vmatpush.msra.mxu0 %v4031
        %4060 = vmatpush.msra.mxu0 %v4030
        %4061 = vmatpush.msra.mxu0 %v4029
        %4062 = vmatmul.f32.gmra.mxu0 %v4038
        %v4063 = vpop.f32.mrf.mxu0
        %v4064 = vadd.f32 %v4035, %v4063
        %4065 = vmatmul.f32.gmra.mxu0 %v4041
        %v4066 = vpop.f32.mrf.mxu0
        %v4067 = vadd.f32 %v4035, %v4066
        %4068 = vmatmul.f32.gmra.mxu0 %v4044
        %v4069 = vpop.f32.mrf.mxu0
        %v4070 = vadd.f32 %v4035, %v4069
        %4071 = vdwg.mxu0
        %v4072 = vperm.slane %v4025, 0
        %v4073 = vmul.f32 %v3933, %v4072
        %v4074 = vmul.f32 %v3934, %v4072
        %v4075 = vmul.f32 %v3935, %v4072
        %v4076 = vadd.f32 %v4073, %v4064
        %v4077 = vadd.f32 %v4074, %v4067
        %v4078 = vadd.f32 %v4075, %v4070
        %v4079 = vmax.f32 %v4076, 0.0
        %v4080 = vmax.f32 %v4077, 0.0
        %v4081 = vmax.f32 %v4078, 0.0
        %v4082 = vld [vmem:[%s71] sm:$0xff]
        %v4083 = vld [vmem:[%s71 + $0x8] sm:$0xf]
        %vm4084 = vcmask 162816
        %v4086 = vsel %vm4084, %v4082, 0
        %v4089 = vsel %vm4084, %v4083, 0
        %vm4091 = vcmask 1043456
        %v4093 = vsel %vm4091, %v4081, 0
        %4095 = vmatpush.msra.mxu0 0.0
        %4096 = vmatpush.msra.mxu0 0.0
        %4097 = vmatpush.msra.mxu0 0.0
        %4098 = vmatpush.msra.mxu0 0.0
        %4099 = vmatpush.msra.mxu0 0.0
        %4100 = vmatpush.msra.mxu0 0.0
        %4101 = vmatpush.msra.mxu0 0.0
        %4102 = vmatpush.msra.mxu0 0.0
        %4103 = vmatpush.msra.mxu0 0.0
        %4104 = vmatpush.msra.mxu0 0.0
        %4105 = vmatpush.msra.mxu0 0.0
        %4106 = vmatpush.msra.mxu0 0.0
        %4107 = vmatpush.msra.mxu0 0.0
        %4108 = vmatpush.msra.mxu0 %v4093
        %4109 = vmatpush.msra.mxu0 %v4080
        %4110 = vmatpush.msra.mxu0 %v4079
        %4111 = vmatmul.f32.gmra.mxu0 %v4086
        %v4112 = vpop.f32.mrf.mxu0
        %v4113 = vadd.f32 0.0, %v4112
        %4114 = vmatmul.f32.gmra.mxu0 %v4089
        %v4115 = vpop.f32.mrf.mxu0
        %v4116 = vadd.f32 0.0, %v4115
        %4117 = vdwg.mxu0
        %v4118 = vld [vmem:[%s73] sm:$0xff]
        %v4119 = vld [vmem:[%s73 + $0x8] sm:$0xf]
        %v4121 = vsel %vm4084, %v4118, 0
        %v4124 = vsel %vm4084, %v4119, 0
        %4126 = vmatpush.msra.mxu0 0.0
        %4127 = vmatpush.msra.mxu0 0.0
        %4128 = vmatpush.msra.mxu0 0.0
        %4129 = vmatpush.msra.mxu0 0.0
        %4130 = vmatpush.msra.mxu0 0.0
        %4131 = vmatpush.msra.mxu0 0.0
        %4132 = vmatpush.msra.mxu0 0.0
        %4133 = vmatpush.msra.mxu0 0.0
        %4134 = vmatpush.msra.mxu0 0.0
        %4135 = vmatpush.msra.mxu0 0.0
        %4136 = vmatpush.msra.mxu0 0.0
        %4137 = vmatpush.msra.mxu0 0.0
        %4138 = vmatpush.msra.mxu0 0.0
        %4139 = vmatpush.msra.mxu0 %v4093
        %4140 = vmatpush.msra.mxu0 %v4080
        %4141 = vmatpush.msra.mxu0 %v4079
        %4142 = vmatmul.f32.gmra.mxu0 %v4121
        %v4143 = vpop.f32.mrf.mxu0
        %v4144 = vadd.f32 0.0, %v4143
        %4145 = vmatmul.f32.gmra.mxu0 %v4124
        %v4146 = vpop.f32.mrf.mxu0
        %v4147 = vadd.f32 0.0, %v4146
        %4148 = vdwg.mxu0
        %4151 = vrot.lane.b32.xlu0 %v4144, 64
        %v4152 = vpop.permute.xlu0 %4151
        %4153 = vrot.lane.b32.xlu0 %v4147, 64
        %v4154 = vpop.permute.xlu0 %4153
        %v4157 = vsel %vm3485, %v4113, %v4152
        %v4158 = vsel %vm3485, %v4116, %v4154
        %4159 = vst [vmem:[#allocation7] sm:$0xff] %v4157
        %4160 = vst [vmem:[#allocation7 + $0x8] sm:$0xf] %v4158
        %s4161 = scalar_lea.vmem %s71, 16
        %v4162 = vld [vmem:[%s4161] sm:$0xff]
        %v4163 = vld [vmem:[%s4161 + $0x8] sm:$0xf]
        %v4165 = vsel %vm4084, %v4162, 0
        %v4168 = vsel %vm4084, %v4163, 0
        %4170 = vmatpush.msra.mxu0 0.0
        %4171 = vmatpush.msra.mxu0 0.0
        %4172 = vmatpush.msra.mxu0 0.0
        %4173 = vmatpush.msra.mxu0 0.0
        %4174 = vmatpush.msra.mxu0 0.0
        %4175 = vmatpush.msra.mxu0 0.0
        %4176 = vmatpush.msra.mxu0 0.0
        %4177 = vmatpush.msra.mxu0 0.0
        %4178 = vmatpush.msra.mxu0 0.0
        %4179 = vmatpush.msra.mxu0 0.0
        %4180 = vmatpush.msra.mxu0 0.0
        %4181 = vmatpush.msra.mxu0 0.0
        %4182 = vmatpush.msra.mxu0 0.0
        %4183 = vmatpush.msra.mxu0 %v4093
        %4184 = vmatpush.msra.mxu0 %v4080
        %4185 = vmatpush.msra.mxu0 %v4079
        %4186 = vmatmul.f32.gmra.mxu0 %v4165
        %v4187 = vpop.f32.mrf.mxu0
        %v4188 = vadd.f32 0.0, %v4187
        %4189 = vmatmul.f32.gmra.mxu0 %v4168
        %v4190 = vpop.f32.mrf.mxu0
        %v4191 = vadd.f32 0.0, %v4190
        %4192 = vdwg.mxu0
        %s4193 = scalar_lea.vmem %s73, 16
        %v4194 = vld [vmem:[%s4193] sm:$0xff]
        %v4195 = vld [vmem:[%s4193 + $0x8] sm:$0xf]
        %v4197 = vsel %vm4084, %v4194, 0
        %v4200 = vsel %vm4084, %v4195, 0
        %4202 = vmatpush.msra.mxu0 0.0
        %4203 = vmatpush.msra.mxu0 0.0
        %4204 = vmatpush.msra.mxu0 0.0
        %4205 = vmatpush.msra.mxu0 0.0
        %4206 = vmatpush.msra.mxu0 0.0
        %4207 = vmatpush.msra.mxu0 0.0
        %4208 = vmatpush.msra.mxu0 0.0
        %4209 = vmatpush.msra.mxu0 0.0
        %4210 = vmatpush.msra.mxu0 0.0
        %4211 = vmatpush.msra.mxu0 0.0
        %4212 = vmatpush.msra.mxu0 0.0
        %4213 = vmatpush.msra.mxu0 0.0
        %4214 = vmatpush.msra.mxu0 0.0
        %4215 = vmatpush.msra.mxu0 %v4093
        %4216 = vmatpush.msra.mxu0 %v4080
        %4217 = vmatpush.msra.mxu0 %v4079
        %4218 = vmatmul.f32.gmra.mxu0 %v4197
        %v4219 = vpop.f32.mrf.mxu0
        %v4220 = vadd.f32 0.0, %v4219
        %4221 = vmatmul.f32.gmra.mxu0 %v4200
        %v4222 = vpop.f32.mrf.mxu0
        %v4223 = vadd.f32 0.0, %v4222
        %4224 = vdwg.mxu0
        %4227 = vrot.lane.b32.xlu0 %v4220, 64
        %v4228 = vpop.permute.xlu0 %4227
        %4229 = vrot.lane.b32.xlu0 %v4223, 64
        %v4230 = vpop.permute.xlu0 %4229
        %v4233 = vsel %vm3485, %v4188, %v4228
        %v4234 = vsel %vm3485, %v4191, %v4230
        %s4235 = scalar_lea.vmem [#allocation7], 16
        %4236 = vst [vmem:[%s4235] sm:$0xff] %v4233
        %4237 = vst [vmem:[%s4235 + $0x8] sm:$0xf] %v4234
        %v4238 = vld [vmem:[#allocation7] sm:$0x3f]
        %v4239 = vld [vmem:[%s35] sm:$0xff]
        %v4240 = vld [vmem:[%s35 + $0x8] sm:$0xff]
        %v4241 = vld [vmem:[%s35 + $0x10] sm:$0xff]
        %v4242 = vld [vmem:[%s35 + $0x18] sm:$0xff]
        %v4243 = vld [vmem:[%s35 + $0x20] sm:$0xff]
        %v4244 = vld [vmem:[%s35 + $0x28] sm:$0xff]
        %v4245 = vld [vmem:[%s35 + $0x30] sm:$0xff]
        %v4246 = vld [vmem:[%s35 + $0x38] sm:$0xff]
        %v4247 = vld [vmem:[%s35 + $0x40] sm:$0xff]
        %v4248 = vld [vmem:[%s35 + $0x48] sm:$0xff]
        %v4249 = vld [vmem:[%s35 + $0x50] sm:$0xff]
        %v4250 = vld [vmem:[%s35 + $0x58] sm:$0xff]
        %v4251 = vld [vmem:[%s35 + $0x60] sm:$0xff]
        %v4252 = vld [vmem:[%s35 + $0x68] sm:$0xff]
        %v4253 = vld [vmem:[%s35 + $0x70] sm:$0xff]
        %v4254 = vld [vmem:[%s35 + $0x78] sm:$0xff]
        %v4255 = vld [vmem:[#allocation7 + $0x1] sm:$0x3f]
        %v4256 = vld [vmem:[%s37] sm:$0xff]
        %v4257 = vld [vmem:[%s37 + $0x8] sm:$0xff]
        %v4258 = vld [vmem:[%s37 + $0x10] sm:$0xff]
        %v4259 = vld [vmem:[%s37 + $0x18] sm:$0xff]
        %v4260 = vld [vmem:[%s37 + $0x20] sm:$0xff]
        %v4261 = vld [vmem:[%s37 + $0x28] sm:$0xff]
        %v4262 = vld [vmem:[%s37 + $0x30] sm:$0xff]
        %v4263 = vld [vmem:[%s37 + $0x38] sm:$0xff]
        %v4265 = vsel %vm3485, %v4255, 0
        %4267 = vmatpush.msra.mxu0 0.0
        %4268 = vmatpush.msra.mxu0 0.0
        %4269 = vmatpush.msra.mxu0 0.0
        %4270 = vmatpush.msra.mxu0 0.0
        %4271 = vmatpush.msra.mxu0 0.0
        %4272 = vmatpush.msra.mxu0 0.0
        %4273 = vmatpush.msra.mxu0 0.0
        %4274 = vmatpush.msra.mxu0 0.0
        %4275 = vmatpush.msra.mxu0 %v4263
        %4276 = vmatpush.msra.mxu0 %v4262
        %4277 = vmatpush.msra.mxu0 %v4261
        %4278 = vmatpush.msra.mxu0 %v4260
        %4279 = vmatpush.msra.mxu0 %v4259
        %4280 = vmatpush.msra.mxu0 %v4258
        %4281 = vmatpush.msra.mxu0 %v4257
        %4282 = vmatpush.msra.mxu0 %v4256
        %4283 = vmatmul.f32.gmra.mxu0 %v4265
        %v4284 = vpop.f32.mrf.mxu0
        %v4285 = vadd.f32 0.0, %v4284
        %4286 = vdwg.mxu0
        %4287 = vmatpush.msra.mxu0 %v4254
        %4288 = vmatpush.msra.mxu0 %v4253
        %4289 = vmatpush.msra.mxu0 %v4252
        %4290 = vmatpush.msra.mxu0 %v4251
        %4291 = vmatpush.msra.mxu0 %v4250
        %4292 = vmatpush.msra.mxu0 %v4249
        %4293 = vmatpush.msra.mxu0 %v4248
        %4294 = vmatpush.msra.mxu0 %v4247
        %4295 = vmatpush.msra.mxu0 %v4246
        %4296 = vmatpush.msra.mxu0 %v4245
        %4297 = vmatpush.msra.mxu0 %v4244
        %4298 = vmatpush.msra.mxu0 %v4243
        %4299 = vmatpush.msra.mxu0 %v4242
        %4300 = vmatpush.msra.mxu0 %v4241
        %4301 = vmatpush.msra.mxu0 %v4240
        %4302 = vmatpush.msra.mxu0 %v4239
        %4303 = vmatmul.f32.gmra.mxu0 %v4238
        %v4304 = vpop.f32.mrf.mxu0
        %v4305 = vadd.f32 %v4285, %v4304
        %4306 = vdwg.mxu0
        %v4307 = vld [vmem:[%s4235] sm:$0x3f]
        %s4308 = scalar_lea.vmem %s35, 128
        %v4309 = vld [vmem:[%s4308] sm:$0xff]
        %v4310 = vld [vmem:[%s4308 + $0x8] sm:$0xff]
        %v4311 = vld [vmem:[%s4308 + $0x10] sm:$0xff]
        %v4312 = vld [vmem:[%s4308 + $0x18] sm:$0xff]
        %v4313 = vld [vmem:[%s4308 + $0x20] sm:$0xff]
        %v4314 = vld [vmem:[%s4308 + $0x28] sm:$0xff]
        %v4315 = vld [vmem:[%s4308 + $0x30] sm:$0xff]
        %v4316 = vld [vmem:[%s4308 + $0x38] sm:$0xff]
        %v4317 = vld [vmem:[%s4308 + $0x40] sm:$0xff]
        %v4318 = vld [vmem:[%s4308 + $0x48] sm:$0xff]
        %v4319 = vld [vmem:[%s4308 + $0x50] sm:$0xff]
        %v4320 = vld [vmem:[%s4308 + $0x58] sm:$0xff]
        %v4321 = vld [vmem:[%s4308 + $0x60] sm:$0xff]
        %v4322 = vld [vmem:[%s4308 + $0x68] sm:$0xff]
        %v4323 = vld [vmem:[%s4308 + $0x70] sm:$0xff]
        %v4324 = vld [vmem:[%s4308 + $0x78] sm:$0xff]
        %4325 = vmatpush.msra.mxu0 %v4324
        %4326 = vmatpush.msra.mxu0 %v4323
        %4327 = vmatpush.msra.mxu0 %v4322
        %4328 = vmatpush.msra.mxu0 %v4321
        %4329 = vmatpush.msra.mxu0 %v4320
        %4330 = vmatpush.msra.mxu0 %v4319
        %4331 = vmatpush.msra.mxu0 %v4318
        %4332 = vmatpush.msra.mxu0 %v4317
        %4333 = vmatpush.msra.mxu0 %v4316
        %4334 = vmatpush.msra.mxu0 %v4315
        %4335 = vmatpush.msra.mxu0 %v4314
        %4336 = vmatpush.msra.mxu0 %v4313
        %4337 = vmatpush.msra.mxu0 %v4312
        %4338 = vmatpush.msra.mxu0 %v4311
        %4339 = vmatpush.msra.mxu0 %v4310
        %4340 = vmatpush.msra.mxu0 %v4309
        %4341 = vmatmul.f32.gmra.mxu0 %v4307
        %v4342 = vpop.f32.mrf.mxu0
        %v4343 = vadd.f32 0.0, %v4342
        %4344 = vdwg.mxu0
        %v4345 = vadd.f32 %v4305, %v4343
        %v4346 = vld [vmem:[%s4235 + $0x1] sm:$0x3f]
        %s4347 = scalar_lea.vmem %s37, 64
        %v4348 = vld [vmem:[%s4347] sm:$0xff]
        %v4349 = vld [vmem:[%s4347 + $0x8] sm:$0xff]
        %v4350 = vld [vmem:[%s4347 + $0x10] sm:$0xff]
        %v4351 = vld [vmem:[%s4347 + $0x18] sm:$0xff]
        %v4352 = vld [vmem:[%s4347 + $0x20] sm:$0xff]
        %v4353 = vld [vmem:[%s4347 + $0x28] sm:$0xff]
        %v4354 = vld [vmem:[%s4347 + $0x30] sm:$0xff]
        %v4355 = vld [vmem:[%s4347 + $0x38] sm:$0xff]
        %v4357 = vsel %vm3485, %v4346, 0
        %4359 = vmatpush.msra.mxu0 0.0
        %4360 = vmatpush.msra.mxu0 0.0
        %4361 = vmatpush.msra.mxu0 0.0
        %4362 = vmatpush.msra.mxu0 0.0
        %4363 = vmatpush.msra.mxu0 0.0
        %4364 = vmatpush.msra.mxu0 0.0
        %4365 = vmatpush.msra.mxu0 0.0
        %4366 = vmatpush.msra.mxu0 0.0
        %4367 = vmatpush.msra.mxu0 %v4355
        %4368 = vmatpush.msra.mxu0 %v4354
        %4369 = vmatpush.msra.mxu0 %v4353
        %4370 = vmatpush.msra.mxu0 %v4352
        %4371 = vmatpush.msra.mxu0 %v4351
        %4372 = vmatpush.msra.mxu0 %v4350
        %4373 = vmatpush.msra.mxu0 %v4349
        %4374 = vmatpush.msra.mxu0 %v4348
        %4375 = vmatmul.f32.gmra.mxu0 %v4357
        %v4376 = vpop.f32.mrf.mxu0
        %v4377 = vadd.f32 0.0, %v4376
        %4378 = vdwg.mxu0
        %v4379 = vadd.f32 %v4345, %v4377
        %v4380 = vld [vmem:[#allocation7 + $0x3] sm:$0x3f]
        %s4381 = scalar_lea.vmem %s35, 256
        %v4382 = vld [vmem:[%s4381] sm:$0xff]
        %v4383 = vld [vmem:[%s4381 + $0x8] sm:$0xff]
        %v4384 = vld [vmem:[%s4381 + $0x10] sm:$0xff]
        %v4385 = vld [vmem:[%s4381 + $0x18] sm:$0xff]
        %v4386 = vld [vmem:[%s4381 + $0x20] sm:$0xff]
        %v4387 = vld [vmem:[%s4381 + $0x28] sm:$0xff]
        %v4388 = vld [vmem:[%s4381 + $0x30] sm:$0xff]
        %v4389 = vld [vmem:[%s4381 + $0x38] sm:$0xff]
        %v4390 = vld [vmem:[%s4381 + $0x40] sm:$0xff]
        %v4391 = vld [vmem:[%s4381 + $0x48] sm:$0xff]
        %v4392 = vld [vmem:[%s4381 + $0x50] sm:$0xff]
        %v4393 = vld [vmem:[%s4381 + $0x58] sm:$0xff]
        %v4394 = vld [vmem:[%s4381 + $0x60] sm:$0xff]
        %v4395 = vld [vmem:[%s4381 + $0x68] sm:$0xff]
        %v4396 = vld [vmem:[%s4381 + $0x70] sm:$0xff]
        %v4397 = vld [vmem:[%s4381 + $0x78] sm:$0xff]
        %4398 = vmatpush.msra.mxu0 %v4397
        %4399 = vmatpush.msra.mxu0 %v4396
        %4400 = vmatpush.msra.mxu0 %v4395
        %4401 = vmatpush.msra.mxu0 %v4394
        %4402 = vmatpush.msra.mxu0 %v4393
        %4403 = vmatpush.msra.mxu0 %v4392
        %4404 = vmatpush.msra.mxu0 %v4391
        %4405 = vmatpush.msra.mxu0 %v4390
        %4406 = vmatpush.msra.mxu0 %v4389
        %4407 = vmatpush.msra.mxu0 %v4388
        %4408 = vmatpush.msra.mxu0 %v4387
        %4409 = vmatpush.msra.mxu0 %v4386
        %4410 = vmatpush.msra.mxu0 %v4385
        %4411 = vmatpush.msra.mxu0 %v4384
        %4412 = vmatpush.msra.mxu0 %v4383
        %4413 = vmatpush.msra.mxu0 %v4382
        %4414 = vmatmul.f32.gmra.mxu0 %v4380
        %v4415 = vpop.f32.mrf.mxu0
        %v4416 = vadd.f32 0.0, %v4415
        %4417 = vdwg.mxu0
        %v4418 = vadd.f32 %v4379, %v4416
        %v4419 = vld [vmem:[#allocation7 + $0x4] sm:$0x3f]
        %s4420 = scalar_lea.vmem %s37, 128
        %v4421 = vld [vmem:[%s4420] sm:$0xff]
        %v4422 = vld [vmem:[%s4420 + $0x8] sm:$0xff]
        %v4423 = vld [vmem:[%s4420 + $0x10] sm:$0xff]
        %v4424 = vld [vmem:[%s4420 + $0x18] sm:$0xff]
        %v4425 = vld [vmem:[%s4420 + $0x20] sm:$0xff]
        %v4426 = vld [vmem:[%s4420 + $0x28] sm:$0xff]
        %v4427 = vld [vmem:[%s4420 + $0x30] sm:$0xff]
        %v4428 = vld [vmem:[%s4420 + $0x38] sm:$0xff]
        %v4430 = vsel %vm3485, %v4419, 0
        %4432 = vmatpush.msra.mxu0 0.0
        %4433 = vmatpush.msra.mxu0 0.0
        %4434 = vmatpush.msra.mxu0 0.0
        %4435 = vmatpush.msra.mxu0 0.0
        %4436 = vmatpush.msra.mxu0 0.0
        %4437 = vmatpush.msra.mxu0 0.0
        %4438 = vmatpush.msra.mxu0 0.0
        %4439 = vmatpush.msra.mxu0 0.0
        %4440 = vmatpush.msra.mxu0 %v4428
        %4441 = vmatpush.msra.mxu0 %v4427
        %4442 = vmatpush.msra.mxu0 %v4426
        %4443 = vmatpush.msra.mxu0 %v4425
        %4444 = vmatpush.msra.mxu0 %v4424
        %4445 = vmatpush.msra.mxu0 %v4423
        %4446 = vmatpush.msra.mxu0 %v4422
        %4447 = vmatpush.msra.mxu0 %v4421
        %4448 = vmatmul.f32.gmra.mxu0 %v4430
        %v4449 = vpop.f32.mrf.mxu0
        %v4450 = vadd.f32 0.0, %v4449
        %4451 = vdwg.mxu0
        %v4452 = vadd.f32 %v4418, %v4450
        %vm4453 = vcmp.eq.s32.totalorder %v1723, 2
        %v4454 = vsel %vm4453, 0.0, 1.0
        %vm4455 = vcmp.eq.s32.totalorder %v1723, 5
        %v4456 = vsel %vm4455, 0.0, %v4454
        %v4457 = vld [vmem:[%s39] sm:$0x1]
        %v4459 = vperm.slane %v4457, 0
        %v4461 = vadd.f32 %v4452, %v4459
        %v4462 = vmax.f32 %v4461, 0.0
        %v4463 = vmul.f32 %v4462, %v4456
        %4464 = vst [vmem:[#allocation4] sm:$0xf] 0.0
        %4465 = vst [vmem:[#allocation4 + $0xa] sm:$0x1f] 0.0
        %4466 = vst [vmem:[#allocation4 + $0x4] sm:$0x3f] %v4463
        %v4467 = vld [vmem:[#allocation4] sm:$0x3f]
        %v4468 = vld [vmem:[%s41] sm:$0xff]
        %v4469 = vld [vmem:[%s41 + $0x8] sm:$0xff]
        %v4470 = vld [vmem:[%s41 + $0x10] sm:$0xff]
        %v4471 = vld [vmem:[%s41 + $0x18] sm:$0xff]
        %v4472 = vld [vmem:[%s41 + $0x20] sm:$0xff]
        %v4473 = vld [vmem:[%s41 + $0x28] sm:$0xff]
        %v4474 = vld [vmem:[%s41 + $0x30] sm:$0xff]
        %v4475 = vld [vmem:[%s41 + $0x38] sm:$0xff]
        %v4476 = vld [vmem:[%s41 + $0x40] sm:$0xff]
        %v4477 = vld [vmem:[%s41 + $0x48] sm:$0xff]
        %v4478 = vld [vmem:[%s41 + $0x50] sm:$0xff]
        %v4479 = vld [vmem:[%s41 + $0x58] sm:$0xff]
        %v4480 = vld [vmem:[%s41 + $0x60] sm:$0xff]
        %v4481 = vld [vmem:[%s41 + $0x68] sm:$0xff]
        %v4482 = vld [vmem:[%s41 + $0x70] sm:$0xff]
        %v4483 = vld [vmem:[%s41 + $0x78] sm:$0xff]
        %v4484 = vld [vmem:[#allocation4 + $0x1] sm:$0x3f]
        %s4485 = scalar_lea.vmem %s41, 128
        %v4486 = vld [vmem:[%s4485] sm:$0xff]
        %v4487 = vld [vmem:[%s4485 + $0x8] sm:$0xff]
        %v4488 = vld [vmem:[%s4485 + $0x10] sm:$0xff]
        %v4489 = vld [vmem:[%s4485 + $0x18] sm:$0xff]
        %v4490 = vld [vmem:[%s4485 + $0x20] sm:$0xff]
        %v4491 = vld [vmem:[%s4485 + $0x28] sm:$0xff]
        %v4492 = vld [vmem:[%s4485 + $0x30] sm:$0xff]
        %v4493 = vld [vmem:[%s4485 + $0x38] sm:$0xff]
        %v4494 = vld [vmem:[%s4485 + $0x40] sm:$0xff]
        %v4495 = vld [vmem:[%s4485 + $0x48] sm:$0xff]
        %v4496 = vld [vmem:[%s4485 + $0x50] sm:$0xff]
        %v4497 = vld [vmem:[%s4485 + $0x58] sm:$0xff]
        %v4498 = vld [vmem:[%s4485 + $0x60] sm:$0xff]
        %v4499 = vld [vmem:[%s4485 + $0x68] sm:$0xff]
        %v4500 = vld [vmem:[%s4485 + $0x70] sm:$0xff]
        %v4501 = vld [vmem:[%s4485 + $0x78] sm:$0xff]
        %4502 = vmatpush.msra.mxu0 %v4501
        %4503 = vmatpush.msra.mxu0 %v4500
        %4504 = vmatpush.msra.mxu0 %v4499
        %4505 = vmatpush.msra.mxu0 %v4498
        %4506 = vmatpush.msra.mxu0 %v4497
        %4507 = vmatpush.msra.mxu0 %v4496
        %4508 = vmatpush.msra.mxu0 %v4495
        %4509 = vmatpush.msra.mxu0 %v4494
        %4510 = vmatpush.msra.mxu0 %v4493
        %4511 = vmatpush.msra.mxu0 %v4492
        %4512 = vmatpush.msra.mxu0 %v4491
        %4513 = vmatpush.msra.mxu0 %v4490
        %4514 = vmatpush.msra.mxu0 %v4489
        %4515 = vmatpush.msra.mxu0 %v4488
        %4516 = vmatpush.msra.mxu0 %v4487
        %4517 = vmatpush.msra.mxu0 %v4486
        %4518 = vmatmul.f32.gmra.mxu0 %v4484
        %v4519 = vpop.f32.mrf.mxu0
        %v4520 = vadd.f32 0.0, %v4519
        %4521 = vdwg.mxu0
        %4522 = vmatpush.msra.mxu0 %v4483
        %4523 = vmatpush.msra.mxu0 %v4482
        %4524 = vmatpush.msra.mxu0 %v4481
        %4525 = vmatpush.msra.mxu0 %v4480
        %4526 = vmatpush.msra.mxu0 %v4479
        %4527 = vmatpush.msra.mxu0 %v4478
        %4528 = vmatpush.msra.mxu0 %v4477
        %4529 = vmatpush.msra.mxu0 %v4476
        %4530 = vmatpush.msra.mxu0 %v4475
        %4531 = vmatpush.msra.mxu0 %v4474
        %4532 = vmatpush.msra.mxu0 %v4473
        %4533 = vmatpush.msra.mxu0 %v4472
        %4534 = vmatpush.msra.mxu0 %v4471
        %4535 = vmatpush.msra.mxu0 %v4470
        %4536 = vmatpush.msra.mxu0 %v4469
        %4537 = vmatpush.msra.mxu0 %v4468
        %4538 = vmatmul.f32.gmra.mxu0 %v4467
        %v4539 = vpop.f32.mrf.mxu0
        %v4540 = vadd.f32 %v4520, %v4539
        %4541 = vdwg.mxu0
        %v4542 = vld [vmem:[#allocation4 + $0x2] sm:$0x3f]
        %s4543 = scalar_lea.vmem %s41, 256
        %v4544 = vld [vmem:[%s4543] sm:$0xff]
        %v4545 = vld [vmem:[%s4543 + $0x8] sm:$0xff]
        %v4546 = vld [vmem:[%s4543 + $0x10] sm:$0xff]
        %v4547 = vld [vmem:[%s4543 + $0x18] sm:$0xff]
        %v4548 = vld [vmem:[%s4543 + $0x20] sm:$0xff]
        %v4549 = vld [vmem:[%s4543 + $0x28] sm:$0xff]
        %v4550 = vld [vmem:[%s4543 + $0x30] sm:$0xff]
        %v4551 = vld [vmem:[%s4543 + $0x38] sm:$0xff]
        %v4552 = vld [vmem:[%s4543 + $0x40] sm:$0xff]
        %v4553 = vld [vmem:[%s4543 + $0x48] sm:$0xff]
        %v4554 = vld [vmem:[%s4543 + $0x50] sm:$0xff]
        %v4555 = vld [vmem:[%s4543 + $0x58] sm:$0xff]
        %v4556 = vld [vmem:[%s4543 + $0x60] sm:$0xff]
        %v4557 = vld [vmem:[%s4543 + $0x68] sm:$0xff]
        %v4558 = vld [vmem:[%s4543 + $0x70] sm:$0xff]
        %v4559 = vld [vmem:[%s4543 + $0x78] sm:$0xff]
        %4560 = vmatpush.msra.mxu0 %v4559
        %4561 = vmatpush.msra.mxu0 %v4558
        %4562 = vmatpush.msra.mxu0 %v4557
        %4563 = vmatpush.msra.mxu0 %v4556
        %4564 = vmatpush.msra.mxu0 %v4555
        %4565 = vmatpush.msra.mxu0 %v4554
        %4566 = vmatpush.msra.mxu0 %v4553
        %4567 = vmatpush.msra.mxu0 %v4552
        %4568 = vmatpush.msra.mxu0 %v4551
        %4569 = vmatpush.msra.mxu0 %v4550
        %4570 = vmatpush.msra.mxu0 %v4549
        %4571 = vmatpush.msra.mxu0 %v4548
        %4572 = vmatpush.msra.mxu0 %v4547
        %4573 = vmatpush.msra.mxu0 %v4546
        %4574 = vmatpush.msra.mxu0 %v4545
        %4575 = vmatpush.msra.mxu0 %v4544
        %4576 = vmatmul.f32.gmra.mxu0 %v4542
        %v4577 = vpop.f32.mrf.mxu0
        %v4578 = vadd.f32 0.0, %v4577
        %4579 = vdwg.mxu0
        %v4580 = vadd.f32 %v4540, %v4578
        %v4581 = vld [vmem:[#allocation4 + $0x3] sm:$0x3f]
        %s4582 = scalar_lea.vmem %s41, 384
        %v4583 = vld [vmem:[%s4582] sm:$0xff]
        %v4584 = vld [vmem:[%s4582 + $0x8] sm:$0xff]
        %v4585 = vld [vmem:[%s4582 + $0x10] sm:$0xff]
        %v4586 = vld [vmem:[%s4582 + $0x18] sm:$0xff]
        %v4587 = vld [vmem:[%s4582 + $0x20] sm:$0xff]
        %v4588 = vld [vmem:[%s4582 + $0x28] sm:$0xff]
        %v4589 = vld [vmem:[%s4582 + $0x30] sm:$0xff]
        %v4590 = vld [vmem:[%s4582 + $0x38] sm:$0xff]
        %v4591 = vld [vmem:[%s4582 + $0x40] sm:$0xff]
        %v4592 = vld [vmem:[%s4582 + $0x48] sm:$0xff]
        %v4593 = vld [vmem:[%s4582 + $0x50] sm:$0xff]
        %v4594 = vld [vmem:[%s4582 + $0x58] sm:$0xff]
        %v4595 = vld [vmem:[%s4582 + $0x60] sm:$0xff]
        %v4596 = vld [vmem:[%s4582 + $0x68] sm:$0xff]
        %v4597 = vld [vmem:[%s4582 + $0x70] sm:$0xff]
        %v4598 = vld [vmem:[%s4582 + $0x78] sm:$0xff]
        %4599 = vmatpush.msra.mxu0 %v4598
        %4600 = vmatpush.msra.mxu0 %v4597
        %4601 = vmatpush.msra.mxu0 %v4596
        %4602 = vmatpush.msra.mxu0 %v4595
        %4603 = vmatpush.msra.mxu0 %v4594
        %4604 = vmatpush.msra.mxu0 %v4593
        %4605 = vmatpush.msra.mxu0 %v4592
        %4606 = vmatpush.msra.mxu0 %v4591
        %4607 = vmatpush.msra.mxu0 %v4590
        %4608 = vmatpush.msra.mxu0 %v4589
        %4609 = vmatpush.msra.mxu0 %v4588
        %4610 = vmatpush.msra.mxu0 %v4587
        %4611 = vmatpush.msra.mxu0 %v4586
        %4612 = vmatpush.msra.mxu0 %v4585
        %4613 = vmatpush.msra.mxu0 %v4584
        %4614 = vmatpush.msra.mxu0 %v4583
        %4615 = vmatmul.f32.gmra.mxu0 %v4581
        %v4616 = vpop.f32.mrf.mxu0
        %v4617 = vadd.f32 0.0, %v4616
        %4618 = vdwg.mxu0
        %v4619 = vadd.f32 %v4580, %v4617
        %v4620 = vld [vmem:[#allocation4 + $0x4] sm:$0x3f]
        %s4621 = scalar_lea.vmem %s41, 512
        %v4622 = vld [vmem:[%s4621] sm:$0xff]
        %v4623 = vld [vmem:[%s4621 + $0x8] sm:$0xff]
        %v4624 = vld [vmem:[%s4621 + $0x10] sm:$0xff]
        %v4625 = vld [vmem:[%s4621 + $0x18] sm:$0xff]
        %v4626 = vld [vmem:[%s4621 + $0x20] sm:$0xff]
        %v4627 = vld [vmem:[%s4621 + $0x28] sm:$0xff]
        %v4628 = vld [vmem:[%s4621 + $0x30] sm:$0xff]
        %v4629 = vld [vmem:[%s4621 + $0x38] sm:$0xff]
        %v4630 = vld [vmem:[%s4621 + $0x40] sm:$0xff]
        %v4631 = vld [vmem:[%s4621 + $0x48] sm:$0xff]
        %v4632 = vld [vmem:[%s4621 + $0x50] sm:$0xff]
        %v4633 = vld [vmem:[%s4621 + $0x58] sm:$0xff]
        %v4634 = vld [vmem:[%s4621 + $0x60] sm:$0xff]
        %v4635 = vld [vmem:[%s4621 + $0x68] sm:$0xff]
        %v4636 = vld [vmem:[%s4621 + $0x70] sm:$0xff]
        %v4637 = vld [vmem:[%s4621 + $0x78] sm:$0xff]
        %4638 = vmatpush.msra.mxu0 %v4637
        %4639 = vmatpush.msra.mxu0 %v4636
        %4640 = vmatpush.msra.mxu0 %v4635
        %4641 = vmatpush.msra.mxu0 %v4634
        %4642 = vmatpush.msra.mxu0 %v4633
        %4643 = vmatpush.msra.mxu0 %v4632
        %4644 = vmatpush.msra.mxu0 %v4631
        %4645 = vmatpush.msra.mxu0 %v4630
        %4646 = vmatpush.msra.mxu0 %v4629
        %4647 = vmatpush.msra.mxu0 %v4628
        %4648 = vmatpush.msra.mxu0 %v4627
        %4649 = vmatpush.msra.mxu0 %v4626
        %4650 = vmatpush.msra.mxu0 %v4625
        %4651 = vmatpush.msra.mxu0 %v4624
        %4652 = vmatpush.msra.mxu0 %v4623
        %4653 = vmatpush.msra.mxu0 %v4622
        %4654 = vmatmul.f32.gmra.mxu0 %v4620
        %v4655 = vpop.f32.mrf.mxu0
        %v4656 = vadd.f32 0.0, %v4655
        %4657 = vdwg.mxu0
        %v4658 = vadd.f32 %v4619, %v4656
        %v4659 = vld [vmem:[#allocation4 + $0x5] sm:$0x3f]
        %s4660 = scalar_lea.vmem %s41, 640
        %v4661 = vld [vmem:[%s4660] sm:$0xff]
        %v4662 = vld [vmem:[%s4660 + $0x8] sm:$0xff]
        %v4663 = vld [vmem:[%s4660 + $0x10] sm:$0xff]
        %v4664 = vld [vmem:[%s4660 + $0x18] sm:$0xff]
        %v4665 = vld [vmem:[%s4660 + $0x20] sm:$0xff]
        %v4666 = vld [vmem:[%s4660 + $0x28] sm:$0xff]
        %v4667 = vld [vmem:[%s4660 + $0x30] sm:$0xff]
        %v4668 = vld [vmem:[%s4660 + $0x38] sm:$0xff]
        %v4669 = vld [vmem:[%s4660 + $0x40] sm:$0xff]
        %v4670 = vld [vmem:[%s4660 + $0x48] sm:$0xff]
        %v4671 = vld [vmem:[%s4660 + $0x50] sm:$0xff]
        %v4672 = vld [vmem:[%s4660 + $0x58] sm:$0xff]
        %v4673 = vld [vmem:[%s4660 + $0x60] sm:$0xff]
        %v4674 = vld [vmem:[%s4660 + $0x68] sm:$0xff]
        %v4675 = vld [vmem:[%s4660 + $0x70] sm:$0xff]
        %v4676 = vld [vmem:[%s4660 + $0x78] sm:$0xff]
        %4677 = vmatpush.msra.mxu0 %v4676
        %4678 = vmatpush.msra.mxu0 %v4675
        %4679 = vmatpush.msra.mxu0 %v4674
        %4680 = vmatpush.msra.mxu0 %v4673
        %4681 = vmatpush.msra.mxu0 %v4672
        %4682 = vmatpush.msra.mxu0 %v4671
        %4683 = vmatpush.msra.mxu0 %v4670
        %4684 = vmatpush.msra.mxu0 %v4669
        %4685 = vmatpush.msra.mxu0 %v4668
        %4686 = vmatpush.msra.mxu0 %v4667
        %4687 = vmatpush.msra.mxu0 %v4666
        %4688 = vmatpush.msra.mxu0 %v4665
        %4689 = vmatpush.msra.mxu0 %v4664
        %4690 = vmatpush.msra.mxu0 %v4663
        %4691 = vmatpush.msra.mxu0 %v4662
        %4692 = vmatpush.msra.mxu0 %v4661
        %4693 = vmatmul.f32.gmra.mxu0 %v4659
        %v4694 = vpop.f32.mrf.mxu0
        %v4695 = vadd.f32 0.0, %v4694
        %4696 = vdwg.mxu0
        %v4697 = vadd.f32 %v4658, %v4695
        %v4698 = vld [vmem:[#allocation4 + $0x6] sm:$0x3f]
        %s4699 = scalar_lea.vmem %s41, 768
        %v4700 = vld [vmem:[%s4699] sm:$0xff]
        %v4701 = vld [vmem:[%s4699 + $0x8] sm:$0xff]
        %v4702 = vld [vmem:[%s4699 + $0x10] sm:$0xff]
        %v4703 = vld [vmem:[%s4699 + $0x18] sm:$0xff]
        %v4704 = vld [vmem:[%s4699 + $0x20] sm:$0xff]
        %v4705 = vld [vmem:[%s4699 + $0x28] sm:$0xff]
        %v4706 = vld [vmem:[%s4699 + $0x30] sm:$0xff]
        %v4707 = vld [vmem:[%s4699 + $0x38] sm:$0xff]
        %v4708 = vld [vmem:[%s4699 + $0x40] sm:$0xff]
        %v4709 = vld [vmem:[%s4699 + $0x48] sm:$0xff]
        %v4710 = vld [vmem:[%s4699 + $0x50] sm:$0xff]
        %v4711 = vld [vmem:[%s4699 + $0x58] sm:$0xff]
        %v4712 = vld [vmem:[%s4699 + $0x60] sm:$0xff]
        %v4713 = vld [vmem:[%s4699 + $0x68] sm:$0xff]
        %v4714 = vld [vmem:[%s4699 + $0x70] sm:$0xff]
        %v4715 = vld [vmem:[%s4699 + $0x78] sm:$0xff]
        %4716 = vmatpush.msra.mxu0 %v4715
        %4717 = vmatpush.msra.mxu0 %v4714
        %4718 = vmatpush.msra.mxu0 %v4713
        %4719 = vmatpush.msra.mxu0 %v4712
        %4720 = vmatpush.msra.mxu0 %v4711
        %4721 = vmatpush.msra.mxu0 %v4710
        %4722 = vmatpush.msra.mxu0 %v4709
        %4723 = vmatpush.msra.mxu0 %v4708
        %4724 = vmatpush.msra.mxu0 %v4707
        %4725 = vmatpush.msra.mxu0 %v4706
        %4726 = vmatpush.msra.mxu0 %v4705
        %4727 = vmatpush.msra.mxu0 %v4704
        %4728 = vmatpush.msra.mxu0 %v4703
        %4729 = vmatpush.msra.mxu0 %v4702
        %4730 = vmatpush.msra.mxu0 %v4701
        %4731 = vmatpush.msra.mxu0 %v4700
        %4732 = vmatmul.f32.gmra.mxu0 %v4698
        %v4733 = vpop.f32.mrf.mxu0
        %v4734 = vadd.f32 0.0, %v4733
        %4735 = vdwg.mxu0
        %v4736 = vadd.f32 %v4697, %v4734
        %v4737 = vld [vmem:[#allocation4 + $0x7] sm:$0x3f]
        %s4738 = scalar_lea.vmem %s41, 896
        %v4739 = vld [vmem:[%s4738] sm:$0xff]
        %v4740 = vld [vmem:[%s4738 + $0x8] sm:$0xff]
        %v4741 = vld [vmem:[%s4738 + $0x10] sm:$0xff]
        %v4742 = vld [vmem:[%s4738 + $0x18] sm:$0xff]
        %v4743 = vld [vmem:[%s4738 + $0x20] sm:$0xff]
        %v4744 = vld [vmem:[%s4738 + $0x28] sm:$0xff]
        %v4745 = vld [vmem:[%s4738 + $0x30] sm:$0xff]
        %v4746 = vld [vmem:[%s4738 + $0x38] sm:$0xff]
        %v4747 = vld [vmem:[%s4738 + $0x40] sm:$0xff]
        %v4748 = vld [vmem:[%s4738 + $0x48] sm:$0xff]
        %v4749 = vld [vmem:[%s4738 + $0x50] sm:$0xff]
        %v4750 = vld [vmem:[%s4738 + $0x58] sm:$0xff]
        %v4751 = vld [vmem:[%s4738 + $0x60] sm:$0xff]
        %v4752 = vld [vmem:[%s4738 + $0x68] sm:$0xff]
        %v4753 = vld [vmem:[%s4738 + $0x70] sm:$0xff]
        %v4754 = vld [vmem:[%s4738 + $0x78] sm:$0xff]
        %4755 = vmatpush.msra.mxu0 %v4754
        %4756 = vmatpush.msra.mxu0 %v4753
        %4757 = vmatpush.msra.mxu0 %v4752
        %4758 = vmatpush.msra.mxu0 %v4751
        %4759 = vmatpush.msra.mxu0 %v4750
        %4760 = vmatpush.msra.mxu0 %v4749
        %4761 = vmatpush.msra.mxu0 %v4748
        %4762 = vmatpush.msra.mxu0 %v4747
        %4763 = vmatpush.msra.mxu0 %v4746
        %4764 = vmatpush.msra.mxu0 %v4745
        %4765 = vmatpush.msra.mxu0 %v4744
        %4766 = vmatpush.msra.mxu0 %v4743
        %4767 = vmatpush.msra.mxu0 %v4742
        %4768 = vmatpush.msra.mxu0 %v4741
        %4769 = vmatpush.msra.mxu0 %v4740
        %4770 = vmatpush.msra.mxu0 %v4739
        %4771 = vmatmul.f32.gmra.mxu0 %v4737
        %v4772 = vpop.f32.mrf.mxu0
        %v4773 = vadd.f32 0.0, %v4772
        %4774 = vdwg.mxu0
        %v4775 = vadd.f32 %v4736, %v4773
        %v4776 = vld [vmem:[#allocation4 + $0x8] sm:$0x3f]
        %s4777 = scalar_lea.vmem %s41, 1024
        %v4778 = vld [vmem:[%s4777] sm:$0xff]
        %v4779 = vld [vmem:[%s4777 + $0x8] sm:$0xff]
        %v4780 = vld [vmem:[%s4777 + $0x10] sm:$0xff]
        %v4781 = vld [vmem:[%s4777 + $0x18] sm:$0xff]
        %v4782 = vld [vmem:[%s4777 + $0x20] sm:$0xff]
        %v4783 = vld [vmem:[%s4777 + $0x28] sm:$0xff]
        %v4784 = vld [vmem:[%s4777 + $0x30] sm:$0xff]
        %v4785 = vld [vmem:[%s4777 + $0x38] sm:$0xff]
        %v4786 = vld [vmem:[%s4777 + $0x40] sm:$0xff]
        %v4787 = vld [vmem:[%s4777 + $0x48] sm:$0xff]
        %v4788 = vld [vmem:[%s4777 + $0x50] sm:$0xff]
        %v4789 = vld [vmem:[%s4777 + $0x58] sm:$0xff]
        %v4790 = vld [vmem:[%s4777 + $0x60] sm:$0xff]
        %v4791 = vld [vmem:[%s4777 + $0x68] sm:$0xff]
        %v4792 = vld [vmem:[%s4777 + $0x70] sm:$0xff]
        %v4793 = vld [vmem:[%s4777 + $0x78] sm:$0xff]
        %4794 = vmatpush.msra.mxu0 %v4793
        %4795 = vmatpush.msra.mxu0 %v4792
        %4796 = vmatpush.msra.mxu0 %v4791
        %4797 = vmatpush.msra.mxu0 %v4790
        %4798 = vmatpush.msra.mxu0 %v4789
        %4799 = vmatpush.msra.mxu0 %v4788
        %4800 = vmatpush.msra.mxu0 %v4787
        %4801 = vmatpush.msra.mxu0 %v4786
        %4802 = vmatpush.msra.mxu0 %v4785
        %4803 = vmatpush.msra.mxu0 %v4784
        %4804 = vmatpush.msra.mxu0 %v4783
        %4805 = vmatpush.msra.mxu0 %v4782
        %4806 = vmatpush.msra.mxu0 %v4781
        %4807 = vmatpush.msra.mxu0 %v4780
        %4808 = vmatpush.msra.mxu0 %v4779
        %4809 = vmatpush.msra.mxu0 %v4778
        %4810 = vmatmul.f32.gmra.mxu0 %v4776
        %v4811 = vpop.f32.mrf.mxu0
        %v4812 = vadd.f32 0.0, %v4811
        %4813 = vdwg.mxu0
        %v4814 = vadd.f32 %v4775, %v4812
        %v4815 = vmul.f32 %v4814, %v4456
        %vm4816 = vcmask 1045504
        %v4817 = vsel %vm4816, %v4815, 0.0
        %v4818 = vrot.slane %v4817, 4
        %v4819 = vadd.f32 %v4817, %v4818
        %v4820 = vrot.slane %v4819, 2
        %v4821 = vadd.f32 %v4819, %v4820
        %v4822 = vrot.slane %v4821, 1
        %v4823 = vadd.f32 %v4821, %v4822
        %v4824 = vmul.f32 %v4823, 0.25
        %v4825 = vld [vmem:[%s47] sm:$0xff]
        %v4826 = vld [vmem:[%s47 + $0x8] sm:$0xff]
        %v4827 = vld [vmem:[%s47 + $0x10] sm:$0xff]
        %v4828 = vld [vmem:[%s47 + $0x18] sm:$0xff]
        %v4829 = vld [vmem:[%s47 + $0x20] sm:$0xff]
        %v4830 = vld [vmem:[%s47 + $0x28] sm:$0xff]
        %v4831 = vld [vmem:[%s47 + $0x30] sm:$0xff]
        %v4832 = vld [vmem:[%s47 + $0x38] sm:$0xff]
        %v4833 = vld [vmem:[%s47 + $0x40] sm:$0xff]
        %v4834 = vld [vmem:[%s47 + $0x48] sm:$0xff]
        %v4835 = vld [vmem:[%s47 + $0x50] sm:$0xff]
        %v4836 = vld [vmem:[%s47 + $0x58] sm:$0xff]
        %v4837 = vld [vmem:[%s47 + $0x60] sm:$0xff]
        %v4838 = vld [vmem:[%s47 + $0x68] sm:$0xff]
        %v4839 = vld [vmem:[%s47 + $0x70] sm:$0xff]
        %v4840 = vld [vmem:[%s47 + $0x78] sm:$0xff]
        %4841 = vmatpush.msra.mxu0 %v4840
        %4842 = vmatpush.msra.mxu0 %v4839
        %4843 = vmatpush.msra.mxu0 %v4838
        %4844 = vmatpush.msra.mxu0 %v4837
        %4845 = vmatpush.msra.mxu0 %v4836
        %4846 = vmatpush.msra.mxu0 %v4835
        %4847 = vmatpush.msra.mxu0 %v4834
        %4848 = vmatpush.msra.mxu0 %v4833
        %4849 = vmatpush.msra.mxu0 %v4832
        %4850 = vmatpush.msra.mxu0 %v4831
        %4851 = vmatpush.msra.mxu0 %v4830
        %4852 = vmatpush.msra.mxu0 %v4829
        %4853 = vmatpush.msra.mxu0 %v4828
        %4854 = vmatpush.msra.mxu0 %v4827
        %4855 = vmatpush.msra.mxu0 %v4826
        %4856 = vmatpush.msra.mxu0 %v4825
        %4857 = vmatmul.f32.gmra.mxu0 %v4824
        %v4858 = vpop.f32.mrf.mxu0
        %v4859 = vadd.f32 0.0, %v4858
        %4860 = vdwg.mxu0
        %v4861 = vmax.f32 %v4859, 0.0
        %v4862 = vld [vmem:[%s49] sm:$0xff]
        %v4864 = vsel %vm2792, %v4861, 0
        %4866 = vmatpush.msra.mxu0 0.0
        %4867 = vmatpush.msra.mxu0 0.0
        %4868 = vmatpush.msra.mxu0 0.0
        %4869 = vmatpush.msra.mxu0 0.0
        %4870 = vmatpush.msra.mxu0 0.0
        %4871 = vmatpush.msra.mxu0 0.0
        %4872 = vmatpush.msra.mxu0 0.0
        %4873 = vmatpush.msra.mxu0 0.0
        %4874 = vmatpush.msra.mxu0 0.0
        %4875 = vmatpush.msra.mxu0 0.0
        %4876 = vmatpush.msra.mxu0 0.0
        %4877 = vmatpush.msra.mxu0 0.0
        %4878 = vmatpush.msra.mxu0 0.0
        %4879 = vmatpush.msra.mxu0 0.0
        %4880 = vmatpush.msra.mxu0 0.0
        %4881 = vmatpush.msra.mxu0 %v4862
        %4882 = vmatmul.f32.gmra.mxu0 %v4864
        %v4883 = vpop.f32.mrf.mxu0
        %v4884 = vadd.f32 0.0, %v4883
        %4885 = vdwg.mxu0
        %v4886 = vxor.u32 %v4884, 2147483648
        %v4887 = vmul.f32 %v4886, 1.442695
        %v4888 = vpow.pop %v4887
        %v4889 = vadd.f32 %v4888, 1.0
        %v4890 = vrcp.pop %v4889
        %v4891 = vmul.f32 %v4889, %v4890
        %v4892 = vsub.f32 1.0, %v4891
        %v4893 = vmul.f32 %v4890, %v4892
        %v4894 = vadd.f32 %v4890, %v4893
        %vm4895 = vweird.f32 %v4889
        %vm4896 = vweird.f32 %v4890
        %vm4897 = vmor %vm4895, %vm4896
        %v4898 = vsel %vm4897, %v4890, %v4894
        %v4899 = vand.u32 2147483647, %v4889
        %vm4900 = vcmp.eq.f32.partialorder %v4899, 8.507059e+37
        %v4901 = vand.u32 %v4889, 2147483648
        %v4902 = vor.u32 1.1754944e-38, %v4901
        %v4903 = vsel %vm4900, %v4902, %v4898
        %v4904 = vmul.f32 1.0, %v4903
        %v4905 = vld [vmem:[%s4235] sm:$0x3f]
        %v4906 = vld [vmem:[%s43] sm:$0xff]
        %v4907 = vld [vmem:[%s43 + $0x8] sm:$0xff]
        %v4908 = vld [vmem:[%s43 + $0x10] sm:$0xff]
        %v4909 = vld [vmem:[%s43 + $0x18] sm:$0xff]
        %v4910 = vld [vmem:[%s43 + $0x20] sm:$0xff]
        %v4911 = vld [vmem:[%s43 + $0x28] sm:$0xff]
        %v4912 = vld [vmem:[%s43 + $0x30] sm:$0xff]
        %v4913 = vld [vmem:[%s43 + $0x38] sm:$0xff]
        %v4914 = vld [vmem:[%s43 + $0x40] sm:$0xff]
        %v4915 = vld [vmem:[%s43 + $0x48] sm:$0xff]
        %v4916 = vld [vmem:[%s43 + $0x50] sm:$0xff]
        %v4917 = vld [vmem:[%s43 + $0x58] sm:$0xff]
        %v4918 = vld [vmem:[%s43 + $0x60] sm:$0xff]
        %v4919 = vld [vmem:[%s43 + $0x68] sm:$0xff]
        %v4920 = vld [vmem:[%s43 + $0x70] sm:$0xff]
        %v4921 = vld [vmem:[%s43 + $0x78] sm:$0xff]
        %v4922 = vld [vmem:[%s45] sm:$0x1]
        %v4924 = vperm.slane %v4922, 0
        %4926 = vmatpush.msra.mxu0 %v4921
        %4927 = vmatpush.msra.mxu0 %v4920
        %4928 = vmatpush.msra.mxu0 %v4919
        %4929 = vmatpush.msra.mxu0 %v4918
        %4930 = vmatpush.msra.mxu0 %v4917
        %4931 = vmatpush.msra.mxu0 %v4916
        %4932 = vmatpush.msra.mxu0 %v4915
        %4933 = vmatpush.msra.mxu0 %v4914
        %4934 = vmatpush.msra.mxu0 %v4913
        %4935 = vmatpush.msra.mxu0 %v4912
        %4936 = vmatpush.msra.mxu0 %v4911
        %4937 = vmatpush.msra.mxu0 %v4910
        %4938 = vmatpush.msra.mxu0 %v4909
        %4939 = vmatpush.msra.mxu0 %v4908
        %4940 = vmatpush.msra.mxu0 %v4907
        %4941 = vmatpush.msra.mxu0 %v4906
        %4942 = vmatmul.f32.gmra.mxu0 %v4905
        %v4943 = vpop.f32.mrf.mxu0
        %v4944 = vadd.f32 %v4924, %v4943
        %4945 = vdwg.mxu0
        %v4946 = vperm.slane %v4904, 0
        %v4947 = vmul.f32 %v4814, %v4946
        %v4948 = vadd.f32 %v4947, %v4944
        %v4949 = vmax.f32 %v4948, 0.0
        %v4950 = vld [vmem:[%s75] sm:$0x3f]
        %vm4951 = vcmask 48128
        %v4953 = vsel %vm4951, %v4950, 0
        %v4956 = vsel %vm4816, %v4949, 0
        %4958 = vmatpush.msra.mxu0 0.0
        %4959 = vmatpush.msra.mxu0 0.0
        %4960 = vmatpush.msra.mxu0 0.0
        %4961 = vmatpush.msra.mxu0 0.0
        %4962 = vmatpush.msra.mxu0 0.0
        %4963 = vmatpush.msra.mxu0 0.0
        %4964 = vmatpush.msra.mxu0 0.0
        %4965 = vmatpush.msra.mxu0 0.0
        %4966 = vmatpush.msra.mxu0 0.0
        %4967 = vmatpush.msra.mxu0 0.0
        %4968 = vmatpush.msra.mxu0 0.0
        %4969 = vmatpush.msra.mxu0 0.0
        %4970 = vmatpush.msra.mxu0 0.0
        %4971 = vmatpush.msra.mxu0 0.0
        %4972 = vmatpush.msra.mxu0 0.0
        %4973 = vmatpush.msra.mxu0 %v4956
        %4974 = vmatmul.f32.gmra.mxu0 %v4953
        %v4975 = vpop.f32.mrf.mxu0
        %v4976 = vadd.f32 0.0, %v4975
        %4977 = vdwg.mxu0
        %v4978 = vld [vmem:[%s77] sm:$0x3f]
        %v4980 = vsel %vm4951, %v4978, 0
        %4982 = vmatpush.msra.mxu0 0.0
        %4983 = vmatpush.msra.mxu0 0.0
        %4984 = vmatpush.msra.mxu0 0.0
        %4985 = vmatpush.msra.mxu0 0.0
        %4986 = vmatpush.msra.mxu0 0.0
        %4987 = vmatpush.msra.mxu0 0.0
        %4988 = vmatpush.msra.mxu0 0.0
        %4989 = vmatpush.msra.mxu0 0.0
        %4990 = vmatpush.msra.mxu0 0.0
        %4991 = vmatpush.msra.mxu0 0.0
        %4992 = vmatpush.msra.mxu0 0.0
        %4993 = vmatpush.msra.mxu0 0.0
        %4994 = vmatpush.msra.mxu0 0.0
        %4995 = vmatpush.msra.mxu0 0.0
        %4996 = vmatpush.msra.mxu0 0.0
        %4997 = vmatpush.msra.mxu0 %v4956
        %4998 = vmatmul.f32.gmra.mxu0 %v4980
        %v4999 = vpop.f32.mrf.mxu0
        %v5000 = vadd.f32 0.0, %v4999
        %5001 = vdwg.mxu0
        %5002 = vst [vmem:[#allocation8] sm:$0x3f] %v4976
        %5003 = vst [vmem:[#allocation8 + $0x8] sm:$0x3f] %v5000
        %s5004 = scalar_lea.vmem %s75, 8
        %v5005 = vld [vmem:[%s5004] sm:$0x3f]
        %v5007 = vsel %vm4951, %v5005, 0
        %5009 = vmatpush.msra.mxu0 0.0
        %5010 = vmatpush.msra.mxu0 0.0
        %5011 = vmatpush.msra.mxu0 0.0
        %5012 = vmatpush.msra.mxu0 0.0
        %5013 = vmatpush.msra.mxu0 0.0
        %5014 = vmatpush.msra.mxu0 0.0
        %5015 = vmatpush.msra.mxu0 0.0
        %5016 = vmatpush.msra.mxu0 0.0
        %5017 = vmatpush.msra.mxu0 0.0
        %5018 = vmatpush.msra.mxu0 0.0
        %5019 = vmatpush.msra.mxu0 0.0
        %5020 = vmatpush.msra.mxu0 0.0
        %5021 = vmatpush.msra.mxu0 0.0
        %5022 = vmatpush.msra.mxu0 0.0
        %5023 = vmatpush.msra.mxu0 0.0
        %5024 = vmatpush.msra.mxu0 %v4956
        %5025 = vmatmul.f32.gmra.mxu0 %v5007
        %v5026 = vpop.f32.mrf.mxu0
        %v5027 = vadd.f32 0.0, %v5026
        %5028 = vdwg.mxu0
        %s5029 = scalar_lea.vmem %s77, 8
        %v5030 = vld [vmem:[%s5029] sm:$0x3f]
        %v5032 = vsel %vm4951, %v5030, 0
        %5034 = vmatpush.msra.mxu0 0.0
        %5035 = vmatpush.msra.mxu0 0.0
        %5036 = vmatpush.msra.mxu0 0.0
        %5037 = vmatpush.msra.mxu0 0.0
        %5038 = vmatpush.msra.mxu0 0.0
        %5039 = vmatpush.msra.mxu0 0.0
        %5040 = vmatpush.msra.mxu0 0.0
        %5041 = vmatpush.msra.mxu0 0.0
        %5042 = vmatpush.msra.mxu0 0.0
        %5043 = vmatpush.msra.mxu0 0.0
        %5044 = vmatpush.msra.mxu0 0.0
        %5045 = vmatpush.msra.mxu0 0.0
        %5046 = vmatpush.msra.mxu0 0.0
        %5047 = vmatpush.msra.mxu0 0.0
        %5048 = vmatpush.msra.mxu0 0.0
        %5049 = vmatpush.msra.mxu0 %v4956
        %5050 = vmatmul.f32.gmra.mxu0 %v5032
        %v5051 = vpop.f32.mrf.mxu0
        %v5052 = vadd.f32 0.0, %v5051
        %5053 = vdwg.mxu0
        %s5054 = scalar_lea.vmem [#allocation8], 16
        %5055 = vst [vmem:[%s5054] sm:$0x3f] %v5027
        %5056 = vst [vmem:[%s5054 + $0x8] sm:$0x3f] %v5052
        %v5057 = vld [vmem:[#allocation8] sm:$0x3]
        %v5058 = vld [vmem:[#allocation8 + $0x8] sm:$0x3]
        %v5059 = vld [vmem:[%s51] sm:$0xff]
        %v5060 = vld [vmem:[%s51 + $0x8] sm:$0xff]
        %v5061 = vld [vmem:[%s51 + $0x10] sm:$0xff]
        %v5062 = vld [vmem:[%s51 + $0x18] sm:$0xff]
        %v5063 = vld [vmem:[%s51 + $0x20] sm:$0xff]
        %v5064 = vld [vmem:[%s51 + $0x28] sm:$0xff]
        %v5065 = vld [vmem:[%s51 + $0x30] sm:$0xff]
        %v5066 = vld [vmem:[%s51 + $0x38] sm:$0xff]
        %v5067 = vld [vmem:[%s51 + $0x40] sm:$0xff]
        %v5068 = vld [vmem:[%s51 + $0x48] sm:$0xff]
        %v5069 = vld [vmem:[%s51 + $0x50] sm:$0xff]
        %v5070 = vld [vmem:[%s51 + $0x58] sm:$0xff]
        %v5071 = vld [vmem:[%s51 + $0x60] sm:$0xff]
        %v5072 = vld [vmem:[%s51 + $0x68] sm:$0xff]
        %v5073 = vld [vmem:[%s51 + $0x70] sm:$0xff]
        %v5074 = vld [vmem:[%s51 + $0x78] sm:$0xff]
        %v5075 = vld [vmem:[%s51 + $0x80] sm:$0xff]
        %v5076 = vld [vmem:[%s51 + $0x88] sm:$0xff]
        %v5077 = vld [vmem:[%s51 + $0x90] sm:$0xff]
        %v5078 = vld [vmem:[%s51 + $0x98] sm:$0xff]
        %v5079 = vld [vmem:[%s51 + $0xa0] sm:$0xff]
        %v5080 = vld [vmem:[%s51 + $0xa8] sm:$0xff]
        %v5081 = vld [vmem:[%s51 + $0xb0] sm:$0xff]
        %v5082 = vld [vmem:[%s51 + $0xb8] sm:$0xff]
        %v5083 = vld [vmem:[%s51 + $0xc0] sm:$0xff]
        %v5084 = vld [vmem:[%s51 + $0xc8] sm:$0xff]
        %v5085 = vld [vmem:[%s51 + $0xd0] sm:$0xff]
        %v5086 = vld [vmem:[%s51 + $0xd8] sm:$0xff]
        %v5087 = vld [vmem:[%s51 + $0xe0] sm:$0xff]
        %v5088 = vld [vmem:[%s51 + $0xe8] sm:$0xff]
        %v5089 = vld [vmem:[%s51 + $0xf0] sm:$0xff]
        %v5090 = vld [vmem:[%s51 + $0xf8] sm:$0xff]
        %v5091 = vld [vmem:[%s51 + $0x100] sm:$0xff]
        %v5092 = vld [vmem:[%s51 + $0x108] sm:$0xff]
        %v5093 = vld [vmem:[%s51 + $0x110] sm:$0xff]
        %v5094 = vld [vmem:[%s51 + $0x118] sm:$0xff]
        %v5095 = vld [vmem:[%s51 + $0x120] sm:$0xff]
        %v5096 = vld [vmem:[%s51 + $0x128] sm:$0xff]
        %v5097 = vld [vmem:[%s51 + $0x130] sm:$0xff]
        %v5098 = vld [vmem:[%s51 + $0x138] sm:$0xff]
        %v5099 = vld [vmem:[%s51 + $0x140] sm:$0xff]
        %v5100 = vld [vmem:[%s51 + $0x148] sm:$0xff]
        %v5101 = vld [vmem:[%s51 + $0x150] sm:$0xff]
        %v5102 = vld [vmem:[%s51 + $0x158] sm:$0xff]
        %v5103 = vld [vmem:[%s51 + $0x160] sm:$0xff]
        %v5104 = vld [vmem:[%s51 + $0x168] sm:$0xff]
        %v5105 = vld [vmem:[%s51 + $0x170] sm:$0xff]
        %v5106 = vld [vmem:[%s51 + $0x178] sm:$0xff]
        %v5107 = vld [vmem:[%s51 + $0x180] sm:$0xff]
        %v5108 = vld [vmem:[%s51 + $0x188] sm:$0xff]
        %v5109 = vld [vmem:[%s51 + $0x190] sm:$0xff]
        %v5110 = vld [vmem:[%s51 + $0x198] sm:$0xff]
        %v5111 = vld [vmem:[%s51 + $0x1a0] sm:$0xff]
        %v5112 = vld [vmem:[%s51 + $0x1a8] sm:$0xff]
        %v5113 = vld [vmem:[%s51 + $0x1b0] sm:$0xff]
        %v5114 = vld [vmem:[%s51 + $0x1b8] sm:$0xff]
        %v5115 = vld [vmem:[%s51 + $0x1c0] sm:$0xff]
        %v5116 = vld [vmem:[%s51 + $0x1c8] sm:$0xff]
        %v5117 = vld [vmem:[%s51 + $0x1d0] sm:$0xff]
        %v5118 = vld [vmem:[%s51 + $0x1d8] sm:$0xff]
        %v5119 = vld [vmem:[%s51 + $0x1e0] sm:$0xff]
        %v5120 = vld [vmem:[%s51 + $0x1e8] sm:$0xff]
        %v5121 = vld [vmem:[%s51 + $0x1f0] sm:$0xff]
        %v5122 = vld [vmem:[%s51 + $0x1f8] sm:$0xff]
        %v5123 = vld [vmem:[#allocation8] sm:$0x6]
        %v5124 = vld [vmem:[%s53] sm:$0xff]
        %v5125 = vld [vmem:[%s53 + $0x8] sm:$0xff]
        %v5126 = vld [vmem:[%s53 + $0x10] sm:$0xff]
        %v5127 = vld [vmem:[%s53 + $0x18] sm:$0xff]
        %v5128 = vld [vmem:[%s53 + $0x20] sm:$0xff]
        %v5129 = vld [vmem:[%s53 + $0x28] sm:$0xff]
        %v5130 = vld [vmem:[%s53 + $0x30] sm:$0xff]
        %v5131 = vld [vmem:[%s53 + $0x38] sm:$0xff]
        %v5132 = vld [vmem:[%s53 + $0x40] sm:$0xff]
        %v5133 = vld [vmem:[%s53 + $0x48] sm:$0xff]
        %v5134 = vld [vmem:[%s53 + $0x50] sm:$0xff]
        %v5135 = vld [vmem:[%s53 + $0x58] sm:$0xff]
        %v5136 = vld [vmem:[%s53 + $0x60] sm:$0xff]
        %v5137 = vld [vmem:[%s53 + $0x68] sm:$0xff]
        %v5138 = vld [vmem:[%s53 + $0x70] sm:$0xff]
        %v5139 = vld [vmem:[%s53 + $0x78] sm:$0xff]
        %v5140 = vld [vmem:[%s53 + $0x80] sm:$0xff]
        %v5141 = vld [vmem:[%s53 + $0x88] sm:$0xff]
        %v5142 = vld [vmem:[%s53 + $0x90] sm:$0xff]
        %v5143 = vld [vmem:[%s53 + $0x98] sm:$0xff]
        %v5144 = vld [vmem:[%s53 + $0xa0] sm:$0xff]
        %v5145 = vld [vmem:[%s53 + $0xa8] sm:$0xff]
        %v5146 = vld [vmem:[%s53 + $0xb0] sm:$0xff]
        %v5147 = vld [vmem:[%s53 + $0xb8] sm:$0xff]
        %v5148 = vld [vmem:[%s53 + $0xc0] sm:$0xff]
        %v5149 = vld [vmem:[%s53 + $0xc8] sm:$0xff]
        %v5150 = vld [vmem:[%s53 + $0xd0] sm:$0xff]
        %v5151 = vld [vmem:[%s53 + $0xd8] sm:$0xff]
        %v5152 = vld [vmem:[%s53 + $0xe0] sm:$0xff]
        %v5153 = vld [vmem:[%s53 + $0xe8] sm:$0xff]
        %v5154 = vld [vmem:[%s53 + $0xf0] sm:$0xff]
        %v5155 = vld [vmem:[%s53 + $0xf8] sm:$0xff]
        %v5157 = vrot.slane %v5123, 1
        %5159 = vmatpush.msra.mxu0 %v5154
        %5160 = vmatpush.msra.mxu0 %v5152
        %5161 = vmatpush.msra.mxu0 %v5150
        %5162 = vmatpush.msra.mxu0 %v5148
        %5163 = vmatpush.msra.mxu0 %v5146
        %5164 = vmatpush.msra.mxu0 %v5144
        %5165 = vmatpush.msra.mxu0 %v5142
        %5166 = vmatpush.msra.mxu0 %v5140
        %5167 = vmatpush.msra.mxu0 %v5138
        %5168 = vmatpush.msra.mxu0 %v5136
        %5169 = vmatpush.msra.mxu0 %v5134
        %5170 = vmatpush.msra.mxu0 %v5132
        %5171 = vmatpush.msra.mxu0 %v5130
        %5172 = vmatpush.msra.mxu0 %v5128
        %5173 = vmatpush.msra.mxu0 %v5126
        %5174 = vmatpush.msra.mxu0 %v5124
        %5175 = vmatmul.f32.gmra.mxu0 %v5157
        %v5176 = vpop.f32.mrf.mxu0
        %v5177 = vadd.f32 0.0, %v5176
        %5178 = vdwg.mxu0
        %5179 = vmatpush.msra.mxu0 %v5155
        %5180 = vmatpush.msra.mxu0 %v5153
        %5181 = vmatpush.msra.mxu0 %v5151
        %5182 = vmatpush.msra.mxu0 %v5149
        %5183 = vmatpush.msra.mxu0 %v5147
        %5184 = vmatpush.msra.mxu0 %v5145
        %5185 = vmatpush.msra.mxu0 %v5143
        %5186 = vmatpush.msra.mxu0 %v5141
        %5187 = vmatpush.msra.mxu0 %v5139
        %5188 = vmatpush.msra.mxu0 %v5137
        %5189 = vmatpush.msra.mxu0 %v5135
        %5190 = vmatpush.msra.mxu0 %v5133
        %5191 = vmatpush.msra.mxu0 %v5131
        %5192 = vmatpush.msra.mxu0 %v5129
        %5193 = vmatpush.msra.mxu0 %v5127
        %5194 = vmatpush.msra.mxu0 %v5125
        %5195 = vmatmul.f32.gmra.mxu0 %v5157
        %v5196 = vpop.f32.mrf.mxu0
        %v5197 = vadd.f32 0.0, %v5196
        %5198 = vdwg.mxu0
        %5199 = vmatpush.msra.mxu0 %v5089
        %5200 = vmatpush.msra.mxu0 %v5087
        %5201 = vmatpush.msra.mxu0 %v5085
        %5202 = vmatpush.msra.mxu0 %v5083
        %5203 = vmatpush.msra.mxu0 %v5081
        %5204 = vmatpush.msra.mxu0 %v5079
        %5205 = vmatpush.msra.mxu0 %v5077
        %5206 = vmatpush.msra.mxu0 %v5075
        %5207 = vmatpush.msra.mxu0 %v5073
        %5208 = vmatpush.msra.mxu0 %v5071
        %5209 = vmatpush.msra.mxu0 %v5069
        %5210 = vmatpush.msra.mxu0 %v5067
        %5211 = vmatpush.msra.mxu0 %v5065
        %5212 = vmatpush.msra.mxu0 %v5063
        %5213 = vmatpush.msra.mxu0 %v5061
        %5214 = vmatpush.msra.mxu0 %v5059
        %5215 = vmatmul.f32.gmra.mxu0 %v5057
        %v5216 = vpop.f32.mrf.mxu0
        %v5217 = vadd.f32 %v5177, %v5216
        %5218 = vdwg.mxu0
        %5219 = vmatpush.msra.mxu0 %v5121
        %5220 = vmatpush.msra.mxu0 %v5119
        %5221 = vmatpush.msra.mxu0 %v5117
        %5222 = vmatpush.msra.mxu0 %v5115
        %5223 = vmatpush.msra.mxu0 %v5113
        %5224 = vmatpush.msra.mxu0 %v5111
        %5225 = vmatpush.msra.mxu0 %v5109
        %5226 = vmatpush.msra.mxu0 %v5107
        %5227 = vmatpush.msra.mxu0 %v5105
        %5228 = vmatpush.msra.mxu0 %v5103
        %5229 = vmatpush.msra.mxu0 %v5101
        %5230 = vmatpush.msra.mxu0 %v5099
        %5231 = vmatpush.msra.mxu0 %v5097
        %5232 = vmatpush.msra.mxu0 %v5095
        %5233 = vmatpush.msra.mxu0 %v5093
        %5234 = vmatpush.msra.mxu0 %v5091
        %5235 = vmatmul.f32.gmra.mxu0 %v5058
        %v5236 = vpop.f32.mrf.mxu0
        %v5237 = vadd.f32 %v5217, %v5236
        %5238 = vdwg.mxu0
        %5239 = vmatpush.msra.mxu0 %v5090
        %5240 = vmatpush.msra.mxu0 %v5088
        %5241 = vmatpush.msra.mxu0 %v5086
        %5242 = vmatpush.msra.mxu0 %v5084
        %5243 = vmatpush.msra.mxu0 %v5082
        %5244 = vmatpush.msra.mxu0 %v5080
        %5245 = vmatpush.msra.mxu0 %v5078
        %5246 = vmatpush.msra.mxu0 %v5076
        %5247 = vmatpush.msra.mxu0 %v5074
        %5248 = vmatpush.msra.mxu0 %v5072
        %5249 = vmatpush.msra.mxu0 %v5070
        %5250 = vmatpush.msra.mxu0 %v5068
        %5251 = vmatpush.msra.mxu0 %v5066
        %5252 = vmatpush.msra.mxu0 %v5064
        %5253 = vmatpush.msra.mxu0 %v5062
        %5254 = vmatpush.msra.mxu0 %v5060
        %5255 = vmatmul.f32.gmra.mxu0 %v5057
        %v5256 = vpop.f32.mrf.mxu0
        %v5257 = vadd.f32 %v5197, %v5256
        %5258 = vdwg.mxu0
        %5259 = vmatpush.msra.mxu0 %v5122
        %5260 = vmatpush.msra.mxu0 %v5120
        %5261 = vmatpush.msra.mxu0 %v5118
        %5262 = vmatpush.msra.mxu0 %v5116
        %5263 = vmatpush.msra.mxu0 %v5114
        %5264 = vmatpush.msra.mxu0 %v5112
        %5265 = vmatpush.msra.mxu0 %v5110
        %5266 = vmatpush.msra.mxu0 %v5108
        %5267 = vmatpush.msra.mxu0 %v5106
        %5268 = vmatpush.msra.mxu0 %v5104
        %5269 = vmatpush.msra.mxu0 %v5102
        %5270 = vmatpush.msra.mxu0 %v5100
        %5271 = vmatpush.msra.mxu0 %v5098
        %5272 = vmatpush.msra.mxu0 %v5096
        %5273 = vmatpush.msra.mxu0 %v5094
        %5274 = vmatpush.msra.mxu0 %v5092
        %5275 = vmatmul.f32.gmra.mxu0 %v5058
        %v5276 = vpop.f32.mrf.mxu0
        %v5277 = vadd.f32 %v5257, %v5276
        %5278 = vdwg.mxu0
        %v5279 = vld [vmem:[%s5054] sm:$0x3]
        %v5280 = vld [vmem:[%s5054 + $0x8] sm:$0x3]
        %s5281 = scalar_lea.vmem %s51, 512
        %v5282 = vld [vmem:[%s5281] sm:$0xff]
        %v5283 = vld [vmem:[%s5281 + $0x8] sm:$0xff]
        %v5284 = vld [vmem:[%s5281 + $0x10] sm:$0xff]
        %v5285 = vld [vmem:[%s5281 + $0x18] sm:$0xff]
        %v5286 = vld [vmem:[%s5281 + $0x20] sm:$0xff]
        %v5287 = vld [vmem:[%s5281 + $0x28] sm:$0xff]
        %v5288 = vld [vmem:[%s5281 + $0x30] sm:$0xff]
        %v5289 = vld [vmem:[%s5281 + $0x38] sm:$0xff]
        %v5290 = vld [vmem:[%s5281 + $0x40] sm:$0xff]
        %v5291 = vld [vmem:[%s5281 + $0x48] sm:$0xff]
        %v5292 = vld [vmem:[%s5281 + $0x50] sm:$0xff]
        %v5293 = vld [vmem:[%s5281 + $0x58] sm:$0xff]
        %v5294 = vld [vmem:[%s5281 + $0x60] sm:$0xff]
        %v5295 = vld [vmem:[%s5281 + $0x68] sm:$0xff]
        %v5296 = vld [vmem:[%s5281 + $0x70] sm:$0xff]
        %v5297 = vld [vmem:[%s5281 + $0x78] sm:$0xff]
        %v5298 = vld [vmem:[%s5281 + $0x80] sm:$0xff]
        %v5299 = vld [vmem:[%s5281 + $0x88] sm:$0xff]
        %v5300 = vld [vmem:[%s5281 + $0x90] sm:$0xff]
        %v5301 = vld [vmem:[%s5281 + $0x98] sm:$0xff]
        %v5302 = vld [vmem:[%s5281 + $0xa0] sm:$0xff]
        %v5303 = vld [vmem:[%s5281 + $0xa8] sm:$0xff]
        %v5304 = vld [vmem:[%s5281 + $0xb0] sm:$0xff]
        %v5305 = vld [vmem:[%s5281 + $0xb8] sm:$0xff]
        %v5306 = vld [vmem:[%s5281 + $0xc0] sm:$0xff]
        %v5307 = vld [vmem:[%s5281 + $0xc8] sm:$0xff]
        %v5308 = vld [vmem:[%s5281 + $0xd0] sm:$0xff]
        %v5309 = vld [vmem:[%s5281 + $0xd8] sm:$0xff]
        %v5310 = vld [vmem:[%s5281 + $0xe0] sm:$0xff]
        %v5311 = vld [vmem:[%s5281 + $0xe8] sm:$0xff]
        %v5312 = vld [vmem:[%s5281 + $0xf0] sm:$0xff]
        %v5313 = vld [vmem:[%s5281 + $0xf8] sm:$0xff]
        %v5314 = vld [vmem:[%s5281 + $0x100] sm:$0xff]
        %v5315 = vld [vmem:[%s5281 + $0x108] sm:$0xff]
        %v5316 = vld [vmem:[%s5281 + $0x110] sm:$0xff]
        %v5317 = vld [vmem:[%s5281 + $0x118] sm:$0xff]
        %v5318 = vld [vmem:[%s5281 + $0x120] sm:$0xff]
        %v5319 = vld [vmem:[%s5281 + $0x128] sm:$0xff]
        %v5320 = vld [vmem:[%s5281 + $0x130] sm:$0xff]
        %v5321 = vld [vmem:[%s5281 + $0x138] sm:$0xff]
        %v5322 = vld [vmem:[%s5281 + $0x140] sm:$0xff]
        %v5323 = vld [vmem:[%s5281 + $0x148] sm:$0xff]
        %v5324 = vld [vmem:[%s5281 + $0x150] sm:$0xff]
        %v5325 = vld [vmem:[%s5281 + $0x158] sm:$0xff]
        %v5326 = vld [vmem:[%s5281 + $0x160] sm:$0xff]
        %v5327 = vld [vmem:[%s5281 + $0x168] sm:$0xff]
        %v5328 = vld [vmem:[%s5281 + $0x170] sm:$0xff]
        %v5329 = vld [vmem:[%s5281 + $0x178] sm:$0xff]
        %v5330 = vld [vmem:[%s5281 + $0x180] sm:$0xff]
        %v5331 = vld [vmem:[%s5281 + $0x188] sm:$0xff]
        %v5332 = vld [vmem:[%s5281 + $0x190] sm:$0xff]
        %v5333 = vld [vmem:[%s5281 + $0x198] sm:$0xff]
        %v5334 = vld [vmem:[%s5281 + $0x1a0] sm:$0xff]
        %v5335 = vld [vmem:[%s5281 + $0x1a8] sm:$0xff]
        %v5336 = vld [vmem:[%s5281 + $0x1b0] sm:$0xff]
        %v5337 = vld [vmem:[%s5281 + $0x1b8] sm:$0xff]
        %v5338 = vld [vmem:[%s5281 + $0x1c0] sm:$0xff]
        %v5339 = vld [vmem:[%s5281 + $0x1c8] sm:$0xff]
        %v5340 = vld [vmem:[%s5281 + $0x1d0] sm:$0xff]
        %v5341 = vld [vmem:[%s5281 + $0x1d8] sm:$0xff]
        %v5342 = vld [vmem:[%s5281 + $0x1e0] sm:$0xff]
        %v5343 = vld [vmem:[%s5281 + $0x1e8] sm:$0xff]
        %v5344 = vld [vmem:[%s5281 + $0x1f0] sm:$0xff]
        %v5345 = vld [vmem:[%s5281 + $0x1f8] sm:$0xff]
        %5346 = vmatpush.msra.mxu0 %v5312
        %5347 = vmatpush.msra.mxu0 %v5310
        %5348 = vmatpush.msra.mxu0 %v5308
        %5349 = vmatpush.msra.mxu0 %v5306
        %5350 = vmatpush.msra.mxu0 %v5304
        %5351 = vmatpush.msra.mxu0 %v5302
        %5352 = vmatpush.msra.mxu0 %v5300
        %5353 = vmatpush.msra.mxu0 %v5298
        %5354 = vmatpush.msra.mxu0 %v5296
        %5355 = vmatpush.msra.mxu0 %v5294
        %5356 = vmatpush.msra.mxu0 %v5292
        %5357 = vmatpush.msra.mxu0 %v5290
        %5358 = vmatpush.msra.mxu0 %v5288
        %5359 = vmatpush.msra.mxu0 %v5286
        %5360 = vmatpush.msra.mxu0 %v5284
        %5361 = vmatpush.msra.mxu0 %v5282
        %5362 = vmatmul.f32.gmra.mxu0 %v5279
        %v5363 = vpop.f32.mrf.mxu0
        %v5364 = vadd.f32 0.0, %v5363
        %5365 = vdwg.mxu0
        %5366 = vmatpush.msra.mxu0 %v5344
        %5367 = vmatpush.msra.mxu0 %v5342
        %5368 = vmatpush.msra.mxu0 %v5340
        %5369 = vmatpush.msra.mxu0 %v5338
        %5370 = vmatpush.msra.mxu0 %v5336
        %5371 = vmatpush.msra.mxu0 %v5334
        %5372 = vmatpush.msra.mxu0 %v5332
        %5373 = vmatpush.msra.mxu0 %v5330
        %5374 = vmatpush.msra.mxu0 %v5328
        %5375 = vmatpush.msra.mxu0 %v5326
        %5376 = vmatpush.msra.mxu0 %v5324
        %5377 = vmatpush.msra.mxu0 %v5322
        %5378 = vmatpush.msra.mxu0 %v5320
        %5379 = vmatpush.msra.mxu0 %v5318
        %5380 = vmatpush.msra.mxu0 %v5316
        %5381 = vmatpush.msra.mxu0 %v5314
        %5382 = vmatmul.f32.gmra.mxu0 %v5280
        %v5383 = vpop.f32.mrf.mxu0
        %v5384 = vadd.f32 %v5364, %v5383
        %5385 = vdwg.mxu0
        %5386 = vmatpush.msra.mxu0 %v5313
        %5387 = vmatpush.msra.mxu0 %v5311
        %5388 = vmatpush.msra.mxu0 %v5309
        %5389 = vmatpush.msra.mxu0 %v5307
        %5390 = vmatpush.msra.mxu0 %v5305
        %5391 = vmatpush.msra.mxu0 %v5303
        %5392 = vmatpush.msra.mxu0 %v5301
        %5393 = vmatpush.msra.mxu0 %v5299
        %5394 = vmatpush.msra.mxu0 %v5297
        %5395 = vmatpush.msra.mxu0 %v5295
        %5396 = vmatpush.msra.mxu0 %v5293
        %5397 = vmatpush.msra.mxu0 %v5291
        %5398 = vmatpush.msra.mxu0 %v5289
        %5399 = vmatpush.msra.mxu0 %v5287
        %5400 = vmatpush.msra.mxu0 %v5285
        %5401 = vmatpush.msra.mxu0 %v5283
        %5402 = vmatmul.f32.gmra.mxu0 %v5279
        %v5403 = vpop.f32.mrf.mxu0
        %v5404 = vadd.f32 0.0, %v5403
        %5405 = vdwg.mxu0
        %5406 = vmatpush.msra.mxu0 %v5345
        %5407 = vmatpush.msra.mxu0 %v5343
        %5408 = vmatpush.msra.mxu0 %v5341
        %5409 = vmatpush.msra.mxu0 %v5339
        %5410 = vmatpush.msra.mxu0 %v5337
        %5411 = vmatpush.msra.mxu0 %v5335
        %5412 = vmatpush.msra.mxu0 %v5333
        %5413 = vmatpush.msra.mxu0 %v5331
        %5414 = vmatpush.msra.mxu0 %v5329
        %5415 = vmatpush.msra.mxu0 %v5327
        %5416 = vmatpush.msra.mxu0 %v5325
        %5417 = vmatpush.msra.mxu0 %v5323
        %5418 = vmatpush.msra.mxu0 %v5321
        %5419 = vmatpush.msra.mxu0 %v5319
        %5420 = vmatpush.msra.mxu0 %v5317
        %5421 = vmatpush.msra.mxu0 %v5315
        %5422 = vmatmul.f32.gmra.mxu0 %v5280
        %v5423 = vpop.f32.mrf.mxu0
        %v5424 = vadd.f32 %v5404, %v5423
        %5425 = vdwg.mxu0
        %v5426 = vadd.f32 %v5237, %v5384
        %v5427 = vadd.f32 %v5277, %v5424
        %v5428 = vld [vmem:[%s5054] sm:$0x6]
        %s5429 = scalar_lea.vmem %s53, 256
        %v5430 = vld [vmem:[%s5429] sm:$0xff]
        %v5431 = vld [vmem:[%s5429 + $0x8] sm:$0xff]
        %v5432 = vld [vmem:[%s5429 + $0x10] sm:$0xff]
        %v5433 = vld [vmem:[%s5429 + $0x18] sm:$0xff]
        %v5434 = vld [vmem:[%s5429 + $0x20] sm:$0xff]
        %v5435 = vld [vmem:[%s5429 + $0x28] sm:$0xff]
        %v5436 = vld [vmem:[%s5429 + $0x30] sm:$0xff]
        %v5437 = vld [vmem:[%s5429 + $0x38] sm:$0xff]
        %v5438 = vld [vmem:[%s5429 + $0x40] sm:$0xff]
        %v5439 = vld [vmem:[%s5429 + $0x48] sm:$0xff]
        %v5440 = vld [vmem:[%s5429 + $0x50] sm:$0xff]
        %v5441 = vld [vmem:[%s5429 + $0x58] sm:$0xff]
        %v5442 = vld [vmem:[%s5429 + $0x60] sm:$0xff]
        %v5443 = vld [vmem:[%s5429 + $0x68] sm:$0xff]
        %v5444 = vld [vmem:[%s5429 + $0x70] sm:$0xff]
        %v5445 = vld [vmem:[%s5429 + $0x78] sm:$0xff]
        %v5446 = vld [vmem:[%s5429 + $0x80] sm:$0xff]
        %v5447 = vld [vmem:[%s5429 + $0x88] sm:$0xff]
        %v5448 = vld [vmem:[%s5429 + $0x90] sm:$0xff]
        %v5449 = vld [vmem:[%s5429 + $0x98] sm:$0xff]
        %v5450 = vld [vmem:[%s5429 + $0xa0] sm:$0xff]
        %v5451 = vld [vmem:[%s5429 + $0xa8] sm:$0xff]
        %v5452 = vld [vmem:[%s5429 + $0xb0] sm:$0xff]
        %v5453 = vld [vmem:[%s5429 + $0xb8] sm:$0xff]
        %v5454 = vld [vmem:[%s5429 + $0xc0] sm:$0xff]
        %v5455 = vld [vmem:[%s5429 + $0xc8] sm:$0xff]
        %v5456 = vld [vmem:[%s5429 + $0xd0] sm:$0xff]
        %v5457 = vld [vmem:[%s5429 + $0xd8] sm:$0xff]
        %v5458 = vld [vmem:[%s5429 + $0xe0] sm:$0xff]
        %v5459 = vld [vmem:[%s5429 + $0xe8] sm:$0xff]
        %v5460 = vld [vmem:[%s5429 + $0xf0] sm:$0xff]
        %v5461 = vld [vmem:[%s5429 + $0xf8] sm:$0xff]
        %v5463 = vrot.slane %v5428, 1
        %5465 = vmatpush.msra.mxu0 %v5460
        %5466 = vmatpush.msra.mxu0 %v5458
        %5467 = vmatpush.msra.mxu0 %v5456
        %5468 = vmatpush.msra.mxu0 %v5454
        %5469 = vmatpush.msra.mxu0 %v5452
        %5470 = vmatpush.msra.mxu0 %v5450
        %5471 = vmatpush.msra.mxu0 %v5448
        %5472 = vmatpush.msra.mxu0 %v5446
        %5473 = vmatpush.msra.mxu0 %v5444
        %5474 = vmatpush.msra.mxu0 %v5442
        %5475 = vmatpush.msra.mxu0 %v5440
        %5476 = vmatpush.msra.mxu0 %v5438
        %5477 = vmatpush.msra.mxu0 %v5436
        %5478 = vmatpush.msra.mxu0 %v5434
        %5479 = vmatpush.msra.mxu0 %v5432
        %5480 = vmatpush.msra.mxu0 %v5430
        %5481 = vmatmul.f32.gmra.mxu0 %v5463
        %v5482 = vpop.f32.mrf.mxu0
        %v5483 = vadd.f32 0.0, %v5482
        %5484 = vdwg.mxu0
        %5485 = vmatpush.msra.mxu0 %v5461
        %5486 = vmatpush.msra.mxu0 %v5459
        %5487 = vmatpush.msra.mxu0 %v5457
        %5488 = vmatpush.msra.mxu0 %v5455
        %5489 = vmatpush.msra.mxu0 %v5453
        %5490 = vmatpush.msra.mxu0 %v5451
        %5491 = vmatpush.msra.mxu0 %v5449
        %5492 = vmatpush.msra.mxu0 %v5447
        %5493 = vmatpush.msra.mxu0 %v5445
        %5494 = vmatpush.msra.mxu0 %v5443
        %5495 = vmatpush.msra.mxu0 %v5441
        %5496 = vmatpush.msra.mxu0 %v5439
        %5497 = vmatpush.msra.mxu0 %v5437
        %5498 = vmatpush.msra.mxu0 %v5435
        %5499 = vmatpush.msra.mxu0 %v5433
        %5500 = vmatpush.msra.mxu0 %v5431
        %5501 = vmatmul.f32.gmra.mxu0 %v5463
        %v5502 = vpop.f32.mrf.mxu0
        %v5503 = vadd.f32 0.0, %v5502
        %5504 = vdwg.mxu0
        %v5505 = vadd.f32 %v5426, %v5483
        %v5506 = vadd.f32 %v5427, %v5503
        %v5507 = vld [vmem:[#allocation8] sm:$0xc]
        %v5508 = vld [vmem:[#allocation8 + $0x8] sm:$0xc]
        %s5509 = scalar_lea.vmem %s51, 1024
        %v5510 = vld [vmem:[%s5509] sm:$0xff]
        %v5511 = vld [vmem:[%s5509 + $0x8] sm:$0xff]
        %v5512 = vld [vmem:[%s5509 + $0x10] sm:$0xff]
        %v5513 = vld [vmem:[%s5509 + $0x18] sm:$0xff]
        %v5514 = vld [vmem:[%s5509 + $0x20] sm:$0xff]
        %v5515 = vld [vmem:[%s5509 + $0x28] sm:$0xff]
        %v5516 = vld [vmem:[%s5509 + $0x30] sm:$0xff]
        %v5517 = vld [vmem:[%s5509 + $0x38] sm:$0xff]
        %v5518 = vld [vmem:[%s5509 + $0x40] sm:$0xff]
        %v5519 = vld [vmem:[%s5509 + $0x48] sm:$0xff]
        %v5520 = vld [vmem:[%s5509 + $0x50] sm:$0xff]
        %v5521 = vld [vmem:[%s5509 + $0x58] sm:$0xff]
        %v5522 = vld [vmem:[%s5509 + $0x60] sm:$0xff]
        %v5523 = vld [vmem:[%s5509 + $0x68] sm:$0xff]
        %v5524 = vld [vmem:[%s5509 + $0x70] sm:$0xff]
        %v5525 = vld [vmem:[%s5509 + $0x78] sm:$0xff]
        %v5526 = vld [vmem:[%s5509 + $0x80] sm:$0xff]
        %v5527 = vld [vmem:[%s5509 + $0x88] sm:$0xff]
        %v5528 = vld [vmem:[%s5509 + $0x90] sm:$0xff]
        %v5529 = vld [vmem:[%s5509 + $0x98] sm:$0xff]
        %v5530 = vld [vmem:[%s5509 + $0xa0] sm:$0xff]
        %v5531 = vld [vmem:[%s5509 + $0xa8] sm:$0xff]
        %v5532 = vld [vmem:[%s5509 + $0xb0] sm:$0xff]
        %v5533 = vld [vmem:[%s5509 + $0xb8] sm:$0xff]
        %v5534 = vld [vmem:[%s5509 + $0xc0] sm:$0xff]
        %v5535 = vld [vmem:[%s5509 + $0xc8] sm:$0xff]
        %v5536 = vld [vmem:[%s5509 + $0xd0] sm:$0xff]
        %v5537 = vld [vmem:[%s5509 + $0xd8] sm:$0xff]
        %v5538 = vld [vmem:[%s5509 + $0xe0] sm:$0xff]
        %v5539 = vld [vmem:[%s5509 + $0xe8] sm:$0xff]
        %v5540 = vld [vmem:[%s5509 + $0xf0] sm:$0xff]
        %v5541 = vld [vmem:[%s5509 + $0xf8] sm:$0xff]
        %v5542 = vld [vmem:[%s5509 + $0x100] sm:$0xff]
        %v5543 = vld [vmem:[%s5509 + $0x108] sm:$0xff]
        %v5544 = vld [vmem:[%s5509 + $0x110] sm:$0xff]
        %v5545 = vld [vmem:[%s5509 + $0x118] sm:$0xff]
        %v5546 = vld [vmem:[%s5509 + $0x120] sm:$0xff]
        %v5547 = vld [vmem:[%s5509 + $0x128] sm:$0xff]
        %v5548 = vld [vmem:[%s5509 + $0x130] sm:$0xff]
        %v5549 = vld [vmem:[%s5509 + $0x138] sm:$0xff]
        %v5550 = vld [vmem:[%s5509 + $0x140] sm:$0xff]
        %v5551 = vld [vmem:[%s5509 + $0x148] sm:$0xff]
        %v5552 = vld [vmem:[%s5509 + $0x150] sm:$0xff]
        %v5553 = vld [vmem:[%s5509 + $0x158] sm:$0xff]
        %v5554 = vld [vmem:[%s5509 + $0x160] sm:$0xff]
        %v5555 = vld [vmem:[%s5509 + $0x168] sm:$0xff]
        %v5556 = vld [vmem:[%s5509 + $0x170] sm:$0xff]
        %v5557 = vld [vmem:[%s5509 + $0x178] sm:$0xff]
        %v5558 = vld [vmem:[%s5509 + $0x180] sm:$0xff]
        %v5559 = vld [vmem:[%s5509 + $0x188] sm:$0xff]
        %v5560 = vld [vmem:[%s5509 + $0x190] sm:$0xff]
        %v5561 = vld [vmem:[%s5509 + $0x198] sm:$0xff]
        %v5562 = vld [vmem:[%s5509 + $0x1a0] sm:$0xff]
        %v5563 = vld [vmem:[%s5509 + $0x1a8] sm:$0xff]
        %v5564 = vld [vmem:[%s5509 + $0x1b0] sm:$0xff]
        %v5565 = vld [vmem:[%s5509 + $0x1b8] sm:$0xff]
        %v5566 = vld [vmem:[%s5509 + $0x1c0] sm:$0xff]
        %v5567 = vld [vmem:[%s5509 + $0x1c8] sm:$0xff]
        %v5568 = vld [vmem:[%s5509 + $0x1d0] sm:$0xff]
        %v5569 = vld [vmem:[%s5509 + $0x1d8] sm:$0xff]
        %v5570 = vld [vmem:[%s5509 + $0x1e0] sm:$0xff]
        %v5571 = vld [vmem:[%s5509 + $0x1e8] sm:$0xff]
        %v5572 = vld [vmem:[%s5509 + $0x1f0] sm:$0xff]
        %v5573 = vld [vmem:[%s5509 + $0x1f8] sm:$0xff]
        %v5576 = vrot.slane %v5507, 2
        %v5577 = vrot.slane %v5508, 2
        %5580 = vmatpush.msra.mxu0 %v5540
        %5581 = vmatpush.msra.mxu0 %v5538
        %5582 = vmatpush.msra.mxu0 %v5536
        %5583 = vmatpush.msra.mxu0 %v5534
        %5584 = vmatpush.msra.mxu0 %v5532
        %5585 = vmatpush.msra.mxu0 %v5530
        %5586 = vmatpush.msra.mxu0 %v5528
        %5587 = vmatpush.msra.mxu0 %v5526
        %5588 = vmatpush.msra.mxu0 %v5524
        %5589 = vmatpush.msra.mxu0 %v5522
        %5590 = vmatpush.msra.mxu0 %v5520
        %5591 = vmatpush.msra.mxu0 %v5518
        %5592 = vmatpush.msra.mxu0 %v5516
        %5593 = vmatpush.msra.mxu0 %v5514
        %5594 = vmatpush.msra.mxu0 %v5512
        %5595 = vmatpush.msra.mxu0 %v5510
        %5596 = vmatmul.f32.gmra.mxu0 %v5576
        %v5597 = vpop.f32.mrf.mxu0
        %v5598 = vadd.f32 0.0, %v5597
        %5599 = vdwg.mxu0
        %5600 = vmatpush.msra.mxu0 %v5572
        %5601 = vmatpush.msra.mxu0 %v5570
        %5602 = vmatpush.msra.mxu0 %v5568
        %5603 = vmatpush.msra.mxu0 %v5566
        %5604 = vmatpush.msra.mxu0 %v5564
        %5605 = vmatpush.msra.mxu0 %v5562
        %5606 = vmatpush.msra.mxu0 %v5560
        %5607 = vmatpush.msra.mxu0 %v5558
        %5608 = vmatpush.msra.mxu0 %v5556
        %5609 = vmatpush.msra.mxu0 %v5554
        %5610 = vmatpush.msra.mxu0 %v5552
        %5611 = vmatpush.msra.mxu0 %v5550
        %5612 = vmatpush.msra.mxu0 %v5548
        %5613 = vmatpush.msra.mxu0 %v5546
        %5614 = vmatpush.msra.mxu0 %v5544
        %5615 = vmatpush.msra.mxu0 %v5542
        %5616 = vmatmul.f32.gmra.mxu0 %v5577
        %v5617 = vpop.f32.mrf.mxu0
        %v5618 = vadd.f32 %v5598, %v5617
        %5619 = vdwg.mxu0
        %5620 = vmatpush.msra.mxu0 %v5541
        %5621 = vmatpush.msra.mxu0 %v5539
        %5622 = vmatpush.msra.mxu0 %v5537
        %5623 = vmatpush.msra.mxu0 %v5535
        %5624 = vmatpush.msra.mxu0 %v5533
        %5625 = vmatpush.msra.mxu0 %v5531
        %5626 = vmatpush.msra.mxu0 %v5529
        %5627 = vmatpush.msra.mxu0 %v5527
        %5628 = vmatpush.msra.mxu0 %v5525
        %5629 = vmatpush.msra.mxu0 %v5523
        %5630 = vmatpush.msra.mxu0 %v5521
        %5631 = vmatpush.msra.mxu0 %v5519
        %5632 = vmatpush.msra.mxu0 %v5517
        %5633 = vmatpush.msra.mxu0 %v5515
        %5634 = vmatpush.msra.mxu0 %v5513
        %5635 = vmatpush.msra.mxu0 %v5511
        %5636 = vmatmul.f32.gmra.mxu0 %v5576
        %v5637 = vpop.f32.mrf.mxu0
        %v5638 = vadd.f32 0.0, %v5637
        %5639 = vdwg.mxu0
        %5640 = vmatpush.msra.mxu0 %v5573
        %5641 = vmatpush.msra.mxu0 %v5571
        %5642 = vmatpush.msra.mxu0 %v5569
        %5643 = vmatpush.msra.mxu0 %v5567
        %5644 = vmatpush.msra.mxu0 %v5565
        %5645 = vmatpush.msra.mxu0 %v5563
        %5646 = vmatpush.msra.mxu0 %v5561
        %5647 = vmatpush.msra.mxu0 %v5559
        %5648 = vmatpush.msra.mxu0 %v5557
        %5649 = vmatpush.msra.mxu0 %v5555
        %5650 = vmatpush.msra.mxu0 %v5553
        %5651 = vmatpush.msra.mxu0 %v5551
        %5652 = vmatpush.msra.mxu0 %v5549
        %5653 = vmatpush.msra.mxu0 %v5547
        %5654 = vmatpush.msra.mxu0 %v5545
        %5655 = vmatpush.msra.mxu0 %v5543
        %5656 = vmatmul.f32.gmra.mxu0 %v5577
        %v5657 = vpop.f32.mrf.mxu0
        %v5658 = vadd.f32 %v5638, %v5657
        %5659 = vdwg.mxu0
        %v5660 = vadd.f32 %v5505, %v5618
        %v5661 = vadd.f32 %v5506, %v5658
        %v5662 = vld [vmem:[#allocation8] sm:$0x18]
        %s5663 = scalar_lea.vmem %s53, 512
        %v5664 = vld [vmem:[%s5663] sm:$0xff]
        %v5665 = vld [vmem:[%s5663 + $0x8] sm:$0xff]
        %v5666 = vld [vmem:[%s5663 + $0x10] sm:$0xff]
        %v5667 = vld [vmem:[%s5663 + $0x18] sm:$0xff]
        %v5668 = vld [vmem:[%s5663 + $0x20] sm:$0xff]
        %v5669 = vld [vmem:[%s5663 + $0x28] sm:$0xff]
        %v5670 = vld [vmem:[%s5663 + $0x30] sm:$0xff]
        %v5671 = vld [vmem:[%s5663 + $0x38] sm:$0xff]
        %v5672 = vld [vmem:[%s5663 + $0x40] sm:$0xff]
        %v5673 = vld [vmem:[%s5663 + $0x48] sm:$0xff]
        %v5674 = vld [vmem:[%s5663 + $0x50] sm:$0xff]
        %v5675 = vld [vmem:[%s5663 + $0x58] sm:$0xff]
        %v5676 = vld [vmem:[%s5663 + $0x60] sm:$0xff]
        %v5677 = vld [vmem:[%s5663 + $0x68] sm:$0xff]
        %v5678 = vld [vmem:[%s5663 + $0x70] sm:$0xff]
        %v5679 = vld [vmem:[%s5663 + $0x78] sm:$0xff]
        %v5680 = vld [vmem:[%s5663 + $0x80] sm:$0xff]
        %v5681 = vld [vmem:[%s5663 + $0x88] sm:$0xff]
        %v5682 = vld [vmem:[%s5663 + $0x90] sm:$0xff]
        %v5683 = vld [vmem:[%s5663 + $0x98] sm:$0xff]
        %v5684 = vld [vmem:[%s5663 + $0xa0] sm:$0xff]
        %v5685 = vld [vmem:[%s5663 + $0xa8] sm:$0xff]
        %v5686 = vld [vmem:[%s5663 + $0xb0] sm:$0xff]
        %v5687 = vld [vmem:[%s5663 + $0xb8] sm:$0xff]
        %v5688 = vld [vmem:[%s5663 + $0xc0] sm:$0xff]
        %v5689 = vld [vmem:[%s5663 + $0xc8] sm:$0xff]
        %v5690 = vld [vmem:[%s5663 + $0xd0] sm:$0xff]
        %v5691 = vld [vmem:[%s5663 + $0xd8] sm:$0xff]
        %v5692 = vld [vmem:[%s5663 + $0xe0] sm:$0xff]
        %v5693 = vld [vmem:[%s5663 + $0xe8] sm:$0xff]
        %v5694 = vld [vmem:[%s5663 + $0xf0] sm:$0xff]
        %v5695 = vld [vmem:[%s5663 + $0xf8] sm:$0xff]
        %v5697 = vrot.slane %v5662, 3
        %5699 = vmatpush.msra.mxu0 %v5694
        %5700 = vmatpush.msra.mxu0 %v5692
        %5701 = vmatpush.msra.mxu0 %v5690
        %5702 = vmatpush.msra.mxu0 %v5688
        %5703 = vmatpush.msra.mxu0 %v5686
        %5704 = vmatpush.msra.mxu0 %v5684
        %5705 = vmatpush.msra.mxu0 %v5682
        %5706 = vmatpush.msra.mxu0 %v5680
        %5707 = vmatpush.msra.mxu0 %v5678
        %5708 = vmatpush.msra.mxu0 %v5676
        %5709 = vmatpush.msra.mxu0 %v5674
        %5710 = vmatpush.msra.mxu0 %v5672
        %5711 = vmatpush.msra.mxu0 %v5670
        %5712 = vmatpush.msra.mxu0 %v5668
        %5713 = vmatpush.msra.mxu0 %v5666
        %5714 = vmatpush.msra.mxu0 %v5664
        %5715 = vmatmul.f32.gmra.mxu0 %v5697
        %v5716 = vpop.f32.mrf.mxu0
        %v5717 = vadd.f32 0.0, %v5716
        %5718 = vdwg.mxu0
        %5719 = vmatpush.msra.mxu0 %v5695
        %5720 = vmatpush.msra.mxu0 %v5693
        %5721 = vmatpush.msra.mxu0 %v5691
        %5722 = vmatpush.msra.mxu0 %v5689
        %5723 = vmatpush.msra.mxu0 %v5687
        %5724 = vmatpush.msra.mxu0 %v5685
        %5725 = vmatpush.msra.mxu0 %v5683
        %5726 = vmatpush.msra.mxu0 %v5681
        %5727 = vmatpush.msra.mxu0 %v5679
        %5728 = vmatpush.msra.mxu0 %v5677
        %5729 = vmatpush.msra.mxu0 %v5675
        %5730 = vmatpush.msra.mxu0 %v5673
        %5731 = vmatpush.msra.mxu0 %v5671
        %5732 = vmatpush.msra.mxu0 %v5669
        %5733 = vmatpush.msra.mxu0 %v5667
        %5734 = vmatpush.msra.mxu0 %v5665
        %5735 = vmatmul.f32.gmra.mxu0 %v5697
        %v5736 = vpop.f32.mrf.mxu0
        %v5737 = vadd.f32 0.0, %v5736
        %5738 = vdwg.mxu0
        %v5739 = vadd.f32 %v5660, %v5717
        %v5740 = vadd.f32 %v5661, %v5737
        %vm5741 = vcmp.eq.s32.totalorder %v1723, 1
        %v5742 = vsel %vm5741, 0.0, 1.0
        %v5743 = vld [vmem:[%s55] sm:$0x3]
        %v5745 = vperm.slane %v5743, 0
        %v5746 = vperm.slane %v5743, 1
        %v5749 = vadd.f32 %v5739, %v5745
        %v5750 = vadd.f32 %v5740, %v5746
        %v5751 = vmax.f32 %v5749, 0.0
        %v5752 = vmax.f32 %v5750, 0.0
        %v5753 = vmul.f32 %v5751, %v5742
        %v5754 = vmul.f32 %v5752, %v5742
        %5755 = vst [vmem:[#allocation5] sm:$0x7] 0.0
        %5756 = vst [vmem:[#allocation5 + $0x8] sm:$0x7] 0.0
        %5757 = vst [vmem:[#allocation5] sm:$0xe0] 0.0
        %5758 = vst [vmem:[#allocation5 + $0x8] sm:$0xe0] 0.0
        %v5761 = vrot.slane %v5753, 5
        %v5762 = vrot.slane %v5754, 5
        %5765 = vst [vmem:[#allocation5] sm:$0x18] %v5761
        %5766 = vst [vmem:[#allocation5 + $0x8] sm:$0x18] %v5762
        %v5767 = vld [vmem:[#allocation5] sm:$0x3]
        %v5768 = vld [vmem:[#allocation5 + $0x8] sm:$0x3]
        %v5769 = vld [vmem:[%s57] sm:$0xff]
        %v5770 = vld [vmem:[%s57 + $0x8] sm:$0xff]
        %v5771 = vld [vmem:[%s57 + $0x10] sm:$0xff]
        %v5772 = vld [vmem:[%s57 + $0x18] sm:$0xff]
        %v5773 = vld [vmem:[%s57 + $0x20] sm:$0xff]
        %v5774 = vld [vmem:[%s57 + $0x28] sm:$0xff]
        %v5775 = vld [vmem:[%s57 + $0x30] sm:$0xff]
        %v5776 = vld [vmem:[%s57 + $0x38] sm:$0xff]
        %v5777 = vld [vmem:[%s57 + $0x40] sm:$0xff]
        %v5778 = vld [vmem:[%s57 + $0x48] sm:$0xff]
        %v5779 = vld [vmem:[%s57 + $0x50] sm:$0xff]
        %v5780 = vld [vmem:[%s57 + $0x58] sm:$0xff]
        %v5781 = vld [vmem:[%s57 + $0x60] sm:$0xff]
        %v5782 = vld [vmem:[%s57 + $0x68] sm:$0xff]
        %v5783 = vld [vmem:[%s57 + $0x70] sm:$0xff]
        %v5784 = vld [vmem:[%s57 + $0x78] sm:$0xff]
        %v5785 = vld [vmem:[%s57 + $0x80] sm:$0xff]
        %v5786 = vld [vmem:[%s57 + $0x88] sm:$0xff]
        %v5787 = vld [vmem:[%s57 + $0x90] sm:$0xff]
        %v5788 = vld [vmem:[%s57 + $0x98] sm:$0xff]
        %v5789 = vld [vmem:[%s57 + $0xa0] sm:$0xff]
        %v5790 = vld [vmem:[%s57 + $0xa8] sm:$0xff]
        %v5791 = vld [vmem:[%s57 + $0xb0] sm:$0xff]
        %v5792 = vld [vmem:[%s57 + $0xb8] sm:$0xff]
        %v5793 = vld [vmem:[%s57 + $0xc0] sm:$0xff]
        %v5794 = vld [vmem:[%s57 + $0xc8] sm:$0xff]
        %v5795 = vld [vmem:[%s57 + $0xd0] sm:$0xff]
        %v5796 = vld [vmem:[%s57 + $0xd8] sm:$0xff]
        %v5797 = vld [vmem:[%s57 + $0xe0] sm:$0xff]
        %v5798 = vld [vmem:[%s57 + $0xe8] sm:$0xff]
        %v5799 = vld [vmem:[%s57 + $0xf0] sm:$0xff]
        %v5800 = vld [vmem:[%s57 + $0xf8] sm:$0xff]
        %v5801 = vld [vmem:[%s57 + $0x100] sm:$0xff]
        %v5802 = vld [vmem:[%s57 + $0x108] sm:$0xff]
        %v5803 = vld [vmem:[%s57 + $0x110] sm:$0xff]
        %v5804 = vld [vmem:[%s57 + $0x118] sm:$0xff]
        %v5805 = vld [vmem:[%s57 + $0x120] sm:$0xff]
        %v5806 = vld [vmem:[%s57 + $0x128] sm:$0xff]
        %v5807 = vld [vmem:[%s57 + $0x130] sm:$0xff]
        %v5808 = vld [vmem:[%s57 + $0x138] sm:$0xff]
        %v5809 = vld [vmem:[%s57 + $0x140] sm:$0xff]
        %v5810 = vld [vmem:[%s57 + $0x148] sm:$0xff]
        %v5811 = vld [vmem:[%s57 + $0x150] sm:$0xff]
        %v5812 = vld [vmem:[%s57 + $0x158] sm:$0xff]
        %v5813 = vld [vmem:[%s57 + $0x160] sm:$0xff]
        %v5814 = vld [vmem:[%s57 + $0x168] sm:$0xff]
        %v5815 = vld [vmem:[%s57 + $0x170] sm:$0xff]
        %v5816 = vld [vmem:[%s57 + $0x178] sm:$0xff]
        %v5817 = vld [vmem:[%s57 + $0x180] sm:$0xff]
        %v5818 = vld [vmem:[%s57 + $0x188] sm:$0xff]
        %v5819 = vld [vmem:[%s57 + $0x190] sm:$0xff]
        %v5820 = vld [vmem:[%s57 + $0x198] sm:$0xff]
        %v5821 = vld [vmem:[%s57 + $0x1a0] sm:$0xff]
        %v5822 = vld [vmem:[%s57 + $0x1a8] sm:$0xff]
        %v5823 = vld [vmem:[%s57 + $0x1b0] sm:$0xff]
        %v5824 = vld [vmem:[%s57 + $0x1b8] sm:$0xff]
        %v5825 = vld [vmem:[%s57 + $0x1c0] sm:$0xff]
        %v5826 = vld [vmem:[%s57 + $0x1c8] sm:$0xff]
        %v5827 = vld [vmem:[%s57 + $0x1d0] sm:$0xff]
        %v5828 = vld [vmem:[%s57 + $0x1d8] sm:$0xff]
        %v5829 = vld [vmem:[%s57 + $0x1e0] sm:$0xff]
        %v5830 = vld [vmem:[%s57 + $0x1e8] sm:$0xff]
        %v5831 = vld [vmem:[%s57 + $0x1f0] sm:$0xff]
        %v5832 = vld [vmem:[%s57 + $0x1f8] sm:$0xff]
        %v5833 = vld [vmem:[#allocation5] sm:$0x6]
        %v5834 = vld [vmem:[#allocation5 + $0x8] sm:$0x6]
        %s5835 = scalar_lea.vmem %s57, 512
        %v5836 = vld [vmem:[%s5835] sm:$0xff]
        %v5837 = vld [vmem:[%s5835 + $0x8] sm:$0xff]
        %v5838 = vld [vmem:[%s5835 + $0x10] sm:$0xff]
        %v5839 = vld [vmem:[%s5835 + $0x18] sm:$0xff]
        %v5840 = vld [vmem:[%s5835 + $0x20] sm:$0xff]
        %v5841 = vld [vmem:[%s5835 + $0x28] sm:$0xff]
        %v5842 = vld [vmem:[%s5835 + $0x30] sm:$0xff]
        %v5843 = vld [vmem:[%s5835 + $0x38] sm:$0xff]
        %v5844 = vld [vmem:[%s5835 + $0x40] sm:$0xff]
        %v5845 = vld [vmem:[%s5835 + $0x48] sm:$0xff]
        %v5846 = vld [vmem:[%s5835 + $0x50] sm:$0xff]
        %v5847 = vld [vmem:[%s5835 + $0x58] sm:$0xff]
        %v5848 = vld [vmem:[%s5835 + $0x60] sm:$0xff]
        %v5849 = vld [vmem:[%s5835 + $0x68] sm:$0xff]
        %v5850 = vld [vmem:[%s5835 + $0x70] sm:$0xff]
        %v5851 = vld [vmem:[%s5835 + $0x78] sm:$0xff]
        %v5852 = vld [vmem:[%s5835 + $0x80] sm:$0xff]
        %v5853 = vld [vmem:[%s5835 + $0x88] sm:$0xff]
        %v5854 = vld [vmem:[%s5835 + $0x90] sm:$0xff]
        %v5855 = vld [vmem:[%s5835 + $0x98] sm:$0xff]
        %v5856 = vld [vmem:[%s5835 + $0xa0] sm:$0xff]
        %v5857 = vld [vmem:[%s5835 + $0xa8] sm:$0xff]
        %v5858 = vld [vmem:[%s5835 + $0xb0] sm:$0xff]
        %v5859 = vld [vmem:[%s5835 + $0xb8] sm:$0xff]
        %v5860 = vld [vmem:[%s5835 + $0xc0] sm:$0xff]
        %v5861 = vld [vmem:[%s5835 + $0xc8] sm:$0xff]
        %v5862 = vld [vmem:[%s5835 + $0xd0] sm:$0xff]
        %v5863 = vld [vmem:[%s5835 + $0xd8] sm:$0xff]
        %v5864 = vld [vmem:[%s5835 + $0xe0] sm:$0xff]
        %v5865 = vld [vmem:[%s5835 + $0xe8] sm:$0xff]
        %v5866 = vld [vmem:[%s5835 + $0xf0] sm:$0xff]
        %v5867 = vld [vmem:[%s5835 + $0xf8] sm:$0xff]
        %v5868 = vld [vmem:[%s5835 + $0x100] sm:$0xff]
        %v5869 = vld [vmem:[%s5835 + $0x108] sm:$0xff]
        %v5870 = vld [vmem:[%s5835 + $0x110] sm:$0xff]
        %v5871 = vld [vmem:[%s5835 + $0x118] sm:$0xff]
        %v5872 = vld [vmem:[%s5835 + $0x120] sm:$0xff]
        %v5873 = vld [vmem:[%s5835 + $0x128] sm:$0xff]
        %v5874 = vld [vmem:[%s5835 + $0x130] sm:$0xff]
        %v5875 = vld [vmem:[%s5835 + $0x138] sm:$0xff]
        %v5876 = vld [vmem:[%s5835 + $0x140] sm:$0xff]
        %v5877 = vld [vmem:[%s5835 + $0x148] sm:$0xff]
        %v5878 = vld [vmem:[%s5835 + $0x150] sm:$0xff]
        %v5879 = vld [vmem:[%s5835 + $0x158] sm:$0xff]
        %v5880 = vld [vmem:[%s5835 + $0x160] sm:$0xff]
        %v5881 = vld [vmem:[%s5835 + $0x168] sm:$0xff]
        %v5882 = vld [vmem:[%s5835 + $0x170] sm:$0xff]
        %v5883 = vld [vmem:[%s5835 + $0x178] sm:$0xff]
        %v5884 = vld [vmem:[%s5835 + $0x180] sm:$0xff]
        %v5885 = vld [vmem:[%s5835 + $0x188] sm:$0xff]
        %v5886 = vld [vmem:[%s5835 + $0x190] sm:$0xff]
        %v5887 = vld [vmem:[%s5835 + $0x198] sm:$0xff]
        %v5888 = vld [vmem:[%s5835 + $0x1a0] sm:$0xff]
        %v5889 = vld [vmem:[%s5835 + $0x1a8] sm:$0xff]
        %v5890 = vld [vmem:[%s5835 + $0x1b0] sm:$0xff]
        %v5891 = vld [vmem:[%s5835 + $0x1b8] sm:$0xff]
        %v5892 = vld [vmem:[%s5835 + $0x1c0] sm:$0xff]
        %v5893 = vld [vmem:[%s5835 + $0x1c8] sm:$0xff]
        %v5894 = vld [vmem:[%s5835 + $0x1d0] sm:$0xff]
        %v5895 = vld [vmem:[%s5835 + $0x1d8] sm:$0xff]
        %v5896 = vld [vmem:[%s5835 + $0x1e0] sm:$0xff]
        %v5897 = vld [vmem:[%s5835 + $0x1e8] sm:$0xff]
        %v5898 = vld [vmem:[%s5835 + $0x1f0] sm:$0xff]
        %v5899 = vld [vmem:[%s5835 + $0x1f8] sm:$0xff]
        %v5902 = vrot.slane %v5833, 1
        %v5903 = vrot.slane %v5834, 1
        %5906 = vmatpush.msra.mxu0 %v5866
        %5907 = vmatpush.msra.mxu0 %v5864
        %5908 = vmatpush.msra.mxu0 %v5862
        %5909 = vmatpush.msra.mxu0 %v5860
        %5910 = vmatpush.msra.mxu0 %v5858
        %5911 = vmatpush.msra.mxu0 %v5856
        %5912 = vmatpush.msra.mxu0 %v5854
        %5913 = vmatpush.msra.mxu0 %v5852
        %5914 = vmatpush.msra.mxu0 %v5850
        %5915 = vmatpush.msra.mxu0 %v5848
        %5916 = vmatpush.msra.mxu0 %v5846
        %5917 = vmatpush.msra.mxu0 %v5844
        %5918 = vmatpush.msra.mxu0 %v5842
        %5919 = vmatpush.msra.mxu0 %v5840
        %5920 = vmatpush.msra.mxu0 %v5838
        %5921 = vmatpush.msra.mxu0 %v5836
        %5922 = vmatmul.f32.gmra.mxu0 %v5902
        %v5923 = vpop.f32.mrf.mxu0
        %v5924 = vadd.f32 0.0, %v5923
        %5925 = vdwg.mxu0
        %5926 = vmatpush.msra.mxu0 %v5898
        %5927 = vmatpush.msra.mxu0 %v5896
        %5928 = vmatpush.msra.mxu0 %v5894
        %5929 = vmatpush.msra.mxu0 %v5892
        %5930 = vmatpush.msra.mxu0 %v5890
        %5931 = vmatpush.msra.mxu0 %v5888
        %5932 = vmatpush.msra.mxu0 %v5886
        %5933 = vmatpush.msra.mxu0 %v5884
        %5934 = vmatpush.msra.mxu0 %v5882
        %5935 = vmatpush.msra.mxu0 %v5880
        %5936 = vmatpush.msra.mxu0 %v5878
        %5937 = vmatpush.msra.mxu0 %v5876
        %5938 = vmatpush.msra.mxu0 %v5874
        %5939 = vmatpush.msra.mxu0 %v5872
        %5940 = vmatpush.msra.mxu0 %v5870
        %5941 = vmatpush.msra.mxu0 %v5868
        %5942 = vmatmul.f32.gmra.mxu0 %v5903
        %v5943 = vpop.f32.mrf.mxu0
        %v5944 = vadd.f32 %v5924, %v5943
        %5945 = vdwg.mxu0
        %5946 = vmatpush.msra.mxu0 %v5867
        %5947 = vmatpush.msra.mxu0 %v5865
        %5948 = vmatpush.msra.mxu0 %v5863
        %5949 = vmatpush.msra.mxu0 %v5861
        %5950 = vmatpush.msra.mxu0 %v5859
        %5951 = vmatpush.msra.mxu0 %v5857
        %5952 = vmatpush.msra.mxu0 %v5855
        %5953 = vmatpush.msra.mxu0 %v5853
        %5954 = vmatpush.msra.mxu0 %v5851
        %5955 = vmatpush.msra.mxu0 %v5849
        %5956 = vmatpush.msra.mxu0 %v5847
        %5957 = vmatpush.msra.mxu0 %v5845
        %5958 = vmatpush.msra.mxu0 %v5843
        %5959 = vmatpush.msra.mxu0 %v5841
        %5960 = vmatpush.msra.mxu0 %v5839
        %5961 = vmatpush.msra.mxu0 %v5837
        %5962 = vmatmul.f32.gmra.mxu0 %v5902
        %v5963 = vpop.f32.mrf.mxu0
        %v5964 = vadd.f32 0.0, %v5963
        %5965 = vdwg.mxu0
        %5966 = vmatpush.msra.mxu0 %v5899
        %5967 = vmatpush.msra.mxu0 %v5897
        %5968 = vmatpush.msra.mxu0 %v5895
        %5969 = vmatpush.msra.mxu0 %v5893
        %5970 = vmatpush.msra.mxu0 %v5891
        %5971 = vmatpush.msra.mxu0 %v5889
        %5972 = vmatpush.msra.mxu0 %v5887
        %5973 = vmatpush.msra.mxu0 %v5885
        %5974 = vmatpush.msra.mxu0 %v5883
        %5975 = vmatpush.msra.mxu0 %v5881
        %5976 = vmatpush.msra.mxu0 %v5879
        %5977 = vmatpush.msra.mxu0 %v5877
        %5978 = vmatpush.msra.mxu0 %v5875
        %5979 = vmatpush.msra.mxu0 %v5873
        %5980 = vmatpush.msra.mxu0 %v5871
        %5981 = vmatpush.msra.mxu0 %v5869
        %5982 = vmatmul.f32.gmra.mxu0 %v5903
        %v5983 = vpop.f32.mrf.mxu0
        %v5984 = vadd.f32 %v5964, %v5983
        %5985 = vdwg.mxu0
        %5986 = vmatpush.msra.mxu0 %v5799
        %5987 = vmatpush.msra.mxu0 %v5797
        %5988 = vmatpush.msra.mxu0 %v5795
        %5989 = vmatpush.msra.mxu0 %v5793
        %5990 = vmatpush.msra.mxu0 %v5791
        %5991 = vmatpush.msra.mxu0 %v5789
        %5992 = vmatpush.msra.mxu0 %v5787
        %5993 = vmatpush.msra.mxu0 %v5785
        %5994 = vmatpush.msra.mxu0 %v5783
        %5995 = vmatpush.msra.mxu0 %v5781
        %5996 = vmatpush.msra.mxu0 %v5779
        %5997 = vmatpush.msra.mxu0 %v5777
        %5998 = vmatpush.msra.mxu0 %v5775
        %5999 = vmatpush.msra.mxu0 %v5773
        %6000 = vmatpush.msra.mxu0 %v5771
        %6001 = vmatpush.msra.mxu0 %v5769
        %6002 = vmatmul.f32.gmra.mxu0 %v5767
        %v6003 = vpop.f32.mrf.mxu0
        %v6004 = vadd.f32 %v5944, %v6003
        %6005 = vdwg.mxu0
        %6006 = vmatpush.msra.mxu0 %v5831
        %6007 = vmatpush.msra.mxu0 %v5829
        %6008 = vmatpush.msra.mxu0 %v5827
        %6009 = vmatpush.msra.mxu0 %v5825
        %6010 = vmatpush.msra.mxu0 %v5823
        %6011 = vmatpush.msra.mxu0 %v5821
        %6012 = vmatpush.msra.mxu0 %v5819
        %6013 = vmatpush.msra.mxu0 %v5817
        %6014 = vmatpush.msra.mxu0 %v5815
        %6015 = vmatpush.msra.mxu0 %v5813
        %6016 = vmatpush.msra.mxu0 %v5811
        %6017 = vmatpush.msra.mxu0 %v5809
        %6018 = vmatpush.msra.mxu0 %v5807
        %6019 = vmatpush.msra.mxu0 %v5805
        %6020 = vmatpush.msra.mxu0 %v5803
        %6021 = vmatpush.msra.mxu0 %v5801
        %6022 = vmatmul.f32.gmra.mxu0 %v5768
        %v6023 = vpop.f32.mrf.mxu0
        %v6024 = vadd.f32 %v6004, %v6023
        %6025 = vdwg.mxu0
        %6026 = vmatpush.msra.mxu0 %v5800
        %6027 = vmatpush.msra.mxu0 %v5798
        %6028 = vmatpush.msra.mxu0 %v5796
        %6029 = vmatpush.msra.mxu0 %v5794
        %6030 = vmatpush.msra.mxu0 %v5792
        %6031 = vmatpush.msra.mxu0 %v5790
        %6032 = vmatpush.msra.mxu0 %v5788
        %6033 = vmatpush.msra.mxu0 %v5786
        %6034 = vmatpush.msra.mxu0 %v5784
        %6035 = vmatpush.msra.mxu0 %v5782
        %6036 = vmatpush.msra.mxu0 %v5780
        %6037 = vmatpush.msra.mxu0 %v5778
        %6038 = vmatpush.msra.mxu0 %v5776
        %6039 = vmatpush.msra.mxu0 %v5774
        %6040 = vmatpush.msra.mxu0 %v5772
        %6041 = vmatpush.msra.mxu0 %v5770
        %6042 = vmatmul.f32.gmra.mxu0 %v5767
        %v6043 = vpop.f32.mrf.mxu0
        %v6044 = vadd.f32 %v5984, %v6043
        %6045 = vdwg.mxu0
        %6046 = vmatpush.msra.mxu0 %v5832
        %6047 = vmatpush.msra.mxu0 %v5830
        %6048 = vmatpush.msra.mxu0 %v5828
        %6049 = vmatpush.msra.mxu0 %v5826
        %6050 = vmatpush.msra.mxu0 %v5824
        %6051 = vmatpush.msra.mxu0 %v5822
        %6052 = vmatpush.msra.mxu0 %v5820
        %6053 = vmatpush.msra.mxu0 %v5818
        %6054 = vmatpush.msra.mxu0 %v5816
        %6055 = vmatpush.msra.mxu0 %v5814
        %6056 = vmatpush.msra.mxu0 %v5812
        %6057 = vmatpush.msra.mxu0 %v5810
        %6058 = vmatpush.msra.mxu0 %v5808
        %6059 = vmatpush.msra.mxu0 %v5806
        %6060 = vmatpush.msra.mxu0 %v5804
        %6061 = vmatpush.msra.mxu0 %v5802
        %6062 = vmatmul.f32.gmra.mxu0 %v5768
        %v6063 = vpop.f32.mrf.mxu0
        %v6064 = vadd.f32 %v6044, %v6063
        %6065 = vdwg.mxu0
        %v6066 = vld [vmem:[#allocation5] sm:$0xc]
        %v6067 = vld [vmem:[#allocation5 + $0x8] sm:$0xc]
        %s6068 = scalar_lea.vmem %s57, 1024
        %v6069 = vld [vmem:[%s6068] sm:$0xff]
        %v6070 = vld [vmem:[%s6068 + $0x8] sm:$0xff]
        %v6071 = vld [vmem:[%s6068 + $0x10] sm:$0xff]
        %v6072 = vld [vmem:[%s6068 + $0x18] sm:$0xff]
        %v6073 = vld [vmem:[%s6068 + $0x20] sm:$0xff]
        %v6074 = vld [vmem:[%s6068 + $0x28] sm:$0xff]
        %v6075 = vld [vmem:[%s6068 + $0x30] sm:$0xff]
        %v6076 = vld [vmem:[%s6068 + $0x38] sm:$0xff]
        %v6077 = vld [vmem:[%s6068 + $0x40] sm:$0xff]
        %v6078 = vld [vmem:[%s6068 + $0x48] sm:$0xff]
        %v6079 = vld [vmem:[%s6068 + $0x50] sm:$0xff]
        %v6080 = vld [vmem:[%s6068 + $0x58] sm:$0xff]
        %v6081 = vld [vmem:[%s6068 + $0x60] sm:$0xff]
        %v6082 = vld [vmem:[%s6068 + $0x68] sm:$0xff]
        %v6083 = vld [vmem:[%s6068 + $0x70] sm:$0xff]
        %v6084 = vld [vmem:[%s6068 + $0x78] sm:$0xff]
        %v6085 = vld [vmem:[%s6068 + $0x80] sm:$0xff]
        %v6086 = vld [vmem:[%s6068 + $0x88] sm:$0xff]
        %v6087 = vld [vmem:[%s6068 + $0x90] sm:$0xff]
        %v6088 = vld [vmem:[%s6068 + $0x98] sm:$0xff]
        %v6089 = vld [vmem:[%s6068 + $0xa0] sm:$0xff]
        %v6090 = vld [vmem:[%s6068 + $0xa8] sm:$0xff]
        %v6091 = vld [vmem:[%s6068 + $0xb0] sm:$0xff]
        %v6092 = vld [vmem:[%s6068 + $0xb8] sm:$0xff]
        %v6093 = vld [vmem:[%s6068 + $0xc0] sm:$0xff]
        %v6094 = vld [vmem:[%s6068 + $0xc8] sm:$0xff]
        %v6095 = vld [vmem:[%s6068 + $0xd0] sm:$0xff]
        %v6096 = vld [vmem:[%s6068 + $0xd8] sm:$0xff]
        %v6097 = vld [vmem:[%s6068 + $0xe0] sm:$0xff]
        %v6098 = vld [vmem:[%s6068 + $0xe8] sm:$0xff]
        %v6099 = vld [vmem:[%s6068 + $0xf0] sm:$0xff]
        %v6100 = vld [vmem:[%s6068 + $0xf8] sm:$0xff]
        %v6101 = vld [vmem:[%s6068 + $0x100] sm:$0xff]
        %v6102 = vld [vmem:[%s6068 + $0x108] sm:$0xff]
        %v6103 = vld [vmem:[%s6068 + $0x110] sm:$0xff]
        %v6104 = vld [vmem:[%s6068 + $0x118] sm:$0xff]
        %v6105 = vld [vmem:[%s6068 + $0x120] sm:$0xff]
        %v6106 = vld [vmem:[%s6068 + $0x128] sm:$0xff]
        %v6107 = vld [vmem:[%s6068 + $0x130] sm:$0xff]
        %v6108 = vld [vmem:[%s6068 + $0x138] sm:$0xff]
        %v6109 = vld [vmem:[%s6068 + $0x140] sm:$0xff]
        %v6110 = vld [vmem:[%s6068 + $0x148] sm:$0xff]
        %v6111 = vld [vmem:[%s6068 + $0x150] sm:$0xff]
        %v6112 = vld [vmem:[%s6068 + $0x158] sm:$0xff]
        %v6113 = vld [vmem:[%s6068 + $0x160] sm:$0xff]
        %v6114 = vld [vmem:[%s6068 + $0x168] sm:$0xff]
        %v6115 = vld [vmem:[%s6068 + $0x170] sm:$0xff]
        %v6116 = vld [vmem:[%s6068 + $0x178] sm:$0xff]
        %v6117 = vld [vmem:[%s6068 + $0x180] sm:$0xff]
        %v6118 = vld [vmem:[%s6068 + $0x188] sm:$0xff]
        %v6119 = vld [vmem:[%s6068 + $0x190] sm:$0xff]
        %v6120 = vld [vmem:[%s6068 + $0x198] sm:$0xff]
        %v6121 = vld [vmem:[%s6068 + $0x1a0] sm:$0xff]
        %v6122 = vld [vmem:[%s6068 + $0x1a8] sm:$0xff]
        %v6123 = vld [vmem:[%s6068 + $0x1b0] sm:$0xff]
        %v6124 = vld [vmem:[%s6068 + $0x1b8] sm:$0xff]
        %v6125 = vld [vmem:[%s6068 + $0x1c0] sm:$0xff]
        %v6126 = vld [vmem:[%s6068 + $0x1c8] sm:$0xff]
        %v6127 = vld [vmem:[%s6068 + $0x1d0] sm:$0xff]
        %v6128 = vld [vmem:[%s6068 + $0x1d8] sm:$0xff]
        %v6129 = vld [vmem:[%s6068 + $0x1e0] sm:$0xff]
        %v6130 = vld [vmem:[%s6068 + $0x1e8] sm:$0xff]
        %v6131 = vld [vmem:[%s6068 + $0x1f0] sm:$0xff]
        %v6132 = vld [vmem:[%s6068 + $0x1f8] sm:$0xff]
        %v6135 = vrot.slane %v6066, 2
        %v6136 = vrot.slane %v6067, 2
        %6139 = vmatpush.msra.mxu0 %v6099
        %6140 = vmatpush.msra.mxu0 %v6097
        %6141 = vmatpush.msra.mxu0 %v6095
        %6142 = vmatpush.msra.mxu0 %v6093
        %6143 = vmatpush.msra.mxu0 %v6091
        %6144 = vmatpush.msra.mxu0 %v6089
        %6145 = vmatpush.msra.mxu0 %v6087
        %6146 = vmatpush.msra.mxu0 %v6085
        %6147 = vmatpush.msra.mxu0 %v6083
        %6148 = vmatpush.msra.mxu0 %v6081
        %6149 = vmatpush.msra.mxu0 %v6079
        %6150 = vmatpush.msra.mxu0 %v6077
        %6151 = vmatpush.msra.mxu0 %v6075
        %6152 = vmatpush.msra.mxu0 %v6073
        %6153 = vmatpush.msra.mxu0 %v6071
        %6154 = vmatpush.msra.mxu0 %v6069
        %6155 = vmatmul.f32.gmra.mxu0 %v6135
        %v6156 = vpop.f32.mrf.mxu0
        %v6157 = vadd.f32 0.0, %v6156
        %6158 = vdwg.mxu0
        %6159 = vmatpush.msra.mxu0 %v6131
        %6160 = vmatpush.msra.mxu0 %v6129
        %6161 = vmatpush.msra.mxu0 %v6127
        %6162 = vmatpush.msra.mxu0 %v6125
        %6163 = vmatpush.msra.mxu0 %v6123
        %6164 = vmatpush.msra.mxu0 %v6121
        %6165 = vmatpush.msra.mxu0 %v6119
        %6166 = vmatpush.msra.mxu0 %v6117
        %6167 = vmatpush.msra.mxu0 %v6115
        %6168 = vmatpush.msra.mxu0 %v6113
        %6169 = vmatpush.msra.mxu0 %v6111
        %6170 = vmatpush.msra.mxu0 %v6109
        %6171 = vmatpush.msra.mxu0 %v6107
        %6172 = vmatpush.msra.mxu0 %v6105
        %6173 = vmatpush.msra.mxu0 %v6103
        %6174 = vmatpush.msra.mxu0 %v6101
        %6175 = vmatmul.f32.gmra.mxu0 %v6136
        %v6176 = vpop.f32.mrf.mxu0
        %v6177 = vadd.f32 %v6157, %v6176
        %6178 = vdwg.mxu0
        %6179 = vmatpush.msra.mxu0 %v6100
        %6180 = vmatpush.msra.mxu0 %v6098
        %6181 = vmatpush.msra.mxu0 %v6096
        %6182 = vmatpush.msra.mxu0 %v6094
        %6183 = vmatpush.msra.mxu0 %v6092
        %6184 = vmatpush.msra.mxu0 %v6090
        %6185 = vmatpush.msra.mxu0 %v6088
        %6186 = vmatpush.msra.mxu0 %v6086
        %6187 = vmatpush.msra.mxu0 %v6084
        %6188 = vmatpush.msra.mxu0 %v6082
        %6189 = vmatpush.msra.mxu0 %v6080
        %6190 = vmatpush.msra.mxu0 %v6078
        %6191 = vmatpush.msra.mxu0 %v6076
        %6192 = vmatpush.msra.mxu0 %v6074
        %6193 = vmatpush.msra.mxu0 %v6072
        %6194 = vmatpush.msra.mxu0 %v6070
        %6195 = vmatmul.f32.gmra.mxu0 %v6135
        %v6196 = vpop.f32.mrf.mxu0
        %v6197 = vadd.f32 0.0, %v6196
        %6198 = vdwg.mxu0
        %6199 = vmatpush.msra.mxu0 %v6132
        %6200 = vmatpush.msra.mxu0 %v6130
        %6201 = vmatpush.msra.mxu0 %v6128
        %6202 = vmatpush.msra.mxu0 %v6126
        %6203 = vmatpush.msra.mxu0 %v6124
        %6204 = vmatpush.msra.mxu0 %v6122
        %6205 = vmatpush.msra.mxu0 %v6120
        %6206 = vmatpush.msra.mxu0 %v6118
        %6207 = vmatpush.msra.mxu0 %v6116
        %6208 = vmatpush.msra.mxu0 %v6114
        %6209 = vmatpush.msra.mxu0 %v6112
        %6210 = vmatpush.msra.mxu0 %v6110
        %6211 = vmatpush.msra.mxu0 %v6108
        %6212 = vmatpush.msra.mxu0 %v6106
        %6213 = vmatpush.msra.mxu0 %v6104
        %6214 = vmatpush.msra.mxu0 %v6102
        %6215 = vmatmul.f32.gmra.mxu0 %v6136
        %v6216 = vpop.f32.mrf.mxu0
        %v6217 = vadd.f32 %v6197, %v6216
        %6218 = vdwg.mxu0
        %v6219 = vadd.f32 %v6024, %v6177
        %v6220 = vadd.f32 %v6064, %v6217
        %s6221 = scalar_lea.vmem %s57, 1536
        %v6222 = vld [vmem:[%s6221] sm:$0xff]
        %v6223 = vld [vmem:[%s6221 + $0x8] sm:$0xff]
        %v6224 = vld [vmem:[%s6221 + $0x10] sm:$0xff]
        %v6225 = vld [vmem:[%s6221 + $0x18] sm:$0xff]
        %v6226 = vld [vmem:[%s6221 + $0x20] sm:$0xff]
        %v6227 = vld [vmem:[%s6221 + $0x28] sm:$0xff]
        %v6228 = vld [vmem:[%s6221 + $0x30] sm:$0xff]
        %v6229 = vld [vmem:[%s6221 + $0x38] sm:$0xff]
        %v6230 = vld [vmem:[%s6221 + $0x40] sm:$0xff]
        %v6231 = vld [vmem:[%s6221 + $0x48] sm:$0xff]
        %v6232 = vld [vmem:[%s6221 + $0x50] sm:$0xff]
        %v6233 = vld [vmem:[%s6221 + $0x58] sm:$0xff]
        %v6234 = vld [vmem:[%s6221 + $0x60] sm:$0xff]
        %v6235 = vld [vmem:[%s6221 + $0x68] sm:$0xff]
        %v6236 = vld [vmem:[%s6221 + $0x70] sm:$0xff]
        %v6237 = vld [vmem:[%s6221 + $0x78] sm:$0xff]
        %v6238 = vld [vmem:[%s6221 + $0x80] sm:$0xff]
        %v6239 = vld [vmem:[%s6221 + $0x88] sm:$0xff]
        %v6240 = vld [vmem:[%s6221 + $0x90] sm:$0xff]
        %v6241 = vld [vmem:[%s6221 + $0x98] sm:$0xff]
        %v6242 = vld [vmem:[%s6221 + $0xa0] sm:$0xff]
        %v6243 = vld [vmem:[%s6221 + $0xa8] sm:$0xff]
        %v6244 = vld [vmem:[%s6221 + $0xb0] sm:$0xff]
        %v6245 = vld [vmem:[%s6221 + $0xb8] sm:$0xff]
        %v6246 = vld [vmem:[%s6221 + $0xc0] sm:$0xff]
        %v6247 = vld [vmem:[%s6221 + $0xc8] sm:$0xff]
        %v6248 = vld [vmem:[%s6221 + $0xd0] sm:$0xff]
        %v6249 = vld [vmem:[%s6221 + $0xd8] sm:$0xff]
        %v6250 = vld [vmem:[%s6221 + $0xe0] sm:$0xff]
        %v6251 = vld [vmem:[%s6221 + $0xe8] sm:$0xff]
        %v6252 = vld [vmem:[%s6221 + $0xf0] sm:$0xff]
        %v6253 = vld [vmem:[%s6221 + $0xf8] sm:$0xff]
        %v6254 = vld [vmem:[%s6221 + $0x100] sm:$0xff]
        %v6255 = vld [vmem:[%s6221 + $0x108] sm:$0xff]
        %v6256 = vld [vmem:[%s6221 + $0x110] sm:$0xff]
        %v6257 = vld [vmem:[%s6221 + $0x118] sm:$0xff]
        %v6258 = vld [vmem:[%s6221 + $0x120] sm:$0xff]
        %v6259 = vld [vmem:[%s6221 + $0x128] sm:$0xff]
        %v6260 = vld [vmem:[%s6221 + $0x130] sm:$0xff]
        %v6261 = vld [vmem:[%s6221 + $0x138] sm:$0xff]
        %v6262 = vld [vmem:[%s6221 + $0x140] sm:$0xff]
        %v6263 = vld [vmem:[%s6221 + $0x148] sm:$0xff]
        %v6264 = vld [vmem:[%s6221 + $0x150] sm:$0xff]
        %v6265 = vld [vmem:[%s6221 + $0x158] sm:$0xff]
        %v6266 = vld [vmem:[%s6221 + $0x160] sm:$0xff]
        %v6267 = vld [vmem:[%s6221 + $0x168] sm:$0xff]
        %v6268 = vld [vmem:[%s6221 + $0x170] sm:$0xff]
        %v6269 = vld [vmem:[%s6221 + $0x178] sm:$0xff]
        %v6270 = vld [vmem:[%s6221 + $0x180] sm:$0xff]
        %v6271 = vld [vmem:[%s6221 + $0x188] sm:$0xff]
        %v6272 = vld [vmem:[%s6221 + $0x190] sm:$0xff]
        %v6273 = vld [vmem:[%s6221 + $0x198] sm:$0xff]
        %v6274 = vld [vmem:[%s6221 + $0x1a0] sm:$0xff]
        %v6275 = vld [vmem:[%s6221 + $0x1a8] sm:$0xff]
        %v6276 = vld [vmem:[%s6221 + $0x1b0] sm:$0xff]
        %v6277 = vld [vmem:[%s6221 + $0x1b8] sm:$0xff]
        %v6278 = vld [vmem:[%s6221 + $0x1c0] sm:$0xff]
        %v6279 = vld [vmem:[%s6221 + $0x1c8] sm:$0xff]
        %v6280 = vld [vmem:[%s6221 + $0x1d0] sm:$0xff]
        %v6281 = vld [vmem:[%s6221 + $0x1d8] sm:$0xff]
        %v6282 = vld [vmem:[%s6221 + $0x1e0] sm:$0xff]
        %v6283 = vld [vmem:[%s6221 + $0x1e8] sm:$0xff]
        %v6284 = vld [vmem:[%s6221 + $0x1f0] sm:$0xff]
        %v6285 = vld [vmem:[%s6221 + $0x1f8] sm:$0xff]
        %6286 = vmatpush.msra.mxu0 %v6252
        %6287 = vmatpush.msra.mxu0 %v6250
        %6288 = vmatpush.msra.mxu0 %v6248
        %6289 = vmatpush.msra.mxu0 %v6246
        %6290 = vmatpush.msra.mxu0 %v6244
        %6291 = vmatpush.msra.mxu0 %v6242
        %6292 = vmatpush.msra.mxu0 %v6240
        %6293 = vmatpush.msra.mxu0 %v6238
        %6294 = vmatpush.msra.mxu0 %v6236
        %6295 = vmatpush.msra.mxu0 %v6234
        %6296 = vmatpush.msra.mxu0 %v6232
        %6297 = vmatpush.msra.mxu0 %v6230
        %6298 = vmatpush.msra.mxu0 %v6228
        %6299 = vmatpush.msra.mxu0 %v6226
        %6300 = vmatpush.msra.mxu0 %v6224
        %6301 = vmatpush.msra.mxu0 %v6222
        %6302 = vmatmul.f32.gmra.mxu0 %v6135
        %v6303 = vpop.f32.mrf.mxu0
        %v6304 = vadd.f32 0.0, %v6303
        %6305 = vdwg.mxu0
        %6306 = vmatpush.msra.mxu0 %v6284
        %6307 = vmatpush.msra.mxu0 %v6282
        %6308 = vmatpush.msra.mxu0 %v6280
        %6309 = vmatpush.msra.mxu0 %v6278
        %6310 = vmatpush.msra.mxu0 %v6276
        %6311 = vmatpush.msra.mxu0 %v6274
        %6312 = vmatpush.msra.mxu0 %v6272
        %6313 = vmatpush.msra.mxu0 %v6270
        %6314 = vmatpush.msra.mxu0 %v6268
        %6315 = vmatpush.msra.mxu0 %v6266
        %6316 = vmatpush.msra.mxu0 %v6264
        %6317 = vmatpush.msra.mxu0 %v6262
        %6318 = vmatpush.msra.mxu0 %v6260
        %6319 = vmatpush.msra.mxu0 %v6258
        %6320 = vmatpush.msra.mxu0 %v6256
        %6321 = vmatpush.msra.mxu0 %v6254
        %6322 = vmatmul.f32.gmra.mxu0 %v6136
        %v6323 = vpop.f32.mrf.mxu0
        %v6324 = vadd.f32 %v6304, %v6323
        %6325 = vdwg.mxu0
        %6326 = vmatpush.msra.mxu0 %v6253
        %6327 = vmatpush.msra.mxu0 %v6251
        %6328 = vmatpush.msra.mxu0 %v6249
        %6329 = vmatpush.msra.mxu0 %v6247
        %6330 = vmatpush.msra.mxu0 %v6245
        %6331 = vmatpush.msra.mxu0 %v6243
        %6332 = vmatpush.msra.mxu0 %v6241
        %6333 = vmatpush.msra.mxu0 %v6239
        %6334 = vmatpush.msra.mxu0 %v6237
        %6335 = vmatpush.msra.mxu0 %v6235
        %6336 = vmatpush.msra.mxu0 %v6233
        %6337 = vmatpush.msra.mxu0 %v6231
        %6338 = vmatpush.msra.mxu0 %v6229
        %6339 = vmatpush.msra.mxu0 %v6227
        %6340 = vmatpush.msra.mxu0 %v6225
        %6341 = vmatpush.msra.mxu0 %v6223
        %6342 = vmatmul.f32.gmra.mxu0 %v6135
        %v6343 = vpop.f32.mrf.mxu0
        %v6344 = vadd.f32 0.0, %v6343
        %6345 = vdwg.mxu0
        %6346 = vmatpush.msra.mxu0 %v6285
        %6347 = vmatpush.msra.mxu0 %v6283
        %6348 = vmatpush.msra.mxu0 %v6281
        %6349 = vmatpush.msra.mxu0 %v6279
        %6350 = vmatpush.msra.mxu0 %v6277
        %6351 = vmatpush.msra.mxu0 %v6275
        %6352 = vmatpush.msra.mxu0 %v6273
        %6353 = vmatpush.msra.mxu0 %v6271
        %6354 = vmatpush.msra.mxu0 %v6269
        %6355 = vmatpush.msra.mxu0 %v6267
        %6356 = vmatpush.msra.mxu0 %v6265
        %6357 = vmatpush.msra.mxu0 %v6263
        %6358 = vmatpush.msra.mxu0 %v6261
        %6359 = vmatpush.msra.mxu0 %v6259
        %6360 = vmatpush.msra.mxu0 %v6257
        %6361 = vmatpush.msra.mxu0 %v6255
        %6362 = vmatmul.f32.gmra.mxu0 %v6136
        %v6363 = vpop.f32.mrf.mxu0
        %v6364 = vadd.f32 %v6344, %v6363
        %6365 = vdwg.mxu0
        %v6366 = vadd.f32 %v6219, %v6324
        %v6367 = vadd.f32 %v6220, %v6364
        %v6368 = vld [vmem:[#allocation5] sm:$0x18]
        %v6369 = vld [vmem:[#allocation5 + $0x8] sm:$0x18]
        %s6370 = scalar_lea.vmem %s57, 2048
        %v6371 = vld [vmem:[%s6370] sm:$0xff]
        %v6372 = vld [vmem:[%s6370 + $0x8] sm:$0xff]
        %v6373 = vld [vmem:[%s6370 + $0x10] sm:$0xff]
        %v6374 = vld [vmem:[%s6370 + $0x18] sm:$0xff]
        %v6375 = vld [vmem:[%s6370 + $0x20] sm:$0xff]
        %v6376 = vld [vmem:[%s6370 + $0x28] sm:$0xff]
        %v6377 = vld [vmem:[%s6370 + $0x30] sm:$0xff]
        %v6378 = vld [vmem:[%s6370 + $0x38] sm:$0xff]
        %v6379 = vld [vmem:[%s6370 + $0x40] sm:$0xff]
        %v6380 = vld [vmem:[%s6370 + $0x48] sm:$0xff]
        %v6381 = vld [vmem:[%s6370 + $0x50] sm:$0xff]
        %v6382 = vld [vmem:[%s6370 + $0x58] sm:$0xff]
        %v6383 = vld [vmem:[%s6370 + $0x60] sm:$0xff]
        %v6384 = vld [vmem:[%s6370 + $0x68] sm:$0xff]
        %v6385 = vld [vmem:[%s6370 + $0x70] sm:$0xff]
        %v6386 = vld [vmem:[%s6370 + $0x78] sm:$0xff]
        %v6387 = vld [vmem:[%s6370 + $0x80] sm:$0xff]
        %v6388 = vld [vmem:[%s6370 + $0x88] sm:$0xff]
        %v6389 = vld [vmem:[%s6370 + $0x90] sm:$0xff]
        %v6390 = vld [vmem:[%s6370 + $0x98] sm:$0xff]
        %v6391 = vld [vmem:[%s6370 + $0xa0] sm:$0xff]
        %v6392 = vld [vmem:[%s6370 + $0xa8] sm:$0xff]
        %v6393 = vld [vmem:[%s6370 + $0xb0] sm:$0xff]
        %v6394 = vld [vmem:[%s6370 + $0xb8] sm:$0xff]
        %v6395 = vld [vmem:[%s6370 + $0xc0] sm:$0xff]
        %v6396 = vld [vmem:[%s6370 + $0xc8] sm:$0xff]
        %v6397 = vld [vmem:[%s6370 + $0xd0] sm:$0xff]
        %v6398 = vld [vmem:[%s6370 + $0xd8] sm:$0xff]
        %v6399 = vld [vmem:[%s6370 + $0xe0] sm:$0xff]
        %v6400 = vld [vmem:[%s6370 + $0xe8] sm:$0xff]
        %v6401 = vld [vmem:[%s6370 + $0xf0] sm:$0xff]
        %v6402 = vld [vmem:[%s6370 + $0xf8] sm:$0xff]
        %v6403 = vld [vmem:[%s6370 + $0x100] sm:$0xff]
        %v6404 = vld [vmem:[%s6370 + $0x108] sm:$0xff]
        %v6405 = vld [vmem:[%s6370 + $0x110] sm:$0xff]
        %v6406 = vld [vmem:[%s6370 + $0x118] sm:$0xff]
        %v6407 = vld [vmem:[%s6370 + $0x120] sm:$0xff]
        %v6408 = vld [vmem:[%s6370 + $0x128] sm:$0xff]
        %v6409 = vld [vmem:[%s6370 + $0x130] sm:$0xff]
        %v6410 = vld [vmem:[%s6370 + $0x138] sm:$0xff]
        %v6411 = vld [vmem:[%s6370 + $0x140] sm:$0xff]
        %v6412 = vld [vmem:[%s6370 + $0x148] sm:$0xff]
        %v6413 = vld [vmem:[%s6370 + $0x150] sm:$0xff]
        %v6414 = vld [vmem:[%s6370 + $0x158] sm:$0xff]
        %v6415 = vld [vmem:[%s6370 + $0x160] sm:$0xff]
        %v6416 = vld [vmem:[%s6370 + $0x168] sm:$0xff]
        %v6417 = vld [vmem:[%s6370 + $0x170] sm:$0xff]
        %v6418 = vld [vmem:[%s6370 + $0x178] sm:$0xff]
        %v6419 = vld [vmem:[%s6370 + $0x180] sm:$0xff]
        %v6420 = vld [vmem:[%s6370 + $0x188] sm:$0xff]
        %v6421 = vld [vmem:[%s6370 + $0x190] sm:$0xff]
        %v6422 = vld [vmem:[%s6370 + $0x198] sm:$0xff]
        %v6423 = vld [vmem:[%s6370 + $0x1a0] sm:$0xff]
        %v6424 = vld [vmem:[%s6370 + $0x1a8] sm:$0xff]
        %v6425 = vld [vmem:[%s6370 + $0x1b0] sm:$0xff]
        %v6426 = vld [vmem:[%s6370 + $0x1b8] sm:$0xff]
        %v6427 = vld [vmem:[%s6370 + $0x1c0] sm:$0xff]
        %v6428 = vld [vmem:[%s6370 + $0x1c8] sm:$0xff]
        %v6429 = vld [vmem:[%s6370 + $0x1d0] sm:$0xff]
        %v6430 = vld [vmem:[%s6370 + $0x1d8] sm:$0xff]
        %v6431 = vld [vmem:[%s6370 + $0x1e0] sm:$0xff]
        %v6432 = vld [vmem:[%s6370 + $0x1e8] sm:$0xff]
        %v6433 = vld [vmem:[%s6370 + $0x1f0] sm:$0xff]
        %v6434 = vld [vmem:[%s6370 + $0x1f8] sm:$0xff]
        %v6437 = vrot.slane %v6368, 3
        %v6438 = vrot.slane %v6369, 3
        %6441 = vmatpush.msra.mxu0 %v6401
        %6442 = vmatpush.msra.mxu0 %v6399
        %6443 = vmatpush.msra.mxu0 %v6397
        %6444 = vmatpush.msra.mxu0 %v6395
        %6445 = vmatpush.msra.mxu0 %v6393
        %6446 = vmatpush.msra.mxu0 %v6391
        %6447 = vmatpush.msra.mxu0 %v6389
        %6448 = vmatpush.msra.mxu0 %v6387
        %6449 = vmatpush.msra.mxu0 %v6385
        %6450 = vmatpush.msra.mxu0 %v6383
        %6451 = vmatpush.msra.mxu0 %v6381
        %6452 = vmatpush.msra.mxu0 %v6379
        %6453 = vmatpush.msra.mxu0 %v6377
        %6454 = vmatpush.msra.mxu0 %v6375
        %6455 = vmatpush.msra.mxu0 %v6373
        %6456 = vmatpush.msra.mxu0 %v6371
        %6457 = vmatmul.f32.gmra.mxu0 %v6437
        %v6458 = vpop.f32.mrf.mxu0
        %v6459 = vadd.f32 0.0, %v6458
        %6460 = vdwg.mxu0
        %6461 = vmatpush.msra.mxu0 %v6433
        %6462 = vmatpush.msra.mxu0 %v6431
        %6463 = vmatpush.msra.mxu0 %v6429
        %6464 = vmatpush.msra.mxu0 %v6427
        %6465 = vmatpush.msra.mxu0 %v6425
        %6466 = vmatpush.msra.mxu0 %v6423
        %6467 = vmatpush.msra.mxu0 %v6421
        %6468 = vmatpush.msra.mxu0 %v6419
        %6469 = vmatpush.msra.mxu0 %v6417
        %6470 = vmatpush.msra.mxu0 %v6415
        %6471 = vmatpush.msra.mxu0 %v6413
        %6472 = vmatpush.msra.mxu0 %v6411
        %6473 = vmatpush.msra.mxu0 %v6409
        %6474 = vmatpush.msra.mxu0 %v6407
        %6475 = vmatpush.msra.mxu0 %v6405
        %6476 = vmatpush.msra.mxu0 %v6403
        %6477 = vmatmul.f32.gmra.mxu0 %v6438
        %v6478 = vpop.f32.mrf.mxu0
        %v6479 = vadd.f32 %v6459, %v6478
        %6480 = vdwg.mxu0
        %6481 = vmatpush.msra.mxu0 %v6402
        %6482 = vmatpush.msra.mxu0 %v6400
        %6483 = vmatpush.msra.mxu0 %v6398
        %6484 = vmatpush.msra.mxu0 %v6396
        %6485 = vmatpush.msra.mxu0 %v6394
        %6486 = vmatpush.msra.mxu0 %v6392
        %6487 = vmatpush.msra.mxu0 %v6390
        %6488 = vmatpush.msra.mxu0 %v6388
        %6489 = vmatpush.msra.mxu0 %v6386
        %6490 = vmatpush.msra.mxu0 %v6384
        %6491 = vmatpush.msra.mxu0 %v6382
        %6492 = vmatpush.msra.mxu0 %v6380
        %6493 = vmatpush.msra.mxu0 %v6378
        %6494 = vmatpush.msra.mxu0 %v6376
        %6495 = vmatpush.msra.mxu0 %v6374
        %6496 = vmatpush.msra.mxu0 %v6372
        %6497 = vmatmul.f32.gmra.mxu0 %v6437
        %v6498 = vpop.f32.mrf.mxu0
        %v6499 = vadd.f32 0.0, %v6498
        %6500 = vdwg.mxu0
        %6501 = vmatpush.msra.mxu0 %v6434
        %6502 = vmatpush.msra.mxu0 %v6432
        %6503 = vmatpush.msra.mxu0 %v6430
        %6504 = vmatpush.msra.mxu0 %v6428
        %6505 = vmatpush.msra.mxu0 %v6426
        %6506 = vmatpush.msra.mxu0 %v6424
        %6507 = vmatpush.msra.mxu0 %v6422
        %6508 = vmatpush.msra.mxu0 %v6420
        %6509 = vmatpush.msra.mxu0 %v6418
        %6510 = vmatpush.msra.mxu0 %v6416
        %6511 = vmatpush.msra.mxu0 %v6414
        %6512 = vmatpush.msra.mxu0 %v6412
        %6513 = vmatpush.msra.mxu0 %v6410
        %6514 = vmatpush.msra.mxu0 %v6408
        %6515 = vmatpush.msra.mxu0 %v6406
        %6516 = vmatpush.msra.mxu0 %v6404
        %6517 = vmatmul.f32.gmra.mxu0 %v6438
        %v6518 = vpop.f32.mrf.mxu0
        %v6519 = vadd.f32 %v6499, %v6518
        %6520 = vdwg.mxu0
        %v6521 = vadd.f32 %v6366, %v6479
        %v6522 = vadd.f32 %v6367, %v6519
        %v6523 = vld [vmem:[#allocation5] sm:$0x30]
        %v6524 = vld [vmem:[#allocation5 + $0x8] sm:$0x30]
        %s6525 = scalar_lea.vmem %s57, 2560
        %v6526 = vld [vmem:[%s6525] sm:$0xff]
        %v6527 = vld [vmem:[%s6525 + $0x8] sm:$0xff]
        %v6528 = vld [vmem:[%s6525 + $0x10] sm:$0xff]
        %v6529 = vld [vmem:[%s6525 + $0x18] sm:$0xff]
        %v6530 = vld [vmem:[%s6525 + $0x20] sm:$0xff]
        %v6531 = vld [vmem:[%s6525 + $0x28] sm:$0xff]
        %v6532 = vld [vmem:[%s6525 + $0x30] sm:$0xff]
        %v6533 = vld [vmem:[%s6525 + $0x38] sm:$0xff]
        %v6534 = vld [vmem:[%s6525 + $0x40] sm:$0xff]
        %v6535 = vld [vmem:[%s6525 + $0x48] sm:$0xff]
        %v6536 = vld [vmem:[%s6525 + $0x50] sm:$0xff]
        %v6537 = vld [vmem:[%s6525 + $0x58] sm:$0xff]
        %v6538 = vld [vmem:[%s6525 + $0x60] sm:$0xff]
        %v6539 = vld [vmem:[%s6525 + $0x68] sm:$0xff]
        %v6540 = vld [vmem:[%s6525 + $0x70] sm:$0xff]
        %v6541 = vld [vmem:[%s6525 + $0x78] sm:$0xff]
        %v6542 = vld [vmem:[%s6525 + $0x80] sm:$0xff]
        %v6543 = vld [vmem:[%s6525 + $0x88] sm:$0xff]
        %v6544 = vld [vmem:[%s6525 + $0x90] sm:$0xff]
        %v6545 = vld [vmem:[%s6525 + $0x98] sm:$0xff]
        %v6546 = vld [vmem:[%s6525 + $0xa0] sm:$0xff]
        %v6547 = vld [vmem:[%s6525 + $0xa8] sm:$0xff]
        %v6548 = vld [vmem:[%s6525 + $0xb0] sm:$0xff]
        %v6549 = vld [vmem:[%s6525 + $0xb8] sm:$0xff]
        %v6550 = vld [vmem:[%s6525 + $0xc0] sm:$0xff]
        %v6551 = vld [vmem:[%s6525 + $0xc8] sm:$0xff]
        %v6552 = vld [vmem:[%s6525 + $0xd0] sm:$0xff]
        %v6553 = vld [vmem:[%s6525 + $0xd8] sm:$0xff]
        %v6554 = vld [vmem:[%s6525 + $0xe0] sm:$0xff]
        %v6555 = vld [vmem:[%s6525 + $0xe8] sm:$0xff]
        %v6556 = vld [vmem:[%s6525 + $0xf0] sm:$0xff]
        %v6557 = vld [vmem:[%s6525 + $0xf8] sm:$0xff]
        %v6558 = vld [vmem:[%s6525 + $0x100] sm:$0xff]
        %v6559 = vld [vmem:[%s6525 + $0x108] sm:$0xff]
        %v6560 = vld [vmem:[%s6525 + $0x110] sm:$0xff]
        %v6561 = vld [vmem:[%s6525 + $0x118] sm:$0xff]
        %v6562 = vld [vmem:[%s6525 + $0x120] sm:$0xff]
        %v6563 = vld [vmem:[%s6525 + $0x128] sm:$0xff]
        %v6564 = vld [vmem:[%s6525 + $0x130] sm:$0xff]
        %v6565 = vld [vmem:[%s6525 + $0x138] sm:$0xff]
        %v6566 = vld [vmem:[%s6525 + $0x140] sm:$0xff]
        %v6567 = vld [vmem:[%s6525 + $0x148] sm:$0xff]
        %v6568 = vld [vmem:[%s6525 + $0x150] sm:$0xff]
        %v6569 = vld [vmem:[%s6525 + $0x158] sm:$0xff]
        %v6570 = vld [vmem:[%s6525 + $0x160] sm:$0xff]
        %v6571 = vld [vmem:[%s6525 + $0x168] sm:$0xff]
        %v6572 = vld [vmem:[%s6525 + $0x170] sm:$0xff]
        %v6573 = vld [vmem:[%s6525 + $0x178] sm:$0xff]
        %v6574 = vld [vmem:[%s6525 + $0x180] sm:$0xff]
        %v6575 = vld [vmem:[%s6525 + $0x188] sm:$0xff]
        %v6576 = vld [vmem:[%s6525 + $0x190] sm:$0xff]
        %v6577 = vld [vmem:[%s6525 + $0x198] sm:$0xff]
        %v6578 = vld [vmem:[%s6525 + $0x1a0] sm:$0xff]
        %v6579 = vld [vmem:[%s6525 + $0x1a8] sm:$0xff]
        %v6580 = vld [vmem:[%s6525 + $0x1b0] sm:$0xff]
        %v6581 = vld [vmem:[%s6525 + $0x1b8] sm:$0xff]
        %v6582 = vld [vmem:[%s6525 + $0x1c0] sm:$0xff]
        %v6583 = vld [vmem:[%s6525 + $0x1c8] sm:$0xff]
        %v6584 = vld [vmem:[%s6525 + $0x1d0] sm:$0xff]
        %v6585 = vld [vmem:[%s6525 + $0x1d8] sm:$0xff]
        %v6586 = vld [vmem:[%s6525 + $0x1e0] sm:$0xff]
        %v6587 = vld [vmem:[%s6525 + $0x1e8] sm:$0xff]
        %v6588 = vld [vmem:[%s6525 + $0x1f0] sm:$0xff]
        %v6589 = vld [vmem:[%s6525 + $0x1f8] sm:$0xff]
        %v6592 = vrot.slane %v6523, 4
        %v6593 = vrot.slane %v6524, 4
        %6596 = vmatpush.msra.mxu0 %v6556
        %6597 = vmatpush.msra.mxu0 %v6554
        %6598 = vmatpush.msra.mxu0 %v6552
        %6599 = vmatpush.msra.mxu0 %v6550
        %6600 = vmatpush.msra.mxu0 %v6548
        %6601 = vmatpush.msra.mxu0 %v6546
        %6602 = vmatpush.msra.mxu0 %v6544
        %6603 = vmatpush.msra.mxu0 %v6542
        %6604 = vmatpush.msra.mxu0 %v6540
        %6605 = vmatpush.msra.mxu0 %v6538
        %6606 = vmatpush.msra.mxu0 %v6536
        %6607 = vmatpush.msra.mxu0 %v6534
        %6608 = vmatpush.msra.mxu0 %v6532
        %6609 = vmatpush.msra.mxu0 %v6530
        %6610 = vmatpush.msra.mxu0 %v6528
        %6611 = vmatpush.msra.mxu0 %v6526
        %6612 = vmatmul.f32.gmra.mxu0 %v6592
        %v6613 = vpop.f32.mrf.mxu0
        %v6614 = vadd.f32 0.0, %v6613
        %6615 = vdwg.mxu0
        %6616 = vmatpush.msra.mxu0 %v6588
        %6617 = vmatpush.msra.mxu0 %v6586
        %6618 = vmatpush.msra.mxu0 %v6584
        %6619 = vmatpush.msra.mxu0 %v6582
        %6620 = vmatpush.msra.mxu0 %v6580
        %6621 = vmatpush.msra.mxu0 %v6578
        %6622 = vmatpush.msra.mxu0 %v6576
        %6623 = vmatpush.msra.mxu0 %v6574
        %6624 = vmatpush.msra.mxu0 %v6572
        %6625 = vmatpush.msra.mxu0 %v6570
        %6626 = vmatpush.msra.mxu0 %v6568
        %6627 = vmatpush.msra.mxu0 %v6566
        %6628 = vmatpush.msra.mxu0 %v6564
        %6629 = vmatpush.msra.mxu0 %v6562
        %6630 = vmatpush.msra.mxu0 %v6560
        %6631 = vmatpush.msra.mxu0 %v6558
        %6632 = vmatmul.f32.gmra.mxu0 %v6593
        %v6633 = vpop.f32.mrf.mxu0
        %v6634 = vadd.f32 %v6614, %v6633
        %6635 = vdwg.mxu0
        %6636 = vmatpush.msra.mxu0 %v6557
        %6637 = vmatpush.msra.mxu0 %v6555
        %6638 = vmatpush.msra.mxu0 %v6553
        %6639 = vmatpush.msra.mxu0 %v6551
        %6640 = vmatpush.msra.mxu0 %v6549
        %6641 = vmatpush.msra.mxu0 %v6547
        %6642 = vmatpush.msra.mxu0 %v6545
        %6643 = vmatpush.msra.mxu0 %v6543
        %6644 = vmatpush.msra.mxu0 %v6541
        %6645 = vmatpush.msra.mxu0 %v6539
        %6646 = vmatpush.msra.mxu0 %v6537
        %6647 = vmatpush.msra.mxu0 %v6535
        %6648 = vmatpush.msra.mxu0 %v6533
        %6649 = vmatpush.msra.mxu0 %v6531
        %6650 = vmatpush.msra.mxu0 %v6529
        %6651 = vmatpush.msra.mxu0 %v6527
        %6652 = vmatmul.f32.gmra.mxu0 %v6592
        %v6653 = vpop.f32.mrf.mxu0
        %v6654 = vadd.f32 0.0, %v6653
        %6655 = vdwg.mxu0
        %6656 = vmatpush.msra.mxu0 %v6589
        %6657 = vmatpush.msra.mxu0 %v6587
        %6658 = vmatpush.msra.mxu0 %v6585
        %6659 = vmatpush.msra.mxu0 %v6583
        %6660 = vmatpush.msra.mxu0 %v6581
        %6661 = vmatpush.msra.mxu0 %v6579
        %6662 = vmatpush.msra.mxu0 %v6577
        %6663 = vmatpush.msra.mxu0 %v6575
        %6664 = vmatpush.msra.mxu0 %v6573
        %6665 = vmatpush.msra.mxu0 %v6571
        %6666 = vmatpush.msra.mxu0 %v6569
        %6667 = vmatpush.msra.mxu0 %v6567
        %6668 = vmatpush.msra.mxu0 %v6565
        %6669 = vmatpush.msra.mxu0 %v6563
        %6670 = vmatpush.msra.mxu0 %v6561
        %6671 = vmatpush.msra.mxu0 %v6559
        %6672 = vmatmul.f32.gmra.mxu0 %v6593
        %v6673 = vpop.f32.mrf.mxu0
        %v6674 = vadd.f32 %v6654, %v6673
        %6675 = vdwg.mxu0
        %v6676 = vadd.f32 %v6521, %v6634
        %v6677 = vadd.f32 %v6522, %v6674
        %s6678 = scalar_lea.vmem %s57, 3072
        %v6679 = vld [vmem:[%s6678] sm:$0xff]
        %v6680 = vld [vmem:[%s6678 + $0x8] sm:$0xff]
        %v6681 = vld [vmem:[%s6678 + $0x10] sm:$0xff]
        %v6682 = vld [vmem:[%s6678 + $0x18] sm:$0xff]
        %v6683 = vld [vmem:[%s6678 + $0x20] sm:$0xff]
        %v6684 = vld [vmem:[%s6678 + $0x28] sm:$0xff]
        %v6685 = vld [vmem:[%s6678 + $0x30] sm:$0xff]
        %v6686 = vld [vmem:[%s6678 + $0x38] sm:$0xff]
        %v6687 = vld [vmem:[%s6678 + $0x40] sm:$0xff]
        %v6688 = vld [vmem:[%s6678 + $0x48] sm:$0xff]
        %v6689 = vld [vmem:[%s6678 + $0x50] sm:$0xff]
        %v6690 = vld [vmem:[%s6678 + $0x58] sm:$0xff]
        %v6691 = vld [vmem:[%s6678 + $0x60] sm:$0xff]
        %v6692 = vld [vmem:[%s6678 + $0x68] sm:$0xff]
        %v6693 = vld [vmem:[%s6678 + $0x70] sm:$0xff]
        %v6694 = vld [vmem:[%s6678 + $0x78] sm:$0xff]
        %v6695 = vld [vmem:[%s6678 + $0x80] sm:$0xff]
        %v6696 = vld [vmem:[%s6678 + $0x88] sm:$0xff]
        %v6697 = vld [vmem:[%s6678 + $0x90] sm:$0xff]
        %v6698 = vld [vmem:[%s6678 + $0x98] sm:$0xff]
        %v6699 = vld [vmem:[%s6678 + $0xa0] sm:$0xff]
        %v6700 = vld [vmem:[%s6678 + $0xa8] sm:$0xff]
        %v6701 = vld [vmem:[%s6678 + $0xb0] sm:$0xff]
        %v6702 = vld [vmem:[%s6678 + $0xb8] sm:$0xff]
        %v6703 = vld [vmem:[%s6678 + $0xc0] sm:$0xff]
        %v6704 = vld [vmem:[%s6678 + $0xc8] sm:$0xff]
        %v6705 = vld [vmem:[%s6678 + $0xd0] sm:$0xff]
        %v6706 = vld [vmem:[%s6678 + $0xd8] sm:$0xff]
        %v6707 = vld [vmem:[%s6678 + $0xe0] sm:$0xff]
        %v6708 = vld [vmem:[%s6678 + $0xe8] sm:$0xff]
        %v6709 = vld [vmem:[%s6678 + $0xf0] sm:$0xff]
        %v6710 = vld [vmem:[%s6678 + $0xf8] sm:$0xff]
        %v6711 = vld [vmem:[%s6678 + $0x100] sm:$0xff]
        %v6712 = vld [vmem:[%s6678 + $0x108] sm:$0xff]
        %v6713 = vld [vmem:[%s6678 + $0x110] sm:$0xff]
        %v6714 = vld [vmem:[%s6678 + $0x118] sm:$0xff]
        %v6715 = vld [vmem:[%s6678 + $0x120] sm:$0xff]
        %v6716 = vld [vmem:[%s6678 + $0x128] sm:$0xff]
        %v6717 = vld [vmem:[%s6678 + $0x130] sm:$0xff]
        %v6718 = vld [vmem:[%s6678 + $0x138] sm:$0xff]
        %v6719 = vld [vmem:[%s6678 + $0x140] sm:$0xff]
        %v6720 = vld [vmem:[%s6678 + $0x148] sm:$0xff]
        %v6721 = vld [vmem:[%s6678 + $0x150] sm:$0xff]
        %v6722 = vld [vmem:[%s6678 + $0x158] sm:$0xff]
        %v6723 = vld [vmem:[%s6678 + $0x160] sm:$0xff]
        %v6724 = vld [vmem:[%s6678 + $0x168] sm:$0xff]
        %v6725 = vld [vmem:[%s6678 + $0x170] sm:$0xff]
        %v6726 = vld [vmem:[%s6678 + $0x178] sm:$0xff]
        %v6727 = vld [vmem:[%s6678 + $0x180] sm:$0xff]
        %v6728 = vld [vmem:[%s6678 + $0x188] sm:$0xff]
        %v6729 = vld [vmem:[%s6678 + $0x190] sm:$0xff]
        %v6730 = vld [vmem:[%s6678 + $0x198] sm:$0xff]
        %v6731 = vld [vmem:[%s6678 + $0x1a0] sm:$0xff]
        %v6732 = vld [vmem:[%s6678 + $0x1a8] sm:$0xff]
        %v6733 = vld [vmem:[%s6678 + $0x1b0] sm:$0xff]
        %v6734 = vld [vmem:[%s6678 + $0x1b8] sm:$0xff]
        %v6735 = vld [vmem:[%s6678 + $0x1c0] sm:$0xff]
        %v6736 = vld [vmem:[%s6678 + $0x1c8] sm:$0xff]
        %v6737 = vld [vmem:[%s6678 + $0x1d0] sm:$0xff]
        %v6738 = vld [vmem:[%s6678 + $0x1d8] sm:$0xff]
        %v6739 = vld [vmem:[%s6678 + $0x1e0] sm:$0xff]
        %v6740 = vld [vmem:[%s6678 + $0x1e8] sm:$0xff]
        %v6741 = vld [vmem:[%s6678 + $0x1f0] sm:$0xff]
        %v6742 = vld [vmem:[%s6678 + $0x1f8] sm:$0xff]
        %6743 = vmatpush.msra.mxu0 %v6709
        %6744 = vmatpush.msra.mxu0 %v6707
        %6745 = vmatpush.msra.mxu0 %v6705
        %6746 = vmatpush.msra.mxu0 %v6703
        %6747 = vmatpush.msra.mxu0 %v6701
        %6748 = vmatpush.msra.mxu0 %v6699
        %6749 = vmatpush.msra.mxu0 %v6697
        %6750 = vmatpush.msra.mxu0 %v6695
        %6751 = vmatpush.msra.mxu0 %v6693
        %6752 = vmatpush.msra.mxu0 %v6691
        %6753 = vmatpush.msra.mxu0 %v6689
        %6754 = vmatpush.msra.mxu0 %v6687
        %6755 = vmatpush.msra.mxu0 %v6685
        %6756 = vmatpush.msra.mxu0 %v6683
        %6757 = vmatpush.msra.mxu0 %v6681
        %6758 = vmatpush.msra.mxu0 %v6679
        %6759 = vmatmul.f32.gmra.mxu0 %v6592
        %v6760 = vpop.f32.mrf.mxu0
        %v6761 = vadd.f32 0.0, %v6760
        %6762 = vdwg.mxu0
        %6763 = vmatpush.msra.mxu0 %v6741
        %6764 = vmatpush.msra.mxu0 %v6739
        %6765 = vmatpush.msra.mxu0 %v6737
        %6766 = vmatpush.msra.mxu0 %v6735
        %6767 = vmatpush.msra.mxu0 %v6733
        %6768 = vmatpush.msra.mxu0 %v6731
        %6769 = vmatpush.msra.mxu0 %v6729
        %6770 = vmatpush.msra.mxu0 %v6727
        %6771 = vmatpush.msra.mxu0 %v6725
        %6772 = vmatpush.msra.mxu0 %v6723
        %6773 = vmatpush.msra.mxu0 %v6721
        %6774 = vmatpush.msra.mxu0 %v6719
        %6775 = vmatpush.msra.mxu0 %v6717
        %6776 = vmatpush.msra.mxu0 %v6715
        %6777 = vmatpush.msra.mxu0 %v6713
        %6778 = vmatpush.msra.mxu0 %v6711
        %6779 = vmatmul.f32.gmra.mxu0 %v6593
        %v6780 = vpop.f32.mrf.mxu0
        %v6781 = vadd.f32 %v6761, %v6780
        %6782 = vdwg.mxu0
        %6783 = vmatpush.msra.mxu0 %v6710
        %6784 = vmatpush.msra.mxu0 %v6708
        %6785 = vmatpush.msra.mxu0 %v6706
        %6786 = vmatpush.msra.mxu0 %v6704
        %6787 = vmatpush.msra.mxu0 %v6702
        %6788 = vmatpush.msra.mxu0 %v6700
        %6789 = vmatpush.msra.mxu0 %v6698
        %6790 = vmatpush.msra.mxu0 %v6696
        %6791 = vmatpush.msra.mxu0 %v6694
        %6792 = vmatpush.msra.mxu0 %v6692
        %6793 = vmatpush.msra.mxu0 %v6690
        %6794 = vmatpush.msra.mxu0 %v6688
        %6795 = vmatpush.msra.mxu0 %v6686
        %6796 = vmatpush.msra.mxu0 %v6684
        %6797 = vmatpush.msra.mxu0 %v6682
        %6798 = vmatpush.msra.mxu0 %v6680
        %6799 = vmatmul.f32.gmra.mxu0 %v6592
        %v6800 = vpop.f32.mrf.mxu0
        %v6801 = vadd.f32 0.0, %v6800
        %6802 = vdwg.mxu0
        %6803 = vmatpush.msra.mxu0 %v6742
        %6804 = vmatpush.msra.mxu0 %v6740
        %6805 = vmatpush.msra.mxu0 %v6738
        %6806 = vmatpush.msra.mxu0 %v6736
        %6807 = vmatpush.msra.mxu0 %v6734
        %6808 = vmatpush.msra.mxu0 %v6732
        %6809 = vmatpush.msra.mxu0 %v6730
        %6810 = vmatpush.msra.mxu0 %v6728
        %6811 = vmatpush.msra.mxu0 %v6726
        %6812 = vmatpush.msra.mxu0 %v6724
        %6813 = vmatpush.msra.mxu0 %v6722
        %6814 = vmatpush.msra.mxu0 %v6720
        %6815 = vmatpush.msra.mxu0 %v6718
        %6816 = vmatpush.msra.mxu0 %v6716
        %6817 = vmatpush.msra.mxu0 %v6714
        %6818 = vmatpush.msra.mxu0 %v6712
        %6819 = vmatmul.f32.gmra.mxu0 %v6593
        %v6820 = vpop.f32.mrf.mxu0
        %v6821 = vadd.f32 %v6801, %v6820
        %6822 = vdwg.mxu0
        %v6823 = vadd.f32 %v6676, %v6781
        %v6824 = vadd.f32 %v6677, %v6821
        %v6825 = vld [vmem:[#allocation5] sm:$0x60]
        %v6826 = vld [vmem:[#allocation5 + $0x8] sm:$0x60]
        %s6827 = scalar_lea.vmem %s57, 3584
        %v6828 = vld [vmem:[%s6827] sm:$0xff]
        %v6829 = vld [vmem:[%s6827 + $0x8] sm:$0xff]
        %v6830 = vld [vmem:[%s6827 + $0x10] sm:$0xff]
        %v6831 = vld [vmem:[%s6827 + $0x18] sm:$0xff]
        %v6832 = vld [vmem:[%s6827 + $0x20] sm:$0xff]
        %v6833 = vld [vmem:[%s6827 + $0x28] sm:$0xff]
        %v6834 = vld [vmem:[%s6827 + $0x30] sm:$0xff]
        %v6835 = vld [vmem:[%s6827 + $0x38] sm:$0xff]
        %v6836 = vld [vmem:[%s6827 + $0x40] sm:$0xff]
        %v6837 = vld [vmem:[%s6827 + $0x48] sm:$0xff]
        %v6838 = vld [vmem:[%s6827 + $0x50] sm:$0xff]
        %v6839 = vld [vmem:[%s6827 + $0x58] sm:$0xff]
        %v6840 = vld [vmem:[%s6827 + $0x60] sm:$0xff]
        %v6841 = vld [vmem:[%s6827 + $0x68] sm:$0xff]
        %v6842 = vld [vmem:[%s6827 + $0x70] sm:$0xff]
        %v6843 = vld [vmem:[%s6827 + $0x78] sm:$0xff]
        %v6844 = vld [vmem:[%s6827 + $0x80] sm:$0xff]
        %v6845 = vld [vmem:[%s6827 + $0x88] sm:$0xff]
        %v6846 = vld [vmem:[%s6827 + $0x90] sm:$0xff]
        %v6847 = vld [vmem:[%s6827 + $0x98] sm:$0xff]
        %v6848 = vld [vmem:[%s6827 + $0xa0] sm:$0xff]
        %v6849 = vld [vmem:[%s6827 + $0xa8] sm:$0xff]
        %v6850 = vld [vmem:[%s6827 + $0xb0] sm:$0xff]
        %v6851 = vld [vmem:[%s6827 + $0xb8] sm:$0xff]
        %v6852 = vld [vmem:[%s6827 + $0xc0] sm:$0xff]
        %v6853 = vld [vmem:[%s6827 + $0xc8] sm:$0xff]
        %v6854 = vld [vmem:[%s6827 + $0xd0] sm:$0xff]
        %v6855 = vld [vmem:[%s6827 + $0xd8] sm:$0xff]
        %v6856 = vld [vmem:[%s6827 + $0xe0] sm:$0xff]
        %v6857 = vld [vmem:[%s6827 + $0xe8] sm:$0xff]
        %v6858 = vld [vmem:[%s6827 + $0xf0] sm:$0xff]
        %v6859 = vld [vmem:[%s6827 + $0xf8] sm:$0xff]
        %v6860 = vld [vmem:[%s6827 + $0x100] sm:$0xff]
        %v6861 = vld [vmem:[%s6827 + $0x108] sm:$0xff]
        %v6862 = vld [vmem:[%s6827 + $0x110] sm:$0xff]
        %v6863 = vld [vmem:[%s6827 + $0x118] sm:$0xff]
        %v6864 = vld [vmem:[%s6827 + $0x120] sm:$0xff]
        %v6865 = vld [vmem:[%s6827 + $0x128] sm:$0xff]
        %v6866 = vld [vmem:[%s6827 + $0x130] sm:$0xff]
        %v6867 = vld [vmem:[%s6827 + $0x138] sm:$0xff]
        %v6868 = vld [vmem:[%s6827 + $0x140] sm:$0xff]
        %v6869 = vld [vmem:[%s6827 + $0x148] sm:$0xff]
        %v6870 = vld [vmem:[%s6827 + $0x150] sm:$0xff]
        %v6871 = vld [vmem:[%s6827 + $0x158] sm:$0xff]
        %v6872 = vld [vmem:[%s6827 + $0x160] sm:$0xff]
        %v6873 = vld [vmem:[%s6827 + $0x168] sm:$0xff]
        %v6874 = vld [vmem:[%s6827 + $0x170] sm:$0xff]
        %v6875 = vld [vmem:[%s6827 + $0x178] sm:$0xff]
        %v6876 = vld [vmem:[%s6827 + $0x180] sm:$0xff]
        %v6877 = vld [vmem:[%s6827 + $0x188] sm:$0xff]
        %v6878 = vld [vmem:[%s6827 + $0x190] sm:$0xff]
        %v6879 = vld [vmem:[%s6827 + $0x198] sm:$0xff]
        %v6880 = vld [vmem:[%s6827 + $0x1a0] sm:$0xff]
        %v6881 = vld [vmem:[%s6827 + $0x1a8] sm:$0xff]
        %v6882 = vld [vmem:[%s6827 + $0x1b0] sm:$0xff]
        %v6883 = vld [vmem:[%s6827 + $0x1b8] sm:$0xff]
        %v6884 = vld [vmem:[%s6827 + $0x1c0] sm:$0xff]
        %v6885 = vld [vmem:[%s6827 + $0x1c8] sm:$0xff]
        %v6886 = vld [vmem:[%s6827 + $0x1d0] sm:$0xff]
        %v6887 = vld [vmem:[%s6827 + $0x1d8] sm:$0xff]
        %v6888 = vld [vmem:[%s6827 + $0x1e0] sm:$0xff]
        %v6889 = vld [vmem:[%s6827 + $0x1e8] sm:$0xff]
        %v6890 = vld [vmem:[%s6827 + $0x1f0] sm:$0xff]
        %v6891 = vld [vmem:[%s6827 + $0x1f8] sm:$0xff]
        %v6894 = vrot.slane %v6825, 5
        %v6895 = vrot.slane %v6826, 5
        %6898 = vmatpush.msra.mxu0 %v6858
        %6899 = vmatpush.msra.mxu0 %v6856
        %6900 = vmatpush.msra.mxu0 %v6854
        %6901 = vmatpush.msra.mxu0 %v6852
        %6902 = vmatpush.msra.mxu0 %v6850
        %6903 = vmatpush.msra.mxu0 %v6848
        %6904 = vmatpush.msra.mxu0 %v6846
        %6905 = vmatpush.msra.mxu0 %v6844
        %6906 = vmatpush.msra.mxu0 %v6842
        %6907 = vmatpush.msra.mxu0 %v6840
        %6908 = vmatpush.msra.mxu0 %v6838
        %6909 = vmatpush.msra.mxu0 %v6836
        %6910 = vmatpush.msra.mxu0 %v6834
        %6911 = vmatpush.msra.mxu0 %v6832
        %6912 = vmatpush.msra.mxu0 %v6830
        %6913 = vmatpush.msra.mxu0 %v6828
        %6914 = vmatmul.f32.gmra.mxu0 %v6894
        %v6915 = vpop.f32.mrf.mxu0
        %v6916 = vadd.f32 0.0, %v6915
        %6917 = vdwg.mxu0
        %6918 = vmatpush.msra.mxu0 %v6890
        %6919 = vmatpush.msra.mxu0 %v6888
        %6920 = vmatpush.msra.mxu0 %v6886
        %6921 = vmatpush.msra.mxu0 %v6884
        %6922 = vmatpush.msra.mxu0 %v6882
        %6923 = vmatpush.msra.mxu0 %v6880
        %6924 = vmatpush.msra.mxu0 %v6878
        %6925 = vmatpush.msra.mxu0 %v6876
        %6926 = vmatpush.msra.mxu0 %v6874
        %6927 = vmatpush.msra.mxu0 %v6872
        %6928 = vmatpush.msra.mxu0 %v6870
        %6929 = vmatpush.msra.mxu0 %v6868
        %6930 = vmatpush.msra.mxu0 %v6866
        %6931 = vmatpush.msra.mxu0 %v6864
        %6932 = vmatpush.msra.mxu0 %v6862
        %6933 = vmatpush.msra.mxu0 %v6860
        %6934 = vmatmul.f32.gmra.mxu0 %v6895
        %v6935 = vpop.f32.mrf.mxu0
        %v6936 = vadd.f32 %v6916, %v6935
        %6937 = vdwg.mxu0
        %6938 = vmatpush.msra.mxu0 %v6859
        %6939 = vmatpush.msra.mxu0 %v6857
        %6940 = vmatpush.msra.mxu0 %v6855
        %6941 = vmatpush.msra.mxu0 %v6853
        %6942 = vmatpush.msra.mxu0 %v6851
        %6943 = vmatpush.msra.mxu0 %v6849
        %6944 = vmatpush.msra.mxu0 %v6847
        %6945 = vmatpush.msra.mxu0 %v6845
        %6946 = vmatpush.msra.mxu0 %v6843
        %6947 = vmatpush.msra.mxu0 %v6841
        %6948 = vmatpush.msra.mxu0 %v6839
        %6949 = vmatpush.msra.mxu0 %v6837
        %6950 = vmatpush.msra.mxu0 %v6835
        %6951 = vmatpush.msra.mxu0 %v6833
        %6952 = vmatpush.msra.mxu0 %v6831
        %6953 = vmatpush.msra.mxu0 %v6829
        %6954 = vmatmul.f32.gmra.mxu0 %v6894
        %v6955 = vpop.f32.mrf.mxu0
        %v6956 = vadd.f32 0.0, %v6955
        %6957 = vdwg.mxu0
        %6958 = vmatpush.msra.mxu0 %v6891
        %6959 = vmatpush.msra.mxu0 %v6889
        %6960 = vmatpush.msra.mxu0 %v6887
        %6961 = vmatpush.msra.mxu0 %v6885
        %6962 = vmatpush.msra.mxu0 %v6883
        %6963 = vmatpush.msra.mxu0 %v6881
        %6964 = vmatpush.msra.mxu0 %v6879
        %6965 = vmatpush.msra.mxu0 %v6877
        %6966 = vmatpush.msra.mxu0 %v6875
        %6967 = vmatpush.msra.mxu0 %v6873
        %6968 = vmatpush.msra.mxu0 %v6871
        %6969 = vmatpush.msra.mxu0 %v6869
        %6970 = vmatpush.msra.mxu0 %v6867
        %6971 = vmatpush.msra.mxu0 %v6865
        %6972 = vmatpush.msra.mxu0 %v6863
        %6973 = vmatpush.msra.mxu0 %v6861
        %6974 = vmatmul.f32.gmra.mxu0 %v6895
        %v6975 = vpop.f32.mrf.mxu0
        %v6976 = vadd.f32 %v6956, %v6975
        %6977 = vdwg.mxu0
        %v6978 = vadd.f32 %v6823, %v6936
        %v6979 = vadd.f32 %v6824, %v6976
        %v6980 = vld [vmem:[#allocation5] sm:$0xc0]
        %v6981 = vld [vmem:[#allocation5 + $0x8] sm:$0xc0]
        %s6982 = scalar_lea.vmem %s57, 4096
        %v6983 = vld [vmem:[%s6982] sm:$0xff]
        %v6984 = vld [vmem:[%s6982 + $0x8] sm:$0xff]
        %v6985 = vld [vmem:[%s6982 + $0x10] sm:$0xff]
        %v6986 = vld [vmem:[%s6982 + $0x18] sm:$0xff]
        %v6987 = vld [vmem:[%s6982 + $0x20] sm:$0xff]
        %v6988 = vld [vmem:[%s6982 + $0x28] sm:$0xff]
        %v6989 = vld [vmem:[%s6982 + $0x30] sm:$0xff]
        %v6990 = vld [vmem:[%s6982 + $0x38] sm:$0xff]
        %v6991 = vld [vmem:[%s6982 + $0x40] sm:$0xff]
        %v6992 = vld [vmem:[%s6982 + $0x48] sm:$0xff]
        %v6993 = vld [vmem:[%s6982 + $0x50] sm:$0xff]
        %v6994 = vld [vmem:[%s6982 + $0x58] sm:$0xff]
        %v6995 = vld [vmem:[%s6982 + $0x60] sm:$0xff]
        %v6996 = vld [vmem:[%s6982 + $0x68] sm:$0xff]
        %v6997 = vld [vmem:[%s6982 + $0x70] sm:$0xff]
        %v6998 = vld [vmem:[%s6982 + $0x78] sm:$0xff]
        %v6999 = vld [vmem:[%s6982 + $0x80] sm:$0xff]
        %v7000 = vld [vmem:[%s6982 + $0x88] sm:$0xff]
        %v7001 = vld [vmem:[%s6982 + $0x90] sm:$0xff]
        %v7002 = vld [vmem:[%s6982 + $0x98] sm:$0xff]
        %v7003 = vld [vmem:[%s6982 + $0xa0] sm:$0xff]
        %v7004 = vld [vmem:[%s6982 + $0xa8] sm:$0xff]
        %v7005 = vld [vmem:[%s6982 + $0xb0] sm:$0xff]
        %v7006 = vld [vmem:[%s6982 + $0xb8] sm:$0xff]
        %v7007 = vld [vmem:[%s6982 + $0xc0] sm:$0xff]
        %v7008 = vld [vmem:[%s6982 + $0xc8] sm:$0xff]
        %v7009 = vld [vmem:[%s6982 + $0xd0] sm:$0xff]
        %v7010 = vld [vmem:[%s6982 + $0xd8] sm:$0xff]
        %v7011 = vld [vmem:[%s6982 + $0xe0] sm:$0xff]
        %v7012 = vld [vmem:[%s6982 + $0xe8] sm:$0xff]
        %v7013 = vld [vmem:[%s6982 + $0xf0] sm:$0xff]
        %v7014 = vld [vmem:[%s6982 + $0xf8] sm:$0xff]
        %v7015 = vld [vmem:[%s6982 + $0x100] sm:$0xff]
        %v7016 = vld [vmem:[%s6982 + $0x108] sm:$0xff]
        %v7017 = vld [vmem:[%s6982 + $0x110] sm:$0xff]
        %v7018 = vld [vmem:[%s6982 + $0x118] sm:$0xff]
        %v7019 = vld [vmem:[%s6982 + $0x120] sm:$0xff]
        %v7020 = vld [vmem:[%s6982 + $0x128] sm:$0xff]
        %v7021 = vld [vmem:[%s6982 + $0x130] sm:$0xff]
        %v7022 = vld [vmem:[%s6982 + $0x138] sm:$0xff]
        %v7023 = vld [vmem:[%s6982 + $0x140] sm:$0xff]
        %v7024 = vld [vmem:[%s6982 + $0x148] sm:$0xff]
        %v7025 = vld [vmem:[%s6982 + $0x150] sm:$0xff]
        %v7026 = vld [vmem:[%s6982 + $0x158] sm:$0xff]
        %v7027 = vld [vmem:[%s6982 + $0x160] sm:$0xff]
        %v7028 = vld [vmem:[%s6982 + $0x168] sm:$0xff]
        %v7029 = vld [vmem:[%s6982 + $0x170] sm:$0xff]
        %v7030 = vld [vmem:[%s6982 + $0x178] sm:$0xff]
        %v7031 = vld [vmem:[%s6982 + $0x180] sm:$0xff]
        %v7032 = vld [vmem:[%s6982 + $0x188] sm:$0xff]
        %v7033 = vld [vmem:[%s6982 + $0x190] sm:$0xff]
        %v7034 = vld [vmem:[%s6982 + $0x198] sm:$0xff]
        %v7035 = vld [vmem:[%s6982 + $0x1a0] sm:$0xff]
        %v7036 = vld [vmem:[%s6982 + $0x1a8] sm:$0xff]
        %v7037 = vld [vmem:[%s6982 + $0x1b0] sm:$0xff]
        %v7038 = vld [vmem:[%s6982 + $0x1b8] sm:$0xff]
        %v7039 = vld [vmem:[%s6982 + $0x1c0] sm:$0xff]
        %v7040 = vld [vmem:[%s6982 + $0x1c8] sm:$0xff]
        %v7041 = vld [vmem:[%s6982 + $0x1d0] sm:$0xff]
        %v7042 = vld [vmem:[%s6982 + $0x1d8] sm:$0xff]
        %v7043 = vld [vmem:[%s6982 + $0x1e0] sm:$0xff]
        %v7044 = vld [vmem:[%s6982 + $0x1e8] sm:$0xff]
        %v7045 = vld [vmem:[%s6982 + $0x1f0] sm:$0xff]
        %v7046 = vld [vmem:[%s6982 + $0x1f8] sm:$0xff]
        %v7049 = vrot.slane %v6980, 6
        %v7050 = vrot.slane %v6981, 6
        %7053 = vmatpush.msra.mxu0 %v7013
        %7054 = vmatpush.msra.mxu0 %v7011
        %7055 = vmatpush.msra.mxu0 %v7009
        %7056 = vmatpush.msra.mxu0 %v7007
        %7057 = vmatpush.msra.mxu0 %v7005
        %7058 = vmatpush.msra.mxu0 %v7003
        %7059 = vmatpush.msra.mxu0 %v7001
        %7060 = vmatpush.msra.mxu0 %v6999
        %7061 = vmatpush.msra.mxu0 %v6997
        %7062 = vmatpush.msra.mxu0 %v6995
        %7063 = vmatpush.msra.mxu0 %v6993
        %7064 = vmatpush.msra.mxu0 %v6991
        %7065 = vmatpush.msra.mxu0 %v6989
        %7066 = vmatpush.msra.mxu0 %v6987
        %7067 = vmatpush.msra.mxu0 %v6985
        %7068 = vmatpush.msra.mxu0 %v6983
        %7069 = vmatmul.f32.gmra.mxu0 %v7049
        %v7070 = vpop.f32.mrf.mxu0
        %v7071 = vadd.f32 0.0, %v7070
        %7072 = vdwg.mxu0
        %7073 = vmatpush.msra.mxu0 %v7045
        %7074 = vmatpush.msra.mxu0 %v7043
        %7075 = vmatpush.msra.mxu0 %v7041
        %7076 = vmatpush.msra.mxu0 %v7039
        %7077 = vmatpush.msra.mxu0 %v7037
        %7078 = vmatpush.msra.mxu0 %v7035
        %7079 = vmatpush.msra.mxu0 %v7033
        %7080 = vmatpush.msra.mxu0 %v7031
        %7081 = vmatpush.msra.mxu0 %v7029
        %7082 = vmatpush.msra.mxu0 %v7027
        %7083 = vmatpush.msra.mxu0 %v7025
        %7084 = vmatpush.msra.mxu0 %v7023
        %7085 = vmatpush.msra.mxu0 %v7021
        %7086 = vmatpush.msra.mxu0 %v7019
        %7087 = vmatpush.msra.mxu0 %v7017
        %7088 = vmatpush.msra.mxu0 %v7015
        %7089 = vmatmul.f32.gmra.mxu0 %v7050
        %v7090 = vpop.f32.mrf.mxu0
        %v7091 = vadd.f32 %v7071, %v7090
        %7092 = vdwg.mxu0
        %7093 = vmatpush.msra.mxu0 %v7014
        %7094 = vmatpush.msra.mxu0 %v7012
        %7095 = vmatpush.msra.mxu0 %v7010
        %7096 = vmatpush.msra.mxu0 %v7008
        %7097 = vmatpush.msra.mxu0 %v7006
        %7098 = vmatpush.msra.mxu0 %v7004
        %7099 = vmatpush.msra.mxu0 %v7002
        %7100 = vmatpush.msra.mxu0 %v7000
        %7101 = vmatpush.msra.mxu0 %v6998
        %7102 = vmatpush.msra.mxu0 %v6996
        %7103 = vmatpush.msra.mxu0 %v6994
        %7104 = vmatpush.msra.mxu0 %v6992
        %7105 = vmatpush.msra.mxu0 %v6990
        %7106 = vmatpush.msra.mxu0 %v6988
        %7107 = vmatpush.msra.mxu0 %v6986
        %7108 = vmatpush.msra.mxu0 %v6984
        %7109 = vmatmul.f32.gmra.mxu0 %v7049
        %v7110 = vpop.f32.mrf.mxu0
        %v7111 = vadd.f32 0.0, %v7110
        %7112 = vdwg.mxu0
        %7113 = vmatpush.msra.mxu0 %v7046
        %7114 = vmatpush.msra.mxu0 %v7044
        %7115 = vmatpush.msra.mxu0 %v7042
        %7116 = vmatpush.msra.mxu0 %v7040
        %7117 = vmatpush.msra.mxu0 %v7038
        %7118 = vmatpush.msra.mxu0 %v7036
        %7119 = vmatpush.msra.mxu0 %v7034
        %7120 = vmatpush.msra.mxu0 %v7032
        %7121 = vmatpush.msra.mxu0 %v7030
        %7122 = vmatpush.msra.mxu0 %v7028
        %7123 = vmatpush.msra.mxu0 %v7026
        %7124 = vmatpush.msra.mxu0 %v7024
        %7125 = vmatpush.msra.mxu0 %v7022
        %7126 = vmatpush.msra.mxu0 %v7020
        %7127 = vmatpush.msra.mxu0 %v7018
        %7128 = vmatpush.msra.mxu0 %v7016
        %7129 = vmatmul.f32.gmra.mxu0 %v7050
        %v7130 = vpop.f32.mrf.mxu0
        %v7131 = vadd.f32 %v7111, %v7130
        %7132 = vdwg.mxu0
        %v7133 = vadd.f32 %v6978, %v7091
        %v7134 = vadd.f32 %v6979, %v7131
        %v7135 = vmul.f32 %v7133, %v5742
        %v7136 = vmul.f32 %v7134, %v5742
        %vm7137 = vcmask 1041408
        %v7138 = vsel %vm7137, %v7135, 0.0
        %v7139 = vrot.slane %v7138, 4
        %v7140 = vadd.f32 %v7138, %v7139
        %v7141 = vrot.slane %v7140, 2
        %v7142 = vadd.f32 %v7140, %v7141
        %v7143 = vrot.slane %v7142, 1
        %v7144 = vadd.f32 %v7142, %v7143
        %v7145 = vsel %vm7137, %v7136, 0.0
        %v7146 = vrot.slane %v7145, 4
        %v7147 = vadd.f32 %v7145, %v7146
        %v7148 = vrot.slane %v7147, 2
        %v7149 = vadd.f32 %v7147, %v7148
        %v7150 = vrot.slane %v7149, 1
        %v7151 = vadd.f32 %v7149, %v7150
        %v7152 = vld [vmem:[%s63] sm:$0xff]
        %v7153 = vld [vmem:[%s63 + $0x8] sm:$0xff]
        %v7154 = vld [vmem:[%s63 + $0x10] sm:$0xff]
        %v7155 = vld [vmem:[%s63 + $0x18] sm:$0xff]
        %v7156 = vld [vmem:[%s63 + $0x20] sm:$0xff]
        %v7157 = vld [vmem:[%s63 + $0x28] sm:$0xff]
        %v7158 = vld [vmem:[%s63 + $0x30] sm:$0xff]
        %v7159 = vld [vmem:[%s63 + $0x38] sm:$0xff]
        %v7160 = vld [vmem:[%s63 + $0x40] sm:$0xff]
        %v7161 = vld [vmem:[%s63 + $0x48] sm:$0xff]
        %v7162 = vld [vmem:[%s63 + $0x50] sm:$0xff]
        %v7163 = vld [vmem:[%s63 + $0x58] sm:$0xff]
        %v7164 = vld [vmem:[%s63 + $0x60] sm:$0xff]
        %v7165 = vld [vmem:[%s63 + $0x68] sm:$0xff]
        %v7166 = vld [vmem:[%s63 + $0x70] sm:$0xff]
        %v7167 = vld [vmem:[%s63 + $0x78] sm:$0xff]
        %v7168 = vld [vmem:[%s63 + $0x80] sm:$0xff]
        %v7169 = vld [vmem:[%s63 + $0x88] sm:$0xff]
        %v7170 = vld [vmem:[%s63 + $0x90] sm:$0xff]
        %v7171 = vld [vmem:[%s63 + $0x98] sm:$0xff]
        %v7172 = vld [vmem:[%s63 + $0xa0] sm:$0xff]
        %v7173 = vld [vmem:[%s63 + $0xa8] sm:$0xff]
        %v7174 = vld [vmem:[%s63 + $0xb0] sm:$0xff]
        %v7175 = vld [vmem:[%s63 + $0xb8] sm:$0xff]
        %v7176 = vld [vmem:[%s63 + $0xc0] sm:$0xff]
        %v7177 = vld [vmem:[%s63 + $0xc8] sm:$0xff]
        %v7178 = vld [vmem:[%s63 + $0xd0] sm:$0xff]
        %v7179 = vld [vmem:[%s63 + $0xd8] sm:$0xff]
        %v7180 = vld [vmem:[%s63 + $0xe0] sm:$0xff]
        %v7181 = vld [vmem:[%s63 + $0xe8] sm:$0xff]
        %v7182 = vld [vmem:[%s63 + $0xf0] sm:$0xff]
        %v7183 = vld [vmem:[%s63 + $0xf8] sm:$0xff]
        %7184 = vmatpush.msra.mxu0 %v7167
        %7185 = vmatpush.msra.mxu0 %v7166
        %7186 = vmatpush.msra.mxu0 %v7165
        %7187 = vmatpush.msra.mxu0 %v7164
        %7188 = vmatpush.msra.mxu0 %v7163
        %7189 = vmatpush.msra.mxu0 %v7162
        %7190 = vmatpush.msra.mxu0 %v7161
        %7191 = vmatpush.msra.mxu0 %v7160
        %7192 = vmatpush.msra.mxu0 %v7159
        %7193 = vmatpush.msra.mxu0 %v7158
        %7194 = vmatpush.msra.mxu0 %v7157
        %7195 = vmatpush.msra.mxu0 %v7156
        %7196 = vmatpush.msra.mxu0 %v7155
        %7197 = vmatpush.msra.mxu0 %v7154
        %7198 = vmatpush.msra.mxu0 %v7153
        %7199 = vmatpush.msra.mxu0 %v7152
        %7200 = vmatmul.f32.gmra.mxu0 %v7144
        %v7201 = vpop.f32.mrf.mxu0
        %v7202 = vadd.f32 0.0, %v7201
        %7203 = vdwg.mxu0
        %7204 = vmatpush.msra.mxu0 %v7183
        %7205 = vmatpush.msra.mxu0 %v7182
        %7206 = vmatpush.msra.mxu0 %v7181
        %7207 = vmatpush.msra.mxu0 %v7180
        %7208 = vmatpush.msra.mxu0 %v7179
        %7209 = vmatpush.msra.mxu0 %v7178
        %7210 = vmatpush.msra.mxu0 %v7177
        %7211 = vmatpush.msra.mxu0 %v7176
        %7212 = vmatpush.msra.mxu0 %v7175
        %7213 = vmatpush.msra.mxu0 %v7174
        %7214 = vmatpush.msra.mxu0 %v7173
        %7215 = vmatpush.msra.mxu0 %v7172
        %7216 = vmatpush.msra.mxu0 %v7171
        %7217 = vmatpush.msra.mxu0 %v7170
        %7218 = vmatpush.msra.mxu0 %v7169
        %7219 = vmatpush.msra.mxu0 %v7168
        %7220 = vmatmul.f32.gmra.mxu0 %v7151
        %v7221 = vpop.f32.mrf.mxu0
        %v7222 = vadd.f32 %v7202, %v7221
        %7223 = vdwg.mxu0
        %v7224 = vmax.f32 %v7222, 0.0
        %v7225 = vld [vmem:[%s65] sm:$0xff]
        %v7226 = vld [vmem:[%s65 + $0x8] sm:$0xff]
        %v7227 = vld [vmem:[%s65 + $0x10] sm:$0xff]
        %v7228 = vld [vmem:[%s65 + $0x18] sm:$0xff]
        %v7230 = vsel %vm1205, %v7224, 0
        %7232 = vmatpush.msra.mxu0 0.0
        %7233 = vmatpush.msra.mxu0 0.0
        %7234 = vmatpush.msra.mxu0 0.0
        %7235 = vmatpush.msra.mxu0 0.0
        %7236 = vmatpush.msra.mxu0 0.0
        %7237 = vmatpush.msra.mxu0 0.0
        %7238 = vmatpush.msra.mxu0 0.0
        %7239 = vmatpush.msra.mxu0 0.0
        %7240 = vmatpush.msra.mxu0 0.0
        %7241 = vmatpush.msra.mxu0 0.0
        %7242 = vmatpush.msra.mxu0 0.0
        %7243 = vmatpush.msra.mxu0 0.0
        %7244 = vmatpush.msra.mxu0 0.0
        %7245 = vmatpush.msra.mxu0 0.0
        %7246 = vmatpush.msra.mxu0 %v7227
        %7247 = vmatpush.msra.mxu0 %v7225
        %7248 = vmatmul.f32.gmra.mxu0 %v7230
        %v7249 = vpop.f32.mrf.mxu0
        %v7250 = vadd.f32 0.0, %v7249
        %7251 = vdwg.mxu0
        %7252 = vmatpush.msra.mxu0 0.0
        %7253 = vmatpush.msra.mxu0 0.0
        %7254 = vmatpush.msra.mxu0 0.0
        %7255 = vmatpush.msra.mxu0 0.0
        %7256 = vmatpush.msra.mxu0 0.0
        %7257 = vmatpush.msra.mxu0 0.0
        %7258 = vmatpush.msra.mxu0 0.0
        %7259 = vmatpush.msra.mxu0 0.0
        %7260 = vmatpush.msra.mxu0 0.0
        %7261 = vmatpush.msra.mxu0 0.0
        %7262 = vmatpush.msra.mxu0 0.0
        %7263 = vmatpush.msra.mxu0 0.0
        %7264 = vmatpush.msra.mxu0 0.0
        %7265 = vmatpush.msra.mxu0 0.0
        %7266 = vmatpush.msra.mxu0 %v7228
        %7267 = vmatpush.msra.mxu0 %v7226
        %7268 = vmatmul.f32.gmra.mxu0 %v7230
        %v7269 = vpop.f32.mrf.mxu0
        %v7270 = vadd.f32 0.0, %v7269
        %7271 = vdwg.mxu0
        %v7272 = vxor.u32 %v7250, 2147483648
        %v7273 = vxor.u32 %v7270, 2147483648
        %v7274 = vmul.f32 %v7272, 1.442695
        %v7275 = vpow.pop %v7274
        %v7276 = vmul.f32 %v7273, 1.442695
        %v7277 = vpow.pop %v7276
        %v7278 = vadd.f32 %v7275, 1.0
        %v7279 = vadd.f32 %v7277, 1.0
        %v7280 = vrcp.pop %v7278
        %v7281 = vmul.f32 %v7278, %v7280
        %v7282 = vsub.f32 1.0, %v7281
        %v7283 = vmul.f32 %v7280, %v7282
        %v7284 = vadd.f32 %v7280, %v7283
        %vm7285 = vweird.f32 %v7278
        %vm7286 = vweird.f32 %v7280
        %vm7287 = vmor %vm7285, %vm7286
        %v7288 = vsel %vm7287, %v7280, %v7284
        %v7289 = vand.u32 2147483647, %v7278
        %vm7290 = vcmp.eq.f32.partialorder %v7289, 8.507059e+37
        %v7291 = vand.u32 %v7278, 2147483648
        %v7292 = vor.u32 1.1754944e-38, %v7291
        %v7293 = vsel %vm7290, %v7292, %v7288
        %v7294 = vmul.f32 1.0, %v7293
        %v7295 = vrcp.pop %v7279
        %v7296 = vmul.f32 %v7279, %v7295
        %v7297 = vsub.f32 1.0, %v7296
        %v7298 = vmul.f32 %v7295, %v7297
        %v7299 = vadd.f32 %v7295, %v7298
        %vm7300 = vweird.f32 %v7279
        %vm7301 = vweird.f32 %v7295
        %vm7302 = vmor %vm7300, %vm7301
        %v7303 = vsel %vm7302, %v7295, %v7299
        %v7304 = vand.u32 2147483647, %v7279
        %vm7305 = vcmp.eq.f32.partialorder %v7304, 8.507059e+37
        %v7306 = vand.u32 %v7279, 2147483648
        %v7307 = vor.u32 1.1754944e-38, %v7306
        %v7308 = vsel %vm7305, %v7307, %v7303
        %v7309 = vmul.f32 1.0, %v7308
        %v7310 = vld [vmem:[%s5054] sm:$0x3]
        %v7311 = vld [vmem:[%s5054 + $0x8] sm:$0x3]
        %v7312 = vld [vmem:[%s59] sm:$0xff]
        %v7313 = vld [vmem:[%s59 + $0x8] sm:$0xff]
        %v7314 = vld [vmem:[%s59 + $0x10] sm:$0xff]
        %v7315 = vld [vmem:[%s59 + $0x18] sm:$0xff]
        %v7316 = vld [vmem:[%s59 + $0x20] sm:$0xff]
        %v7317 = vld [vmem:[%s59 + $0x28] sm:$0xff]
        %v7318 = vld [vmem:[%s59 + $0x30] sm:$0xff]
        %v7319 = vld [vmem:[%s59 + $0x38] sm:$0xff]
        %v7320 = vld [vmem:[%s59 + $0x40] sm:$0xff]
        %v7321 = vld [vmem:[%s59 + $0x48] sm:$0xff]
        %v7322 = vld [vmem:[%s59 + $0x50] sm:$0xff]
        %v7323 = vld [vmem:[%s59 + $0x58] sm:$0xff]
        %v7324 = vld [vmem:[%s59 + $0x60] sm:$0xff]
        %v7325 = vld [vmem:[%s59 + $0x68] sm:$0xff]
        %v7326 = vld [vmem:[%s59 + $0x70] sm:$0xff]
        %v7327 = vld [vmem:[%s59 + $0x78] sm:$0xff]
        %v7328 = vld [vmem:[%s59 + $0x80] sm:$0xff]
        %v7329 = vld [vmem:[%s59 + $0x88] sm:$0xff]
        %v7330 = vld [vmem:[%s59 + $0x90] sm:$0xff]
        %v7331 = vld [vmem:[%s59 + $0x98] sm:$0xff]
        %v7332 = vld [vmem:[%s59 + $0xa0] sm:$0xff]
        %v7333 = vld [vmem:[%s59 + $0xa8] sm:$0xff]
        %v7334 = vld [vmem:[%s59 + $0xb0] sm:$0xff]
        %v7335 = vld [vmem:[%s59 + $0xb8] sm:$0xff]
        %v7336 = vld [vmem:[%s59 + $0xc0] sm:$0xff]
        %v7337 = vld [vmem:[%s59 + $0xc8] sm:$0xff]
        %v7338 = vld [vmem:[%s59 + $0xd0] sm:$0xff]
        %v7339 = vld [vmem:[%s59 + $0xd8] sm:$0xff]
        %v7340 = vld [vmem:[%s59 + $0xe0] sm:$0xff]
        %v7341 = vld [vmem:[%s59 + $0xe8] sm:$0xff]
        %v7342 = vld [vmem:[%s59 + $0xf0] sm:$0xff]
        %v7343 = vld [vmem:[%s59 + $0xf8] sm:$0xff]
        %v7344 = vld [vmem:[%s59 + $0x100] sm:$0xff]
        %v7345 = vld [vmem:[%s59 + $0x108] sm:$0xff]
        %v7346 = vld [vmem:[%s59 + $0x110] sm:$0xff]
        %v7347 = vld [vmem:[%s59 + $0x118] sm:$0xff]
        %v7348 = vld [vmem:[%s59 + $0x120] sm:$0xff]
        %v7349 = vld [vmem:[%s59 + $0x128] sm:$0xff]
        %v7350 = vld [vmem:[%s59 + $0x130] sm:$0xff]
        %v7351 = vld [vmem:[%s59 + $0x138] sm:$0xff]
        %v7352 = vld [vmem:[%s59 + $0x140] sm:$0xff]
        %v7353 = vld [vmem:[%s59 + $0x148] sm:$0xff]
        %v7354 = vld [vmem:[%s59 + $0x150] sm:$0xff]
        %v7355 = vld [vmem:[%s59 + $0x158] sm:$0xff]
        %v7356 = vld [vmem:[%s59 + $0x160] sm:$0xff]
        %v7357 = vld [vmem:[%s59 + $0x168] sm:$0xff]
        %v7358 = vld [vmem:[%s59 + $0x170] sm:$0xff]
        %v7359 = vld [vmem:[%s59 + $0x178] sm:$0xff]
        %v7360 = vld [vmem:[%s59 + $0x180] sm:$0xff]
        %v7361 = vld [vmem:[%s59 + $0x188] sm:$0xff]
        %v7362 = vld [vmem:[%s59 + $0x190] sm:$0xff]
        %v7363 = vld [vmem:[%s59 + $0x198] sm:$0xff]
        %v7364 = vld [vmem:[%s59 + $0x1a0] sm:$0xff]
        %v7365 = vld [vmem:[%s59 + $0x1a8] sm:$0xff]
        %v7366 = vld [vmem:[%s59 + $0x1b0] sm:$0xff]
        %v7367 = vld [vmem:[%s59 + $0x1b8] sm:$0xff]
        %v7368 = vld [vmem:[%s59 + $0x1c0] sm:$0xff]
        %v7369 = vld [vmem:[%s59 + $0x1c8] sm:$0xff]
        %v7370 = vld [vmem:[%s59 + $0x1d0] sm:$0xff]
        %v7371 = vld [vmem:[%s59 + $0x1d8] sm:$0xff]
        %v7372 = vld [vmem:[%s59 + $0x1e0] sm:$0xff]
        %v7373 = vld [vmem:[%s59 + $0x1e8] sm:$0xff]
        %v7374 = vld [vmem:[%s59 + $0x1f0] sm:$0xff]
        %v7375 = vld [vmem:[%s59 + $0x1f8] sm:$0xff]
        %v7376 = vld [vmem:[%s61] sm:$0x3]
        %v7378 = vperm.slane %v7376, 0
        %v7379 = vperm.slane %v7376, 1
        %7382 = vmatpush.msra.mxu0 %v7342
        %7383 = vmatpush.msra.mxu0 %v7340
        %7384 = vmatpush.msra.mxu0 %v7338
        %7385 = vmatpush.msra.mxu0 %v7336
        %7386 = vmatpush.msra.mxu0 %v7334
        %7387 = vmatpush.msra.mxu0 %v7332
        %7388 = vmatpush.msra.mxu0 %v7330
        %7389 = vmatpush.msra.mxu0 %v7328
        %7390 = vmatpush.msra.mxu0 %v7326
        %7391 = vmatpush.msra.mxu0 %v7324
        %7392 = vmatpush.msra.mxu0 %v7322
        %7393 = vmatpush.msra.mxu0 %v7320
        %7394 = vmatpush.msra.mxu0 %v7318
        %7395 = vmatpush.msra.mxu0 %v7316
        %7396 = vmatpush.msra.mxu0 %v7314
        %7397 = vmatpush.msra.mxu0 %v7312
        %7398 = vmatmul.f32.gmra.mxu0 %v7310
        %v7399 = vpop.f32.mrf.mxu0
        %v7400 = vadd.f32 %v7378, %v7399
        %7401 = vdwg.mxu0
        %7402 = vmatpush.msra.mxu0 %v7374
        %7403 = vmatpush.msra.mxu0 %v7372
        %7404 = vmatpush.msra.mxu0 %v7370
        %7405 = vmatpush.msra.mxu0 %v7368
        %7406 = vmatpush.msra.mxu0 %v7366
        %7407 = vmatpush.msra.mxu0 %v7364
        %7408 = vmatpush.msra.mxu0 %v7362
        %7409 = vmatpush.msra.mxu0 %v7360
        %7410 = vmatpush.msra.mxu0 %v7358
        %7411 = vmatpush.msra.mxu0 %v7356
        %7412 = vmatpush.msra.mxu0 %v7354
        %7413 = vmatpush.msra.mxu0 %v7352
        %7414 = vmatpush.msra.mxu0 %v7350
        %7415 = vmatpush.msra.mxu0 %v7348
        %7416 = vmatpush.msra.mxu0 %v7346
        %7417 = vmatpush.msra.mxu0 %v7344
        %7418 = vmatmul.f32.gmra.mxu0 %v7311
        %v7419 = vpop.f32.mrf.mxu0
        %v7420 = vadd.f32 %v7400, %v7419
        %7421 = vdwg.mxu0
        %7422 = vmatpush.msra.mxu0 %v7343
        %7423 = vmatpush.msra.mxu0 %v7341
        %7424 = vmatpush.msra.mxu0 %v7339
        %7425 = vmatpush.msra.mxu0 %v7337
        %7426 = vmatpush.msra.mxu0 %v7335
        %7427 = vmatpush.msra.mxu0 %v7333
        %7428 = vmatpush.msra.mxu0 %v7331
        %7429 = vmatpush.msra.mxu0 %v7329
        %7430 = vmatpush.msra.mxu0 %v7327
        %7431 = vmatpush.msra.mxu0 %v7325
        %7432 = vmatpush.msra.mxu0 %v7323
        %7433 = vmatpush.msra.mxu0 %v7321
        %7434 = vmatpush.msra.mxu0 %v7319
        %7435 = vmatpush.msra.mxu0 %v7317
        %7436 = vmatpush.msra.mxu0 %v7315
        %7437 = vmatpush.msra.mxu0 %v7313
        %7438 = vmatmul.f32.gmra.mxu0 %v7310
        %v7439 = vpop.f32.mrf.mxu0
        %v7440 = vadd.f32 %v7379, %v7439
        %7441 = vdwg.mxu0
        %7442 = vmatpush.msra.mxu0 %v7375
        %7443 = vmatpush.msra.mxu0 %v7373
        %7444 = vmatpush.msra.mxu0 %v7371
        %7445 = vmatpush.msra.mxu0 %v7369
        %7446 = vmatpush.msra.mxu0 %v7367
        %7447 = vmatpush.msra.mxu0 %v7365
        %7448 = vmatpush.msra.mxu0 %v7363
        %7449 = vmatpush.msra.mxu0 %v7361
        %7450 = vmatpush.msra.mxu0 %v7359
        %7451 = vmatpush.msra.mxu0 %v7357
        %7452 = vmatpush.msra.mxu0 %v7355
        %7453 = vmatpush.msra.mxu0 %v7353
        %7454 = vmatpush.msra.mxu0 %v7351
        %7455 = vmatpush.msra.mxu0 %v7349
        %7456 = vmatpush.msra.mxu0 %v7347
        %7457 = vmatpush.msra.mxu0 %v7345
        %7458 = vmatmul.f32.gmra.mxu0 %v7311
        %v7459 = vpop.f32.mrf.mxu0
        %v7460 = vadd.f32 %v7440, %v7459
        %7461 = vdwg.mxu0
        %v7462 = vperm.slane %v7294, 0
        %v7463 = vperm.slane %v7309, 0
        %v7464 = vmul.f32 %v7133, %v7462
        %v7465 = vmul.f32 %v7134, %v7463
        %v7466 = vadd.f32 %v7464, %v7420
        %v7467 = vadd.f32 %v7465, %v7460
        %v7468 = vmax.f32 %v7466, 0.0
        %v7469 = vmax.f32 %v7467, 0.0
        %v7472 = vrot.slane %v7469, 7
        %vm7473 = vcmask 1040384
        %v7474 = vsel %vm7473, %v7468, %v7472
        %v7476 = vlaneseq
        %vm7477 = vcmp.ge.s32.totalorder %v7476, 0
        %vm7478 = vcmp.lt.s32.totalorder %v7476, 256
        %vm7479 = vmand %vm7477, %vm7478
        %7480 = vst.msk [vmem:[%s1175] sm:$0x3] %vm7479, %v7474
        %s7481 = sand.u32 %s925, 1
        %s7482 = scalar_lea.sflag [#allocation10], %s7481
        %s7483 = sand.u32 %s925, 1
        %s7484 = smul.addr %s7483, 2
        %s7485 = scalar_lea.vmem [#allocation9], %s7484
        // Predicated region
        $region177: #{noise_analysis_forward.1} parent=175 // pred_check
          %p7486 = pneg %p935
        $region178: #{noise_analysis_forward.1} parent=175 // pred_check_branch
          %7488 = sbr.rel (%p7486) target = $region180
        $region179: #{noise_analysis_forward.1} parent=175 // pred_region
          %7490 = vsyncadd %s7482, 0
          %s7491 = smul.addr %s93, 2
          %s7492 = scalar_lea.hbm %s79, %s7491
          %s7494 = sshll.u32 %s7485, 4
          %s7495 = int_to_ptr.vmem [resolvable:$true] %s7494
          %s7496 = sshll.u32 %s7492, 4
          %s7497 = int_to_ptr.hbm [resolvable:$true] %s7496
          %7499 = dma.vmem_to_hbm [thread:$0]  %s7495, 32, %s7497, %s7482
        $region180: #{noise_analysis_forward.1} parent=175 // pred_fallthru
          _
      $region176: #{noise_analysis_forward.1} parent=5 // pred_fallthru
        _
      %p7500 = scmp.le.s32.totalorder 2, %s88
      // Predicated region
      $region181: #{noise_analysis_forward.1} parent=5 // pred_check
        %p7501 = pneg %p7500
      $region182: #{noise_analysis_forward.1} parent=5 // pred_check_branch
        %7503 = sbr.rel (%p7501) target = $region184
      $region183: #{noise_analysis_forward.1} parent=5 // pred_region
        %s7504 = ssub.s32 %s88, 2
        // Predicated region
        $region185: #{noise_analysis_forward.1} parent=183 // pred_check
          %p7505 = pneg %p941
        $region186: #{noise_analysis_forward.1} parent=183 // pred_check_branch
          %7507 = sbr.rel (%p7505) target = $region188
        $region187: #{noise_analysis_forward.1} parent=183 // pred_region
          %s7508 = sand.u32 %s926, 1
          %s7509 = scalar_lea.sflag [#allocation10], %s7508
          %s7510 = sand.u32 %s926, 1
          %s7511 = smul.addr %s7510, 2
          %s7512 = scalar_lea.vmem [#allocation9], %s7511
          %7514 = dma.done %s7509, 32
        $region188: #{noise_analysis_forward.1} parent=183 // pred_fallthru
          _
      $region184: #{noise_analysis_forward.1} parent=5 // pred_fallthru
        _
    $region6: #{noise_analysis_forward.1} parent=1 // loop_footer
      %s92 = sadd.s32 1, %s88
    $region7: #{noise_analysis_forward.1} parent=1 // loop_footer_branch
      %87 = sbr.rel target = $region3
    $region8: #{noise_analysis_forward.1} parent=1 // loop_exit
      _
    %7515 = vsyncpa [#allocation10], 1
    %s7516 = scalar_lea.sflag [#allocation10], 1
    %7517 = vsyncpa %s7516, 1

</llo_original>
